<compile_context>
chip_gen: v6e
topology: v6e:2x2x1
jax: 0.10.0
libtpu: 0.0.40
codegen_flags: <defaults>
</compile_context>

<pallas_src>
import math

import jax
import jax.numpy as jnp
from jax.experimental import pallas as pl
from jax.experimental.pallas import tpu as pltpu

D_MODEL = 32
NUM_HEADS = 8
DEPTH = D_MODEL // NUM_HEADS
D_FF = 4 * D_MODEL
SEQ = 8
BATCH = 2
EPS = 1e-5  # nn.LayerNorm default


# ----------------------------- in-kernel math ------------------------------ #

def _layernorm(x, gamma, beta):
    # x: (N, D); gamma/beta: (1, D)
    mu = jnp.mean(x, axis=-1, keepdims=True)
    var = jnp.mean((x - mu) ** 2, axis=-1, keepdims=True)
    return (x - mu) * jax.lax.rsqrt(var + EPS) * gamma + beta


def _split_heads(x2d, B, S):
    # (B*S, D) -> (H*B, S, DEPTH); row index = h*B + b.
    heads = [x2d[:, h * DEPTH:(h + 1) * DEPTH].reshape(B, S, DEPTH)
             for h in range(NUM_HEADS)]
    return jnp.concatenate(heads, axis=0)


def _merge_heads(o, B, S):
    # (H*B, S, DEPTH) -> (B*S, D), heads laid out contiguously along lanes.
    cols = [o[h * B:(h + 1) * B].reshape(B * S, DEPTH)
            for h in range(NUM_HEADS)]
    return jnp.concatenate(cols, axis=-1)


def _attention(q2d, k2d, v2d, B, Sq, Skv):
    # 1/sqrt(DEPTH) is already folded into the Q projection.
    q = _split_heads(q2d, B, Sq)     # (H*B, Sq, DEPTH)
    k = _split_heads(k2d, B, Skv)    # (H*B, Skv, DEPTH)
    v = _split_heads(v2d, B, Skv)    # (H*B, Skv, DEPTH)
    logits = jnp.einsum("bqd,bkd->bqk", q, k,
                        preferred_element_type=jnp.float32)
    logits = logits - jnp.max(logits, axis=-1, keepdims=True)
    p = jnp.exp(logits)
    p = p * pl.reciprocal(jnp.sum(p, axis=-1, keepdims=True), approx=True)
    o = jnp.einsum("bqk,bkd->bqd", p, v, preferred_element_type=jnp.float32)
    return _merge_heads(o, B, Sq)    # (B*Sq, D)


def decoder_layer_kernel(
    x_ref, enc_ref,
    # self-attention (mha1): fused QKV + output projection
    wqkv1_ref, bqkv1_ref, wo1_ref, bo1_ref,
    # cross-attention (mha2): Q + fused KV + output projection
    wq2_ref, bq2_ref, wkv2_ref, bkv2_ref, wo2_ref, bo2_ref,
    # FFN
    wf1_ref, bf1_ref, wf2_ref, bf2_ref,
    # LayerNorms (3 gammas / 3 betas stacked)
    ln_g_ref, ln_b_ref,
    out_ref,
):
    B, S, D = x_ref.shape
    x = x_ref[...].reshape(B * S, D)
    enc = enc_ref[...].reshape(B * S, D)
    ln_g = ln_g_ref[...]   # (3, D)
    ln_b = ln_b_ref[...]   # (3, D)

    # ---- self-attention (mha1) ----
    qkv = jnp.dot(x, wqkv1_ref[...],
                  preferred_element_type=jnp.float32) + bqkv1_ref[...]
    ctx1 = _attention(qkv[:, 0 * D:1 * D], qkv[:, 1 * D:2 * D],
                      qkv[:, 2 * D:3 * D], B, S, S)
    attn1 = jnp.dot(ctx1, wo1_ref[...],
                    preferred_element_type=jnp.float32) + bo1_ref[...]
    out1 = _layernorm(attn1 + x, ln_g[0:1], ln_b[0:1])

    # ---- cross-attention (mha2): query from out1, key/value from encoder ----
    q2 = jnp.dot(out1, wq2_ref[...],
                 preferred_element_type=jnp.float32) + bq2_ref[...]
    kv2 = jnp.dot(enc, wkv2_ref[...],
                  preferred_element_type=jnp.float32) + bkv2_ref[...]
    ctx2 = _attention(q2, kv2[:, 0 * D:1 * D], kv2[:, 1 * D:2 * D], B, S, S)
    attn2 = jnp.dot(ctx2, wo2_ref[...],
                    preferred_element_type=jnp.float32) + bo2_ref[...]
    out2 = _layernorm(attn2 + out1, ln_g[1:2], ln_b[1:2])

    # ---- FFN ----
    h = jnp.maximum(
        jnp.dot(out2, wf1_ref[...],
                preferred_element_type=jnp.float32) + bf1_ref[...], 0.0)
    ffn = jnp.dot(h, wf2_ref[...],
                  preferred_element_type=jnp.float32) + bf2_ref[...]
    out3 = _layernorm(ffn + out2, ln_g[2:3], ln_b[2:3])

    out_ref[...] = out3.reshape(B, S, D).astype(out_ref.dtype)


# ------------------------------- wrapper ----------------------------------- #

_PARAM_ORDER = ("wqkv1", "bqkv1", "wo1", "bo1",
                "wq2", "bq2", "wkv2", "bkv2", "wo2", "bo2",
                "wf1", "bf1", "wf2", "bf2",
                "ln_g", "ln_b")


def pack_params(p):
    """Host-side, one-time: fuse QKV, fold attention scale into Q, stack LNs."""
    s = 1.0 / math.sqrt(DEPTH)
    return {
        "wqkv1": jnp.concatenate([p["wq1"] * s, p["wk1"], p["wv1"]], axis=1),
        "bqkv1": jnp.concatenate([p["bq1"] * s, p["bk1"], p["bv1"]], axis=1),
        "wo1": p["wo1"], "bo1": p["bo1"],
        "wq2": p["wq2"] * s, "bq2": p["bq2"] * s,
        "wkv2": jnp.concatenate([p["wk2"], p["wv2"]], axis=1),
        "bkv2": jnp.concatenate([p["bk2"], p["bv2"]], axis=1),
        "wo2": p["wo2"], "bo2": p["bo2"],
        "wf1": p["wf1"], "bf1": p["bf1"],
        "wf2": p["wf2"], "bf2": p["bf2"],
        "ln_g": jnp.concatenate([p["g1"], p["g2"], p["g3"]], axis=0),
        "ln_b": jnp.concatenate([p["be1"], p["be2"], p["be3"]], axis=0),
    }


def decoder_layer(x, enc_output, packed):
    """x, enc_output: (B, S, D) float32; packed: output of pack_params."""
    B, S, D = x.shape
    args = [x, enc_output] + [packed[k] for k in _PARAM_ORDER]
    return pl.pallas_call(
        decoder_layer_kernel,
        out_shape=jax.ShapeDtypeStruct((B, S, D), x.dtype),
        in_specs=[pl.BlockSpec(memory_space=pltpu.MemorySpace.VMEM)
                  for _ in args],
        out_specs=pl.BlockSpec(memory_space=pltpu.MemorySpace.VMEM),
    )(*args)


# ------------------------- pure-JAX reference ------------------------------ #

def _ref_mha(xq, xkv, wq, bq, wk, bk, wv, bv, wo, bo):
    B, Sq, D = xq.shape
    Skv = xkv.shape[1]
    q = (xq @ wq + bq).reshape(B, Sq, NUM_HEADS, DEPTH).transpose(0, 2, 1, 3)
    k = (xkv @ wk + bk).reshape(B, Skv, NUM_HEADS, DEPTH).transpose(0, 2, 1, 3)
    v = (xkv @ wv + bv).reshape(B, Skv, NUM_HEADS, DEPTH).transpose(0, 2, 1, 3)
    logits = jnp.einsum("bhqd,bhkd->bhqk", q, k) / math.sqrt(DEPTH)
    w = jax.nn.softmax(logits, axis=-1)
    o = jnp.einsum("bhqk,bhkd->bhqd", w, v)
    o = o.transpose(0, 2, 1, 3).reshape(B, Sq, D)
    return o @ wo + bo


def _ref_ln(x, g, b):
    mu = jnp.mean(x, axis=-1, keepdims=True)
    var = jnp.mean((x - mu) ** 2, axis=-1, keepdims=True)
    return (x - mu) / jnp.sqrt(var + EPS) * g + b


def decoder_layer_ref(x, enc, p):
    attn1 = _ref_mha(x, x, p["wq1"], p["bq1"], p["wk1"], p["bk1"],
                     p["wv1"], p["bv1"], p["wo1"], p["bo1"])
    out1 = _ref_ln(attn1 + x, p["g1"], p["be1"])
    attn2 = _ref_mha(out1, enc, p["wq2"], p["bq2"], p["wk2"], p["bk2"],
                     p["wv2"], p["bv2"], p["wo2"], p["bo2"])
    out2 = _ref_ln(attn2 + out1, p["g2"], p["be2"])
    ffn = jnp.maximum(out2 @ p["wf1"] + p["bf1"], 0.0) @ p["wf2"] + p["bf2"]
    return _ref_ln(ffn + out2, p["g3"], p["be3"])


# --------------------------------- main ------------------------------------ #

def _init_params(key):
    keys = jax.random.split(key, 20)
    ki = iter(keys)
    scale = 0.05

    def mat(shape):
        return (scale * jax.random.normal(next(ki), shape)).astype(jnp.float32)

    p = {}
    # mha1 / mha2: wq, wk, wv, dense -- weights (D, D) (already transposed
    # w.r.t. nn.Linear storage), biases (1, D).
    for tag in ("1", "2"):
        for name in ("q", "k", "v", "o"):
            p["w" + name + tag] = mat((D_MODEL, D_MODEL))
            p["b" + name + tag] = mat((1, D_MODEL))
    # ffn
    p["wf1"] = mat((D_MODEL, D_FF))
    p["bf1"] = mat((1, D_FF))
    p["wf2"] = mat((D_FF, D_MODEL))
    p["bf2"] = mat((1, D_MODEL))
    # layernorms (PyTorch default init: gamma=1, beta=0)
    for i in ("1", "2", "3"):
        p["g" + i] = jnp.ones((1, D_MODEL), jnp.float32)
        p["be" + i] = jnp.zeros((1, D_MODEL), jnp.float32)
    return p


if __name__ == "__main__":
    key = jax.random.PRNGKey(0)
    k_x, k_enc, k_p = jax.random.split(key, 3)

    x = jax.random.normal(k_x, (BATCH, SEQ, D_MODEL), dtype=jnp.float32)
    enc = jax.random.normal(k_enc, (BATCH, SEQ, D_MODEL), dtype=jnp.float32)
    params = _init_params(k_p)
    packed = pack_params(params)

    out = jax.block_until_ready(decoder_layer(x, enc, packed))
    ref = jax.block_until_ready(decoder_layer_ref(x, enc, params))

    assert out.shape == (BATCH, SEQ, D_MODEL)
    # Slightly looser tolerance because the softmax normalisation uses the
    # EUP approximate reciprocal (pl.reciprocal(..., approx=True)).
    assert jnp.allclose(out, ref, rtol=2e-3, atol=2e-3), (
        float(jnp.max(jnp.abs(out - ref))))

    print("KERNEL_OK")
</pallas_src>

<mosaic_0001>
module attributes {stable_mosaic.version = 11 : i64} {
  func.func @decoder_layer_kernel(%arg0: memref<2x8x32xf32, #tpu.memory_space<vmem>>, %arg1: memref<2x8x32xf32, #tpu.memory_space<vmem>>, %arg2: memref<32x96xf32, #tpu.memory_space<vmem>>, %arg3: memref<1x96xf32, #tpu.memory_space<vmem>>, %arg4: memref<32x32xf32, #tpu.memory_space<vmem>>, %arg5: memref<1x32xf32, #tpu.memory_space<vmem>>, %arg6: memref<32x32xf32, #tpu.memory_space<vmem>>, %arg7: memref<1x32xf32, #tpu.memory_space<vmem>>, %arg8: memref<32x64xf32, #tpu.memory_space<vmem>>, %arg9: memref<1x64xf32, #tpu.memory_space<vmem>>, %arg10: memref<32x32xf32, #tpu.memory_space<vmem>>, %arg11: memref<1x32xf32, #tpu.memory_space<vmem>>, %arg12: memref<32x128xf32, #tpu.memory_space<vmem>>, %arg13: memref<1x128xf32, #tpu.memory_space<vmem>>, %arg14: memref<128x32xf32, #tpu.memory_space<vmem>>, %arg15: memref<1x32xf32, #tpu.memory_space<vmem>>, %arg16: memref<3x32xf32, #tpu.memory_space<vmem>>, %arg17: memref<3x32xf32, #tpu.memory_space<vmem>>, %arg18: memref<2x8x32xf32, #tpu.memory_space<vmem>>) attributes {dimension_semantics = [], scalar_prefetch = 0 : i64, scratch_operands = 0 : i64, tpu.core_type = #tpu.core_type<tc>} {
    %c0 = arith.constant 0 : index
    %c0_0 = arith.constant 0 : index
    %c0_1 = arith.constant 0 : index
    %0 = vector.load %arg0[%c0, %c0_0, %c0_1] : memref<2x8x32xf32, #tpu.memory_space<vmem>>, vector<2x8x32xf32>
    %1 = vector.shape_cast %0 : vector<2x8x32xf32> to vector<16x32xf32>
    %c0_2 = arith.constant 0 : index
    %c0_3 = arith.constant 0 : index
    %c0_4 = arith.constant 0 : index
    %2 = vector.load %arg1[%c0_2, %c0_3, %c0_4] : memref<2x8x32xf32, #tpu.memory_space<vmem>>, vector<2x8x32xf32>
    %3 = vector.shape_cast %2 : vector<2x8x32xf32> to vector<16x32xf32>
    %c0_5 = arith.constant 0 : index
    %c0_6 = arith.constant 0 : index
    %4 = vector.load %arg16[%c0_5, %c0_6] : memref<3x32xf32, #tpu.memory_space<vmem>>, vector<3x32xf32>
    %c0_7 = arith.constant 0 : index
    %c0_8 = arith.constant 0 : index
    %5 = vector.load %arg17[%c0_7, %c0_8] : memref<3x32xf32, #tpu.memory_space<vmem>>, vector<3x32xf32>
    %c0_9 = arith.constant 0 : index
    %c0_10 = arith.constant 0 : index
    %6 = vector.load %arg2[%c0_9, %c0_10] : memref<32x96xf32, #tpu.memory_space<vmem>>, vector<32x96xf32>
    %cst = arith.constant dense<0.000000e+00> : vector<16x96xf32>
    %7 = tpu.matmul %1, %6, %cst {dimension_numbers = #tpu.dot_dimension_numbers<[1], [0], [0], [1], [0, 0, 1, 1], [], []>} : vector<16x32xf32>, vector<32x96xf32>, vector<16x96xf32> -> vector<16x96xf32>
    %c0_11 = arith.constant 0 : index
    %c0_12 = arith.constant 0 : index
    %8 = vector.load %arg3[%c0_11, %c0_12] : memref<1x96xf32, #tpu.memory_space<vmem>>, vector<1x96xf32>
    %9 = vector.broadcast %8 : vector<1x96xf32> to vector<16x96xf32>
    %10 = arith.addf %7, %9 : vector<16x96xf32>
    %11 = vector.extract_strided_slice %10 {offsets = [0, 0], sizes = [16, 32], strides = [1, 1]} : vector<16x96xf32> to vector<16x32xf32>
    %12 = vector.extract_strided_slice %10 {offsets = [0, 32], sizes = [16, 32], strides = [1, 1]} : vector<16x96xf32> to vector<16x32xf32>
    %13 = vector.extract_strided_slice %10 {offsets = [0, 64], sizes = [16, 32], strides = [1, 1]} : vector<16x96xf32> to vector<16x32xf32>
    %14 = vector.extract_strided_slice %11 {offsets = [0, 0], sizes = [16, 4], strides = [1, 1]} : vector<16x32xf32> to vector<16x4xf32>
    %15 = vector.shape_cast %14 : vector<16x4xf32> to vector<2x8x4xf32>
    %16 = vector.extract_strided_slice %11 {offsets = [0, 4], sizes = [16, 4], strides = [1, 1]} : vector<16x32xf32> to vector<16x4xf32>
    %17 = vector.shape_cast %16 : vector<16x4xf32> to vector<2x8x4xf32>
    %18 = vector.extract_strided_slice %11 {offsets = [0, 8], sizes = [16, 4], strides = [1, 1]} : vector<16x32xf32> to vector<16x4xf32>
    %19 = vector.shape_cast %18 : vector<16x4xf32> to vector<2x8x4xf32>
    %20 = vector.extract_strided_slice %11 {offsets = [0, 12], sizes = [16, 4], strides = [1, 1]} : vector<16x32xf32> to vector<16x4xf32>
    %21 = vector.shape_cast %20 : vector<16x4xf32> to vector<2x8x4xf32>
    %22 = vector.extract_strided_slice %11 {offsets = [0, 16], sizes = [16, 4], strides = [1, 1]} : vector<16x32xf32> to vector<16x4xf32>
    %23 = vector.shape_cast %22 : vector<16x4xf32> to vector<2x8x4xf32>
    %24 = vector.extract_strided_slice %11 {offsets = [0, 20], sizes = [16, 4], strides = [1, 1]} : vector<16x32xf32> to vector<16x4xf32>
    %25 = vector.shape_cast %24 : vector<16x4xf32> to vector<2x8x4xf32>
    %26 = vector.extract_strided_slice %11 {offsets = [0, 24], sizes = [16, 4], strides = [1, 1]} : vector<16x32xf32> to vector<16x4xf32>
    %27 = vector.shape_cast %26 : vector<16x4xf32> to vector<2x8x4xf32>
    %28 = vector.extract_strided_slice %11 {offsets = [0, 28], sizes = [16, 4], strides = [1, 1]} : vector<16x32xf32> to vector<16x4xf32>
    %29 = vector.shape_cast %28 : vector<16x4xf32> to vector<2x8x4xf32>
    %30 = tpu.concatenate %15, %17, %19, %21, %23, %25, %27, %29 in 0 : vector<2x8x4xf32>, vector<2x8x4xf32>, vector<2x8x4xf32>, vector<2x8x4xf32>, vector<2x8x4xf32>, vector<2x8x4xf32>, vector<2x8x4xf32>, vector<2x8x4xf32> -> vector<16x8x4xf32>
    %31 = vector.extract_strided_slice %12 {offsets = [0, 0], sizes = [16, 4], strides = [1, 1]} : vector<16x32xf32> to vector<16x4xf32>
    %32 = vector.shape_cast %31 : vector<16x4xf32> to vector<2x8x4xf32>
    %33 = vector.extract_strided_slice %12 {offsets = [0, 4], sizes = [16, 4], strides = [1, 1]} : vector<16x32xf32> to vector<16x4xf32>
    %34 = vector.shape_cast %33 : vector<16x4xf32> to vector<2x8x4xf32>
    %35 = vector.extract_strided_slice %12 {offsets = [0, 8], sizes = [16, 4], strides = [1, 1]} : vector<16x32xf32> to vector<16x4xf32>
    %36 = vector.shape_cast %35 : vector<16x4xf32> to vector<2x8x4xf32>
    %37 = vector.extract_strided_slice %12 {offsets = [0, 12], sizes = [16, 4], strides = [1, 1]} : vector<16x32xf32> to vector<16x4xf32>
    %38 = vector.shape_cast %37 : vector<16x4xf32> to vector<2x8x4xf32>
    %39 = vector.extract_strided_slice %12 {offsets = [0, 16], sizes = [16, 4], strides = [1, 1]} : vector<16x32xf32> to vector<16x4xf32>
    %40 = vector.shape_cast %39 : vector<16x4xf32> to vector<2x8x4xf32>
    %41 = vector.extract_strided_slice %12 {offsets = [0, 20], sizes = [16, 4], strides = [1, 1]} : vector<16x32xf32> to vector<16x4xf32>
    %42 = vector.shape_cast %41 : vector<16x4xf32> to vector<2x8x4xf32>
    %43 = vector.extract_strided_slice %12 {offsets = [0, 24], sizes = [16, 4], strides = [1, 1]} : vector<16x32xf32> to vector<16x4xf32>
    %44 = vector.shape_cast %43 : vector<16x4xf32> to vector<2x8x4xf32>
    %45 = vector.extract_strided_slice %12 {offsets = [0, 28], sizes = [16, 4], strides = [1, 1]} : vector<16x32xf32> to vector<16x4xf32>
    %46 = vector.shape_cast %45 : vector<16x4xf32> to vector<2x8x4xf32>
    %47 = tpu.concatenate %32, %34, %36, %38, %40, %42, %44, %46 in 0 : vector<2x8x4xf32>, vector<2x8x4xf32>, vector<2x8x4xf32>, vector<2x8x4xf32>, vector<2x8x4xf32>, vector<2x8x4xf32>, vector<2x8x4xf32>, vector<2x8x4xf32> -> vector<16x8x4xf32>
    %48 = vector.extract_strided_slice %13 {offsets = [0, 0], sizes = [16, 4], strides = [1, 1]} : vector<16x32xf32> to vector<16x4xf32>
    %49 = vector.shape_cast %48 : vector<16x4xf32> to vector<2x8x4xf32>
    %50 = vector.extract_strided_slice %13 {offsets = [0, 4], sizes = [16, 4], strides = [1, 1]} : vector<16x32xf32> to vector<16x4xf32>
    %51 = vector.shape_cast %50 : vector<16x4xf32> to vector<2x8x4xf32>
    %52 = vector.extract_strided_slice %13 {offsets = [0, 8], sizes = [16, 4], strides = [1, 1]} : vector<16x32xf32> to vector<16x4xf32>
    %53 = vector.shape_cast %52 : vector<16x4xf32> to vector<2x8x4xf32>
    %54 = vector.extract_strided_slice %13 {offsets = [0, 12], sizes = [16, 4], strides = [1, 1]} : vector<16x32xf32> to vector<16x4xf32>
    %55 = vector.shape_cast %54 : vector<16x4xf32> to vector<2x8x4xf32>
    %56 = vector.extract_strided_slice %13 {offsets = [0, 16], sizes = [16, 4], strides = [1, 1]} : vector<16x32xf32> to vector<16x4xf32>
    %57 = vector.shape_cast %56 : vector<16x4xf32> to vector<2x8x4xf32>
    %58 = vector.extract_strided_slice %13 {offsets = [0, 20], sizes = [16, 4], strides = [1, 1]} : vector<16x32xf32> to vector<16x4xf32>
    %59 = vector.shape_cast %58 : vector<16x4xf32> to vector<2x8x4xf32>
    %60 = vector.extract_strided_slice %13 {offsets = [0, 24], sizes = [16, 4], strides = [1, 1]} : vector<16x32xf32> to vector<16x4xf32>
    %61 = vector.shape_cast %60 : vector<16x4xf32> to vector<2x8x4xf32>
    %62 = vector.extract_strided_slice %13 {offsets = [0, 28], sizes = [16, 4], strides = [1, 1]} : vector<16x32xf32> to vector<16x4xf32>
    %63 = vector.shape_cast %62 : vector<16x4xf32> to vector<2x8x4xf32>
    %64 = tpu.concatenate %49, %51, %53, %55, %57, %59, %61, %63 in 0 : vector<2x8x4xf32>, vector<2x8x4xf32>, vector<2x8x4xf32>, vector<2x8x4xf32>, vector<2x8x4xf32>, vector<2x8x4xf32>, vector<2x8x4xf32>, vector<2x8x4xf32> -> vector<16x8x4xf32>
    "tpu.trace_start"() <{level = 10 : i32, message = "bqd,bkd->bqk"}> : () -> ()
    %cst_13 = arith.constant dense<0.000000e+00> : vector<16x8x8xf32>
    %65 = tpu.matmul %30, %47, %cst_13 {dimension_numbers = #tpu.dot_dimension_numbers<[2], [2], [1], [1], [0, 0, 0, 1, 1, 1], [0], [0]>} : vector<16x8x4xf32>, vector<16x8x4xf32>, vector<16x8x8xf32> -> vector<16x8x8xf32>
    "tpu.trace_stop"() : () -> ()
    %cst_14 = arith.constant dense<0xFF800000> : vector<16x8xf32>
    %66 = vector.multi_reduction <maximumf>, %65, %cst_14 [2] : vector<16x8x8xf32> to vector<16x8xf32>
    %67 = vector.shape_cast %66 : vector<16x8xf32> to vector<16x8x1xf32>
    %68 = vector.broadcast %67 : vector<16x8x1xf32> to vector<16x8x8xf32>
    %69 = arith.subf %65, %68 : vector<16x8x8xf32>
    %70 = math.exp %69 : vector<16x8x8xf32>
    %cst_15 = arith.constant dense<0.000000e+00> : vector<16x8xf32>
    %71 = vector.multi_reduction <add>, %70, %cst_15 [2] : vector<16x8x8xf32> to vector<16x8xf32>
    %72 = vector.shape_cast %71 : vector<16x8xf32> to vector<16x8x1xf32>
    %73 = tpu.reciprocal %72 {approx = true} : vector<16x8x1xf32> -> vector<16x8x1xf32>
    %74 = vector.broadcast %73 : vector<16x8x1xf32> to vector<16x8x8xf32>
    %75 = arith.mulf %70, %74 : vector<16x8x8xf32>
    "tpu.trace_start"() <{level = 10 : i32, message = "bqk,bkd->bqd"}> : () -> ()
    %cst_16 = arith.constant dense<0.000000e+00> : vector<16x8x4xf32>
    %76 = tpu.matmul %75, %64, %cst_16 {dimension_numbers = #tpu.dot_dimension_numbers<[2], [1], [1], [2], [0, 0, 0, 1, 1, 2], [0], [0]>} : vector<16x8x8xf32>, vector<16x8x4xf32>, vector<16x8x4xf32> -> vector<16x8x4xf32>
    "tpu.trace_stop"() : () -> ()
    %77 = vector.extract_strided_slice %76 {offsets = [0, 0, 0], sizes = [2, 8, 4], strides = [1, 1, 1]} : vector<16x8x4xf32> to vector<2x8x4xf32>
    %78 = vector.shape_cast %77 : vector<2x8x4xf32> to vector<16x4xf32>
    %79 = vector.extract_strided_slice %76 {offsets = [2, 0, 0], sizes = [2, 8, 4], strides = [1, 1, 1]} : vector<16x8x4xf32> to vector<2x8x4xf32>
    %80 = vector.shape_cast %79 : vector<2x8x4xf32> to vector<16x4xf32>
    %81 = vector.extract_strided_slice %76 {offsets = [4, 0, 0], sizes = [2, 8, 4], strides = [1, 1, 1]} : vector<16x8x4xf32> to vector<2x8x4xf32>
    %82 = vector.shape_cast %81 : vector<2x8x4xf32> to vector<16x4xf32>
    %83 = vector.extract_strided_slice %76 {offsets = [6, 0, 0], sizes = [2, 8, 4], strides = [1, 1, 1]} : vector<16x8x4xf32> to vector<2x8x4xf32>
    %84 = vector.shape_cast %83 : vector<2x8x4xf32> to vector<16x4xf32>
    %85 = vector.extract_strided_slice %76 {offsets = [8, 0, 0], sizes = [2, 8, 4], strides = [1, 1, 1]} : vector<16x8x4xf32> to vector<2x8x4xf32>
    %86 = vector.shape_cast %85 : vector<2x8x4xf32> to vector<16x4xf32>
    %87 = vector.extract_strided_slice %76 {offsets = [10, 0, 0], sizes = [2, 8, 4], strides = [1, 1, 1]} : vector<16x8x4xf32> to vector<2x8x4xf32>
    %88 = vector.shape_cast %87 : vector<2x8x4xf32> to vector<16x4xf32>
    %89 = vector.extract_strided_slice %76 {offsets = [12, 0, 0], sizes = [2, 8, 4], strides = [1, 1, 1]} : vector<16x8x4xf32> to vector<2x8x4xf32>
    %90 = vector.shape_cast %89 : vector<2x8x4xf32> to vector<16x4xf32>
    %91 = vector.extract_strided_slice %76 {offsets = [14, 0, 0], sizes = [2, 8, 4], strides = [1, 1, 1]} : vector<16x8x4xf32> to vector<2x8x4xf32>
    %92 = vector.shape_cast %91 : vector<2x8x4xf32> to vector<16x4xf32>
    %93 = tpu.concatenate %78, %80, %82, %84, %86, %88, %90, %92 in 1 : vector<16x4xf32>, vector<16x4xf32>, vector<16x4xf32>, vector<16x4xf32>, vector<16x4xf32>, vector<16x4xf32>, vector<16x4xf32>, vector<16x4xf32> -> vector<16x32xf32>
    %c0_17 = arith.constant 0 : index
    %c0_18 = arith.constant 0 : index
    %94 = vector.load %arg4[%c0_17, %c0_18] : memref<32x32xf32, #tpu.memory_space<vmem>>, vector<32x32xf32>
    %cst_19 = arith.constant dense<0.000000e+00> : vector<16x32xf32>
    %95 = tpu.matmul %93, %94, %cst_19 {dimension_numbers = #tpu.dot_dimension_numbers<[1], [0], [0], [1], [0, 0, 1, 1], [], []>} : vector<16x32xf32>, vector<32x32xf32>, vector<16x32xf32> -> vector<16x32xf32>
    %c0_20 = arith.constant 0 : index
    %c0_21 = arith.constant 0 : index
    %96 = vector.load %arg5[%c0_20, %c0_21] : memref<1x32xf32, #tpu.memory_space<vmem>>, vector<1x32xf32>
    %97 = vector.broadcast %96 : vector<1x32xf32> to vector<16x32xf32>
    %98 = arith.addf %95, %97 : vector<16x32xf32>
    %99 = arith.addf %98, %1 : vector<16x32xf32>
    %100 = vector.extract_strided_slice %4 {offsets = [0, 0], sizes = [1, 32], strides = [1, 1]} : vector<3x32xf32> to vector<1x32xf32>
    %101 = vector.extract_strided_slice %5 {offsets = [0, 0], sizes = [1, 32], strides = [1, 1]} : vector<3x32xf32> to vector<1x32xf32>
    %cst_22 = arith.constant dense<0.000000e+00> : vector<16xf32>
    %102 = vector.multi_reduction <add>, %99, %cst_22 [1] : vector<16x32xf32> to vector<16xf32>
    %103 = vector.shape_cast %102 : vector<16xf32> to vector<16x1xf32>
    %cst_23 = arith.constant 3.200000e+01 : f32
    %104 = vector.broadcast %cst_23 : f32 to vector<16x1xf32>
    %105 = arith.divf %103, %104 : vector<16x1xf32>
    %106 = vector.broadcast %105 : vector<16x1xf32> to vector<16x32xf32>
    %107 = arith.subf %99, %106 : vector<16x32xf32>
    %108 = arith.mulf %107, %107 : vector<16x32xf32>
    %cst_24 = arith.constant dense<0.000000e+00> : vector<16xf32>
    %109 = vector.multi_reduction <add>, %108, %cst_24 [1] : vector<16x32xf32> to vector<16xf32>
    %110 = vector.shape_cast %109 : vector<16xf32> to vector<16x1xf32>
    %cst_25 = arith.constant 3.200000e+01 : f32
    %111 = vector.broadcast %cst_25 : f32 to vector<16x1xf32>
    %112 = arith.divf %110, %111 : vector<16x1xf32>
    %113 = vector.broadcast %105 : vector<16x1xf32> to vector<16x32xf32>
    %114 = arith.subf %99, %113 : vector<16x32xf32>
    %cst_26 = arith.constant 9.99999974E-6 : f32
    %115 = vector.broadcast %cst_26 : f32 to vector<16x1xf32>
    %116 = arith.addf %112, %115 : vector<16x1xf32>
    %117 = math.rsqrt %116 : vector<16x1xf32>
    %118 = vector.broadcast %117 : vector<16x1xf32> to vector<16x32xf32>
    %119 = arith.mulf %114, %118 : vector<16x32xf32>
    %120 = vector.broadcast %100 : vector<1x32xf32> to vector<16x32xf32>
    %121 = arith.mulf %119, %120 : vector<16x32xf32>
    %122 = vector.broadcast %101 : vector<1x32xf32> to vector<16x32xf32>
    %123 = arith.addf %121, %122 : vector<16x32xf32>
    %c0_27 = arith.constant 0 : index
    %c0_28 = arith.constant 0 : index
    %124 = vector.load %arg6[%c0_27, %c0_28] : memref<32x32xf32, #tpu.memory_space<vmem>>, vector<32x32xf32>
    %cst_29 = arith.constant dense<0.000000e+00> : vector<16x32xf32>
    %125 = tpu.matmul %123, %124, %cst_29 {dimension_numbers = #tpu.dot_dimension_numbers<[1], [0], [0], [1], [0, 0, 1, 1], [], []>} : vector<16x32xf32>, vector<32x32xf32>, vector<16x32xf32> -> vector<16x32xf32>
    %c0_30 = arith.constant 0 : index
    %c0_31 = arith.constant 0 : index
    %126 = vector.load %arg7[%c0_30, %c0_31] : memref<1x32xf32, #tpu.memory_space<vmem>>, vector<1x32xf32>
    %127 = vector.broadcast %126 : vector<1x32xf32> to vector<16x32xf32>
    %128 = arith.addf %125, %127 : vector<16x32xf32>
    %c0_32 = arith.constant 0 : index
    %c0_33 = arith.constant 0 : index
    %129 = vector.load %arg8[%c0_32, %c0_33] : memref<32x64xf32, #tpu.memory_space<vmem>>, vector<32x64xf32>
    %cst_34 = arith.constant dense<0.000000e+00> : vector<16x64xf32>
    %130 = tpu.matmul %3, %129, %cst_34 {dimension_numbers = #tpu.dot_dimension_numbers<[1], [0], [0], [1], [0, 0, 1, 1], [], []>} : vector<16x32xf32>, vector<32x64xf32>, vector<16x64xf32> -> vector<16x64xf32>
    %c0_35 = arith.constant 0 : index
    %c0_36 = arith.constant 0 : index
    %131 = vector.load %arg9[%c0_35, %c0_36] : memref<1x64xf32, #tpu.memory_space<vmem>>, vector<1x64xf32>
    %132 = vector.broadcast %131 : vector<1x64xf32> to vector<16x64xf32>
    %133 = arith.addf %130, %132 : vector<16x64xf32>
    %134 = vector.extract_strided_slice %133 {offsets = [0, 0], sizes = [16, 32], strides = [1, 1]} : vector<16x64xf32> to vector<16x32xf32>
    %135 = vector.extract_strided_slice %133 {offsets = [0, 32], sizes = [16, 32], strides = [1, 1]} : vector<16x64xf32> to vector<16x32xf32>
    %136 = vector.extract_strided_slice %128 {offsets = [0, 0], sizes = [16, 4], strides = [1, 1]} : vector<16x32xf32> to vector<16x4xf32>
    %137 = vector.shape_cast %136 : vector<16x4xf32> to vector<2x8x4xf32>
    %138 = vector.extract_strided_slice %128 {offsets = [0, 4], sizes = [16, 4], strides = [1, 1]} : vector<16x32xf32> to vector<16x4xf32>
    %139 = vector.shape_cast %138 : vector<16x4xf32> to vector<2x8x4xf32>
    %140 = vector.extract_strided_slice %128 {offsets = [0, 8], sizes = [16, 4], strides = [1, 1]} : vector<16x32xf32> to vector<16x4xf32>
    %141 = vector.shape_cast %140 : vector<16x4xf32> to vector<2x8x4xf32>
    %142 = vector.extract_strided_slice %128 {offsets = [0, 12], sizes = [16, 4], strides = [1, 1]} : vector<16x32xf32> to vector<16x4xf32>
    %143 = vector.shape_cast %142 : vector<16x4xf32> to vector<2x8x4xf32>
    %144 = vector.extract_strided_slice %128 {offsets = [0, 16], sizes = [16, 4], strides = [1, 1]} : vector<16x32xf32> to vector<16x4xf32>
    %145 = vector.shape_cast %144 : vector<16x4xf32> to vector<2x8x4xf32>
    %146 = vector.extract_strided_slice %128 {offsets = [0, 20], sizes = [16, 4], strides = [1, 1]} : vector<16x32xf32> to vector<16x4xf32>
    %147 = vector.shape_cast %146 : vector<16x4xf32> to vector<2x8x4xf32>
    %148 = vector.extract_strided_slice %128 {offsets = [0, 24], sizes = [16, 4], strides = [1, 1]} : vector<16x32xf32> to vector<16x4xf32>
    %149 = vector.shape_cast %148 : vector<16x4xf32> to vector<2x8x4xf32>
    %150 = vector.extract_strided_slice %128 {offsets = [0, 28], sizes = [16, 4], strides = [1, 1]} : vector<16x32xf32> to vector<16x4xf32>
    %151 = vector.shape_cast %150 : vector<16x4xf32> to vector<2x8x4xf32>
    %152 = tpu.concatenate %137, %139, %141, %143, %145, %147, %149, %151 in 0 : vector<2x8x4xf32>, vector<2x8x4xf32>, vector<2x8x4xf32>, vector<2x8x4xf32>, vector<2x8x4xf32>, vector<2x8x4xf32>, vector<2x8x4xf32>, vector<2x8x4xf32> -> vector<16x8x4xf32>
    %153 = vector.extract_strided_slice %134 {offsets = [0, 0], sizes = [16, 4], strides = [1, 1]} : vector<16x32xf32> to vector<16x4xf32>
    %154 = vector.shape_cast %153 : vector<16x4xf32> to vector<2x8x4xf32>
    %155 = vector.extract_strided_slice %134 {offsets = [0, 4], sizes = [16, 4], strides = [1, 1]} : vector<16x32xf32> to vector<16x4xf32>
    %156 = vector.shape_cast %155 : vector<16x4xf32> to vector<2x8x4xf32>
    %157 = vector.extract_strided_slice %134 {offsets = [0, 8], sizes = [16, 4], strides = [1, 1]} : vector<16x32xf32> to vector<16x4xf32>
    %158 = vector.shape_cast %157 : vector<16x4xf32> to vector<2x8x4xf32>
    %159 = vector.extract_strided_slice %134 {offsets = [0, 12], sizes = [16, 4], strides = [1, 1]} : vector<16x32xf32> to vector<16x4xf32>
    %160 = vector.shape_cast %159 : vector<16x4xf32> to vector<2x8x4xf32>
    %161 = vector.extract_strided_slice %134 {offsets = [0, 16], sizes = [16, 4], strides = [1, 1]} : vector<16x32xf32> to vector<16x4xf32>
    %162 = vector.shape_cast %161 : vector<16x4xf32> to vector<2x8x4xf32>
    %163 = vector.extract_strided_slice %134 {offsets = [0, 20], sizes = [16, 4], strides = [1, 1]} : vector<16x32xf32> to vector<16x4xf32>
    %164 = vector.shape_cast %163 : vector<16x4xf32> to vector<2x8x4xf32>
    %165 = vector.extract_strided_slice %134 {offsets = [0, 24], sizes = [16, 4], strides = [1, 1]} : vector<16x32xf32> to vector<16x4xf32>
    %166 = vector.shape_cast %165 : vector<16x4xf32> to vector<2x8x4xf32>
    %167 = vector.extract_strided_slice %134 {offsets = [0, 28], sizes = [16, 4], strides = [1, 1]} : vector<16x32xf32> to vector<16x4xf32>
    %168 = vector.shape_cast %167 : vector<16x4xf32> to vector<2x8x4xf32>
    %169 = tpu.concatenate %154, %156, %158, %160, %162, %164, %166, %168 in 0 : vector<2x8x4xf32>, vector<2x8x4xf32>, vector<2x8x4xf32>, vector<2x8x4xf32>, vector<2x8x4xf32>, vector<2x8x4xf32>, vector<2x8x4xf32>, vector<2x8x4xf32> -> vector<16x8x4xf32>
    %170 = vector.extract_strided_slice %135 {offsets = [0, 0], sizes = [16, 4], strides = [1, 1]} : vector<16x32xf32> to vector<16x4xf32>
    %171 = vector.shape_cast %170 : vector<16x4xf32> to vector<2x8x4xf32>
    %172 = vector.extract_strided_slice %135 {offsets = [0, 4], sizes = [16, 4], strides = [1, 1]} : vector<16x32xf32> to vector<16x4xf32>
    %173 = vector.shape_cast %172 : vector<16x4xf32> to vector<2x8x4xf32>
    %174 = vector.extract_strided_slice %135 {offsets = [0, 8], sizes = [16, 4], strides = [1, 1]} : vector<16x32xf32> to vector<16x4xf32>
    %175 = vector.shape_cast %174 : vector<16x4xf32> to vector<2x8x4xf32>
    %176 = vector.extract_strided_slice %135 {offsets = [0, 12], sizes = [16, 4], strides = [1, 1]} : vector<16x32xf32> to vector<16x4xf32>
    %177 = vector.shape_cast %176 : vector<16x4xf32> to vector<2x8x4xf32>
    %178 = vector.extract_strided_slice %135 {offsets = [0, 16], sizes = [16, 4], strides = [1, 1]} : vector<16x32xf32> to vector<16x4xf32>
    %179 = vector.shape_cast %178 : vector<16x4xf32> to vector<2x8x4xf32>
    %180 = vector.extract_strided_slice %135 {offsets = [0, 20], sizes = [16, 4], strides = [1, 1]} : vector<16x32xf32> to vector<16x4xf32>
    %181 = vector.shape_cast %180 : vector<16x4xf32> to vector<2x8x4xf32>
    %182 = vector.extract_strided_slice %135 {offsets = [0, 24], sizes = [16, 4], strides = [1, 1]} : vector<16x32xf32> to vector<16x4xf32>
    %183 = vector.shape_cast %182 : vector<16x4xf32> to vector<2x8x4xf32>
    %184 = vector.extract_strided_slice %135 {offsets = [0, 28], sizes = [16, 4], strides = [1, 1]} : vector<16x32xf32> to vector<16x4xf32>
    %185 = vector.shape_cast %184 : vector<16x4xf32> to vector<2x8x4xf32>
    %186 = tpu.concatenate %171, %173, %175, %177, %179, %181, %183, %185 in 0 : vector<2x8x4xf32>, vector<2x8x4xf32>, vector<2x8x4xf32>, vector<2x8x4xf32>, vector<2x8x4xf32>, vector<2x8x4xf32>, vector<2x8x4xf32>, vector<2x8x4xf32> -> vector<16x8x4xf32>
    "tpu.trace_start"() <{level = 10 : i32, message = "bqd,bkd->bqk"}> : () -> ()
    %cst_37 = arith.constant dense<0.000000e+00> : vector<16x8x8xf32>
    %187 = tpu.matmul %152, %169, %cst_37 {dimension_numbers = #tpu.dot_dimension_numbers<[2], [2], [1], [1], [0, 0, 0, 1, 1, 1], [0], [0]>} : vector<16x8x4xf32>, vector<16x8x4xf32>, vector<16x8x8xf32> -> vector<16x8x8xf32>
    "tpu.trace_stop"() : () -> ()
    %cst_38 = arith.constant dense<0xFF800000> : vector<16x8xf32>
    %188 = vector.multi_reduction <maximumf>, %187, %cst_38 [2] : vector<16x8x8xf32> to vector<16x8xf32>
    %189 = vector.shape_cast %188 : vector<16x8xf32> to vector<16x8x1xf32>
    %190 = vector.broadcast %189 : vector<16x8x1xf32> to vector<16x8x8xf32>
    %191 = arith.subf %187, %190 : vector<16x8x8xf32>
    %192 = math.exp %191 : vector<16x8x8xf32>
    %cst_39 = arith.constant dense<0.000000e+00> : vector<16x8xf32>
    %193 = vector.multi_reduction <add>, %192, %cst_39 [2] : vector<16x8x8xf32> to vector<16x8xf32>
    %194 = vector.shape_cast %193 : vector<16x8xf32> to vector<16x8x1xf32>
    %195 = tpu.reciprocal %194 {approx = true} : vector<16x8x1xf32> -> vector<16x8x1xf32>
    %196 = vector.broadcast %195 : vector<16x8x1xf32> to vector<16x8x8xf32>
    %197 = arith.mulf %192, %196 : vector<16x8x8xf32>
    "tpu.trace_start"() <{level = 10 : i32, message = "bqk,bkd->bqd"}> : () -> ()
    %cst_40 = arith.constant dense<0.000000e+00> : vector<16x8x4xf32>
    %198 = tpu.matmul %197, %186, %cst_40 {dimension_numbers = #tpu.dot_dimension_numbers<[2], [1], [1], [2], [0, 0, 0, 1, 1, 2], [0], [0]>} : vector<16x8x8xf32>, vector<16x8x4xf32>, vector<16x8x4xf32> -> vector<16x8x4xf32>
    "tpu.trace_stop"() : () -> ()
    %199 = vector.extract_strided_slice %198 {offsets = [0, 0, 0], sizes = [2, 8, 4], strides = [1, 1, 1]} : vector<16x8x4xf32> to vector<2x8x4xf32>
    %200 = vector.shape_cast %199 : vector<2x8x4xf32> to vector<16x4xf32>
    %201 = vector.extract_strided_slice %198 {offsets = [2, 0, 0], sizes = [2, 8, 4], strides = [1, 1, 1]} : vector<16x8x4xf32> to vector<2x8x4xf32>
    %202 = vector.shape_cast %201 : vector<2x8x4xf32> to vector<16x4xf32>
    %203 = vector.extract_strided_slice %198 {offsets = [4, 0, 0], sizes = [2, 8, 4], strides = [1, 1, 1]} : vector<16x8x4xf32> to vector<2x8x4xf32>
    %204 = vector.shape_cast %203 : vector<2x8x4xf32> to vector<16x4xf32>
    %205 = vector.extract_strided_slice %198 {offsets = [6, 0, 0], sizes = [2, 8, 4], strides = [1, 1, 1]} : vector<16x8x4xf32> to vector<2x8x4xf32>
    %206 = vector.shape_cast %205 : vector<2x8x4xf32> to vector<16x4xf32>
    %207 = vector.extract_strided_slice %198 {offsets = [8, 0, 0], sizes = [2, 8, 4], strides = [1, 1, 1]} : vector<16x8x4xf32> to vector<2x8x4xf32>
    %208 = vector.shape_cast %207 : vector<2x8x4xf32> to vector<16x4xf32>
    %209 = vector.extract_strided_slice %198 {offsets = [10, 0, 0], sizes = [2, 8, 4], strides = [1, 1, 1]} : vector<16x8x4xf32> to vector<2x8x4xf32>
    %210 = vector.shape_cast %209 : vector<2x8x4xf32> to vector<16x4xf32>
    %211 = vector.extract_strided_slice %198 {offsets = [12, 0, 0], sizes = [2, 8, 4], strides = [1, 1, 1]} : vector<16x8x4xf32> to vector<2x8x4xf32>
    %212 = vector.shape_cast %211 : vector<2x8x4xf32> to vector<16x4xf32>
    %213 = vector.extract_strided_slice %198 {offsets = [14, 0, 0], sizes = [2, 8, 4], strides = [1, 1, 1]} : vector<16x8x4xf32> to vector<2x8x4xf32>
    %214 = vector.shape_cast %213 : vector<2x8x4xf32> to vector<16x4xf32>
    %215 = tpu.concatenate %200, %202, %204, %206, %208, %210, %212, %214 in 1 : vector<16x4xf32>, vector<16x4xf32>, vector<16x4xf32>, vector<16x4xf32>, vector<16x4xf32>, vector<16x4xf32>, vector<16x4xf32>, vector<16x4xf32> -> vector<16x32xf32>
    %c0_41 = arith.constant 0 : index
    %c0_42 = arith.constant 0 : index
    %216 = vector.load %arg10[%c0_41, %c0_42] : memref<32x32xf32, #tpu.memory_space<vmem>>, vector<32x32xf32>
    %cst_43 = arith.constant dense<0.000000e+00> : vector<16x32xf32>
    %217 = tpu.matmul %215, %216, %cst_43 {dimension_numbers = #tpu.dot_dimension_numbers<[1], [0], [0], [1], [0, 0, 1, 1], [], []>} : vector<16x32xf32>, vector<32x32xf32>, vector<16x32xf32> -> vector<16x32xf32>
    %c0_44 = arith.constant 0 : index
    %c0_45 = arith.constant 0 : index
    %218 = vector.load %arg11[%c0_44, %c0_45] : memref<1x32xf32, #tpu.memory_space<vmem>>, vector<1x32xf32>
    %219 = vector.broadcast %218 : vector<1x32xf32> to vector<16x32xf32>
    %220 = arith.addf %217, %219 : vector<16x32xf32>
    %221 = arith.addf %220, %123 : vector<16x32xf32>
    %222 = vector.extract_strided_slice %4 {offsets = [1, 0], sizes = [1, 32], strides = [1, 1]} : vector<3x32xf32> to vector<1x32xf32>
    %223 = vector.extract_strided_slice %5 {offsets = [1, 0], sizes = [1, 32], strides = [1, 1]} : vector<3x32xf32> to vector<1x32xf32>
    %cst_46 = arith.constant dense<0.000000e+00> : vector<16xf32>
    %224 = vector.multi_reduction <add>, %221, %cst_46 [1] : vector<16x32xf32> to vector<16xf32>
    %225 = vector.shape_cast %224 : vector<16xf32> to vector<16x1xf32>
    %cst_47 = arith.constant 3.200000e+01 : f32
    %226 = vector.broadcast %cst_47 : f32 to vector<16x1xf32>
    %227 = arith.divf %225, %226 : vector<16x1xf32>
    %228 = vector.broadcast %227 : vector<16x1xf32> to vector<16x32xf32>
    %229 = arith.subf %221, %228 : vector<16x32xf32>
    %230 = arith.mulf %229, %229 : vector<16x32xf32>
    %cst_48 = arith.constant dense<0.000000e+00> : vector<16xf32>
    %231 = vector.multi_reduction <add>, %230, %cst_48 [1] : vector<16x32xf32> to vector<16xf32>
    %232 = vector.shape_cast %231 : vector<16xf32> to vector<16x1xf32>
    %cst_49 = arith.constant 3.200000e+01 : f32
    %233 = vector.broadcast %cst_49 : f32 to vector<16x1xf32>
    %234 = arith.divf %232, %233 : vector<16x1xf32>
    %235 = vector.broadcast %227 : vector<16x1xf32> to vector<16x32xf32>
    %236 = arith.subf %221, %235 : vector<16x32xf32>
    %cst_50 = arith.constant 9.99999974E-6 : f32
    %237 = vector.broadcast %cst_50 : f32 to vector<16x1xf32>
    %238 = arith.addf %234, %237 : vector<16x1xf32>
    %239 = math.rsqrt %238 : vector<16x1xf32>
    %240 = vector.broadcast %239 : vector<16x1xf32> to vector<16x32xf32>
    %241 = arith.mulf %236, %240 : vector<16x32xf32>
    %242 = vector.broadcast %222 : vector<1x32xf32> to vector<16x32xf32>
    %243 = arith.mulf %241, %242 : vector<16x32xf32>
    %244 = vector.broadcast %223 : vector<1x32xf32> to vector<16x32xf32>
    %245 = arith.addf %243, %244 : vector<16x32xf32>
    %c0_51 = arith.constant 0 : index
    %c0_52 = arith.constant 0 : index
    %246 = vector.load %arg12[%c0_51, %c0_52] : memref<32x128xf32, #tpu.memory_space<vmem>>, vector<32x128xf32>
    %cst_53 = arith.constant dense<0.000000e+00> : vector<16x128xf32>
    %247 = tpu.matmul %245, %246, %cst_53 {dimension_numbers = #tpu.dot_dimension_numbers<[1], [0], [0], [1], [0, 0, 1, 1], [], []>} : vector<16x32xf32>, vector<32x128xf32>, vector<16x128xf32> -> vector<16x128xf32>
    %c0_54 = arith.constant 0 : index
    %c0_55 = arith.constant 0 : index
    %248 = vector.load %arg13[%c0_54, %c0_55] : memref<1x128xf32, #tpu.memory_space<vmem>>, vector<1x128xf32>
    %249 = vector.broadcast %248 : vector<1x128xf32> to vector<16x128xf32>
    %250 = arith.addf %247, %249 : vector<16x128xf32>
    %cst_56 = arith.constant 0.000000e+00 : f32
    %251 = vector.broadcast %cst_56 : f32 to vector<16x128xf32>
    %252 = arith.maximumf %250, %251 : vector<16x128xf32>
    %c0_57 = arith.constant 0 : index
    %c0_58 = arith.constant 0 : index
    %253 = vector.load %arg14[%c0_57, %c0_58] : memref<128x32xf32, #tpu.memory_space<vmem>>, vector<128x32xf32>
    %cst_59 = arith.constant dense<0.000000e+00> : vector<16x32xf32>
    %254 = tpu.matmul %252, %253, %cst_59 {dimension_numbers = #tpu.dot_dimension_numbers<[1], [0], [0], [1], [0, 0, 1, 1], [], []>} : vector<16x128xf32>, vector<128x32xf32>, vector<16x32xf32> -> vector<16x32xf32>
    %c0_60 = arith.constant 0 : index
    %c0_61 = arith.constant 0 : index
    %255 = vector.load %arg15[%c0_60, %c0_61] : memref<1x32xf32, #tpu.memory_space<vmem>>, vector<1x32xf32>
    %256 = vector.broadcast %255 : vector<1x32xf32> to vector<16x32xf32>
    %257 = arith.addf %254, %256 : vector<16x32xf32>
    %258 = arith.addf %257, %245 : vector<16x32xf32>
    %259 = vector.extract_strided_slice %4 {offsets = [2, 0], sizes = [1, 32], strides = [1, 1]} : vector<3x32xf32> to vector<1x32xf32>
    %260 = vector.extract_strided_slice %5 {offsets = [2, 0], sizes = [1, 32], strides = [1, 1]} : vector<3x32xf32> to vector<1x32xf32>
    %cst_62 = arith.constant dense<0.000000e+00> : vector<16xf32>
    %261 = vector.multi_reduction <add>, %258, %cst_62 [1] : vector<16x32xf32> to vector<16xf32>
    %262 = vector.shape_cast %261 : vector<16xf32> to vector<16x1xf32>
    %cst_63 = arith.constant 3.200000e+01 : f32
    %263 = vector.broadcast %cst_63 : f32 to vector<16x1xf32>
    %264 = arith.divf %262, %263 : vector<16x1xf32>
    %265 = vector.broadcast %264 : vector<16x1xf32> to vector<16x32xf32>
    %266 = arith.subf %258, %265 : vector<16x32xf32>
    %267 = arith.mulf %266, %266 : vector<16x32xf32>
    %cst_64 = arith.constant dense<0.000000e+00> : vector<16xf32>
    %268 = vector.multi_reduction <add>, %267, %cst_64 [1] : vector<16x32xf32> to vector<16xf32>
    %269 = vector.shape_cast %268 : vector<16xf32> to vector<16x1xf32>
    %cst_65 = arith.constant 3.200000e+01 : f32
    %270 = vector.broadcast %cst_65 : f32 to vector<16x1xf32>
    %271 = arith.divf %269, %270 : vector<16x1xf32>
    %272 = vector.broadcast %264 : vector<16x1xf32> to vector<16x32xf32>
    %273 = arith.subf %258, %272 : vector<16x32xf32>
    %cst_66 = arith.constant 9.99999974E-6 : f32
    %274 = vector.broadcast %cst_66 : f32 to vector<16x1xf32>
    %275 = arith.addf %271, %274 : vector<16x1xf32>
    %276 = math.rsqrt %275 : vector<16x1xf32>
    %277 = vector.broadcast %276 : vector<16x1xf32> to vector<16x32xf32>
    %278 = arith.mulf %273, %277 : vector<16x32xf32>
    %279 = vector.broadcast %259 : vector<1x32xf32> to vector<16x32xf32>
    %280 = arith.mulf %278, %279 : vector<16x32xf32>
    %281 = vector.broadcast %260 : vector<1x32xf32> to vector<16x32xf32>
    %282 = arith.addf %280, %281 : vector<16x32xf32>
    %283 = vector.shape_cast %282 : vector<16x32xf32> to vector<2x8x32xf32>
    %c0_67 = arith.constant 0 : index
    %c0_68 = arith.constant 0 : index
    %c0_69 = arith.constant 0 : index
    %284 = vector.load %arg18[%c0_67, %c0_68, %c0_69] : memref<2x8x32xf32, #tpu.memory_space<vmem>>, vector<2x8x32xf32>
    tpu.vector_store %arg18[%c0_67, %c0_68, %c0_69], %283 {strides = array<i32>} : memref<2x8x32xf32, #tpu.memory_space<vmem>>, vector<2x8x32xf32>,
    return
  }
}

</mosaic_0001>

<llo_original>
// kernel: tpu_custom_call.1
$region0: #{tpu_custom_call.1}
  #allocation0 [shape = 'u32[]', space=smem, size = 0x4, offset = 0x4, fixed_abs, tag = 'smem constant byte address 0x4 - core index']
  #allocation1 [shape = 'u32[144,128]{1,0:T(1,128)}', space=vmem, size = 0x12000, scoped, tag = 'internal scratch']
  %s0 = inlined_call_operand.hbm [shape: f32[2,8,32], index: 0, kind: input, shape index: {}]
  %s1 = inlined_call_operand.hbm [shape: f32[2,8,32], index: 1, kind: input, shape index: {}]
  %s2 = inlined_call_operand.vmem [shape: f32[32,96], index: 2, kind: input, shape index: {}]
  %s3 = inlined_call_operand.vmem [shape: f32[1,96], index: 3, kind: input, shape index: {}]
  %s4 = inlined_call_operand.vmem [shape: f32[32,32], index: 4, kind: input, shape index: {}]
  %s5 = inlined_call_operand.vmem [shape: f32[1,32], index: 5, kind: input, shape index: {}]
  %s6 = inlined_call_operand.vmem [shape: f32[32,32], index: 6, kind: input, shape index: {}]
  %s7 = inlined_call_operand.vmem [shape: f32[1,32], index: 7, kind: input, shape index: {}]
  %s8 = inlined_call_operand.vmem [shape: f32[32,64], index: 8, kind: input, shape index: {}]
  %s9 = inlined_call_operand.vmem [shape: f32[1,64], index: 9, kind: input, shape index: {}]
  %s10 = inlined_call_operand.vmem [shape: f32[32,32], index: 10, kind: input, shape index: {}]
  %s11 = inlined_call_operand.vmem [shape: f32[1,32], index: 11, kind: input, shape index: {}]
  %s12 = inlined_call_operand.hbm [shape: f32[32,128], index: 12, kind: input, shape index: {}]
  %s13 = inlined_call_operand.vmem [shape: f32[1,128], index: 13, kind: input, shape index: {}]
  %s14 = inlined_call_operand.vmem [shape: f32[128,32], index: 14, kind: input, shape index: {}]
  %s15 = inlined_call_operand.vmem [shape: f32[1,32], index: 15, kind: input, shape index: {}]
  %s16 = inlined_call_operand.vmem [shape: f32[3,32], index: 16, kind: input, shape index: {}]
  %s17 = inlined_call_operand.vmem [shape: f32[3,32], index: 17, kind: input, shape index: {}]
  %s18 = inlined_call_operand.hbm [shape: f32[2,8,32], index: 18, kind: output, shape index: {}]
  %s19 = sld [smem:[#allocation0]]
  $region94: #{tpu_custom_call.1} parent=0
    _
  %s21 = ssub.s32 1, %s19
  %s22 = scalar_select 0, %s21, %s19
  $region1: #{tpu_custom_call.1} parent=0
    #allocation2 [shape = 'u8[8192]{0}', space=vmem, size = 0x2000, scoped, tag = 'input window, operand 0, single buffered']
    #allocation3 [shape = 's32[1]{0}', space=sflag, size = 0x4, scoped, tag = 'scoped memory for tpu_custom_call.1']
    #allocation4 [shape = 's32[1]{0}', space=sflag, size = 0x4, scoped, tag = 'scoped memory for tpu_custom_call.1']
    #allocation5 [shape = 'u8[8192]{0}', space=vmem, size = 0x2000, scoped, tag = 'input window, operand 1, single buffered']
    #allocation6 [shape = 's32[1]{0}', space=sflag, size = 0x4, scoped, tag = 'scoped memory for tpu_custom_call.1']
    #allocation7 [shape = 'u8[16384]{0}', space=vmem, size = 0x4000, scoped, tag = 'input window, operand 12, single buffered']
    #allocation8 [shape = 'u8[8192]{0}', space=vmem, size = 0x2000, scoped, tag = 'output window, operand 0, single buffered']
    %23 = vsyncpa [#allocation3], 0
    %24 = vsyncpa [#allocation6], 0
    %25 = vsyncpa [#allocation4], 0
    // Predicated region
    $region2: #{tpu_custom_call.1} parent=1 // pred_check
      _
    $region3: #{tpu_custom_call.1} parent=1 // pred_check_branch
      %27 = sbr.rel (0) target = $region5
    $region4: #{tpu_custom_call.1} parent=1 // pred_region
      %s29 = ssub.s32 256, 256
      %30 = vsyncadd [#allocation3], %s29
      %s31 = sshll.u32 [#allocation2], 4
      %s32 = int_to_ptr.vmem [resolvable:$true] %s31
      %37 = dma.hbm_to_vmem [thread:$0]  %s0, 256, %s32, [#allocation3], 128, 128, 8
    $region5: #{tpu_custom_call.1} parent=1 // pred_fallthru
      _
    // Predicated region
    $region6: #{tpu_custom_call.1} parent=1 // pred_check
      _
    $region7: #{tpu_custom_call.1} parent=1 // pred_check_branch
      %39 = sbr.rel (0) target = $region9
    $region8: #{tpu_custom_call.1} parent=1 // pred_region
      %s41 = ssub.s32 256, 256
      %42 = vsyncadd [#allocation6], %s41
      %s43 = sshll.u32 [#allocation5], 4
      %s44 = int_to_ptr.vmem [resolvable:$true] %s43
      %49 = dma.hbm_to_vmem [thread:$0]  %s1, 256, %s44, [#allocation6], 128, 128, 8
    $region9: #{tpu_custom_call.1} parent=1 // pred_fallthru
      _
    // Predicated region
    $region10: #{tpu_custom_call.1} parent=1 // pred_check
      _
    $region11: #{tpu_custom_call.1} parent=1 // pred_check_branch
      %51 = sbr.rel (0) target = $region13
    $region12: #{tpu_custom_call.1} parent=1 // pred_region
      _
    $region13: #{tpu_custom_call.1} parent=1 // pred_fallthru
      _
    // Predicated region
    $region14: #{tpu_custom_call.1} parent=1 // pred_check
      _
    $region15: #{tpu_custom_call.1} parent=1 // pred_check_branch
      %53 = sbr.rel (0) target = $region17
    $region16: #{tpu_custom_call.1} parent=1 // pred_region
      _
    $region17: #{tpu_custom_call.1} parent=1 // pred_fallthru
      _
    // Predicated region
    $region18: #{tpu_custom_call.1} parent=1 // pred_check
      _
    $region19: #{tpu_custom_call.1} parent=1 // pred_check_branch
      %55 = sbr.rel (0) target = $region21
    $region20: #{tpu_custom_call.1} parent=1 // pred_region
      _
    $region21: #{tpu_custom_call.1} parent=1 // pred_fallthru
      _
    // Predicated region
    $region22: #{tpu_custom_call.1} parent=1 // pred_check
      _
    $region23: #{tpu_custom_call.1} parent=1 // pred_check_branch
      %57 = sbr.rel (0) target = $region25
    $region24: #{tpu_custom_call.1} parent=1 // pred_region
      _
    $region25: #{tpu_custom_call.1} parent=1 // pred_fallthru
      _
    // Predicated region
    $region26: #{tpu_custom_call.1} parent=1 // pred_check
      _
    $region27: #{tpu_custom_call.1} parent=1 // pred_check_branch
      %59 = sbr.rel (0) target = $region29
    $region28: #{tpu_custom_call.1} parent=1 // pred_region
      _
    $region29: #{tpu_custom_call.1} parent=1 // pred_fallthru
      _
    // Predicated region
    $region30: #{tpu_custom_call.1} parent=1 // pred_check
      _
    $region31: #{tpu_custom_call.1} parent=1 // pred_check_branch
      %61 = sbr.rel (0) target = $region33
    $region32: #{tpu_custom_call.1} parent=1 // pred_region
      _
    $region33: #{tpu_custom_call.1} parent=1 // pred_fallthru
      _
    // Predicated region
    $region34: #{tpu_custom_call.1} parent=1 // pred_check
      _
    $region35: #{tpu_custom_call.1} parent=1 // pred_check_branch
      %63 = sbr.rel (0) target = $region37
    $region36: #{tpu_custom_call.1} parent=1 // pred_region
      _
    $region37: #{tpu_custom_call.1} parent=1 // pred_fallthru
      _
    // Predicated region
    $region38: #{tpu_custom_call.1} parent=1 // pred_check
      _
    $region39: #{tpu_custom_call.1} parent=1 // pred_check_branch
      %65 = sbr.rel (0) target = $region41
    $region40: #{tpu_custom_call.1} parent=1 // pred_region
      _
    $region41: #{tpu_custom_call.1} parent=1 // pred_fallthru
      _
    // Predicated region
    $region42: #{tpu_custom_call.1} parent=1 // pred_check
      _
    $region43: #{tpu_custom_call.1} parent=1 // pred_check_branch
      %67 = sbr.rel (0) target = $region45
    $region44: #{tpu_custom_call.1} parent=1 // pred_region
      _
    $region45: #{tpu_custom_call.1} parent=1 // pred_fallthru
      _
    // Predicated region
    $region46: #{tpu_custom_call.1} parent=1 // pred_check
      _
    $region47: #{tpu_custom_call.1} parent=1 // pred_check_branch
      %69 = sbr.rel (0) target = $region49
    $region48: #{tpu_custom_call.1} parent=1 // pred_region
      _
    $region49: #{tpu_custom_call.1} parent=1 // pred_fallthru
      _
    // Predicated region
    $region50: #{tpu_custom_call.1} parent=1 // pred_check
      _
    $region51: #{tpu_custom_call.1} parent=1 // pred_check_branch
      %71 = sbr.rel (0) target = $region53
    $region52: #{tpu_custom_call.1} parent=1 // pred_region
      %s73 = ssub.s32 512, 512
      %74 = vsyncadd [#allocation6], %s73
      %s75 = sshll.u32 [#allocation7], 4
      %s76 = int_to_ptr.vmem [resolvable:$true] %s75
      %81 = dma.hbm_to_vmem [thread:$0]  %s12, 512, %s76, [#allocation6], 128, 128, 8
    $region53: #{tpu_custom_call.1} parent=1 // pred_fallthru
      _
    // Predicated region
    $region54: #{tpu_custom_call.1} parent=1 // pred_check
      _
    $region55: #{tpu_custom_call.1} parent=1 // pred_check_branch
      %83 = sbr.rel (0) target = $region57
    $region56: #{tpu_custom_call.1} parent=1 // pred_region
      _
    $region57: #{tpu_custom_call.1} parent=1 // pred_fallthru
      _
    // Predicated region
    $region58: #{tpu_custom_call.1} parent=1 // pred_check
      _
    $region59: #{tpu_custom_call.1} parent=1 // pred_check_branch
      %85 = sbr.rel (0) target = $region61
    $region60: #{tpu_custom_call.1} parent=1 // pred_region
      _
    $region61: #{tpu_custom_call.1} parent=1 // pred_fallthru
      _
    // Predicated region
    $region62: #{tpu_custom_call.1} parent=1 // pred_check
      _
    $region63: #{tpu_custom_call.1} parent=1 // pred_check_branch
      %87 = sbr.rel (0) target = $region65
    $region64: #{tpu_custom_call.1} parent=1 // pred_region
      _
    $region65: #{tpu_custom_call.1} parent=1 // pred_fallthru
      _
    // Predicated region
    $region66: #{tpu_custom_call.1} parent=1 // pred_check
      _
    $region67: #{tpu_custom_call.1} parent=1 // pred_check_branch
      %89 = sbr.rel (0) target = $region69
    $region68: #{tpu_custom_call.1} parent=1 // pred_region
      _
    $region69: #{tpu_custom_call.1} parent=1 // pred_fallthru
      _
    // Predicated region
    $region70: #{tpu_custom_call.1} parent=1 // pred_check
      _
    $region71: #{tpu_custom_call.1} parent=1 // pred_check_branch
      %91 = sbr.rel (0) target = $region73
    $region72: #{tpu_custom_call.1} parent=1 // pred_region
      _
    $region73: #{tpu_custom_call.1} parent=1 // pred_fallthru
      _
    // Predicated region
    $region74: #{tpu_custom_call.1} parent=1 // pred_check
      _
    $region75: #{tpu_custom_call.1} parent=1 // pred_check_branch
      %93 = sbr.rel (0) target = $region77
    $region76: #{tpu_custom_call.1} parent=1 // pred_region
      %94 = dma.done [#allocation3], 256
    $region77: #{tpu_custom_call.1} parent=1 // pred_fallthru
      _
    // Predicated region
    $region78: #{tpu_custom_call.1} parent=1 // pred_check
      _
    $region79: #{tpu_custom_call.1} parent=1 // pred_check_branch
      %96 = sbr.rel (0) target = $region81
    $region80: #{tpu_custom_call.1} parent=1 // pred_region
      %97 = dma.done [#allocation6], 256
    $region81: #{tpu_custom_call.1} parent=1 // pred_fallthru
      _
    // Predicated region
    $region82: #{tpu_custom_call.1} parent=1 // pred_check
      _
    $region83: #{tpu_custom_call.1} parent=1 // pred_check_branch
      %99 = sbr.rel (0) target = $region85
    $region84: #{tpu_custom_call.1} parent=1 // pred_region
      %100 = dma.done [#allocation6], 512
    $region85: #{tpu_custom_call.1} parent=1 // pred_fallthru
      _
    %v101 = vld [vmem:[#allocation2] sm:$0xff]
    %v102 = vld [vmem:[#allocation2 + $0x8] sm:$0xff]
    %v103 = vld [vmem:[#allocation5] sm:$0xff]
    %v104 = vld [vmem:[#allocation5 + $0x8] sm:$0xff]
    %v105 = vld [vmem:[%s16] sm:$0x7]
    %v106 = vld [vmem:[%s17] sm:$0x7]
    %v107 = vld [vmem:[%s2] sm:$0xff]
    %v108 = vld [vmem:[%s2 + $0x8] sm:$0xff]
    %v109 = vld [vmem:[%s2 + $0x10] sm:$0xff]
    %v110 = vld [vmem:[%s2 + $0x18] sm:$0xff]
    %v111 = vld [vmem:[%s3] sm:$0x1]
    %v113 = vlaneseq
    %v114 = vshrl.u32 %v113, 7
    %v115 = vsub.s32 0, %v114
    %v116 = vrot.slane %v111, %v115
    %vm118 = vcmask 261120
    %v120 = vsel %vm118, %v101, 0
    %v123 = vsel %vm118, %v102, 0
    %125 = vmatprep.subr.mxu0 0.0
    %126 = vmatpush1.msra.mxu0 0.0
    %127 = vmatprep.subr.mxu0 0.0
    %128 = vmatpush1.msra.mxu0 0.0
    %129 = vmatprep.subr.mxu0 0.0
    %130 = vmatpush1.msra.mxu0 0.0
    %131 = vmatprep.subr.mxu0 0.0
    %132 = vmatpush1.msra.mxu0 0.0
    %133 = vmatprep.subr.mxu0 0.0
    %134 = vmatpush1.msra.mxu0 0.0
    %135 = vmatprep.subr.mxu0 0.0
    %136 = vmatpush1.msra.mxu0 0.0
    %137 = vmatprep.subr.mxu0 0.0
    %138 = vmatpush1.msra.mxu0 0.0
    %139 = vmatprep.subr.mxu0 0.0
    %140 = vmatpush1.msra.mxu0 0.0
    %141 = vmatprep.subr.mxu0 0.0
    %142 = vmatpush1.msra.mxu0 0.0
    %143 = vmatprep.subr.mxu0 0.0
    %144 = vmatpush1.msra.mxu0 0.0
    %145 = vmatprep.subr.mxu0 0.0
    %146 = vmatpush1.msra.mxu0 0.0
    %147 = vmatprep.subr.mxu0 0.0
    %148 = vmatpush1.msra.mxu0 0.0
    %149 = vmatprep.subr.mxu0 0.0
    %150 = vmatpush1.msra.mxu0 %v110
    %151 = vmatprep.subr.mxu0 0.0
    %152 = vmatpush1.msra.mxu0 %v109
    %153 = vmatprep.subr.mxu0 0.0
    %154 = vmatpush1.msra.mxu0 %v108
    %155 = vmatprep.subr.mxu0 0.0
    %156 = vmatpush1.msra.mxu0 %v107
    %157 = vmatprep.subr.mxu0 0.0
    %158 = vmatpush2.msra.mxu0 0.0
    %159 = vmatprep.subr.mxu0 0.0
    %160 = vmatpush2.msra.mxu0 0.0
    %161 = vmatprep.subr.mxu0 0.0
    %162 = vmatpush2.msra.mxu0 0.0
    %163 = vmatprep.subr.mxu0 0.0
    %164 = vmatpush2.msra.mxu0 0.0
    %165 = vmatprep.subr.mxu0 0.0
    %166 = vmatpush2.msra.mxu0 0.0
    %167 = vmatprep.subr.mxu0 0.0
    %168 = vmatpush2.msra.mxu0 0.0
    %169 = vmatprep.subr.mxu0 0.0
    %170 = vmatpush2.msra.mxu0 0.0
    %171 = vmatprep.subr.mxu0 0.0
    %172 = vmatpush2.msra.mxu0 0.0
    %173 = vmatprep.subr.mxu0 0.0
    %174 = vmatpush2.msra.mxu0 0.0
    %175 = vmatprep.subr.mxu0 0.0
    %176 = vmatpush2.msra.mxu0 0.0
    %177 = vmatprep.subr.mxu0 0.0
    %178 = vmatpush2.msra.mxu0 0.0
    %179 = vmatprep.subr.mxu0 0.0
    %180 = vmatpush2.msra.mxu0 0.0
    %181 = vmatprep.subr.mxu0 0.0
    %182 = vmatpush2.msra.mxu0 0.0
    %183 = vmatprep.subr.mxu0 0.0
    %184 = vmatpush2.msra.mxu0 0.0
    %185 = vmatprep.subr.mxu0 0.0
    %186 = vmatpush2.msra.mxu0 0.0
    %187 = vmatprep.subr.mxu0 0.0
    %188 = vmatpush2.msra.mxu0 0.0
    %189 = vmatprep.mubr.f32.mxu0 0.0
    %190 = vmatmul.mubr.f32.gmra.mxu0 %v120
    %v191 = vpop.f32.mrf.mxu0
    %v192 = vadd.f32 %v116, %v191
    %v193 = vpop.f32.mrf.mxu0
    %194 = vmatprep.mubr.f32.mxu0 0.0
    %195 = vmatmul.mubr.f32.gmra.mxu0 %v123
    %v196 = vpop.f32.mrf.mxu0
    %v197 = vadd.f32 %v116, %v196
    %v198 = vpop.f32.mrf.mxu0
    %199 = vdwg.mxu0
    %202 = vrot.lane.b32.xlu0 %v192, 124
    %v203 = vpop.permute.xlu0 %202
    %204 = vrot.lane.b32.xlu0 %v197, 124
    %v205 = vpop.permute.xlu0 %204
    %206 = vrot.lane.b32.xlu0 %v192, 120
    %v207 = vpop.permute.xlu0 %206
    %208 = vrot.lane.b32.xlu0 %v197, 120
    %v209 = vpop.permute.xlu0 %208
    %210 = vrot.lane.b32.xlu0 %v192, 116
    %v211 = vpop.permute.xlu0 %210
    %212 = vrot.lane.b32.xlu0 %v197, 116
    %v213 = vpop.permute.xlu0 %212
    %214 = vrot.lane.b32.xlu0 %v192, 112
    %v215 = vpop.permute.xlu0 %214
    %216 = vrot.lane.b32.xlu0 %v197, 112
    %v217 = vpop.permute.xlu0 %216
    %218 = vrot.lane.b32.xlu0 %v192, 108
    %v219 = vpop.permute.xlu0 %218
    %220 = vrot.lane.b32.xlu0 %v197, 108
    %v221 = vpop.permute.xlu0 %220
    %222 = vrot.lane.b32.xlu0 %v192, 104
    %v223 = vpop.permute.xlu0 %222
    %224 = vrot.lane.b32.xlu0 %v197, 104
    %v225 = vpop.permute.xlu0 %224
    %226 = vrot.lane.b32.xlu0 %v192, 100
    %v227 = vpop.permute.xlu0 %226
    %228 = vrot.lane.b32.xlu0 %v197, 100
    %v229 = vpop.permute.xlu0 %228
    %230 = vrot.lane.b32.xlu0 %v192, 96
    %v231 = vpop.permute.xlu0 %230
    %vm232 = vcmask 31744
    %v233 = vsel %vm232, %v192, 0
    %v235 = vsel %vm232, %v231, 0
    %237 = vmatprep.subr.mxu0 0.0
    %238 = vmatpush1.xpose.msra.mxu0 0.0
    %239 = vmatprep.subr.mxu0 0.0
    %240 = vmatpush1.xpose.msra.mxu0 0.0
    %241 = vmatprep.subr.mxu0 0.0
    %242 = vmatpush1.xpose.msra.mxu0 0.0
    %243 = vmatprep.subr.mxu0 0.0
    %244 = vmatpush1.xpose.msra.mxu0 0.0
    %245 = vmatprep.subr.mxu0 0.0
    %246 = vmatpush1.xpose.msra.mxu0 0.0
    %247 = vmatprep.subr.mxu0 0.0
    %248 = vmatpush1.xpose.msra.mxu0 0.0
    %249 = vmatprep.subr.mxu0 0.0
    %250 = vmatpush1.xpose.msra.mxu0 0.0
    %251 = vmatprep.subr.mxu0 0.0
    %252 = vmatpush1.xpose.msra.mxu0 0.0
    %253 = vmatprep.subr.mxu0 0.0
    %254 = vmatpush1.xpose.msra.mxu0 0.0
    %255 = vmatprep.subr.mxu0 0.0
    %256 = vmatpush1.xpose.msra.mxu0 0.0
    %257 = vmatprep.subr.mxu0 0.0
    %258 = vmatpush1.xpose.msra.mxu0 0.0
    %259 = vmatprep.subr.mxu0 0.0
    %260 = vmatpush1.xpose.msra.mxu0 0.0
    %261 = vmatprep.subr.mxu0 0.0
    %262 = vmatpush1.xpose.msra.mxu0 0.0
    %263 = vmatprep.subr.mxu0 0.0
    %264 = vmatpush1.xpose.msra.mxu0 0.0
    %265 = vmatprep.subr.mxu0 0.0
    %266 = vmatpush1.xpose.msra.mxu0 0.0
    %267 = vmatprep.subr.mxu0 0.0
    %268 = vmatpush1.xpose.msra.mxu0 %v235
    %269 = vmatprep.subr.mxu0 0.0
    %270 = vmatpush2.xpose.msra.mxu0 0.0
    %271 = vmatprep.subr.mxu0 0.0
    %272 = vmatpush2.xpose.msra.mxu0 0.0
    %273 = vmatprep.subr.mxu0 0.0
    %274 = vmatpush2.xpose.msra.mxu0 0.0
    %275 = vmatprep.subr.mxu0 0.0
    %276 = vmatpush2.xpose.msra.mxu0 0.0
    %277 = vmatprep.subr.mxu0 0.0
    %278 = vmatpush2.xpose.msra.mxu0 0.0
    %279 = vmatprep.subr.mxu0 0.0
    %280 = vmatpush2.xpose.msra.mxu0 0.0
    %281 = vmatprep.subr.mxu0 0.0
    %282 = vmatpush2.xpose.msra.mxu0 0.0
    %283 = vmatprep.subr.mxu0 0.0
    %284 = vmatpush2.xpose.msra.mxu0 0.0
    %285 = vmatprep.subr.mxu0 0.0
    %286 = vmatpush2.xpose.msra.mxu0 0.0
    %287 = vmatprep.subr.mxu0 0.0
    %288 = vmatpush2.xpose.msra.mxu0 0.0
    %289 = vmatprep.subr.mxu0 0.0
    %290 = vmatpush2.xpose.msra.mxu0 0.0
    %291 = vmatprep.subr.mxu0 0.0
    %292 = vmatpush2.xpose.msra.mxu0 0.0
    %293 = vmatprep.subr.mxu0 0.0
    %294 = vmatpush2.xpose.msra.mxu0 0.0
    %295 = vmatprep.subr.mxu0 0.0
    %296 = vmatpush2.xpose.msra.mxu0 0.0
    %297 = vmatprep.subr.mxu0 0.0
    %298 = vmatpush2.xpose.msra.mxu0 0.0
    %299 = vmatprep.subr.mxu0 0.0
    %300 = vmatpush2.xpose.msra.mxu0 0.0
    %301 = vmatprep.mubr.f32.mxu0 0.0
    %302 = vmatmul.mubr.f32.gmra.mxu0 %v233
    %v303 = vpop.f32.mrf.mxu0
    %v304 = vadd.f32 0.0, %v303
    %v305 = vpop.f32.mrf.mxu0
    %306 = vdwg.mxu0
    %307 = vrot.lane.b32.xlu0 %v197, 96
    %v308 = vpop.permute.xlu0 %307
    %v309 = vsel %vm232, %v197, 0
    %v311 = vsel %vm232, %v308, 0
    %313 = vmatprep.subr.mxu0 0.0
    %314 = vmatpush1.xpose.msra.mxu0 0.0
    %315 = vmatprep.subr.mxu0 0.0
    %316 = vmatpush1.xpose.msra.mxu0 0.0
    %317 = vmatprep.subr.mxu0 0.0
    %318 = vmatpush1.xpose.msra.mxu0 0.0
    %319 = vmatprep.subr.mxu0 0.0
    %320 = vmatpush1.xpose.msra.mxu0 0.0
    %321 = vmatprep.subr.mxu0 0.0
    %322 = vmatpush1.xpose.msra.mxu0 0.0
    %323 = vmatprep.subr.mxu0 0.0
    %324 = vmatpush1.xpose.msra.mxu0 0.0
    %325 = vmatprep.subr.mxu0 0.0
    %326 = vmatpush1.xpose.msra.mxu0 0.0
    %327 = vmatprep.subr.mxu0 0.0
    %328 = vmatpush1.xpose.msra.mxu0 0.0
    %329 = vmatprep.subr.mxu0 0.0
    %330 = vmatpush1.xpose.msra.mxu0 0.0
    %331 = vmatprep.subr.mxu0 0.0
    %332 = vmatpush1.xpose.msra.mxu0 0.0
    %333 = vmatprep.subr.mxu0 0.0
    %334 = vmatpush1.xpose.msra.mxu0 0.0
    %335 = vmatprep.subr.mxu0 0.0
    %336 = vmatpush1.xpose.msra.mxu0 0.0
    %337 = vmatprep.subr.mxu0 0.0
    %338 = vmatpush1.xpose.msra.mxu0 0.0
    %339 = vmatprep.subr.mxu0 0.0
    %340 = vmatpush1.xpose.msra.mxu0 0.0
    %341 = vmatprep.subr.mxu0 0.0
    %342 = vmatpush1.xpose.msra.mxu0 0.0
    %343 = vmatprep.subr.mxu0 0.0
    %344 = vmatpush1.xpose.msra.mxu0 %v311
    %345 = vmatprep.subr.mxu0 0.0
    %346 = vmatpush2.xpose.msra.mxu0 0.0
    %347 = vmatprep.subr.mxu0 0.0
    %348 = vmatpush2.xpose.msra.mxu0 0.0
    %349 = vmatprep.subr.mxu0 0.0
    %350 = vmatpush2.xpose.msra.mxu0 0.0
    %351 = vmatprep.subr.mxu0 0.0
    %352 = vmatpush2.xpose.msra.mxu0 0.0
    %353 = vmatprep.subr.mxu0 0.0
    %354 = vmatpush2.xpose.msra.mxu0 0.0
    %355 = vmatprep.subr.mxu0 0.0
    %356 = vmatpush2.xpose.msra.mxu0 0.0
    %357 = vmatprep.subr.mxu0 0.0
    %358 = vmatpush2.xpose.msra.mxu0 0.0
    %359 = vmatprep.subr.mxu0 0.0
    %360 = vmatpush2.xpose.msra.mxu0 0.0
    %361 = vmatprep.subr.mxu0 0.0
    %362 = vmatpush2.xpose.msra.mxu0 0.0
    %363 = vmatprep.subr.mxu0 0.0
    %364 = vmatpush2.xpose.msra.mxu0 0.0
    %365 = vmatprep.subr.mxu0 0.0
    %366 = vmatpush2.xpose.msra.mxu0 0.0
    %367 = vmatprep.subr.mxu0 0.0
    %368 = vmatpush2.xpose.msra.mxu0 0.0
    %369 = vmatprep.subr.mxu0 0.0
    %370 = vmatpush2.xpose.msra.mxu0 0.0
    %371 = vmatprep.subr.mxu0 0.0
    %372 = vmatpush2.xpose.msra.mxu0 0.0
    %373 = vmatprep.subr.mxu0 0.0
    %374 = vmatpush2.xpose.msra.mxu0 0.0
    %375 = vmatprep.subr.mxu0 0.0
    %376 = vmatpush2.xpose.msra.mxu0 0.0
    %377 = vmatprep.mubr.f32.mxu0 0.0
    %378 = vmatmul.mubr.f32.gmra.mxu0 %v309
    %v379 = vpop.f32.mrf.mxu0
    %v380 = vadd.f32 0.0, %v379
    %v381 = vpop.f32.mrf.mxu0
    %382 = vdwg.mxu0
    %383 = vrot.lane.b32.xlu0 %v203, 96
    %v384 = vpop.permute.xlu0 %383
    %v385 = vsel %vm232, %v203, 0
    %v387 = vsel %vm232, %v384, 0
    %389 = vmatprep.subr.mxu0 0.0
    %390 = vmatpush1.xpose.msra.mxu0 0.0
    %391 = vmatprep.subr.mxu0 0.0
    %392 = vmatpush1.xpose.msra.mxu0 0.0
    %393 = vmatprep.subr.mxu0 0.0
    %394 = vmatpush1.xpose.msra.mxu0 0.0
    %395 = vmatprep.subr.mxu0 0.0
    %396 = vmatpush1.xpose.msra.mxu0 0.0
    %397 = vmatprep.subr.mxu0 0.0
    %398 = vmatpush1.xpose.msra.mxu0 0.0
    %399 = vmatprep.subr.mxu0 0.0
    %400 = vmatpush1.xpose.msra.mxu0 0.0
    %401 = vmatprep.subr.mxu0 0.0
    %402 = vmatpush1.xpose.msra.mxu0 0.0
    %403 = vmatprep.subr.mxu0 0.0
    %404 = vmatpush1.xpose.msra.mxu0 0.0
    %405 = vmatprep.subr.mxu0 0.0
    %406 = vmatpush1.xpose.msra.mxu0 0.0
    %407 = vmatprep.subr.mxu0 0.0
    %408 = vmatpush1.xpose.msra.mxu0 0.0
    %409 = vmatprep.subr.mxu0 0.0
    %410 = vmatpush1.xpose.msra.mxu0 0.0
    %411 = vmatprep.subr.mxu0 0.0
    %412 = vmatpush1.xpose.msra.mxu0 0.0
    %413 = vmatprep.subr.mxu0 0.0
    %414 = vmatpush1.xpose.msra.mxu0 0.0
    %415 = vmatprep.subr.mxu0 0.0
    %416 = vmatpush1.xpose.msra.mxu0 0.0
    %417 = vmatprep.subr.mxu0 0.0
    %418 = vmatpush1.xpose.msra.mxu0 0.0
    %419 = vmatprep.subr.mxu0 0.0
    %420 = vmatpush1.xpose.msra.mxu0 %v387
    %421 = vmatprep.subr.mxu0 0.0
    %422 = vmatpush2.xpose.msra.mxu0 0.0
    %423 = vmatprep.subr.mxu0 0.0
    %424 = vmatpush2.xpose.msra.mxu0 0.0
    %425 = vmatprep.subr.mxu0 0.0
    %426 = vmatpush2.xpose.msra.mxu0 0.0
    %427 = vmatprep.subr.mxu0 0.0
    %428 = vmatpush2.xpose.msra.mxu0 0.0
    %429 = vmatprep.subr.mxu0 0.0
    %430 = vmatpush2.xpose.msra.mxu0 0.0
    %431 = vmatprep.subr.mxu0 0.0
    %432 = vmatpush2.xpose.msra.mxu0 0.0
    %433 = vmatprep.subr.mxu0 0.0
    %434 = vmatpush2.xpose.msra.mxu0 0.0
    %435 = vmatprep.subr.mxu0 0.0
    %436 = vmatpush2.xpose.msra.mxu0 0.0
    %437 = vmatprep.subr.mxu0 0.0
    %438 = vmatpush2.xpose.msra.mxu0 0.0
    %439 = vmatprep.subr.mxu0 0.0
    %440 = vmatpush2.xpose.msra.mxu0 0.0
    %441 = vmatprep.subr.mxu0 0.0
    %442 = vmatpush2.xpose.msra.mxu0 0.0
    %443 = vmatprep.subr.mxu0 0.0
    %444 = vmatpush2.xpose.msra.mxu0 0.0
    %445 = vmatprep.subr.mxu0 0.0
    %446 = vmatpush2.xpose.msra.mxu0 0.0
    %447 = vmatprep.subr.mxu0 0.0
    %448 = vmatpush2.xpose.msra.mxu0 0.0
    %449 = vmatprep.subr.mxu0 0.0
    %450 = vmatpush2.xpose.msra.mxu0 0.0
    %451 = vmatprep.subr.mxu0 0.0
    %452 = vmatpush2.xpose.msra.mxu0 0.0
    %453 = vmatprep.mubr.f32.mxu0 0.0
    %454 = vmatmul.mubr.f32.gmra.mxu0 %v385
    %v455 = vpop.f32.mrf.mxu0
    %v456 = vadd.f32 0.0, %v455
    %v457 = vpop.f32.mrf.mxu0
    %458 = vdwg.mxu0
    %459 = vrot.lane.b32.xlu0 %v205, 96
    %v460 = vpop.permute.xlu0 %459
    %v461 = vsel %vm232, %v205, 0
    %v463 = vsel %vm232, %v460, 0
    %465 = vmatprep.subr.mxu0 0.0
    %466 = vmatpush1.xpose.msra.mxu0 0.0
    %467 = vmatprep.subr.mxu0 0.0
    %468 = vmatpush1.xpose.msra.mxu0 0.0
    %469 = vmatprep.subr.mxu0 0.0
    %470 = vmatpush1.xpose.msra.mxu0 0.0
    %471 = vmatprep.subr.mxu0 0.0
    %472 = vmatpush1.xpose.msra.mxu0 0.0
    %473 = vmatprep.subr.mxu0 0.0
    %474 = vmatpush1.xpose.msra.mxu0 0.0
    %475 = vmatprep.subr.mxu0 0.0
    %476 = vmatpush1.xpose.msra.mxu0 0.0
    %477 = vmatprep.subr.mxu0 0.0
    %478 = vmatpush1.xpose.msra.mxu0 0.0
    %479 = vmatprep.subr.mxu0 0.0
    %480 = vmatpush1.xpose.msra.mxu0 0.0
    %481 = vmatprep.subr.mxu0 0.0
    %482 = vmatpush1.xpose.msra.mxu0 0.0
    %483 = vmatprep.subr.mxu0 0.0
    %484 = vmatpush1.xpose.msra.mxu0 0.0
    %485 = vmatprep.subr.mxu0 0.0
    %486 = vmatpush1.xpose.msra.mxu0 0.0
    %487 = vmatprep.subr.mxu0 0.0
    %488 = vmatpush1.xpose.msra.mxu0 0.0
    %489 = vmatprep.subr.mxu0 0.0
    %490 = vmatpush1.xpose.msra.mxu0 0.0
    %491 = vmatprep.subr.mxu0 0.0
    %492 = vmatpush1.xpose.msra.mxu0 0.0
    %493 = vmatprep.subr.mxu0 0.0
    %494 = vmatpush1.xpose.msra.mxu0 0.0
    %495 = vmatprep.subr.mxu0 0.0
    %496 = vmatpush1.xpose.msra.mxu0 %v463
    %497 = vmatprep.subr.mxu0 0.0
    %498 = vmatpush2.xpose.msra.mxu0 0.0
    %499 = vmatprep.subr.mxu0 0.0
    %500 = vmatpush2.xpose.msra.mxu0 0.0
    %501 = vmatprep.subr.mxu0 0.0
    %502 = vmatpush2.xpose.msra.mxu0 0.0
    %503 = vmatprep.subr.mxu0 0.0
    %504 = vmatpush2.xpose.msra.mxu0 0.0
    %505 = vmatprep.subr.mxu0 0.0
    %506 = vmatpush2.xpose.msra.mxu0 0.0
    %507 = vmatprep.subr.mxu0 0.0
    %508 = vmatpush2.xpose.msra.mxu0 0.0
    %509 = vmatprep.subr.mxu0 0.0
    %510 = vmatpush2.xpose.msra.mxu0 0.0
    %511 = vmatprep.subr.mxu0 0.0
    %512 = vmatpush2.xpose.msra.mxu0 0.0
    %513 = vmatprep.subr.mxu0 0.0
    %514 = vmatpush2.xpose.msra.mxu0 0.0
    %515 = vmatprep.subr.mxu0 0.0
    %516 = vmatpush2.xpose.msra.mxu0 0.0
    %517 = vmatprep.subr.mxu0 0.0
    %518 = vmatpush2.xpose.msra.mxu0 0.0
    %519 = vmatprep.subr.mxu0 0.0
    %520 = vmatpush2.xpose.msra.mxu0 0.0
    %521 = vmatprep.subr.mxu0 0.0
    %522 = vmatpush2.xpose.msra.mxu0 0.0
    %523 = vmatprep.subr.mxu0 0.0
    %524 = vmatpush2.xpose.msra.mxu0 0.0
    %525 = vmatprep.subr.mxu0 0.0
    %526 = vmatpush2.xpose.msra.mxu0 0.0
    %527 = vmatprep.subr.mxu0 0.0
    %528 = vmatpush2.xpose.msra.mxu0 0.0
    %529 = vmatprep.mubr.f32.mxu0 0.0
    %530 = vmatmul.mubr.f32.gmra.mxu0 %v461
    %v531 = vpop.f32.mrf.mxu0
    %v532 = vadd.f32 0.0, %v531
    %v533 = vpop.f32.mrf.mxu0
    %534 = vdwg.mxu0
    %535 = vrot.lane.b32.xlu0 %v207, 96
    %v536 = vpop.permute.xlu0 %535
    %v537 = vsel %vm232, %v207, 0
    %v539 = vsel %vm232, %v536, 0
    %541 = vmatprep.subr.mxu0 0.0
    %542 = vmatpush1.xpose.msra.mxu0 0.0
    %543 = vmatprep.subr.mxu0 0.0
    %544 = vmatpush1.xpose.msra.mxu0 0.0
    %545 = vmatprep.subr.mxu0 0.0
    %546 = vmatpush1.xpose.msra.mxu0 0.0
    %547 = vmatprep.subr.mxu0 0.0
    %548 = vmatpush1.xpose.msra.mxu0 0.0
    %549 = vmatprep.subr.mxu0 0.0
    %550 = vmatpush1.xpose.msra.mxu0 0.0
    %551 = vmatprep.subr.mxu0 0.0
    %552 = vmatpush1.xpose.msra.mxu0 0.0
    %553 = vmatprep.subr.mxu0 0.0
    %554 = vmatpush1.xpose.msra.mxu0 0.0
    %555 = vmatprep.subr.mxu0 0.0
    %556 = vmatpush1.xpose.msra.mxu0 0.0
    %557 = vmatprep.subr.mxu0 0.0
    %558 = vmatpush1.xpose.msra.mxu0 0.0
    %559 = vmatprep.subr.mxu0 0.0
    %560 = vmatpush1.xpose.msra.mxu0 0.0
    %561 = vmatprep.subr.mxu0 0.0
    %562 = vmatpush1.xpose.msra.mxu0 0.0
    %563 = vmatprep.subr.mxu0 0.0
    %564 = vmatpush1.xpose.msra.mxu0 0.0
    %565 = vmatprep.subr.mxu0 0.0
    %566 = vmatpush1.xpose.msra.mxu0 0.0
    %567 = vmatprep.subr.mxu0 0.0
    %568 = vmatpush1.xpose.msra.mxu0 0.0
    %569 = vmatprep.subr.mxu0 0.0
    %570 = vmatpush1.xpose.msra.mxu0 0.0
    %571 = vmatprep.subr.mxu0 0.0
    %572 = vmatpush1.xpose.msra.mxu0 %v539
    %573 = vmatprep.subr.mxu0 0.0
    %574 = vmatpush2.xpose.msra.mxu0 0.0
    %575 = vmatprep.subr.mxu0 0.0
    %576 = vmatpush2.xpose.msra.mxu0 0.0
    %577 = vmatprep.subr.mxu0 0.0
    %578 = vmatpush2.xpose.msra.mxu0 0.0
    %579 = vmatprep.subr.mxu0 0.0
    %580 = vmatpush2.xpose.msra.mxu0 0.0
    %581 = vmatprep.subr.mxu0 0.0
    %582 = vmatpush2.xpose.msra.mxu0 0.0
    %583 = vmatprep.subr.mxu0 0.0
    %584 = vmatpush2.xpose.msra.mxu0 0.0
    %585 = vmatprep.subr.mxu0 0.0
    %586 = vmatpush2.xpose.msra.mxu0 0.0
    %587 = vmatprep.subr.mxu0 0.0
    %588 = vmatpush2.xpose.msra.mxu0 0.0
    %589 = vmatprep.subr.mxu0 0.0
    %590 = vmatpush2.xpose.msra.mxu0 0.0
    %591 = vmatprep.subr.mxu0 0.0
    %592 = vmatpush2.xpose.msra.mxu0 0.0
    %593 = vmatprep.subr.mxu0 0.0
    %594 = vmatpush2.xpose.msra.mxu0 0.0
    %595 = vmatprep.subr.mxu0 0.0
    %596 = vmatpush2.xpose.msra.mxu0 0.0
    %597 = vmatprep.subr.mxu0 0.0
    %598 = vmatpush2.xpose.msra.mxu0 0.0
    %599 = vmatprep.subr.mxu0 0.0
    %600 = vmatpush2.xpose.msra.mxu0 0.0
    %601 = vmatprep.subr.mxu0 0.0
    %602 = vmatpush2.xpose.msra.mxu0 0.0
    %603 = vmatprep.subr.mxu0 0.0
    %604 = vmatpush2.xpose.msra.mxu0 0.0
    %605 = vmatprep.mubr.f32.mxu0 0.0
    %606 = vmatmul.mubr.f32.gmra.mxu0 %v537
    %v607 = vpop.f32.mrf.mxu0
    %v608 = vadd.f32 0.0, %v607
    %v609 = vpop.f32.mrf.mxu0
    %610 = vdwg.mxu0
    %611 = vrot.lane.b32.xlu0 %v209, 96
    %v612 = vpop.permute.xlu0 %611
    %v613 = vsel %vm232, %v209, 0
    %v615 = vsel %vm232, %v612, 0
    %617 = vmatprep.subr.mxu0 0.0
    %618 = vmatpush1.xpose.msra.mxu0 0.0
    %619 = vmatprep.subr.mxu0 0.0
    %620 = vmatpush1.xpose.msra.mxu0 0.0
    %621 = vmatprep.subr.mxu0 0.0
    %622 = vmatpush1.xpose.msra.mxu0 0.0
    %623 = vmatprep.subr.mxu0 0.0
    %624 = vmatpush1.xpose.msra.mxu0 0.0
    %625 = vmatprep.subr.mxu0 0.0
    %626 = vmatpush1.xpose.msra.mxu0 0.0
    %627 = vmatprep.subr.mxu0 0.0
    %628 = vmatpush1.xpose.msra.mxu0 0.0
    %629 = vmatprep.subr.mxu0 0.0
    %630 = vmatpush1.xpose.msra.mxu0 0.0
    %631 = vmatprep.subr.mxu0 0.0
    %632 = vmatpush1.xpose.msra.mxu0 0.0
    %633 = vmatprep.subr.mxu0 0.0
    %634 = vmatpush1.xpose.msra.mxu0 0.0
    %635 = vmatprep.subr.mxu0 0.0
    %636 = vmatpush1.xpose.msra.mxu0 0.0
    %637 = vmatprep.subr.mxu0 0.0
    %638 = vmatpush1.xpose.msra.mxu0 0.0
    %639 = vmatprep.subr.mxu0 0.0
    %640 = vmatpush1.xpose.msra.mxu0 0.0
    %641 = vmatprep.subr.mxu0 0.0
    %642 = vmatpush1.xpose.msra.mxu0 0.0
    %643 = vmatprep.subr.mxu0 0.0
    %644 = vmatpush1.xpose.msra.mxu0 0.0
    %645 = vmatprep.subr.mxu0 0.0
    %646 = vmatpush1.xpose.msra.mxu0 0.0
    %647 = vmatprep.subr.mxu0 0.0
    %648 = vmatpush1.xpose.msra.mxu0 %v615
    %649 = vmatprep.subr.mxu0 0.0
    %650 = vmatpush2.xpose.msra.mxu0 0.0
    %651 = vmatprep.subr.mxu0 0.0
    %652 = vmatpush2.xpose.msra.mxu0 0.0
    %653 = vmatprep.subr.mxu0 0.0
    %654 = vmatpush2.xpose.msra.mxu0 0.0
    %655 = vmatprep.subr.mxu0 0.0
    %656 = vmatpush2.xpose.msra.mxu0 0.0
    %657 = vmatprep.subr.mxu0 0.0
    %658 = vmatpush2.xpose.msra.mxu0 0.0
    %659 = vmatprep.subr.mxu0 0.0
    %660 = vmatpush2.xpose.msra.mxu0 0.0
    %661 = vmatprep.subr.mxu0 0.0
    %662 = vmatpush2.xpose.msra.mxu0 0.0
    %663 = vmatprep.subr.mxu0 0.0
    %664 = vmatpush2.xpose.msra.mxu0 0.0
    %665 = vmatprep.subr.mxu0 0.0
    %666 = vmatpush2.xpose.msra.mxu0 0.0
    %667 = vmatprep.subr.mxu0 0.0
    %668 = vmatpush2.xpose.msra.mxu0 0.0
    %669 = vmatprep.subr.mxu0 0.0
    %670 = vmatpush2.xpose.msra.mxu0 0.0
    %671 = vmatprep.subr.mxu0 0.0
    %672 = vmatpush2.xpose.msra.mxu0 0.0
    %673 = vmatprep.subr.mxu0 0.0
    %674 = vmatpush2.xpose.msra.mxu0 0.0
    %675 = vmatprep.subr.mxu0 0.0
    %676 = vmatpush2.xpose.msra.mxu0 0.0
    %677 = vmatprep.subr.mxu0 0.0
    %678 = vmatpush2.xpose.msra.mxu0 0.0
    %679 = vmatprep.subr.mxu0 0.0
    %680 = vmatpush2.xpose.msra.mxu0 0.0
    %681 = vmatprep.mubr.f32.mxu0 0.0
    %682 = vmatmul.mubr.f32.gmra.mxu0 %v613
    %v683 = vpop.f32.mrf.mxu0
    %v684 = vadd.f32 0.0, %v683
    %v685 = vpop.f32.mrf.mxu0
    %686 = vdwg.mxu0
    %687 = vrot.lane.b32.xlu0 %v211, 96
    %v688 = vpop.permute.xlu0 %687
    %v689 = vsel %vm232, %v211, 0
    %v691 = vsel %vm232, %v688, 0
    %693 = vmatprep.subr.mxu0 0.0
    %694 = vmatpush1.xpose.msra.mxu0 0.0
    %695 = vmatprep.subr.mxu0 0.0
    %696 = vmatpush1.xpose.msra.mxu0 0.0
    %697 = vmatprep.subr.mxu0 0.0
    %698 = vmatpush1.xpose.msra.mxu0 0.0
    %699 = vmatprep.subr.mxu0 0.0
    %700 = vmatpush1.xpose.msra.mxu0 0.0
    %701 = vmatprep.subr.mxu0 0.0
    %702 = vmatpush1.xpose.msra.mxu0 0.0
    %703 = vmatprep.subr.mxu0 0.0
    %704 = vmatpush1.xpose.msra.mxu0 0.0
    %705 = vmatprep.subr.mxu0 0.0
    %706 = vmatpush1.xpose.msra.mxu0 0.0
    %707 = vmatprep.subr.mxu0 0.0
    %708 = vmatpush1.xpose.msra.mxu0 0.0
    %709 = vmatprep.subr.mxu0 0.0
    %710 = vmatpush1.xpose.msra.mxu0 0.0
    %711 = vmatprep.subr.mxu0 0.0
    %712 = vmatpush1.xpose.msra.mxu0 0.0
    %713 = vmatprep.subr.mxu0 0.0
    %714 = vmatpush1.xpose.msra.mxu0 0.0
    %715 = vmatprep.subr.mxu0 0.0
    %716 = vmatpush1.xpose.msra.mxu0 0.0
    %717 = vmatprep.subr.mxu0 0.0
    %718 = vmatpush1.xpose.msra.mxu0 0.0
    %719 = vmatprep.subr.mxu0 0.0
    %720 = vmatpush1.xpose.msra.mxu0 0.0
    %721 = vmatprep.subr.mxu0 0.0
    %722 = vmatpush1.xpose.msra.mxu0 0.0
    %723 = vmatprep.subr.mxu0 0.0
    %724 = vmatpush1.xpose.msra.mxu0 %v691
    %725 = vmatprep.subr.mxu0 0.0
    %726 = vmatpush2.xpose.msra.mxu0 0.0
    %727 = vmatprep.subr.mxu0 0.0
    %728 = vmatpush2.xpose.msra.mxu0 0.0
    %729 = vmatprep.subr.mxu0 0.0
    %730 = vmatpush2.xpose.msra.mxu0 0.0
    %731 = vmatprep.subr.mxu0 0.0
    %732 = vmatpush2.xpose.msra.mxu0 0.0
    %733 = vmatprep.subr.mxu0 0.0
    %734 = vmatpush2.xpose.msra.mxu0 0.0
    %735 = vmatprep.subr.mxu0 0.0
    %736 = vmatpush2.xpose.msra.mxu0 0.0
    %737 = vmatprep.subr.mxu0 0.0
    %738 = vmatpush2.xpose.msra.mxu0 0.0
    %739 = vmatprep.subr.mxu0 0.0
    %740 = vmatpush2.xpose.msra.mxu0 0.0
    %741 = vmatprep.subr.mxu0 0.0
    %742 = vmatpush2.xpose.msra.mxu0 0.0
    %743 = vmatprep.subr.mxu0 0.0
    %744 = vmatpush2.xpose.msra.mxu0 0.0
    %745 = vmatprep.subr.mxu0 0.0
    %746 = vmatpush2.xpose.msra.mxu0 0.0
    %747 = vmatprep.subr.mxu0 0.0
    %748 = vmatpush2.xpose.msra.mxu0 0.0
    %749 = vmatprep.subr.mxu0 0.0
    %750 = vmatpush2.xpose.msra.mxu0 0.0
    %751 = vmatprep.subr.mxu0 0.0
    %752 = vmatpush2.xpose.msra.mxu0 0.0
    %753 = vmatprep.subr.mxu0 0.0
    %754 = vmatpush2.xpose.msra.mxu0 0.0
    %755 = vmatprep.subr.mxu0 0.0
    %756 = vmatpush2.xpose.msra.mxu0 0.0
    %757 = vmatprep.mubr.f32.mxu0 0.0
    %758 = vmatmul.mubr.f32.gmra.mxu0 %v689
    %v759 = vpop.f32.mrf.mxu0
    %v760 = vadd.f32 0.0, %v759
    %v761 = vpop.f32.mrf.mxu0
    %762 = vdwg.mxu0
    %763 = vrot.lane.b32.xlu0 %v213, 96
    %v764 = vpop.permute.xlu0 %763
    %v765 = vsel %vm232, %v213, 0
    %v767 = vsel %vm232, %v764, 0
    %769 = vmatprep.subr.mxu0 0.0
    %770 = vmatpush1.xpose.msra.mxu0 0.0
    %771 = vmatprep.subr.mxu0 0.0
    %772 = vmatpush1.xpose.msra.mxu0 0.0
    %773 = vmatprep.subr.mxu0 0.0
    %774 = vmatpush1.xpose.msra.mxu0 0.0
    %775 = vmatprep.subr.mxu0 0.0
    %776 = vmatpush1.xpose.msra.mxu0 0.0
    %777 = vmatprep.subr.mxu0 0.0
    %778 = vmatpush1.xpose.msra.mxu0 0.0
    %779 = vmatprep.subr.mxu0 0.0
    %780 = vmatpush1.xpose.msra.mxu0 0.0
    %781 = vmatprep.subr.mxu0 0.0
    %782 = vmatpush1.xpose.msra.mxu0 0.0
    %783 = vmatprep.subr.mxu0 0.0
    %784 = vmatpush1.xpose.msra.mxu0 0.0
    %785 = vmatprep.subr.mxu0 0.0
    %786 = vmatpush1.xpose.msra.mxu0 0.0
    %787 = vmatprep.subr.mxu0 0.0
    %788 = vmatpush1.xpose.msra.mxu0 0.0
    %789 = vmatprep.subr.mxu0 0.0
    %790 = vmatpush1.xpose.msra.mxu0 0.0
    %791 = vmatprep.subr.mxu0 0.0
    %792 = vmatpush1.xpose.msra.mxu0 0.0
    %793 = vmatprep.subr.mxu0 0.0
    %794 = vmatpush1.xpose.msra.mxu0 0.0
    %795 = vmatprep.subr.mxu0 0.0
    %796 = vmatpush1.xpose.msra.mxu0 0.0
    %797 = vmatprep.subr.mxu0 0.0
    %798 = vmatpush1.xpose.msra.mxu0 0.0
    %799 = vmatprep.subr.mxu0 0.0
    %800 = vmatpush1.xpose.msra.mxu0 %v767
    %801 = vmatprep.subr.mxu0 0.0
    %802 = vmatpush2.xpose.msra.mxu0 0.0
    %803 = vmatprep.subr.mxu0 0.0
    %804 = vmatpush2.xpose.msra.mxu0 0.0
    %805 = vmatprep.subr.mxu0 0.0
    %806 = vmatpush2.xpose.msra.mxu0 0.0
    %807 = vmatprep.subr.mxu0 0.0
    %808 = vmatpush2.xpose.msra.mxu0 0.0
    %809 = vmatprep.subr.mxu0 0.0
    %810 = vmatpush2.xpose.msra.mxu0 0.0
    %811 = vmatprep.subr.mxu0 0.0
    %812 = vmatpush2.xpose.msra.mxu0 0.0
    %813 = vmatprep.subr.mxu0 0.0
    %814 = vmatpush2.xpose.msra.mxu0 0.0
    %815 = vmatprep.subr.mxu0 0.0
    %816 = vmatpush2.xpose.msra.mxu0 0.0
    %817 = vmatprep.subr.mxu0 0.0
    %818 = vmatpush2.xpose.msra.mxu0 0.0
    %819 = vmatprep.subr.mxu0 0.0
    %820 = vmatpush2.xpose.msra.mxu0 0.0
    %821 = vmatprep.subr.mxu0 0.0
    %822 = vmatpush2.xpose.msra.mxu0 0.0
    %823 = vmatprep.subr.mxu0 0.0
    %824 = vmatpush2.xpose.msra.mxu0 0.0
    %825 = vmatprep.subr.mxu0 0.0
    %826 = vmatpush2.xpose.msra.mxu0 0.0
    %827 = vmatprep.subr.mxu0 0.0
    %828 = vmatpush2.xpose.msra.mxu0 0.0
    %829 = vmatprep.subr.mxu0 0.0
    %830 = vmatpush2.xpose.msra.mxu0 0.0
    %831 = vmatprep.subr.mxu0 0.0
    %832 = vmatpush2.xpose.msra.mxu0 0.0
    %833 = vmatprep.mubr.f32.mxu0 0.0
    %834 = vmatmul.mubr.f32.gmra.mxu0 %v765
    %v835 = vpop.f32.mrf.mxu0
    %v836 = vadd.f32 0.0, %v835
    %v837 = vpop.f32.mrf.mxu0
    %838 = vdwg.mxu0
    %839 = vrot.lane.b32.xlu0 %v215, 96
    %v840 = vpop.permute.xlu0 %839
    %v841 = vsel %vm232, %v215, 0
    %v843 = vsel %vm232, %v840, 0
    %845 = vmatprep.subr.mxu0 0.0
    %846 = vmatpush1.xpose.msra.mxu0 0.0
    %847 = vmatprep.subr.mxu0 0.0
    %848 = vmatpush1.xpose.msra.mxu0 0.0
    %849 = vmatprep.subr.mxu0 0.0
    %850 = vmatpush1.xpose.msra.mxu0 0.0
    %851 = vmatprep.subr.mxu0 0.0
    %852 = vmatpush1.xpose.msra.mxu0 0.0
    %853 = vmatprep.subr.mxu0 0.0
    %854 = vmatpush1.xpose.msra.mxu0 0.0
    %855 = vmatprep.subr.mxu0 0.0
    %856 = vmatpush1.xpose.msra.mxu0 0.0
    %857 = vmatprep.subr.mxu0 0.0
    %858 = vmatpush1.xpose.msra.mxu0 0.0
    %859 = vmatprep.subr.mxu0 0.0
    %860 = vmatpush1.xpose.msra.mxu0 0.0
    %861 = vmatprep.subr.mxu0 0.0
    %862 = vmatpush1.xpose.msra.mxu0 0.0
    %863 = vmatprep.subr.mxu0 0.0
    %864 = vmatpush1.xpose.msra.mxu0 0.0
    %865 = vmatprep.subr.mxu0 0.0
    %866 = vmatpush1.xpose.msra.mxu0 0.0
    %867 = vmatprep.subr.mxu0 0.0
    %868 = vmatpush1.xpose.msra.mxu0 0.0
    %869 = vmatprep.subr.mxu0 0.0
    %870 = vmatpush1.xpose.msra.mxu0 0.0
    %871 = vmatprep.subr.mxu0 0.0
    %872 = vmatpush1.xpose.msra.mxu0 0.0
    %873 = vmatprep.subr.mxu0 0.0
    %874 = vmatpush1.xpose.msra.mxu0 0.0
    %875 = vmatprep.subr.mxu0 0.0
    %876 = vmatpush1.xpose.msra.mxu0 %v843
    %877 = vmatprep.subr.mxu0 0.0
    %878 = vmatpush2.xpose.msra.mxu0 0.0
    %879 = vmatprep.subr.mxu0 0.0
    %880 = vmatpush2.xpose.msra.mxu0 0.0
    %881 = vmatprep.subr.mxu0 0.0
    %882 = vmatpush2.xpose.msra.mxu0 0.0
    %883 = vmatprep.subr.mxu0 0.0
    %884 = vmatpush2.xpose.msra.mxu0 0.0
    %885 = vmatprep.subr.mxu0 0.0
    %886 = vmatpush2.xpose.msra.mxu0 0.0
    %887 = vmatprep.subr.mxu0 0.0
    %888 = vmatpush2.xpose.msra.mxu0 0.0
    %889 = vmatprep.subr.mxu0 0.0
    %890 = vmatpush2.xpose.msra.mxu0 0.0
    %891 = vmatprep.subr.mxu0 0.0
    %892 = vmatpush2.xpose.msra.mxu0 0.0
    %893 = vmatprep.subr.mxu0 0.0
    %894 = vmatpush2.xpose.msra.mxu0 0.0
    %895 = vmatprep.subr.mxu0 0.0
    %896 = vmatpush2.xpose.msra.mxu0 0.0
    %897 = vmatprep.subr.mxu0 0.0
    %898 = vmatpush2.xpose.msra.mxu0 0.0
    %899 = vmatprep.subr.mxu0 0.0
    %900 = vmatpush2.xpose.msra.mxu0 0.0
    %901 = vmatprep.subr.mxu0 0.0
    %902 = vmatpush2.xpose.msra.mxu0 0.0
    %903 = vmatprep.subr.mxu0 0.0
    %904 = vmatpush2.xpose.msra.mxu0 0.0
    %905 = vmatprep.subr.mxu0 0.0
    %906 = vmatpush2.xpose.msra.mxu0 0.0
    %907 = vmatprep.subr.mxu0 0.0
    %908 = vmatpush2.xpose.msra.mxu0 0.0
    %909 = vmatprep.mubr.f32.mxu0 0.0
    %910 = vmatmul.mubr.f32.gmra.mxu0 %v841
    %v911 = vpop.f32.mrf.mxu0
    %v912 = vadd.f32 0.0, %v911
    %v913 = vpop.f32.mrf.mxu0
    %914 = vdwg.mxu0
    %915 = vrot.lane.b32.xlu0 %v217, 96
    %v916 = vpop.permute.xlu0 %915
    %v917 = vsel %vm232, %v217, 0
    %v919 = vsel %vm232, %v916, 0
    %921 = vmatprep.subr.mxu0 0.0
    %922 = vmatpush1.xpose.msra.mxu0 0.0
    %923 = vmatprep.subr.mxu0 0.0
    %924 = vmatpush1.xpose.msra.mxu0 0.0
    %925 = vmatprep.subr.mxu0 0.0
    %926 = vmatpush1.xpose.msra.mxu0 0.0
    %927 = vmatprep.subr.mxu0 0.0
    %928 = vmatpush1.xpose.msra.mxu0 0.0
    %929 = vmatprep.subr.mxu0 0.0
    %930 = vmatpush1.xpose.msra.mxu0 0.0
    %931 = vmatprep.subr.mxu0 0.0
    %932 = vmatpush1.xpose.msra.mxu0 0.0
    %933 = vmatprep.subr.mxu0 0.0
    %934 = vmatpush1.xpose.msra.mxu0 0.0
    %935 = vmatprep.subr.mxu0 0.0
    %936 = vmatpush1.xpose.msra.mxu0 0.0
    %937 = vmatprep.subr.mxu0 0.0
    %938 = vmatpush1.xpose.msra.mxu0 0.0
    %939 = vmatprep.subr.mxu0 0.0
    %940 = vmatpush1.xpose.msra.mxu0 0.0
    %941 = vmatprep.subr.mxu0 0.0
    %942 = vmatpush1.xpose.msra.mxu0 0.0
    %943 = vmatprep.subr.mxu0 0.0
    %944 = vmatpush1.xpose.msra.mxu0 0.0
    %945 = vmatprep.subr.mxu0 0.0
    %946 = vmatpush1.xpose.msra.mxu0 0.0
    %947 = vmatprep.subr.mxu0 0.0
    %948 = vmatpush1.xpose.msra.mxu0 0.0
    %949 = vmatprep.subr.mxu0 0.0
    %950 = vmatpush1.xpose.msra.mxu0 0.0
    %951 = vmatprep.subr.mxu0 0.0
    %952 = vmatpush1.xpose.msra.mxu0 %v919
    %953 = vmatprep.subr.mxu0 0.0
    %954 = vmatpush2.xpose.msra.mxu0 0.0
    %955 = vmatprep.subr.mxu0 0.0
    %956 = vmatpush2.xpose.msra.mxu0 0.0
    %957 = vmatprep.subr.mxu0 0.0
    %958 = vmatpush2.xpose.msra.mxu0 0.0
    %959 = vmatprep.subr.mxu0 0.0
    %960 = vmatpush2.xpose.msra.mxu0 0.0
    %961 = vmatprep.subr.mxu0 0.0
    %962 = vmatpush2.xpose.msra.mxu0 0.0
    %963 = vmatprep.subr.mxu0 0.0
    %964 = vmatpush2.xpose.msra.mxu0 0.0
    %965 = vmatprep.subr.mxu0 0.0
    %966 = vmatpush2.xpose.msra.mxu0 0.0
    %967 = vmatprep.subr.mxu0 0.0
    %968 = vmatpush2.xpose.msra.mxu0 0.0
    %969 = vmatprep.subr.mxu0 0.0
    %970 = vmatpush2.xpose.msra.mxu0 0.0
    %971 = vmatprep.subr.mxu0 0.0
    %972 = vmatpush2.xpose.msra.mxu0 0.0
    %973 = vmatprep.subr.mxu0 0.0
    %974 = vmatpush2.xpose.msra.mxu0 0.0
    %975 = vmatprep.subr.mxu0 0.0
    %976 = vmatpush2.xpose.msra.mxu0 0.0
    %977 = vmatprep.subr.mxu0 0.0
    %978 = vmatpush2.xpose.msra.mxu0 0.0
    %979 = vmatprep.subr.mxu0 0.0
    %980 = vmatpush2.xpose.msra.mxu0 0.0
    %981 = vmatprep.subr.mxu0 0.0
    %982 = vmatpush2.xpose.msra.mxu0 0.0
    %983 = vmatprep.subr.mxu0 0.0
    %984 = vmatpush2.xpose.msra.mxu0 0.0
    %985 = vmatprep.mubr.f32.mxu0 0.0
    %986 = vmatmul.mubr.f32.gmra.mxu0 %v917
    %v987 = vpop.f32.mrf.mxu0
    %v988 = vadd.f32 0.0, %v987
    %v989 = vpop.f32.mrf.mxu0
    %990 = vdwg.mxu0
    %991 = vrot.lane.b32.xlu0 %v219, 96
    %v992 = vpop.permute.xlu0 %991
    %v993 = vsel %vm232, %v219, 0
    %v995 = vsel %vm232, %v992, 0
    %997 = vmatprep.subr.mxu0 0.0
    %998 = vmatpush1.xpose.msra.mxu0 0.0
    %999 = vmatprep.subr.mxu0 0.0
    %1000 = vmatpush1.xpose.msra.mxu0 0.0
    %1001 = vmatprep.subr.mxu0 0.0
    %1002 = vmatpush1.xpose.msra.mxu0 0.0
    %1003 = vmatprep.subr.mxu0 0.0
    %1004 = vmatpush1.xpose.msra.mxu0 0.0
    %1005 = vmatprep.subr.mxu0 0.0
    %1006 = vmatpush1.xpose.msra.mxu0 0.0
    %1007 = vmatprep.subr.mxu0 0.0
    %1008 = vmatpush1.xpose.msra.mxu0 0.0
    %1009 = vmatprep.subr.mxu0 0.0
    %1010 = vmatpush1.xpose.msra.mxu0 0.0
    %1011 = vmatprep.subr.mxu0 0.0
    %1012 = vmatpush1.xpose.msra.mxu0 0.0
    %1013 = vmatprep.subr.mxu0 0.0
    %1014 = vmatpush1.xpose.msra.mxu0 0.0
    %1015 = vmatprep.subr.mxu0 0.0
    %1016 = vmatpush1.xpose.msra.mxu0 0.0
    %1017 = vmatprep.subr.mxu0 0.0
    %1018 = vmatpush1.xpose.msra.mxu0 0.0
    %1019 = vmatprep.subr.mxu0 0.0
    %1020 = vmatpush1.xpose.msra.mxu0 0.0
    %1021 = vmatprep.subr.mxu0 0.0
    %1022 = vmatpush1.xpose.msra.mxu0 0.0
    %1023 = vmatprep.subr.mxu0 0.0
    %1024 = vmatpush1.xpose.msra.mxu0 0.0
    %1025 = vmatprep.subr.mxu0 0.0
    %1026 = vmatpush1.xpose.msra.mxu0 0.0
    %1027 = vmatprep.subr.mxu0 0.0
    %1028 = vmatpush1.xpose.msra.mxu0 %v995
    %1029 = vmatprep.subr.mxu0 0.0
    %1030 = vmatpush2.xpose.msra.mxu0 0.0
    %1031 = vmatprep.subr.mxu0 0.0
    %1032 = vmatpush2.xpose.msra.mxu0 0.0
    %1033 = vmatprep.subr.mxu0 0.0
    %1034 = vmatpush2.xpose.msra.mxu0 0.0
    %1035 = vmatprep.subr.mxu0 0.0
    %1036 = vmatpush2.xpose.msra.mxu0 0.0
    %1037 = vmatprep.subr.mxu0 0.0
    %1038 = vmatpush2.xpose.msra.mxu0 0.0
    %1039 = vmatprep.subr.mxu0 0.0
    %1040 = vmatpush2.xpose.msra.mxu0 0.0
    %1041 = vmatprep.subr.mxu0 0.0
    %1042 = vmatpush2.xpose.msra.mxu0 0.0
    %1043 = vmatprep.subr.mxu0 0.0
    %1044 = vmatpush2.xpose.msra.mxu0 0.0
    %1045 = vmatprep.subr.mxu0 0.0
    %1046 = vmatpush2.xpose.msra.mxu0 0.0
    %1047 = vmatprep.subr.mxu0 0.0
    %1048 = vmatpush2.xpose.msra.mxu0 0.0
    %1049 = vmatprep.subr.mxu0 0.0
    %1050 = vmatpush2.xpose.msra.mxu0 0.0
    %1051 = vmatprep.subr.mxu0 0.0
    %1052 = vmatpush2.xpose.msra.mxu0 0.0
    %1053 = vmatprep.subr.mxu0 0.0
    %1054 = vmatpush2.xpose.msra.mxu0 0.0
    %1055 = vmatprep.subr.mxu0 0.0
    %1056 = vmatpush2.xpose.msra.mxu0 0.0
    %1057 = vmatprep.subr.mxu0 0.0
    %1058 = vmatpush2.xpose.msra.mxu0 0.0
    %1059 = vmatprep.subr.mxu0 0.0
    %1060 = vmatpush2.xpose.msra.mxu0 0.0
    %1061 = vmatprep.mubr.f32.mxu0 0.0
    %1062 = vmatmul.mubr.f32.gmra.mxu0 %v993
    %v1063 = vpop.f32.mrf.mxu0
    %v1064 = vadd.f32 0.0, %v1063
    %v1065 = vpop.f32.mrf.mxu0
    %1066 = vdwg.mxu0
    %1067 = vrot.lane.b32.xlu0 %v221, 96
    %v1068 = vpop.permute.xlu0 %1067
    %v1069 = vsel %vm232, %v221, 0
    %v1071 = vsel %vm232, %v1068, 0
    %1073 = vmatprep.subr.mxu0 0.0
    %1074 = vmatpush1.xpose.msra.mxu0 0.0
    %1075 = vmatprep.subr.mxu0 0.0
    %1076 = vmatpush1.xpose.msra.mxu0 0.0
    %1077 = vmatprep.subr.mxu0 0.0
    %1078 = vmatpush1.xpose.msra.mxu0 0.0
    %1079 = vmatprep.subr.mxu0 0.0
    %1080 = vmatpush1.xpose.msra.mxu0 0.0
    %1081 = vmatprep.subr.mxu0 0.0
    %1082 = vmatpush1.xpose.msra.mxu0 0.0
    %1083 = vmatprep.subr.mxu0 0.0
    %1084 = vmatpush1.xpose.msra.mxu0 0.0
    %1085 = vmatprep.subr.mxu0 0.0
    %1086 = vmatpush1.xpose.msra.mxu0 0.0
    %1087 = vmatprep.subr.mxu0 0.0
    %1088 = vmatpush1.xpose.msra.mxu0 0.0
    %1089 = vmatprep.subr.mxu0 0.0
    %1090 = vmatpush1.xpose.msra.mxu0 0.0
    %1091 = vmatprep.subr.mxu0 0.0
    %1092 = vmatpush1.xpose.msra.mxu0 0.0
    %1093 = vmatprep.subr.mxu0 0.0
    %1094 = vmatpush1.xpose.msra.mxu0 0.0
    %1095 = vmatprep.subr.mxu0 0.0
    %1096 = vmatpush1.xpose.msra.mxu0 0.0
    %1097 = vmatprep.subr.mxu0 0.0
    %1098 = vmatpush1.xpose.msra.mxu0 0.0
    %1099 = vmatprep.subr.mxu0 0.0
    %1100 = vmatpush1.xpose.msra.mxu0 0.0
    %1101 = vmatprep.subr.mxu0 0.0
    %1102 = vmatpush1.xpose.msra.mxu0 0.0
    %1103 = vmatprep.subr.mxu0 0.0
    %1104 = vmatpush1.xpose.msra.mxu0 %v1071
    %1105 = vmatprep.subr.mxu0 0.0
    %1106 = vmatpush2.xpose.msra.mxu0 0.0
    %1107 = vmatprep.subr.mxu0 0.0
    %1108 = vmatpush2.xpose.msra.mxu0 0.0
    %1109 = vmatprep.subr.mxu0 0.0
    %1110 = vmatpush2.xpose.msra.mxu0 0.0
    %1111 = vmatprep.subr.mxu0 0.0
    %1112 = vmatpush2.xpose.msra.mxu0 0.0
    %1113 = vmatprep.subr.mxu0 0.0
    %1114 = vmatpush2.xpose.msra.mxu0 0.0
    %1115 = vmatprep.subr.mxu0 0.0
    %1116 = vmatpush2.xpose.msra.mxu0 0.0
    %1117 = vmatprep.subr.mxu0 0.0
    %1118 = vmatpush2.xpose.msra.mxu0 0.0
    %1119 = vmatprep.subr.mxu0 0.0
    %1120 = vmatpush2.xpose.msra.mxu0 0.0
    %1121 = vmatprep.subr.mxu0 0.0
    %1122 = vmatpush2.xpose.msra.mxu0 0.0
    %1123 = vmatprep.subr.mxu0 0.0
    %1124 = vmatpush2.xpose.msra.mxu0 0.0
    %1125 = vmatprep.subr.mxu0 0.0
    %1126 = vmatpush2.xpose.msra.mxu0 0.0
    %1127 = vmatprep.subr.mxu0 0.0
    %1128 = vmatpush2.xpose.msra.mxu0 0.0
    %1129 = vmatprep.subr.mxu0 0.0
    %1130 = vmatpush2.xpose.msra.mxu0 0.0
    %1131 = vmatprep.subr.mxu0 0.0
    %1132 = vmatpush2.xpose.msra.mxu0 0.0
    %1133 = vmatprep.subr.mxu0 0.0
    %1134 = vmatpush2.xpose.msra.mxu0 0.0
    %1135 = vmatprep.subr.mxu0 0.0
    %1136 = vmatpush2.xpose.msra.mxu0 0.0
    %1137 = vmatprep.mubr.f32.mxu0 0.0
    %1138 = vmatmul.mubr.f32.gmra.mxu0 %v1069
    %v1139 = vpop.f32.mrf.mxu0
    %v1140 = vadd.f32 0.0, %v1139
    %v1141 = vpop.f32.mrf.mxu0
    %1142 = vdwg.mxu0
    %1143 = vrot.lane.b32.xlu0 %v223, 96
    %v1144 = vpop.permute.xlu0 %1143
    %v1145 = vsel %vm232, %v223, 0
    %v1147 = vsel %vm232, %v1144, 0
    %1149 = vmatprep.subr.mxu0 0.0
    %1150 = vmatpush1.xpose.msra.mxu0 0.0
    %1151 = vmatprep.subr.mxu0 0.0
    %1152 = vmatpush1.xpose.msra.mxu0 0.0
    %1153 = vmatprep.subr.mxu0 0.0
    %1154 = vmatpush1.xpose.msra.mxu0 0.0
    %1155 = vmatprep.subr.mxu0 0.0
    %1156 = vmatpush1.xpose.msra.mxu0 0.0
    %1157 = vmatprep.subr.mxu0 0.0
    %1158 = vmatpush1.xpose.msra.mxu0 0.0
    %1159 = vmatprep.subr.mxu0 0.0
    %1160 = vmatpush1.xpose.msra.mxu0 0.0
    %1161 = vmatprep.subr.mxu0 0.0
    %1162 = vmatpush1.xpose.msra.mxu0 0.0
    %1163 = vmatprep.subr.mxu0 0.0
    %1164 = vmatpush1.xpose.msra.mxu0 0.0
    %1165 = vmatprep.subr.mxu0 0.0
    %1166 = vmatpush1.xpose.msra.mxu0 0.0
    %1167 = vmatprep.subr.mxu0 0.0
    %1168 = vmatpush1.xpose.msra.mxu0 0.0
    %1169 = vmatprep.subr.mxu0 0.0
    %1170 = vmatpush1.xpose.msra.mxu0 0.0
    %1171 = vmatprep.subr.mxu0 0.0
    %1172 = vmatpush1.xpose.msra.mxu0 0.0
    %1173 = vmatprep.subr.mxu0 0.0
    %1174 = vmatpush1.xpose.msra.mxu0 0.0
    %1175 = vmatprep.subr.mxu0 0.0
    %1176 = vmatpush1.xpose.msra.mxu0 0.0
    %1177 = vmatprep.subr.mxu0 0.0
    %1178 = vmatpush1.xpose.msra.mxu0 0.0
    %1179 = vmatprep.subr.mxu0 0.0
    %1180 = vmatpush1.xpose.msra.mxu0 %v1147
    %1181 = vmatprep.subr.mxu0 0.0
    %1182 = vmatpush2.xpose.msra.mxu0 0.0
    %1183 = vmatprep.subr.mxu0 0.0
    %1184 = vmatpush2.xpose.msra.mxu0 0.0
    %1185 = vmatprep.subr.mxu0 0.0
    %1186 = vmatpush2.xpose.msra.mxu0 0.0
    %1187 = vmatprep.subr.mxu0 0.0
    %1188 = vmatpush2.xpose.msra.mxu0 0.0
    %1189 = vmatprep.subr.mxu0 0.0
    %1190 = vmatpush2.xpose.msra.mxu0 0.0
    %1191 = vmatprep.subr.mxu0 0.0
    %1192 = vmatpush2.xpose.msra.mxu0 0.0
    %1193 = vmatprep.subr.mxu0 0.0
    %1194 = vmatpush2.xpose.msra.mxu0 0.0
    %1195 = vmatprep.subr.mxu0 0.0
    %1196 = vmatpush2.xpose.msra.mxu0 0.0
    %1197 = vmatprep.subr.mxu0 0.0
    %1198 = vmatpush2.xpose.msra.mxu0 0.0
    %1199 = vmatprep.subr.mxu0 0.0
    %1200 = vmatpush2.xpose.msra.mxu0 0.0
    %1201 = vmatprep.subr.mxu0 0.0
    %1202 = vmatpush2.xpose.msra.mxu0 0.0
    %1203 = vmatprep.subr.mxu0 0.0
    %1204 = vmatpush2.xpose.msra.mxu0 0.0
    %1205 = vmatprep.subr.mxu0 0.0
    %1206 = vmatpush2.xpose.msra.mxu0 0.0
    %1207 = vmatprep.subr.mxu0 0.0
    %1208 = vmatpush2.xpose.msra.mxu0 0.0
    %1209 = vmatprep.subr.mxu0 0.0
    %1210 = vmatpush2.xpose.msra.mxu0 0.0
    %1211 = vmatprep.subr.mxu0 0.0
    %1212 = vmatpush2.xpose.msra.mxu0 0.0
    %1213 = vmatprep.mubr.f32.mxu0 0.0
    %1214 = vmatmul.mubr.f32.gmra.mxu0 %v1145
    %v1215 = vpop.f32.mrf.mxu0
    %v1216 = vadd.f32 0.0, %v1215
    %v1217 = vpop.f32.mrf.mxu0
    %1218 = vdwg.mxu0
    %1219 = vrot.lane.b32.xlu0 %v225, 96
    %v1220 = vpop.permute.xlu0 %1219
    %v1221 = vsel %vm232, %v225, 0
    %v1223 = vsel %vm232, %v1220, 0
    %1225 = vmatprep.subr.mxu0 0.0
    %1226 = vmatpush1.xpose.msra.mxu0 0.0
    %1227 = vmatprep.subr.mxu0 0.0
    %1228 = vmatpush1.xpose.msra.mxu0 0.0
    %1229 = vmatprep.subr.mxu0 0.0
    %1230 = vmatpush1.xpose.msra.mxu0 0.0
    %1231 = vmatprep.subr.mxu0 0.0
    %1232 = vmatpush1.xpose.msra.mxu0 0.0
    %1233 = vmatprep.subr.mxu0 0.0
    %1234 = vmatpush1.xpose.msra.mxu0 0.0
    %1235 = vmatprep.subr.mxu0 0.0
    %1236 = vmatpush1.xpose.msra.mxu0 0.0
    %1237 = vmatprep.subr.mxu0 0.0
    %1238 = vmatpush1.xpose.msra.mxu0 0.0
    %1239 = vmatprep.subr.mxu0 0.0
    %1240 = vmatpush1.xpose.msra.mxu0 0.0
    %1241 = vmatprep.subr.mxu0 0.0
    %1242 = vmatpush1.xpose.msra.mxu0 0.0
    %1243 = vmatprep.subr.mxu0 0.0
    %1244 = vmatpush1.xpose.msra.mxu0 0.0
    %1245 = vmatprep.subr.mxu0 0.0
    %1246 = vmatpush1.xpose.msra.mxu0 0.0
    %1247 = vmatprep.subr.mxu0 0.0
    %1248 = vmatpush1.xpose.msra.mxu0 0.0
    %1249 = vmatprep.subr.mxu0 0.0
    %1250 = vmatpush1.xpose.msra.mxu0 0.0
    %1251 = vmatprep.subr.mxu0 0.0
    %1252 = vmatpush1.xpose.msra.mxu0 0.0
    %1253 = vmatprep.subr.mxu0 0.0
    %1254 = vmatpush1.xpose.msra.mxu0 0.0
    %1255 = vmatprep.subr.mxu0 0.0
    %1256 = vmatpush1.xpose.msra.mxu0 %v1223
    %1257 = vmatprep.subr.mxu0 0.0
    %1258 = vmatpush2.xpose.msra.mxu0 0.0
    %1259 = vmatprep.subr.mxu0 0.0
    %1260 = vmatpush2.xpose.msra.mxu0 0.0
    %1261 = vmatprep.subr.mxu0 0.0
    %1262 = vmatpush2.xpose.msra.mxu0 0.0
    %1263 = vmatprep.subr.mxu0 0.0
    %1264 = vmatpush2.xpose.msra.mxu0 0.0
    %1265 = vmatprep.subr.mxu0 0.0
    %1266 = vmatpush2.xpose.msra.mxu0 0.0
    %1267 = vmatprep.subr.mxu0 0.0
    %1268 = vmatpush2.xpose.msra.mxu0 0.0
    %1269 = vmatprep.subr.mxu0 0.0
    %1270 = vmatpush2.xpose.msra.mxu0 0.0
    %1271 = vmatprep.subr.mxu0 0.0
    %1272 = vmatpush2.xpose.msra.mxu0 0.0
    %1273 = vmatprep.subr.mxu0 0.0
    %1274 = vmatpush2.xpose.msra.mxu0 0.0
    %1275 = vmatprep.subr.mxu0 0.0
    %1276 = vmatpush2.xpose.msra.mxu0 0.0
    %1277 = vmatprep.subr.mxu0 0.0
    %1278 = vmatpush2.xpose.msra.mxu0 0.0
    %1279 = vmatprep.subr.mxu0 0.0
    %1280 = vmatpush2.xpose.msra.mxu0 0.0
    %1281 = vmatprep.subr.mxu0 0.0
    %1282 = vmatpush2.xpose.msra.mxu0 0.0
    %1283 = vmatprep.subr.mxu0 0.0
    %1284 = vmatpush2.xpose.msra.mxu0 0.0
    %1285 = vmatprep.subr.mxu0 0.0
    %1286 = vmatpush2.xpose.msra.mxu0 0.0
    %1287 = vmatprep.subr.mxu0 0.0
    %1288 = vmatpush2.xpose.msra.mxu0 0.0
    %1289 = vmatprep.mubr.f32.mxu0 0.0
    %1290 = vmatmul.mubr.f32.gmra.mxu0 %v1221
    %v1291 = vpop.f32.mrf.mxu0
    %v1292 = vadd.f32 0.0, %v1291
    %v1293 = vpop.f32.mrf.mxu0
    %1294 = vdwg.mxu0
    %1295 = vrot.lane.b32.xlu0 %v227, 96
    %v1296 = vpop.permute.xlu0 %1295
    %v1297 = vsel %vm232, %v227, 0
    %v1299 = vsel %vm232, %v1296, 0
    %1301 = vmatprep.subr.mxu0 0.0
    %1302 = vmatpush1.xpose.msra.mxu0 0.0
    %1303 = vmatprep.subr.mxu0 0.0
    %1304 = vmatpush1.xpose.msra.mxu0 0.0
    %1305 = vmatprep.subr.mxu0 0.0
    %1306 = vmatpush1.xpose.msra.mxu0 0.0
    %1307 = vmatprep.subr.mxu0 0.0
    %1308 = vmatpush1.xpose.msra.mxu0 0.0
    %1309 = vmatprep.subr.mxu0 0.0
    %1310 = vmatpush1.xpose.msra.mxu0 0.0
    %1311 = vmatprep.subr.mxu0 0.0
    %1312 = vmatpush1.xpose.msra.mxu0 0.0
    %1313 = vmatprep.subr.mxu0 0.0
    %1314 = vmatpush1.xpose.msra.mxu0 0.0
    %1315 = vmatprep.subr.mxu0 0.0
    %1316 = vmatpush1.xpose.msra.mxu0 0.0
    %1317 = vmatprep.subr.mxu0 0.0
    %1318 = vmatpush1.xpose.msra.mxu0 0.0
    %1319 = vmatprep.subr.mxu0 0.0
    %1320 = vmatpush1.xpose.msra.mxu0 0.0
    %1321 = vmatprep.subr.mxu0 0.0
    %1322 = vmatpush1.xpose.msra.mxu0 0.0
    %1323 = vmatprep.subr.mxu0 0.0
    %1324 = vmatpush1.xpose.msra.mxu0 0.0
    %1325 = vmatprep.subr.mxu0 0.0
    %1326 = vmatpush1.xpose.msra.mxu0 0.0
    %1327 = vmatprep.subr.mxu0 0.0
    %1328 = vmatpush1.xpose.msra.mxu0 0.0
    %1329 = vmatprep.subr.mxu0 0.0
    %1330 = vmatpush1.xpose.msra.mxu0 0.0
    %1331 = vmatprep.subr.mxu0 0.0
    %1332 = vmatpush1.xpose.msra.mxu0 %v1299
    %1333 = vmatprep.subr.mxu0 0.0
    %1334 = vmatpush2.xpose.msra.mxu0 0.0
    %1335 = vmatprep.subr.mxu0 0.0
    %1336 = vmatpush2.xpose.msra.mxu0 0.0
    %1337 = vmatprep.subr.mxu0 0.0
    %1338 = vmatpush2.xpose.msra.mxu0 0.0
    %1339 = vmatprep.subr.mxu0 0.0
    %1340 = vmatpush2.xpose.msra.mxu0 0.0
    %1341 = vmatprep.subr.mxu0 0.0
    %1342 = vmatpush2.xpose.msra.mxu0 0.0
    %1343 = vmatprep.subr.mxu0 0.0
    %1344 = vmatpush2.xpose.msra.mxu0 0.0
    %1345 = vmatprep.subr.mxu0 0.0
    %1346 = vmatpush2.xpose.msra.mxu0 0.0
    %1347 = vmatprep.subr.mxu0 0.0
    %1348 = vmatpush2.xpose.msra.mxu0 0.0
    %1349 = vmatprep.subr.mxu0 0.0
    %1350 = vmatpush2.xpose.msra.mxu0 0.0
    %1351 = vmatprep.subr.mxu0 0.0
    %1352 = vmatpush2.xpose.msra.mxu0 0.0
    %1353 = vmatprep.subr.mxu0 0.0
    %1354 = vmatpush2.xpose.msra.mxu0 0.0
    %1355 = vmatprep.subr.mxu0 0.0
    %1356 = vmatpush2.xpose.msra.mxu0 0.0
    %1357 = vmatprep.subr.mxu0 0.0
    %1358 = vmatpush2.xpose.msra.mxu0 0.0
    %1359 = vmatprep.subr.mxu0 0.0
    %1360 = vmatpush2.xpose.msra.mxu0 0.0
    %1361 = vmatprep.subr.mxu0 0.0
    %1362 = vmatpush2.xpose.msra.mxu0 0.0
    %1363 = vmatprep.subr.mxu0 0.0
    %1364 = vmatpush2.xpose.msra.mxu0 0.0
    %1365 = vmatprep.mubr.f32.mxu0 0.0
    %1366 = vmatmul.mubr.f32.gmra.mxu0 %v1297
    %v1367 = vpop.f32.mrf.mxu0
    %v1368 = vadd.f32 0.0, %v1367
    %v1369 = vpop.f32.mrf.mxu0
    %1370 = vdwg.mxu0
    %1371 = vrot.lane.b32.xlu0 %v229, 96
    %v1372 = vpop.permute.xlu0 %1371
    %v1373 = vsel %vm232, %v229, 0
    %v1375 = vsel %vm232, %v1372, 0
    %1377 = vmatprep.subr.mxu0 0.0
    %1378 = vmatpush1.xpose.msra.mxu0 0.0
    %1379 = vmatprep.subr.mxu0 0.0
    %1380 = vmatpush1.xpose.msra.mxu0 0.0
    %1381 = vmatprep.subr.mxu0 0.0
    %1382 = vmatpush1.xpose.msra.mxu0 0.0
    %1383 = vmatprep.subr.mxu0 0.0
    %1384 = vmatpush1.xpose.msra.mxu0 0.0
    %1385 = vmatprep.subr.mxu0 0.0
    %1386 = vmatpush1.xpose.msra.mxu0 0.0
    %1387 = vmatprep.subr.mxu0 0.0
    %1388 = vmatpush1.xpose.msra.mxu0 0.0
    %1389 = vmatprep.subr.mxu0 0.0
    %1390 = vmatpush1.xpose.msra.mxu0 0.0
    %1391 = vmatprep.subr.mxu0 0.0
    %1392 = vmatpush1.xpose.msra.mxu0 0.0
    %1393 = vmatprep.subr.mxu0 0.0
    %1394 = vmatpush1.xpose.msra.mxu0 0.0
    %1395 = vmatprep.subr.mxu0 0.0
    %1396 = vmatpush1.xpose.msra.mxu0 0.0
    %1397 = vmatprep.subr.mxu0 0.0
    %1398 = vmatpush1.xpose.msra.mxu0 0.0
    %1399 = vmatprep.subr.mxu0 0.0
    %1400 = vmatpush1.xpose.msra.mxu0 0.0
    %1401 = vmatprep.subr.mxu0 0.0
    %1402 = vmatpush1.xpose.msra.mxu0 0.0
    %1403 = vmatprep.subr.mxu0 0.0
    %1404 = vmatpush1.xpose.msra.mxu0 0.0
    %1405 = vmatprep.subr.mxu0 0.0
    %1406 = vmatpush1.xpose.msra.mxu0 0.0
    %1407 = vmatprep.subr.mxu0 0.0
    %1408 = vmatpush1.xpose.msra.mxu0 %v1375
    %1409 = vmatprep.subr.mxu0 0.0
    %1410 = vmatpush2.xpose.msra.mxu0 0.0
    %1411 = vmatprep.subr.mxu0 0.0
    %1412 = vmatpush2.xpose.msra.mxu0 0.0
    %1413 = vmatprep.subr.mxu0 0.0
    %1414 = vmatpush2.xpose.msra.mxu0 0.0
    %1415 = vmatprep.subr.mxu0 0.0
    %1416 = vmatpush2.xpose.msra.mxu0 0.0
    %1417 = vmatprep.subr.mxu0 0.0
    %1418 = vmatpush2.xpose.msra.mxu0 0.0
    %1419 = vmatprep.subr.mxu0 0.0
    %1420 = vmatpush2.xpose.msra.mxu0 0.0
    %1421 = vmatprep.subr.mxu0 0.0
    %1422 = vmatpush2.xpose.msra.mxu0 0.0
    %1423 = vmatprep.subr.mxu0 0.0
    %1424 = vmatpush2.xpose.msra.mxu0 0.0
    %1425 = vmatprep.subr.mxu0 0.0
    %1426 = vmatpush2.xpose.msra.mxu0 0.0
    %1427 = vmatprep.subr.mxu0 0.0
    %1428 = vmatpush2.xpose.msra.mxu0 0.0
    %1429 = vmatprep.subr.mxu0 0.0
    %1430 = vmatpush2.xpose.msra.mxu0 0.0
    %1431 = vmatprep.subr.mxu0 0.0
    %1432 = vmatpush2.xpose.msra.mxu0 0.0
    %1433 = vmatprep.subr.mxu0 0.0
    %1434 = vmatpush2.xpose.msra.mxu0 0.0
    %1435 = vmatprep.subr.mxu0 0.0
    %1436 = vmatpush2.xpose.msra.mxu0 0.0
    %1437 = vmatprep.subr.mxu0 0.0
    %1438 = vmatpush2.xpose.msra.mxu0 0.0
    %1439 = vmatprep.subr.mxu0 0.0
    %1440 = vmatpush2.xpose.msra.mxu0 0.0
    %1441 = vmatprep.mubr.f32.mxu0 0.0
    %1442 = vmatmul.mubr.f32.gmra.mxu0 %v1373
    %v1443 = vpop.f32.mrf.mxu0
    %v1444 = vadd.f32 0.0, %v1443
    %v1445 = vpop.f32.mrf.mxu0
    %1446 = vdwg.mxu0
    %vm1447 = vcmask 64512
    %v1448 = vsel %vm1447, %v304, -inf
    %1449 = vmax.xlane.f32.xlu0 %v1448
    %v1450 = vpop.xlane.xlu0 %1449
    %v1451 = vsel %vm1447, %v380, -inf
    %1452 = vmax.xlane.f32.xlu0 %v1451
    %v1453 = vpop.xlane.xlu0 %1452
    %v1454 = vsel %vm1447, %v456, -inf
    %1455 = vmax.xlane.f32.xlu0 %v1454
    %v1456 = vpop.xlane.xlu0 %1455
    %v1457 = vsel %vm1447, %v532, -inf
    %1458 = vmax.xlane.f32.xlu0 %v1457
    %v1459 = vpop.xlane.xlu0 %1458
    %v1460 = vsel %vm1447, %v608, -inf
    %1461 = vmax.xlane.f32.xlu0 %v1460
    %v1462 = vpop.xlane.xlu0 %1461
    %v1463 = vsel %vm1447, %v684, -inf
    %1464 = vmax.xlane.f32.xlu0 %v1463
    %v1465 = vpop.xlane.xlu0 %1464
    %v1466 = vsel %vm1447, %v760, -inf
    %1467 = vmax.xlane.f32.xlu0 %v1466
    %v1468 = vpop.xlane.xlu0 %1467
    %v1469 = vsel %vm1447, %v836, -inf
    %1470 = vmax.xlane.f32.xlu0 %v1469
    %v1471 = vpop.xlane.xlu0 %1470
    %v1472 = vsel %vm1447, %v912, -inf
    %1473 = vmax.xlane.f32.xlu0 %v1472
    %v1474 = vpop.xlane.xlu0 %1473
    %v1475 = vsel %vm1447, %v988, -inf
    %1476 = vmax.xlane.f32.xlu0 %v1475
    %v1477 = vpop.xlane.xlu0 %1476
    %v1478 = vsel %vm1447, %v1064, -inf
    %1479 = vmax.xlane.f32.xlu0 %v1478
    %v1480 = vpop.xlane.xlu0 %1479
    %v1481 = vsel %vm1447, %v1140, -inf
    %1482 = vmax.xlane.f32.xlu0 %v1481
    %v1483 = vpop.xlane.xlu0 %1482
    %v1484 = vsel %vm1447, %v1216, -inf
    %1485 = vmax.xlane.f32.xlu0 %v1484
    %v1486 = vpop.xlane.xlu0 %1485
    %v1487 = vsel %vm1447, %v1292, -inf
    %1488 = vmax.xlane.f32.xlu0 %v1487
    %v1489 = vpop.xlane.xlu0 %1488
    %v1490 = vsel %vm1447, %v1368, -inf
    %1491 = vmax.xlane.f32.xlu0 %v1490
    %v1492 = vpop.xlane.xlu0 %1491
    %v1493 = vsel %vm1447, %v1444, -inf
    %1494 = vmax.xlane.f32.xlu0 %v1493
    %v1495 = vpop.xlane.xlu0 %1494
    %v1496 = vsub.f32 %v304, %v1450
    %v1497 = vsub.f32 %v380, %v1453
    %v1498 = vsub.f32 %v456, %v1456
    %v1499 = vsub.f32 %v532, %v1459
    %v1500 = vsub.f32 %v608, %v1462
    %v1501 = vsub.f32 %v684, %v1465
    %v1502 = vsub.f32 %v760, %v1468
    %v1503 = vsub.f32 %v836, %v1471
    %v1504 = vsub.f32 %v912, %v1474
    %v1505 = vsub.f32 %v988, %v1477
    %v1506 = vsub.f32 %v1064, %v1480
    %v1507 = vsub.f32 %v1140, %v1483
    %v1508 = vsub.f32 %v1216, %v1486
    %v1509 = vsub.f32 %v1292, %v1489
    %v1510 = vsub.f32 %v1368, %v1492
    %v1511 = vsub.f32 %v1444, %v1495
    %v1512 = vmul.f32 %v1496, 1.442695
    %v1513 = vpow.pop %v1512
    %v1514 = vmul.f32 %v1497, 1.442695
    %v1515 = vpow.pop %v1514
    %v1516 = vmul.f32 %v1498, 1.442695
    %v1517 = vpow.pop %v1516
    %v1518 = vmul.f32 %v1499, 1.442695
    %v1519 = vpow.pop %v1518
    %v1520 = vmul.f32 %v1500, 1.442695
    %v1521 = vpow.pop %v1520
    %v1522 = vmul.f32 %v1501, 1.442695
    %v1523 = vpow.pop %v1522
    %v1524 = vmul.f32 %v1502, 1.442695
    %v1525 = vpow.pop %v1524
    %v1526 = vmul.f32 %v1503, 1.442695
    %v1527 = vpow.pop %v1526
    %v1528 = vmul.f32 %v1504, 1.442695
    %v1529 = vpow.pop %v1528
    %v1530 = vmul.f32 %v1505, 1.442695
    %v1531 = vpow.pop %v1530
    %v1532 = vmul.f32 %v1506, 1.442695
    %v1533 = vpow.pop %v1532
    %v1534 = vmul.f32 %v1507, 1.442695
    %v1535 = vpow.pop %v1534
    %v1536 = vmul.f32 %v1508, 1.442695
    %v1537 = vpow.pop %v1536
    %v1538 = vmul.f32 %v1509, 1.442695
    %v1539 = vpow.pop %v1538
    %v1540 = vmul.f32 %v1510, 1.442695
    %v1541 = vpow.pop %v1540
    %v1542 = vmul.f32 %v1511, 1.442695
    %v1543 = vpow.pop %v1542
    %v1544 = vsel %vm1447, %v1513, 0.0
    %1545 = vadd.xlane.f32.xlu0 %v1544
    %v1546 = vpop.xlane.xlu0 %1545
    %v1547 = vsel %vm1447, %v1515, 0.0
    %1548 = vadd.xlane.f32.xlu0 %v1547
    %v1549 = vpop.xlane.xlu0 %1548
    %v1550 = vsel %vm1447, %v1517, 0.0
    %1551 = vadd.xlane.f32.xlu0 %v1550
    %v1552 = vpop.xlane.xlu0 %1551
    %v1553 = vsel %vm1447, %v1519, 0.0
    %1554 = vadd.xlane.f32.xlu0 %v1553
    %v1555 = vpop.xlane.xlu0 %1554
    %v1556 = vsel %vm1447, %v1521, 0.0
    %1557 = vadd.xlane.f32.xlu0 %v1556
    %v1558 = vpop.xlane.xlu0 %1557
    %v1559 = vsel %vm1447, %v1523, 0.0
    %1560 = vadd.xlane.f32.xlu0 %v1559
    %v1561 = vpop.xlane.xlu0 %1560
    %v1562 = vsel %vm1447, %v1525, 0.0
    %1563 = vadd.xlane.f32.xlu0 %v1562
    %v1564 = vpop.xlane.xlu0 %1563
    %v1565 = vsel %vm1447, %v1527, 0.0
    %1566 = vadd.xlane.f32.xlu0 %v1565
    %v1567 = vpop.xlane.xlu0 %1566
    %v1568 = vsel %vm1447, %v1529, 0.0
    %1569 = vadd.xlane.f32.xlu0 %v1568
    %v1570 = vpop.xlane.xlu0 %1569
    %v1571 = vsel %vm1447, %v1531, 0.0
    %1572 = vadd.xlane.f32.xlu0 %v1571
    %v1573 = vpop.xlane.xlu0 %1572
    %v1574 = vsel %vm1447, %v1533, 0.0
    %1575 = vadd.xlane.f32.xlu0 %v1574
    %v1576 = vpop.xlane.xlu0 %1575
    %v1577 = vsel %vm1447, %v1535, 0.0
    %1578 = vadd.xlane.f32.xlu0 %v1577
    %v1579 = vpop.xlane.xlu0 %1578
    %v1580 = vsel %vm1447, %v1537, 0.0
    %1581 = vadd.xlane.f32.xlu0 %v1580
    %v1582 = vpop.xlane.xlu0 %1581
    %v1583 = vsel %vm1447, %v1539, 0.0
    %1584 = vadd.xlane.f32.xlu0 %v1583
    %v1585 = vpop.xlane.xlu0 %1584
    %v1586 = vsel %vm1447, %v1541, 0.0
    %1587 = vadd.xlane.f32.xlu0 %v1586
    %v1588 = vpop.xlane.xlu0 %1587
    %v1589 = vsel %vm1447, %v1543, 0.0
    %1590 = vadd.xlane.f32.xlu0 %v1589
    %v1591 = vpop.xlane.xlu0 %1590
    %v1592 = vrcp.pop %v1546
    %v1593 = vrcp.pop %v1549
    %v1594 = vrcp.pop %v1552
    %v1595 = vrcp.pop %v1555
    %v1596 = vrcp.pop %v1558
    %v1597 = vrcp.pop %v1561
    %v1598 = vrcp.pop %v1564
    %v1599 = vrcp.pop %v1567
    %v1600 = vrcp.pop %v1570
    %v1601 = vrcp.pop %v1573
    %v1602 = vrcp.pop %v1576
    %v1603 = vrcp.pop %v1579
    %v1604 = vrcp.pop %v1582
    %v1605 = vrcp.pop %v1585
    %v1606 = vrcp.pop %v1588
    %v1607 = vrcp.pop %v1591
    %v1608 = vmul.f32 %v1513, %v1592
    %v1609 = vmul.f32 %v1515, %v1593
    %v1610 = vmul.f32 %v1517, %v1594
    %v1611 = vmul.f32 %v1519, %v1595
    %v1612 = vmul.f32 %v1521, %v1596
    %v1613 = vmul.f32 %v1523, %v1597
    %v1614 = vmul.f32 %v1525, %v1598
    %v1615 = vmul.f32 %v1527, %v1599
    %v1616 = vmul.f32 %v1529, %v1600
    %v1617 = vmul.f32 %v1531, %v1601
    %v1618 = vmul.f32 %v1533, %v1602
    %v1619 = vmul.f32 %v1535, %v1603
    %v1620 = vmul.f32 %v1537, %v1604
    %v1621 = vmul.f32 %v1539, %v1605
    %v1622 = vmul.f32 %v1541, %v1606
    %v1623 = vmul.f32 %v1543, %v1607
    %1624 = vrot.lane.b32.xlu0 %v192, 64
    %v1625 = vpop.permute.xlu0 %1624
    %v1628 = vsel %vm1447, %v1608, 0
    %1630 = vmatprep.subr.mxu0 0.0
    %1631 = vmatpush1.msra.mxu0 0.0
    %1632 = vmatprep.subr.mxu0 0.0
    %1633 = vmatpush1.msra.mxu0 0.0
    %1634 = vmatprep.subr.mxu0 0.0
    %1635 = vmatpush1.msra.mxu0 0.0
    %1636 = vmatprep.subr.mxu0 0.0
    %1637 = vmatpush1.msra.mxu0 0.0
    %1638 = vmatprep.subr.mxu0 0.0
    %1639 = vmatpush1.msra.mxu0 0.0
    %1640 = vmatprep.subr.mxu0 0.0
    %1641 = vmatpush1.msra.mxu0 0.0
    %1642 = vmatprep.subr.mxu0 0.0
    %1643 = vmatpush1.msra.mxu0 0.0
    %1644 = vmatprep.subr.mxu0 0.0
    %1645 = vmatpush1.msra.mxu0 0.0
    %1646 = vmatprep.subr.mxu0 0.0
    %1647 = vmatpush1.msra.mxu0 0.0
    %1648 = vmatprep.subr.mxu0 0.0
    %1649 = vmatpush1.msra.mxu0 0.0
    %1650 = vmatprep.subr.mxu0 0.0
    %1651 = vmatpush1.msra.mxu0 0.0
    %1652 = vmatprep.subr.mxu0 0.0
    %1653 = vmatpush1.msra.mxu0 0.0
    %1654 = vmatprep.subr.mxu0 0.0
    %1655 = vmatpush1.msra.mxu0 0.0
    %1656 = vmatprep.subr.mxu0 0.0
    %1657 = vmatpush1.msra.mxu0 0.0
    %1658 = vmatprep.subr.mxu0 0.0
    %1659 = vmatpush1.msra.mxu0 0.0
    %1660 = vmatprep.subr.mxu0 0.0
    %1661 = vmatpush1.msra.mxu0 %v1625
    %1662 = vmatprep.subr.mxu0 0.0
    %1663 = vmatpush2.msra.mxu0 0.0
    %1664 = vmatprep.subr.mxu0 0.0
    %1665 = vmatpush2.msra.mxu0 0.0
    %1666 = vmatprep.subr.mxu0 0.0
    %1667 = vmatpush2.msra.mxu0 0.0
    %1668 = vmatprep.subr.mxu0 0.0
    %1669 = vmatpush2.msra.mxu0 0.0
    %1670 = vmatprep.subr.mxu0 0.0
    %1671 = vmatpush2.msra.mxu0 0.0
    %1672 = vmatprep.subr.mxu0 0.0
    %1673 = vmatpush2.msra.mxu0 0.0
    %1674 = vmatprep.subr.mxu0 0.0
    %1675 = vmatpush2.msra.mxu0 0.0
    %1676 = vmatprep.subr.mxu0 0.0
    %1677 = vmatpush2.msra.mxu0 0.0
    %1678 = vmatprep.subr.mxu0 0.0
    %1679 = vmatpush2.msra.mxu0 0.0
    %1680 = vmatprep.subr.mxu0 0.0
    %1681 = vmatpush2.msra.mxu0 0.0
    %1682 = vmatprep.subr.mxu0 0.0
    %1683 = vmatpush2.msra.mxu0 0.0
    %1684 = vmatprep.subr.mxu0 0.0
    %1685 = vmatpush2.msra.mxu0 0.0
    %1686 = vmatprep.subr.mxu0 0.0
    %1687 = vmatpush2.msra.mxu0 0.0
    %1688 = vmatprep.subr.mxu0 0.0
    %1689 = vmatpush2.msra.mxu0 0.0
    %1690 = vmatprep.subr.mxu0 0.0
    %1691 = vmatpush2.msra.mxu0 0.0
    %1692 = vmatprep.subr.mxu0 0.0
    %1693 = vmatpush2.msra.mxu0 0.0
    %1694 = vmatprep.mubr.f32.mxu0 0.0
    %1695 = vmatmul.mubr.f32.gmra.mxu0 %v1628
    %v1696 = vpop.f32.mrf.mxu0
    %v1697 = vadd.f32 0.0, %v1696
    %v1698 = vpop.f32.mrf.mxu0
    %1699 = vdwg.mxu0
    %1700 = vrot.lane.b32.xlu0 %v197, 64
    %v1701 = vpop.permute.xlu0 %1700
    %v1704 = vsel %vm1447, %v1609, 0
    %1706 = vmatprep.subr.mxu0 0.0
    %1707 = vmatpush1.msra.mxu0 0.0
    %1708 = vmatprep.subr.mxu0 0.0
    %1709 = vmatpush1.msra.mxu0 0.0
    %1710 = vmatprep.subr.mxu0 0.0
    %1711 = vmatpush1.msra.mxu0 0.0
    %1712 = vmatprep.subr.mxu0 0.0
    %1713 = vmatpush1.msra.mxu0 0.0
    %1714 = vmatprep.subr.mxu0 0.0
    %1715 = vmatpush1.msra.mxu0 0.0
    %1716 = vmatprep.subr.mxu0 0.0
    %1717 = vmatpush1.msra.mxu0 0.0
    %1718 = vmatprep.subr.mxu0 0.0
    %1719 = vmatpush1.msra.mxu0 0.0
    %1720 = vmatprep.subr.mxu0 0.0
    %1721 = vmatpush1.msra.mxu0 0.0
    %1722 = vmatprep.subr.mxu0 0.0
    %1723 = vmatpush1.msra.mxu0 0.0
    %1724 = vmatprep.subr.mxu0 0.0
    %1725 = vmatpush1.msra.mxu0 0.0
    %1726 = vmatprep.subr.mxu0 0.0
    %1727 = vmatpush1.msra.mxu0 0.0
    %1728 = vmatprep.subr.mxu0 0.0
    %1729 = vmatpush1.msra.mxu0 0.0
    %1730 = vmatprep.subr.mxu0 0.0
    %1731 = vmatpush1.msra.mxu0 0.0
    %1732 = vmatprep.subr.mxu0 0.0
    %1733 = vmatpush1.msra.mxu0 0.0
    %1734 = vmatprep.subr.mxu0 0.0
    %1735 = vmatpush1.msra.mxu0 0.0
    %1736 = vmatprep.subr.mxu0 0.0
    %1737 = vmatpush1.msra.mxu0 %v1701
    %1738 = vmatprep.subr.mxu0 0.0
    %1739 = vmatpush2.msra.mxu0 0.0
    %1740 = vmatprep.subr.mxu0 0.0
    %1741 = vmatpush2.msra.mxu0 0.0
    %1742 = vmatprep.subr.mxu0 0.0
    %1743 = vmatpush2.msra.mxu0 0.0
    %1744 = vmatprep.subr.mxu0 0.0
    %1745 = vmatpush2.msra.mxu0 0.0
    %1746 = vmatprep.subr.mxu0 0.0
    %1747 = vmatpush2.msra.mxu0 0.0
    %1748 = vmatprep.subr.mxu0 0.0
    %1749 = vmatpush2.msra.mxu0 0.0
    %1750 = vmatprep.subr.mxu0 0.0
    %1751 = vmatpush2.msra.mxu0 0.0
    %1752 = vmatprep.subr.mxu0 0.0
    %1753 = vmatpush2.msra.mxu0 0.0
    %1754 = vmatprep.subr.mxu0 0.0
    %1755 = vmatpush2.msra.mxu0 0.0
    %1756 = vmatprep.subr.mxu0 0.0
    %1757 = vmatpush2.msra.mxu0 0.0
    %1758 = vmatprep.subr.mxu0 0.0
    %1759 = vmatpush2.msra.mxu0 0.0
    %1760 = vmatprep.subr.mxu0 0.0
    %1761 = vmatpush2.msra.mxu0 0.0
    %1762 = vmatprep.subr.mxu0 0.0
    %1763 = vmatpush2.msra.mxu0 0.0
    %1764 = vmatprep.subr.mxu0 0.0
    %1765 = vmatpush2.msra.mxu0 0.0
    %1766 = vmatprep.subr.mxu0 0.0
    %1767 = vmatpush2.msra.mxu0 0.0
    %1768 = vmatprep.subr.mxu0 0.0
    %1769 = vmatpush2.msra.mxu0 0.0
    %1770 = vmatprep.mubr.f32.mxu0 0.0
    %1771 = vmatmul.mubr.f32.gmra.mxu0 %v1704
    %v1772 = vpop.f32.mrf.mxu0
    %v1773 = vadd.f32 0.0, %v1772
    %v1774 = vpop.f32.mrf.mxu0
    %1775 = vdwg.mxu0
    %1776 = vrot.lane.b32.xlu0 %v203, 64
    %v1777 = vpop.permute.xlu0 %1776
    %v1780 = vsel %vm1447, %v1610, 0
    %1782 = vmatprep.subr.mxu0 0.0
    %1783 = vmatpush1.msra.mxu0 0.0
    %1784 = vmatprep.subr.mxu0 0.0
    %1785 = vmatpush1.msra.mxu0 0.0
    %1786 = vmatprep.subr.mxu0 0.0
    %1787 = vmatpush1.msra.mxu0 0.0
    %1788 = vmatprep.subr.mxu0 0.0
    %1789 = vmatpush1.msra.mxu0 0.0
    %1790 = vmatprep.subr.mxu0 0.0
    %1791 = vmatpush1.msra.mxu0 0.0
    %1792 = vmatprep.subr.mxu0 0.0
    %1793 = vmatpush1.msra.mxu0 0.0
    %1794 = vmatprep.subr.mxu0 0.0
    %1795 = vmatpush1.msra.mxu0 0.0
    %1796 = vmatprep.subr.mxu0 0.0
    %1797 = vmatpush1.msra.mxu0 0.0
    %1798 = vmatprep.subr.mxu0 0.0
    %1799 = vmatpush1.msra.mxu0 0.0
    %1800 = vmatprep.subr.mxu0 0.0
    %1801 = vmatpush1.msra.mxu0 0.0
    %1802 = vmatprep.subr.mxu0 0.0
    %1803 = vmatpush1.msra.mxu0 0.0
    %1804 = vmatprep.subr.mxu0 0.0
    %1805 = vmatpush1.msra.mxu0 0.0
    %1806 = vmatprep.subr.mxu0 0.0
    %1807 = vmatpush1.msra.mxu0 0.0
    %1808 = vmatprep.subr.mxu0 0.0
    %1809 = vmatpush1.msra.mxu0 0.0
    %1810 = vmatprep.subr.mxu0 0.0
    %1811 = vmatpush1.msra.mxu0 0.0
    %1812 = vmatprep.subr.mxu0 0.0
    %1813 = vmatpush1.msra.mxu0 %v1777
    %1814 = vmatprep.subr.mxu0 0.0
    %1815 = vmatpush2.msra.mxu0 0.0
    %1816 = vmatprep.subr.mxu0 0.0
    %1817 = vmatpush2.msra.mxu0 0.0
    %1818 = vmatprep.subr.mxu0 0.0
    %1819 = vmatpush2.msra.mxu0 0.0
    %1820 = vmatprep.subr.mxu0 0.0
    %1821 = vmatpush2.msra.mxu0 0.0
    %1822 = vmatprep.subr.mxu0 0.0
    %1823 = vmatpush2.msra.mxu0 0.0
    %1824 = vmatprep.subr.mxu0 0.0
    %1825 = vmatpush2.msra.mxu0 0.0
    %1826 = vmatprep.subr.mxu0 0.0
    %1827 = vmatpush2.msra.mxu0 0.0
    %1828 = vmatprep.subr.mxu0 0.0
    %1829 = vmatpush2.msra.mxu0 0.0
    %1830 = vmatprep.subr.mxu0 0.0
    %1831 = vmatpush2.msra.mxu0 0.0
    %1832 = vmatprep.subr.mxu0 0.0
    %1833 = vmatpush2.msra.mxu0 0.0
    %1834 = vmatprep.subr.mxu0 0.0
    %1835 = vmatpush2.msra.mxu0 0.0
    %1836 = vmatprep.subr.mxu0 0.0
    %1837 = vmatpush2.msra.mxu0 0.0
    %1838 = vmatprep.subr.mxu0 0.0
    %1839 = vmatpush2.msra.mxu0 0.0
    %1840 = vmatprep.subr.mxu0 0.0
    %1841 = vmatpush2.msra.mxu0 0.0
    %1842 = vmatprep.subr.mxu0 0.0
    %1843 = vmatpush2.msra.mxu0 0.0
    %1844 = vmatprep.subr.mxu0 0.0
    %1845 = vmatpush2.msra.mxu0 0.0
    %1846 = vmatprep.mubr.f32.mxu0 0.0
    %1847 = vmatmul.mubr.f32.gmra.mxu0 %v1780
    %v1848 = vpop.f32.mrf.mxu0
    %v1849 = vadd.f32 0.0, %v1848
    %v1850 = vpop.f32.mrf.mxu0
    %1851 = vdwg.mxu0
    %1852 = vrot.lane.b32.xlu0 %v205, 64
    %v1853 = vpop.permute.xlu0 %1852
    %v1856 = vsel %vm1447, %v1611, 0
    %1858 = vmatprep.subr.mxu0 0.0
    %1859 = vmatpush1.msra.mxu0 0.0
    %1860 = vmatprep.subr.mxu0 0.0
    %1861 = vmatpush1.msra.mxu0 0.0
    %1862 = vmatprep.subr.mxu0 0.0
    %1863 = vmatpush1.msra.mxu0 0.0
    %1864 = vmatprep.subr.mxu0 0.0
    %1865 = vmatpush1.msra.mxu0 0.0
    %1866 = vmatprep.subr.mxu0 0.0
    %1867 = vmatpush1.msra.mxu0 0.0
    %1868 = vmatprep.subr.mxu0 0.0
    %1869 = vmatpush1.msra.mxu0 0.0
    %1870 = vmatprep.subr.mxu0 0.0
    %1871 = vmatpush1.msra.mxu0 0.0
    %1872 = vmatprep.subr.mxu0 0.0
    %1873 = vmatpush1.msra.mxu0 0.0
    %1874 = vmatprep.subr.mxu0 0.0
    %1875 = vmatpush1.msra.mxu0 0.0
    %1876 = vmatprep.subr.mxu0 0.0
    %1877 = vmatpush1.msra.mxu0 0.0
    %1878 = vmatprep.subr.mxu0 0.0
    %1879 = vmatpush1.msra.mxu0 0.0
    %1880 = vmatprep.subr.mxu0 0.0
    %1881 = vmatpush1.msra.mxu0 0.0
    %1882 = vmatprep.subr.mxu0 0.0
    %1883 = vmatpush1.msra.mxu0 0.0
    %1884 = vmatprep.subr.mxu0 0.0
    %1885 = vmatpush1.msra.mxu0 0.0
    %1886 = vmatprep.subr.mxu0 0.0
    %1887 = vmatpush1.msra.mxu0 0.0
    %1888 = vmatprep.subr.mxu0 0.0
    %1889 = vmatpush1.msra.mxu0 %v1853
    %1890 = vmatprep.subr.mxu0 0.0
    %1891 = vmatpush2.msra.mxu0 0.0
    %1892 = vmatprep.subr.mxu0 0.0
    %1893 = vmatpush2.msra.mxu0 0.0
    %1894 = vmatprep.subr.mxu0 0.0
    %1895 = vmatpush2.msra.mxu0 0.0
    %1896 = vmatprep.subr.mxu0 0.0
    %1897 = vmatpush2.msra.mxu0 0.0
    %1898 = vmatprep.subr.mxu0 0.0
    %1899 = vmatpush2.msra.mxu0 0.0
    %1900 = vmatprep.subr.mxu0 0.0
    %1901 = vmatpush2.msra.mxu0 0.0
    %1902 = vmatprep.subr.mxu0 0.0
    %1903 = vmatpush2.msra.mxu0 0.0
    %1904 = vmatprep.subr.mxu0 0.0
    %1905 = vmatpush2.msra.mxu0 0.0
    %1906 = vmatprep.subr.mxu0 0.0
    %1907 = vmatpush2.msra.mxu0 0.0
    %1908 = vmatprep.subr.mxu0 0.0
    %1909 = vmatpush2.msra.mxu0 0.0
    %1910 = vmatprep.subr.mxu0 0.0
    %1911 = vmatpush2.msra.mxu0 0.0
    %1912 = vmatprep.subr.mxu0 0.0
    %1913 = vmatpush2.msra.mxu0 0.0
    %1914 = vmatprep.subr.mxu0 0.0
    %1915 = vmatpush2.msra.mxu0 0.0
    %1916 = vmatprep.subr.mxu0 0.0
    %1917 = vmatpush2.msra.mxu0 0.0
    %1918 = vmatprep.subr.mxu0 0.0
    %1919 = vmatpush2.msra.mxu0 0.0
    %1920 = vmatprep.subr.mxu0 0.0
    %1921 = vmatpush2.msra.mxu0 0.0
    %1922 = vmatprep.mubr.f32.mxu0 0.0
    %1923 = vmatmul.mubr.f32.gmra.mxu0 %v1856
    %v1924 = vpop.f32.mrf.mxu0
    %v1925 = vadd.f32 0.0, %v1924
    %v1926 = vpop.f32.mrf.mxu0
    %1927 = vdwg.mxu0
    %1928 = vrot.lane.b32.xlu0 %v207, 64
    %v1929 = vpop.permute.xlu0 %1928
    %v1932 = vsel %vm1447, %v1612, 0
    %1934 = vmatprep.subr.mxu0 0.0
    %1935 = vmatpush1.msra.mxu0 0.0
    %1936 = vmatprep.subr.mxu0 0.0
    %1937 = vmatpush1.msra.mxu0 0.0
    %1938 = vmatprep.subr.mxu0 0.0
    %1939 = vmatpush1.msra.mxu0 0.0
    %1940 = vmatprep.subr.mxu0 0.0
    %1941 = vmatpush1.msra.mxu0 0.0
    %1942 = vmatprep.subr.mxu0 0.0
    %1943 = vmatpush1.msra.mxu0 0.0
    %1944 = vmatprep.subr.mxu0 0.0
    %1945 = vmatpush1.msra.mxu0 0.0
    %1946 = vmatprep.subr.mxu0 0.0
    %1947 = vmatpush1.msra.mxu0 0.0
    %1948 = vmatprep.subr.mxu0 0.0
    %1949 = vmatpush1.msra.mxu0 0.0
    %1950 = vmatprep.subr.mxu0 0.0
    %1951 = vmatpush1.msra.mxu0 0.0
    %1952 = vmatprep.subr.mxu0 0.0
    %1953 = vmatpush1.msra.mxu0 0.0
    %1954 = vmatprep.subr.mxu0 0.0
    %1955 = vmatpush1.msra.mxu0 0.0
    %1956 = vmatprep.subr.mxu0 0.0
    %1957 = vmatpush1.msra.mxu0 0.0
    %1958 = vmatprep.subr.mxu0 0.0
    %1959 = vmatpush1.msra.mxu0 0.0
    %1960 = vmatprep.subr.mxu0 0.0
    %1961 = vmatpush1.msra.mxu0 0.0
    %1962 = vmatprep.subr.mxu0 0.0
    %1963 = vmatpush1.msra.mxu0 0.0
    %1964 = vmatprep.subr.mxu0 0.0
    %1965 = vmatpush1.msra.mxu0 %v1929
    %1966 = vmatprep.subr.mxu0 0.0
    %1967 = vmatpush2.msra.mxu0 0.0
    %1968 = vmatprep.subr.mxu0 0.0
    %1969 = vmatpush2.msra.mxu0 0.0
    %1970 = vmatprep.subr.mxu0 0.0
    %1971 = vmatpush2.msra.mxu0 0.0
    %1972 = vmatprep.subr.mxu0 0.0
    %1973 = vmatpush2.msra.mxu0 0.0
    %1974 = vmatprep.subr.mxu0 0.0
    %1975 = vmatpush2.msra.mxu0 0.0
    %1976 = vmatprep.subr.mxu0 0.0
    %1977 = vmatpush2.msra.mxu0 0.0
    %1978 = vmatprep.subr.mxu0 0.0
    %1979 = vmatpush2.msra.mxu0 0.0
    %1980 = vmatprep.subr.mxu0 0.0
    %1981 = vmatpush2.msra.mxu0 0.0
    %1982 = vmatprep.subr.mxu0 0.0
    %1983 = vmatpush2.msra.mxu0 0.0
    %1984 = vmatprep.subr.mxu0 0.0
    %1985 = vmatpush2.msra.mxu0 0.0
    %1986 = vmatprep.subr.mxu0 0.0
    %1987 = vmatpush2.msra.mxu0 0.0
    %1988 = vmatprep.subr.mxu0 0.0
    %1989 = vmatpush2.msra.mxu0 0.0
    %1990 = vmatprep.subr.mxu0 0.0
    %1991 = vmatpush2.msra.mxu0 0.0
    %1992 = vmatprep.subr.mxu0 0.0
    %1993 = vmatpush2.msra.mxu0 0.0
    %1994 = vmatprep.subr.mxu0 0.0
    %1995 = vmatpush2.msra.mxu0 0.0
    %1996 = vmatprep.subr.mxu0 0.0
    %1997 = vmatpush2.msra.mxu0 0.0
    %1998 = vmatprep.mubr.f32.mxu0 0.0
    %1999 = vmatmul.mubr.f32.gmra.mxu0 %v1932
    %v2000 = vpop.f32.mrf.mxu0
    %v2001 = vadd.f32 0.0, %v2000
    %v2002 = vpop.f32.mrf.mxu0
    %2003 = vdwg.mxu0
    %2004 = vrot.lane.b32.xlu0 %v209, 64
    %v2005 = vpop.permute.xlu0 %2004
    %v2008 = vsel %vm1447, %v1613, 0
    %2010 = vmatprep.subr.mxu0 0.0
    %2011 = vmatpush1.msra.mxu0 0.0
    %2012 = vmatprep.subr.mxu0 0.0
    %2013 = vmatpush1.msra.mxu0 0.0
    %2014 = vmatprep.subr.mxu0 0.0
    %2015 = vmatpush1.msra.mxu0 0.0
    %2016 = vmatprep.subr.mxu0 0.0
    %2017 = vmatpush1.msra.mxu0 0.0
    %2018 = vmatprep.subr.mxu0 0.0
    %2019 = vmatpush1.msra.mxu0 0.0
    %2020 = vmatprep.subr.mxu0 0.0
    %2021 = vmatpush1.msra.mxu0 0.0
    %2022 = vmatprep.subr.mxu0 0.0
    %2023 = vmatpush1.msra.mxu0 0.0
    %2024 = vmatprep.subr.mxu0 0.0
    %2025 = vmatpush1.msra.mxu0 0.0
    %2026 = vmatprep.subr.mxu0 0.0
    %2027 = vmatpush1.msra.mxu0 0.0
    %2028 = vmatprep.subr.mxu0 0.0
    %2029 = vmatpush1.msra.mxu0 0.0
    %2030 = vmatprep.subr.mxu0 0.0
    %2031 = vmatpush1.msra.mxu0 0.0
    %2032 = vmatprep.subr.mxu0 0.0
    %2033 = vmatpush1.msra.mxu0 0.0
    %2034 = vmatprep.subr.mxu0 0.0
    %2035 = vmatpush1.msra.mxu0 0.0
    %2036 = vmatprep.subr.mxu0 0.0
    %2037 = vmatpush1.msra.mxu0 0.0
    %2038 = vmatprep.subr.mxu0 0.0
    %2039 = vmatpush1.msra.mxu0 0.0
    %2040 = vmatprep.subr.mxu0 0.0
    %2041 = vmatpush1.msra.mxu0 %v2005
    %2042 = vmatprep.subr.mxu0 0.0
    %2043 = vmatpush2.msra.mxu0 0.0
    %2044 = vmatprep.subr.mxu0 0.0
    %2045 = vmatpush2.msra.mxu0 0.0
    %2046 = vmatprep.subr.mxu0 0.0
    %2047 = vmatpush2.msra.mxu0 0.0
    %2048 = vmatprep.subr.mxu0 0.0
    %2049 = vmatpush2.msra.mxu0 0.0
    %2050 = vmatprep.subr.mxu0 0.0
    %2051 = vmatpush2.msra.mxu0 0.0
    %2052 = vmatprep.subr.mxu0 0.0
    %2053 = vmatpush2.msra.mxu0 0.0
    %2054 = vmatprep.subr.mxu0 0.0
    %2055 = vmatpush2.msra.mxu0 0.0
    %2056 = vmatprep.subr.mxu0 0.0
    %2057 = vmatpush2.msra.mxu0 0.0
    %2058 = vmatprep.subr.mxu0 0.0
    %2059 = vmatpush2.msra.mxu0 0.0
    %2060 = vmatprep.subr.mxu0 0.0
    %2061 = vmatpush2.msra.mxu0 0.0
    %2062 = vmatprep.subr.mxu0 0.0
    %2063 = vmatpush2.msra.mxu0 0.0
    %2064 = vmatprep.subr.mxu0 0.0
    %2065 = vmatpush2.msra.mxu0 0.0
    %2066 = vmatprep.subr.mxu0 0.0
    %2067 = vmatpush2.msra.mxu0 0.0
    %2068 = vmatprep.subr.mxu0 0.0
    %2069 = vmatpush2.msra.mxu0 0.0
    %2070 = vmatprep.subr.mxu0 0.0
    %2071 = vmatpush2.msra.mxu0 0.0
    %2072 = vmatprep.subr.mxu0 0.0
    %2073 = vmatpush2.msra.mxu0 0.0
    %2074 = vmatprep.mubr.f32.mxu0 0.0
    %2075 = vmatmul.mubr.f32.gmra.mxu0 %v2008
    %v2076 = vpop.f32.mrf.mxu0
    %v2077 = vadd.f32 0.0, %v2076
    %v2078 = vpop.f32.mrf.mxu0
    %2079 = vdwg.mxu0
    %2080 = vrot.lane.b32.xlu0 %v211, 64
    %v2081 = vpop.permute.xlu0 %2080
    %v2084 = vsel %vm1447, %v1614, 0
    %2086 = vmatprep.subr.mxu0 0.0
    %2087 = vmatpush1.msra.mxu0 0.0
    %2088 = vmatprep.subr.mxu0 0.0
    %2089 = vmatpush1.msra.mxu0 0.0
    %2090 = vmatprep.subr.mxu0 0.0
    %2091 = vmatpush1.msra.mxu0 0.0
    %2092 = vmatprep.subr.mxu0 0.0
    %2093 = vmatpush1.msra.mxu0 0.0
    %2094 = vmatprep.subr.mxu0 0.0
    %2095 = vmatpush1.msra.mxu0 0.0
    %2096 = vmatprep.subr.mxu0 0.0
    %2097 = vmatpush1.msra.mxu0 0.0
    %2098 = vmatprep.subr.mxu0 0.0
    %2099 = vmatpush1.msra.mxu0 0.0
    %2100 = vmatprep.subr.mxu0 0.0
    %2101 = vmatpush1.msra.mxu0 0.0
    %2102 = vmatprep.subr.mxu0 0.0
    %2103 = vmatpush1.msra.mxu0 0.0
    %2104 = vmatprep.subr.mxu0 0.0
    %2105 = vmatpush1.msra.mxu0 0.0
    %2106 = vmatprep.subr.mxu0 0.0
    %2107 = vmatpush1.msra.mxu0 0.0
    %2108 = vmatprep.subr.mxu0 0.0
    %2109 = vmatpush1.msra.mxu0 0.0
    %2110 = vmatprep.subr.mxu0 0.0
    %2111 = vmatpush1.msra.mxu0 0.0
    %2112 = vmatprep.subr.mxu0 0.0
    %2113 = vmatpush1.msra.mxu0 0.0
    %2114 = vmatprep.subr.mxu0 0.0
    %2115 = vmatpush1.msra.mxu0 0.0
    %2116 = vmatprep.subr.mxu0 0.0
    %2117 = vmatpush1.msra.mxu0 %v2081
    %2118 = vmatprep.subr.mxu0 0.0
    %2119 = vmatpush2.msra.mxu0 0.0
    %2120 = vmatprep.subr.mxu0 0.0
    %2121 = vmatpush2.msra.mxu0 0.0
    %2122 = vmatprep.subr.mxu0 0.0
    %2123 = vmatpush2.msra.mxu0 0.0
    %2124 = vmatprep.subr.mxu0 0.0
    %2125 = vmatpush2.msra.mxu0 0.0
    %2126 = vmatprep.subr.mxu0 0.0
    %2127 = vmatpush2.msra.mxu0 0.0
    %2128 = vmatprep.subr.mxu0 0.0
    %2129 = vmatpush2.msra.mxu0 0.0
    %2130 = vmatprep.subr.mxu0 0.0
    %2131 = vmatpush2.msra.mxu0 0.0
    %2132 = vmatprep.subr.mxu0 0.0
    %2133 = vmatpush2.msra.mxu0 0.0
    %2134 = vmatprep.subr.mxu0 0.0
    %2135 = vmatpush2.msra.mxu0 0.0
    %2136 = vmatprep.subr.mxu0 0.0
    %2137 = vmatpush2.msra.mxu0 0.0
    %2138 = vmatprep.subr.mxu0 0.0
    %2139 = vmatpush2.msra.mxu0 0.0
    %2140 = vmatprep.subr.mxu0 0.0
    %2141 = vmatpush2.msra.mxu0 0.0
    %2142 = vmatprep.subr.mxu0 0.0
    %2143 = vmatpush2.msra.mxu0 0.0
    %2144 = vmatprep.subr.mxu0 0.0
    %2145 = vmatpush2.msra.mxu0 0.0
    %2146 = vmatprep.subr.mxu0 0.0
    %2147 = vmatpush2.msra.mxu0 0.0
    %2148 = vmatprep.subr.mxu0 0.0
    %2149 = vmatpush2.msra.mxu0 0.0
    %2150 = vmatprep.mubr.f32.mxu0 0.0
    %2151 = vmatmul.mubr.f32.gmra.mxu0 %v2084
    %v2152 = vpop.f32.mrf.mxu0
    %v2153 = vadd.f32 0.0, %v2152
    %v2154 = vpop.f32.mrf.mxu0
    %2155 = vdwg.mxu0
    %2156 = vrot.lane.b32.xlu0 %v213, 64
    %v2157 = vpop.permute.xlu0 %2156
    %v2160 = vsel %vm1447, %v1615, 0
    %2162 = vmatprep.subr.mxu0 0.0
    %2163 = vmatpush1.msra.mxu0 0.0
    %2164 = vmatprep.subr.mxu0 0.0
    %2165 = vmatpush1.msra.mxu0 0.0
    %2166 = vmatprep.subr.mxu0 0.0
    %2167 = vmatpush1.msra.mxu0 0.0
    %2168 = vmatprep.subr.mxu0 0.0
    %2169 = vmatpush1.msra.mxu0 0.0
    %2170 = vmatprep.subr.mxu0 0.0
    %2171 = vmatpush1.msra.mxu0 0.0
    %2172 = vmatprep.subr.mxu0 0.0
    %2173 = vmatpush1.msra.mxu0 0.0
    %2174 = vmatprep.subr.mxu0 0.0
    %2175 = vmatpush1.msra.mxu0 0.0
    %2176 = vmatprep.subr.mxu0 0.0
    %2177 = vmatpush1.msra.mxu0 0.0
    %2178 = vmatprep.subr.mxu0 0.0
    %2179 = vmatpush1.msra.mxu0 0.0
    %2180 = vmatprep.subr.mxu0 0.0
    %2181 = vmatpush1.msra.mxu0 0.0
    %2182 = vmatprep.subr.mxu0 0.0
    %2183 = vmatpush1.msra.mxu0 0.0
    %2184 = vmatprep.subr.mxu0 0.0
    %2185 = vmatpush1.msra.mxu0 0.0
    %2186 = vmatprep.subr.mxu0 0.0
    %2187 = vmatpush1.msra.mxu0 0.0
    %2188 = vmatprep.subr.mxu0 0.0
    %2189 = vmatpush1.msra.mxu0 0.0
    %2190 = vmatprep.subr.mxu0 0.0
    %2191 = vmatpush1.msra.mxu0 0.0
    %2192 = vmatprep.subr.mxu0 0.0
    %2193 = vmatpush1.msra.mxu0 %v2157
    %2194 = vmatprep.subr.mxu0 0.0
    %2195 = vmatpush2.msra.mxu0 0.0
    %2196 = vmatprep.subr.mxu0 0.0
    %2197 = vmatpush2.msra.mxu0 0.0
    %2198 = vmatprep.subr.mxu0 0.0
    %2199 = vmatpush2.msra.mxu0 0.0
    %2200 = vmatprep.subr.mxu0 0.0
    %2201 = vmatpush2.msra.mxu0 0.0
    %2202 = vmatprep.subr.mxu0 0.0
    %2203 = vmatpush2.msra.mxu0 0.0
    %2204 = vmatprep.subr.mxu0 0.0
    %2205 = vmatpush2.msra.mxu0 0.0
    %2206 = vmatprep.subr.mxu0 0.0
    %2207 = vmatpush2.msra.mxu0 0.0
    %2208 = vmatprep.subr.mxu0 0.0
    %2209 = vmatpush2.msra.mxu0 0.0
    %2210 = vmatprep.subr.mxu0 0.0
    %2211 = vmatpush2.msra.mxu0 0.0
    %2212 = vmatprep.subr.mxu0 0.0
    %2213 = vmatpush2.msra.mxu0 0.0
    %2214 = vmatprep.subr.mxu0 0.0
    %2215 = vmatpush2.msra.mxu0 0.0
    %2216 = vmatprep.subr.mxu0 0.0
    %2217 = vmatpush2.msra.mxu0 0.0
    %2218 = vmatprep.subr.mxu0 0.0
    %2219 = vmatpush2.msra.mxu0 0.0
    %2220 = vmatprep.subr.mxu0 0.0
    %2221 = vmatpush2.msra.mxu0 0.0
    %2222 = vmatprep.subr.mxu0 0.0
    %2223 = vmatpush2.msra.mxu0 0.0
    %2224 = vmatprep.subr.mxu0 0.0
    %2225 = vmatpush2.msra.mxu0 0.0
    %2226 = vmatprep.mubr.f32.mxu0 0.0
    %2227 = vmatmul.mubr.f32.gmra.mxu0 %v2160
    %v2228 = vpop.f32.mrf.mxu0
    %v2229 = vadd.f32 0.0, %v2228
    %v2230 = vpop.f32.mrf.mxu0
    %2231 = vdwg.mxu0
    %2232 = vrot.lane.b32.xlu0 %v215, 64
    %v2233 = vpop.permute.xlu0 %2232
    %v2236 = vsel %vm1447, %v1616, 0
    %2238 = vmatprep.subr.mxu0 0.0
    %2239 = vmatpush1.msra.mxu0 0.0
    %2240 = vmatprep.subr.mxu0 0.0
    %2241 = vmatpush1.msra.mxu0 0.0
    %2242 = vmatprep.subr.mxu0 0.0
    %2243 = vmatpush1.msra.mxu0 0.0
    %2244 = vmatprep.subr.mxu0 0.0
    %2245 = vmatpush1.msra.mxu0 0.0
    %2246 = vmatprep.subr.mxu0 0.0
    %2247 = vmatpush1.msra.mxu0 0.0
    %2248 = vmatprep.subr.mxu0 0.0
    %2249 = vmatpush1.msra.mxu0 0.0
    %2250 = vmatprep.subr.mxu0 0.0
    %2251 = vmatpush1.msra.mxu0 0.0
    %2252 = vmatprep.subr.mxu0 0.0
    %2253 = vmatpush1.msra.mxu0 0.0
    %2254 = vmatprep.subr.mxu0 0.0
    %2255 = vmatpush1.msra.mxu0 0.0
    %2256 = vmatprep.subr.mxu0 0.0
    %2257 = vmatpush1.msra.mxu0 0.0
    %2258 = vmatprep.subr.mxu0 0.0
    %2259 = vmatpush1.msra.mxu0 0.0
    %2260 = vmatprep.subr.mxu0 0.0
    %2261 = vmatpush1.msra.mxu0 0.0
    %2262 = vmatprep.subr.mxu0 0.0
    %2263 = vmatpush1.msra.mxu0 0.0
    %2264 = vmatprep.subr.mxu0 0.0
    %2265 = vmatpush1.msra.mxu0 0.0
    %2266 = vmatprep.subr.mxu0 0.0
    %2267 = vmatpush1.msra.mxu0 0.0
    %2268 = vmatprep.subr.mxu0 0.0
    %2269 = vmatpush1.msra.mxu0 %v2233
    %2270 = vmatprep.subr.mxu0 0.0
    %2271 = vmatpush2.msra.mxu0 0.0
    %2272 = vmatprep.subr.mxu0 0.0
    %2273 = vmatpush2.msra.mxu0 0.0
    %2274 = vmatprep.subr.mxu0 0.0
    %2275 = vmatpush2.msra.mxu0 0.0
    %2276 = vmatprep.subr.mxu0 0.0
    %2277 = vmatpush2.msra.mxu0 0.0
    %2278 = vmatprep.subr.mxu0 0.0
    %2279 = vmatpush2.msra.mxu0 0.0
    %2280 = vmatprep.subr.mxu0 0.0
    %2281 = vmatpush2.msra.mxu0 0.0
    %2282 = vmatprep.subr.mxu0 0.0
    %2283 = vmatpush2.msra.mxu0 0.0
    %2284 = vmatprep.subr.mxu0 0.0
    %2285 = vmatpush2.msra.mxu0 0.0
    %2286 = vmatprep.subr.mxu0 0.0
    %2287 = vmatpush2.msra.mxu0 0.0
    %2288 = vmatprep.subr.mxu0 0.0
    %2289 = vmatpush2.msra.mxu0 0.0
    %2290 = vmatprep.subr.mxu0 0.0
    %2291 = vmatpush2.msra.mxu0 0.0
    %2292 = vmatprep.subr.mxu0 0.0
    %2293 = vmatpush2.msra.mxu0 0.0
    %2294 = vmatprep.subr.mxu0 0.0
    %2295 = vmatpush2.msra.mxu0 0.0
    %2296 = vmatprep.subr.mxu0 0.0
    %2297 = vmatpush2.msra.mxu0 0.0
    %2298 = vmatprep.subr.mxu0 0.0
    %2299 = vmatpush2.msra.mxu0 0.0
    %2300 = vmatprep.subr.mxu0 0.0
    %2301 = vmatpush2.msra.mxu0 0.0
    %2302 = vmatprep.mubr.f32.mxu0 0.0
    %2303 = vmatmul.mubr.f32.gmra.mxu0 %v2236
    %v2304 = vpop.f32.mrf.mxu0
    %v2305 = vadd.f32 0.0, %v2304
    %v2306 = vpop.f32.mrf.mxu0
    %2307 = vdwg.mxu0
    %2308 = vrot.lane.b32.xlu0 %v217, 64
    %v2309 = vpop.permute.xlu0 %2308
    %v2312 = vsel %vm1447, %v1617, 0
    %2314 = vmatprep.subr.mxu0 0.0
    %2315 = vmatpush1.msra.mxu0 0.0
    %2316 = vmatprep.subr.mxu0 0.0
    %2317 = vmatpush1.msra.mxu0 0.0
    %2318 = vmatprep.subr.mxu0 0.0
    %2319 = vmatpush1.msra.mxu0 0.0
    %2320 = vmatprep.subr.mxu0 0.0
    %2321 = vmatpush1.msra.mxu0 0.0
    %2322 = vmatprep.subr.mxu0 0.0
    %2323 = vmatpush1.msra.mxu0 0.0
    %2324 = vmatprep.subr.mxu0 0.0
    %2325 = vmatpush1.msra.mxu0 0.0
    %2326 = vmatprep.subr.mxu0 0.0
    %2327 = vmatpush1.msra.mxu0 0.0
    %2328 = vmatprep.subr.mxu0 0.0
    %2329 = vmatpush1.msra.mxu0 0.0
    %2330 = vmatprep.subr.mxu0 0.0
    %2331 = vmatpush1.msra.mxu0 0.0
    %2332 = vmatprep.subr.mxu0 0.0
    %2333 = vmatpush1.msra.mxu0 0.0
    %2334 = vmatprep.subr.mxu0 0.0
    %2335 = vmatpush1.msra.mxu0 0.0
    %2336 = vmatprep.subr.mxu0 0.0
    %2337 = vmatpush1.msra.mxu0 0.0
    %2338 = vmatprep.subr.mxu0 0.0
    %2339 = vmatpush1.msra.mxu0 0.0
    %2340 = vmatprep.subr.mxu0 0.0
    %2341 = vmatpush1.msra.mxu0 0.0
    %2342 = vmatprep.subr.mxu0 0.0
    %2343 = vmatpush1.msra.mxu0 0.0
    %2344 = vmatprep.subr.mxu0 0.0
    %2345 = vmatpush1.msra.mxu0 %v2309
    %2346 = vmatprep.subr.mxu0 0.0
    %2347 = vmatpush2.msra.mxu0 0.0
    %2348 = vmatprep.subr.mxu0 0.0
    %2349 = vmatpush2.msra.mxu0 0.0
    %2350 = vmatprep.subr.mxu0 0.0
    %2351 = vmatpush2.msra.mxu0 0.0
    %2352 = vmatprep.subr.mxu0 0.0
    %2353 = vmatpush2.msra.mxu0 0.0
    %2354 = vmatprep.subr.mxu0 0.0
    %2355 = vmatpush2.msra.mxu0 0.0
    %2356 = vmatprep.subr.mxu0 0.0
    %2357 = vmatpush2.msra.mxu0 0.0
    %2358 = vmatprep.subr.mxu0 0.0
    %2359 = vmatpush2.msra.mxu0 0.0
    %2360 = vmatprep.subr.mxu0 0.0
    %2361 = vmatpush2.msra.mxu0 0.0
    %2362 = vmatprep.subr.mxu0 0.0
    %2363 = vmatpush2.msra.mxu0 0.0
    %2364 = vmatprep.subr.mxu0 0.0
    %2365 = vmatpush2.msra.mxu0 0.0
    %2366 = vmatprep.subr.mxu0 0.0
    %2367 = vmatpush2.msra.mxu0 0.0
    %2368 = vmatprep.subr.mxu0 0.0
    %2369 = vmatpush2.msra.mxu0 0.0
    %2370 = vmatprep.subr.mxu0 0.0
    %2371 = vmatpush2.msra.mxu0 0.0
    %2372 = vmatprep.subr.mxu0 0.0
    %2373 = vmatpush2.msra.mxu0 0.0
    %2374 = vmatprep.subr.mxu0 0.0
    %2375 = vmatpush2.msra.mxu0 0.0
    %2376 = vmatprep.subr.mxu0 0.0
    %2377 = vmatpush2.msra.mxu0 0.0
    %2378 = vmatprep.mubr.f32.mxu0 0.0
    %2379 = vmatmul.mubr.f32.gmra.mxu0 %v2312
    %v2380 = vpop.f32.mrf.mxu0
    %v2381 = vadd.f32 0.0, %v2380
    %v2382 = vpop.f32.mrf.mxu0
    %2383 = vdwg.mxu0
    %2384 = vrot.lane.b32.xlu0 %v219, 64
    %v2385 = vpop.permute.xlu0 %2384
    %v2388 = vsel %vm1447, %v1618, 0
    %2390 = vmatprep.subr.mxu0 0.0
    %2391 = vmatpush1.msra.mxu0 0.0
    %2392 = vmatprep.subr.mxu0 0.0
    %2393 = vmatpush1.msra.mxu0 0.0
    %2394 = vmatprep.subr.mxu0 0.0
    %2395 = vmatpush1.msra.mxu0 0.0
    %2396 = vmatprep.subr.mxu0 0.0
    %2397 = vmatpush1.msra.mxu0 0.0
    %2398 = vmatprep.subr.mxu0 0.0
    %2399 = vmatpush1.msra.mxu0 0.0
    %2400 = vmatprep.subr.mxu0 0.0
    %2401 = vmatpush1.msra.mxu0 0.0
    %2402 = vmatprep.subr.mxu0 0.0
    %2403 = vmatpush1.msra.mxu0 0.0
    %2404 = vmatprep.subr.mxu0 0.0
    %2405 = vmatpush1.msra.mxu0 0.0
    %2406 = vmatprep.subr.mxu0 0.0
    %2407 = vmatpush1.msra.mxu0 0.0
    %2408 = vmatprep.subr.mxu0 0.0
    %2409 = vmatpush1.msra.mxu0 0.0
    %2410 = vmatprep.subr.mxu0 0.0
    %2411 = vmatpush1.msra.mxu0 0.0
    %2412 = vmatprep.subr.mxu0 0.0
    %2413 = vmatpush1.msra.mxu0 0.0
    %2414 = vmatprep.subr.mxu0 0.0
    %2415 = vmatpush1.msra.mxu0 0.0
    %2416 = vmatprep.subr.mxu0 0.0
    %2417 = vmatpush1.msra.mxu0 0.0
    %2418 = vmatprep.subr.mxu0 0.0
    %2419 = vmatpush1.msra.mxu0 0.0
    %2420 = vmatprep.subr.mxu0 0.0
    %2421 = vmatpush1.msra.mxu0 %v2385
    %2422 = vmatprep.subr.mxu0 0.0
    %2423 = vmatpush2.msra.mxu0 0.0
    %2424 = vmatprep.subr.mxu0 0.0
    %2425 = vmatpush2.msra.mxu0 0.0
    %2426 = vmatprep.subr.mxu0 0.0
    %2427 = vmatpush2.msra.mxu0 0.0
    %2428 = vmatprep.subr.mxu0 0.0
    %2429 = vmatpush2.msra.mxu0 0.0
    %2430 = vmatprep.subr.mxu0 0.0
    %2431 = vmatpush2.msra.mxu0 0.0
    %2432 = vmatprep.subr.mxu0 0.0
    %2433 = vmatpush2.msra.mxu0 0.0
    %2434 = vmatprep.subr.mxu0 0.0
    %2435 = vmatpush2.msra.mxu0 0.0
    %2436 = vmatprep.subr.mxu0 0.0
    %2437 = vmatpush2.msra.mxu0 0.0
    %2438 = vmatprep.subr.mxu0 0.0
    %2439 = vmatpush2.msra.mxu0 0.0
    %2440 = vmatprep.subr.mxu0 0.0
    %2441 = vmatpush2.msra.mxu0 0.0
    %2442 = vmatprep.subr.mxu0 0.0
    %2443 = vmatpush2.msra.mxu0 0.0
    %2444 = vmatprep.subr.mxu0 0.0
    %2445 = vmatpush2.msra.mxu0 0.0
    %2446 = vmatprep.subr.mxu0 0.0
    %2447 = vmatpush2.msra.mxu0 0.0
    %2448 = vmatprep.subr.mxu0 0.0
    %2449 = vmatpush2.msra.mxu0 0.0
    %2450 = vmatprep.subr.mxu0 0.0
    %2451 = vmatpush2.msra.mxu0 0.0
    %2452 = vmatprep.subr.mxu0 0.0
    %2453 = vmatpush2.msra.mxu0 0.0
    %2454 = vmatprep.mubr.f32.mxu0 0.0
    %2455 = vmatmul.mubr.f32.gmra.mxu0 %v2388
    %v2456 = vpop.f32.mrf.mxu0
    %v2457 = vadd.f32 0.0, %v2456
    %v2458 = vpop.f32.mrf.mxu0
    %2459 = vdwg.mxu0
    %2460 = vrot.lane.b32.xlu0 %v221, 64
    %v2461 = vpop.permute.xlu0 %2460
    %v2464 = vsel %vm1447, %v1619, 0
    %2466 = vmatprep.subr.mxu0 0.0
    %2467 = vmatpush1.msra.mxu0 0.0
    %2468 = vmatprep.subr.mxu0 0.0
    %2469 = vmatpush1.msra.mxu0 0.0
    %2470 = vmatprep.subr.mxu0 0.0
    %2471 = vmatpush1.msra.mxu0 0.0
    %2472 = vmatprep.subr.mxu0 0.0
    %2473 = vmatpush1.msra.mxu0 0.0
    %2474 = vmatprep.subr.mxu0 0.0
    %2475 = vmatpush1.msra.mxu0 0.0
    %2476 = vmatprep.subr.mxu0 0.0
    %2477 = vmatpush1.msra.mxu0 0.0
    %2478 = vmatprep.subr.mxu0 0.0
    %2479 = vmatpush1.msra.mxu0 0.0
    %2480 = vmatprep.subr.mxu0 0.0
    %2481 = vmatpush1.msra.mxu0 0.0
    %2482 = vmatprep.subr.mxu0 0.0
    %2483 = vmatpush1.msra.mxu0 0.0
    %2484 = vmatprep.subr.mxu0 0.0
    %2485 = vmatpush1.msra.mxu0 0.0
    %2486 = vmatprep.subr.mxu0 0.0
    %2487 = vmatpush1.msra.mxu0 0.0
    %2488 = vmatprep.subr.mxu0 0.0
    %2489 = vmatpush1.msra.mxu0 0.0
    %2490 = vmatprep.subr.mxu0 0.0
    %2491 = vmatpush1.msra.mxu0 0.0
    %2492 = vmatprep.subr.mxu0 0.0
    %2493 = vmatpush1.msra.mxu0 0.0
    %2494 = vmatprep.subr.mxu0 0.0
    %2495 = vmatpush1.msra.mxu0 0.0
    %2496 = vmatprep.subr.mxu0 0.0
    %2497 = vmatpush1.msra.mxu0 %v2461
    %2498 = vmatprep.subr.mxu0 0.0
    %2499 = vmatpush2.msra.mxu0 0.0
    %2500 = vmatprep.subr.mxu0 0.0
    %2501 = vmatpush2.msra.mxu0 0.0
    %2502 = vmatprep.subr.mxu0 0.0
    %2503 = vmatpush2.msra.mxu0 0.0
    %2504 = vmatprep.subr.mxu0 0.0
    %2505 = vmatpush2.msra.mxu0 0.0
    %2506 = vmatprep.subr.mxu0 0.0
    %2507 = vmatpush2.msra.mxu0 0.0
    %2508 = vmatprep.subr.mxu0 0.0
    %2509 = vmatpush2.msra.mxu0 0.0
    %2510 = vmatprep.subr.mxu0 0.0
    %2511 = vmatpush2.msra.mxu0 0.0
    %2512 = vmatprep.subr.mxu0 0.0
    %2513 = vmatpush2.msra.mxu0 0.0
    %2514 = vmatprep.subr.mxu0 0.0
    %2515 = vmatpush2.msra.mxu0 0.0
    %2516 = vmatprep.subr.mxu0 0.0
    %2517 = vmatpush2.msra.mxu0 0.0
    %2518 = vmatprep.subr.mxu0 0.0
    %2519 = vmatpush2.msra.mxu0 0.0
    %2520 = vmatprep.subr.mxu0 0.0
    %2521 = vmatpush2.msra.mxu0 0.0
    %2522 = vmatprep.subr.mxu0 0.0
    %2523 = vmatpush2.msra.mxu0 0.0
    %2524 = vmatprep.subr.mxu0 0.0
    %2525 = vmatpush2.msra.mxu0 0.0
    %2526 = vmatprep.subr.mxu0 0.0
    %2527 = vmatpush2.msra.mxu0 0.0
    %2528 = vmatprep.subr.mxu0 0.0
    %2529 = vmatpush2.msra.mxu0 0.0
    %2530 = vmatprep.mubr.f32.mxu0 0.0
    %2531 = vmatmul.mubr.f32.gmra.mxu0 %v2464
    %v2532 = vpop.f32.mrf.mxu0
    %v2533 = vadd.f32 0.0, %v2532
    %v2534 = vpop.f32.mrf.mxu0
    %2535 = vdwg.mxu0
    %2536 = vrot.lane.b32.xlu0 %v223, 64
    %v2537 = vpop.permute.xlu0 %2536
    %v2540 = vsel %vm1447, %v1620, 0
    %2542 = vmatprep.subr.mxu0 0.0
    %2543 = vmatpush1.msra.mxu0 0.0
    %2544 = vmatprep.subr.mxu0 0.0
    %2545 = vmatpush1.msra.mxu0 0.0
    %2546 = vmatprep.subr.mxu0 0.0
    %2547 = vmatpush1.msra.mxu0 0.0
    %2548 = vmatprep.subr.mxu0 0.0
    %2549 = vmatpush1.msra.mxu0 0.0
    %2550 = vmatprep.subr.mxu0 0.0
    %2551 = vmatpush1.msra.mxu0 0.0
    %2552 = vmatprep.subr.mxu0 0.0
    %2553 = vmatpush1.msra.mxu0 0.0
    %2554 = vmatprep.subr.mxu0 0.0
    %2555 = vmatpush1.msra.mxu0 0.0
    %2556 = vmatprep.subr.mxu0 0.0
    %2557 = vmatpush1.msra.mxu0 0.0
    %2558 = vmatprep.subr.mxu0 0.0
    %2559 = vmatpush1.msra.mxu0 0.0
    %2560 = vmatprep.subr.mxu0 0.0
    %2561 = vmatpush1.msra.mxu0 0.0
    %2562 = vmatprep.subr.mxu0 0.0
    %2563 = vmatpush1.msra.mxu0 0.0
    %2564 = vmatprep.subr.mxu0 0.0
    %2565 = vmatpush1.msra.mxu0 0.0
    %2566 = vmatprep.subr.mxu0 0.0
    %2567 = vmatpush1.msra.mxu0 0.0
    %2568 = vmatprep.subr.mxu0 0.0
    %2569 = vmatpush1.msra.mxu0 0.0
    %2570 = vmatprep.subr.mxu0 0.0
    %2571 = vmatpush1.msra.mxu0 0.0
    %2572 = vmatprep.subr.mxu0 0.0
    %2573 = vmatpush1.msra.mxu0 %v2537
    %2574 = vmatprep.subr.mxu0 0.0
    %2575 = vmatpush2.msra.mxu0 0.0
    %2576 = vmatprep.subr.mxu0 0.0
    %2577 = vmatpush2.msra.mxu0 0.0
    %2578 = vmatprep.subr.mxu0 0.0
    %2579 = vmatpush2.msra.mxu0 0.0
    %2580 = vmatprep.subr.mxu0 0.0
    %2581 = vmatpush2.msra.mxu0 0.0
    %2582 = vmatprep.subr.mxu0 0.0
    %2583 = vmatpush2.msra.mxu0 0.0
    %2584 = vmatprep.subr.mxu0 0.0
    %2585 = vmatpush2.msra.mxu0 0.0
    %2586 = vmatprep.subr.mxu0 0.0
    %2587 = vmatpush2.msra.mxu0 0.0
    %2588 = vmatprep.subr.mxu0 0.0
    %2589 = vmatpush2.msra.mxu0 0.0
    %2590 = vmatprep.subr.mxu0 0.0
    %2591 = vmatpush2.msra.mxu0 0.0
    %2592 = vmatprep.subr.mxu0 0.0
    %2593 = vmatpush2.msra.mxu0 0.0
    %2594 = vmatprep.subr.mxu0 0.0
    %2595 = vmatpush2.msra.mxu0 0.0
    %2596 = vmatprep.subr.mxu0 0.0
    %2597 = vmatpush2.msra.mxu0 0.0
    %2598 = vmatprep.subr.mxu0 0.0
    %2599 = vmatpush2.msra.mxu0 0.0
    %2600 = vmatprep.subr.mxu0 0.0
    %2601 = vmatpush2.msra.mxu0 0.0
    %2602 = vmatprep.subr.mxu0 0.0
    %2603 = vmatpush2.msra.mxu0 0.0
    %2604 = vmatprep.subr.mxu0 0.0
    %2605 = vmatpush2.msra.mxu0 0.0
    %2606 = vmatprep.mubr.f32.mxu0 0.0
    %2607 = vmatmul.mubr.f32.gmra.mxu0 %v2540
    %v2608 = vpop.f32.mrf.mxu0
    %v2609 = vadd.f32 0.0, %v2608
    %v2610 = vpop.f32.mrf.mxu0
    %2611 = vdwg.mxu0
    %2612 = vrot.lane.b32.xlu0 %v225, 64
    %v2613 = vpop.permute.xlu0 %2612
    %v2616 = vsel %vm1447, %v1621, 0
    %2618 = vmatprep.subr.mxu0 0.0
    %2619 = vmatpush1.msra.mxu0 0.0
    %2620 = vmatprep.subr.mxu0 0.0
    %2621 = vmatpush1.msra.mxu0 0.0
    %2622 = vmatprep.subr.mxu0 0.0
    %2623 = vmatpush1.msra.mxu0 0.0
    %2624 = vmatprep.subr.mxu0 0.0
    %2625 = vmatpush1.msra.mxu0 0.0
    %2626 = vmatprep.subr.mxu0 0.0
    %2627 = vmatpush1.msra.mxu0 0.0
    %2628 = vmatprep.subr.mxu0 0.0
    %2629 = vmatpush1.msra.mxu0 0.0
    %2630 = vmatprep.subr.mxu0 0.0
    %2631 = vmatpush1.msra.mxu0 0.0
    %2632 = vmatprep.subr.mxu0 0.0
    %2633 = vmatpush1.msra.mxu0 0.0
    %2634 = vmatprep.subr.mxu0 0.0
    %2635 = vmatpush1.msra.mxu0 0.0
    %2636 = vmatprep.subr.mxu0 0.0
    %2637 = vmatpush1.msra.mxu0 0.0
    %2638 = vmatprep.subr.mxu0 0.0
    %2639 = vmatpush1.msra.mxu0 0.0
    %2640 = vmatprep.subr.mxu0 0.0
    %2641 = vmatpush1.msra.mxu0 0.0
    %2642 = vmatprep.subr.mxu0 0.0
    %2643 = vmatpush1.msra.mxu0 0.0
    %2644 = vmatprep.subr.mxu0 0.0
    %2645 = vmatpush1.msra.mxu0 0.0
    %2646 = vmatprep.subr.mxu0 0.0
    %2647 = vmatpush1.msra.mxu0 0.0
    %2648 = vmatprep.subr.mxu0 0.0
    %2649 = vmatpush1.msra.mxu0 %v2613
    %2650 = vmatprep.subr.mxu0 0.0
    %2651 = vmatpush2.msra.mxu0 0.0
    %2652 = vmatprep.subr.mxu0 0.0
    %2653 = vmatpush2.msra.mxu0 0.0
    %2654 = vmatprep.subr.mxu0 0.0
    %2655 = vmatpush2.msra.mxu0 0.0
    %2656 = vmatprep.subr.mxu0 0.0
    %2657 = vmatpush2.msra.mxu0 0.0
    %2658 = vmatprep.subr.mxu0 0.0
    %2659 = vmatpush2.msra.mxu0 0.0
    %2660 = vmatprep.subr.mxu0 0.0
    %2661 = vmatpush2.msra.mxu0 0.0
    %2662 = vmatprep.subr.mxu0 0.0
    %2663 = vmatpush2.msra.mxu0 0.0
    %2664 = vmatprep.subr.mxu0 0.0
    %2665 = vmatpush2.msra.mxu0 0.0
    %2666 = vmatprep.subr.mxu0 0.0
    %2667 = vmatpush2.msra.mxu0 0.0
    %2668 = vmatprep.subr.mxu0 0.0
    %2669 = vmatpush2.msra.mxu0 0.0
    %2670 = vmatprep.subr.mxu0 0.0
    %2671 = vmatpush2.msra.mxu0 0.0
    %2672 = vmatprep.subr.mxu0 0.0
    %2673 = vmatpush2.msra.mxu0 0.0
    %2674 = vmatprep.subr.mxu0 0.0
    %2675 = vmatpush2.msra.mxu0 0.0
    %2676 = vmatprep.subr.mxu0 0.0
    %2677 = vmatpush2.msra.mxu0 0.0
    %2678 = vmatprep.subr.mxu0 0.0
    %2679 = vmatpush2.msra.mxu0 0.0
    %2680 = vmatprep.subr.mxu0 0.0
    %2681 = vmatpush2.msra.mxu0 0.0
    %2682 = vmatprep.mubr.f32.mxu0 0.0
    %2683 = vmatmul.mubr.f32.gmra.mxu0 %v2616
    %v2684 = vpop.f32.mrf.mxu0
    %v2685 = vadd.f32 0.0, %v2684
    %v2686 = vpop.f32.mrf.mxu0
    %2687 = vdwg.mxu0
    %2688 = vrot.lane.b32.xlu0 %v227, 64
    %v2689 = vpop.permute.xlu0 %2688
    %v2692 = vsel %vm1447, %v1622, 0
    %2694 = vmatprep.subr.mxu0 0.0
    %2695 = vmatpush1.msra.mxu0 0.0
    %2696 = vmatprep.subr.mxu0 0.0
    %2697 = vmatpush1.msra.mxu0 0.0
    %2698 = vmatprep.subr.mxu0 0.0
    %2699 = vmatpush1.msra.mxu0 0.0
    %2700 = vmatprep.subr.mxu0 0.0
    %2701 = vmatpush1.msra.mxu0 0.0
    %2702 = vmatprep.subr.mxu0 0.0
    %2703 = vmatpush1.msra.mxu0 0.0
    %2704 = vmatprep.subr.mxu0 0.0
    %2705 = vmatpush1.msra.mxu0 0.0
    %2706 = vmatprep.subr.mxu0 0.0
    %2707 = vmatpush1.msra.mxu0 0.0
    %2708 = vmatprep.subr.mxu0 0.0
    %2709 = vmatpush1.msra.mxu0 0.0
    %2710 = vmatprep.subr.mxu0 0.0
    %2711 = vmatpush1.msra.mxu0 0.0
    %2712 = vmatprep.subr.mxu0 0.0
    %2713 = vmatpush1.msra.mxu0 0.0
    %2714 = vmatprep.subr.mxu0 0.0
    %2715 = vmatpush1.msra.mxu0 0.0
    %2716 = vmatprep.subr.mxu0 0.0
    %2717 = vmatpush1.msra.mxu0 0.0
    %2718 = vmatprep.subr.mxu0 0.0
    %2719 = vmatpush1.msra.mxu0 0.0
    %2720 = vmatprep.subr.mxu0 0.0
    %2721 = vmatpush1.msra.mxu0 0.0
    %2722 = vmatprep.subr.mxu0 0.0
    %2723 = vmatpush1.msra.mxu0 0.0
    %2724 = vmatprep.subr.mxu0 0.0
    %2725 = vmatpush1.msra.mxu0 %v2689
    %2726 = vmatprep.subr.mxu0 0.0
    %2727 = vmatpush2.msra.mxu0 0.0
    %2728 = vmatprep.subr.mxu0 0.0
    %2729 = vmatpush2.msra.mxu0 0.0
    %2730 = vmatprep.subr.mxu0 0.0
    %2731 = vmatpush2.msra.mxu0 0.0
    %2732 = vmatprep.subr.mxu0 0.0
    %2733 = vmatpush2.msra.mxu0 0.0
    %2734 = vmatprep.subr.mxu0 0.0
    %2735 = vmatpush2.msra.mxu0 0.0
    %2736 = vmatprep.subr.mxu0 0.0
    %2737 = vmatpush2.msra.mxu0 0.0
    %2738 = vmatprep.subr.mxu0 0.0
    %2739 = vmatpush2.msra.mxu0 0.0
    %2740 = vmatprep.subr.mxu0 0.0
    %2741 = vmatpush2.msra.mxu0 0.0
    %2742 = vmatprep.subr.mxu0 0.0
    %2743 = vmatpush2.msra.mxu0 0.0
    %2744 = vmatprep.subr.mxu0 0.0
    %2745 = vmatpush2.msra.mxu0 0.0
    %2746 = vmatprep.subr.mxu0 0.0
    %2747 = vmatpush2.msra.mxu0 0.0
    %2748 = vmatprep.subr.mxu0 0.0
    %2749 = vmatpush2.msra.mxu0 0.0
    %2750 = vmatprep.subr.mxu0 0.0
    %2751 = vmatpush2.msra.mxu0 0.0
    %2752 = vmatprep.subr.mxu0 0.0
    %2753 = vmatpush2.msra.mxu0 0.0
    %2754 = vmatprep.subr.mxu0 0.0
    %2755 = vmatpush2.msra.mxu0 0.0
    %2756 = vmatprep.subr.mxu0 0.0
    %2757 = vmatpush2.msra.mxu0 0.0
    %2758 = vmatprep.mubr.f32.mxu0 0.0
    %2759 = vmatmul.mubr.f32.gmra.mxu0 %v2692
    %v2760 = vpop.f32.mrf.mxu0
    %v2761 = vadd.f32 0.0, %v2760
    %v2762 = vpop.f32.mrf.mxu0
    %2763 = vdwg.mxu0
    %2764 = vrot.lane.b32.xlu0 %v229, 64
    %v2765 = vpop.permute.xlu0 %2764
    %v2768 = vsel %vm1447, %v1623, 0
    %2770 = vmatprep.subr.mxu0 0.0
    %2771 = vmatpush1.msra.mxu0 0.0
    %2772 = vmatprep.subr.mxu0 0.0
    %2773 = vmatpush1.msra.mxu0 0.0
    %2774 = vmatprep.subr.mxu0 0.0
    %2775 = vmatpush1.msra.mxu0 0.0
    %2776 = vmatprep.subr.mxu0 0.0
    %2777 = vmatpush1.msra.mxu0 0.0
    %2778 = vmatprep.subr.mxu0 0.0
    %2779 = vmatpush1.msra.mxu0 0.0
    %2780 = vmatprep.subr.mxu0 0.0
    %2781 = vmatpush1.msra.mxu0 0.0
    %2782 = vmatprep.subr.mxu0 0.0
    %2783 = vmatpush1.msra.mxu0 0.0
    %2784 = vmatprep.subr.mxu0 0.0
    %2785 = vmatpush1.msra.mxu0 0.0
    %2786 = vmatprep.subr.mxu0 0.0
    %2787 = vmatpush1.msra.mxu0 0.0
    %2788 = vmatprep.subr.mxu0 0.0
    %2789 = vmatpush1.msra.mxu0 0.0
    %2790 = vmatprep.subr.mxu0 0.0
    %2791 = vmatpush1.msra.mxu0 0.0
    %2792 = vmatprep.subr.mxu0 0.0
    %2793 = vmatpush1.msra.mxu0 0.0
    %2794 = vmatprep.subr.mxu0 0.0
    %2795 = vmatpush1.msra.mxu0 0.0
    %2796 = vmatprep.subr.mxu0 0.0
    %2797 = vmatpush1.msra.mxu0 0.0
    %2798 = vmatprep.subr.mxu0 0.0
    %2799 = vmatpush1.msra.mxu0 0.0
    %2800 = vmatprep.subr.mxu0 0.0
    %2801 = vmatpush1.msra.mxu0 %v2765
    %2802 = vmatprep.subr.mxu0 0.0
    %2803 = vmatpush2.msra.mxu0 0.0
    %2804 = vmatprep.subr.mxu0 0.0
    %2805 = vmatpush2.msra.mxu0 0.0
    %2806 = vmatprep.subr.mxu0 0.0
    %2807 = vmatpush2.msra.mxu0 0.0
    %2808 = vmatprep.subr.mxu0 0.0
    %2809 = vmatpush2.msra.mxu0 0.0
    %2810 = vmatprep.subr.mxu0 0.0
    %2811 = vmatpush2.msra.mxu0 0.0
    %2812 = vmatprep.subr.mxu0 0.0
    %2813 = vmatpush2.msra.mxu0 0.0
    %2814 = vmatprep.subr.mxu0 0.0
    %2815 = vmatpush2.msra.mxu0 0.0
    %2816 = vmatprep.subr.mxu0 0.0
    %2817 = vmatpush2.msra.mxu0 0.0
    %2818 = vmatprep.subr.mxu0 0.0
    %2819 = vmatpush2.msra.mxu0 0.0
    %2820 = vmatprep.subr.mxu0 0.0
    %2821 = vmatpush2.msra.mxu0 0.0
    %2822 = vmatprep.subr.mxu0 0.0
    %2823 = vmatpush2.msra.mxu0 0.0
    %2824 = vmatprep.subr.mxu0 0.0
    %2825 = vmatpush2.msra.mxu0 0.0
    %2826 = vmatprep.subr.mxu0 0.0
    %2827 = vmatpush2.msra.mxu0 0.0
    %2828 = vmatprep.subr.mxu0 0.0
    %2829 = vmatpush2.msra.mxu0 0.0
    %2830 = vmatprep.subr.mxu0 0.0
    %2831 = vmatpush2.msra.mxu0 0.0
    %2832 = vmatprep.subr.mxu0 0.0
    %2833 = vmatpush2.msra.mxu0 0.0
    %2834 = vmatprep.mubr.f32.mxu0 0.0
    %2835 = vmatmul.mubr.f32.gmra.mxu0 %v2768
    %v2836 = vpop.f32.mrf.mxu0
    %v2837 = vadd.f32 0.0, %v2836
    %v2838 = vpop.f32.mrf.mxu0
    %2839 = vdwg.mxu0
    %2842 = vrot.lane.b32.xlu0 %v1849, 4
    %v2843 = vpop.permute.xlu0 %2842
    %2844 = vrot.lane.b32.xlu0 %v1925, 4
    %v2845 = vpop.permute.xlu0 %2844
    %2850 = vrot.lane.b32.xlu0 %v2001, 8
    %v2851 = vpop.permute.xlu0 %2850
    %2852 = vrot.lane.b32.xlu0 %v2077, 8
    %v2853 = vpop.permute.xlu0 %2852
    %2858 = vrot.lane.b32.xlu0 %v2153, 12
    %v2859 = vpop.permute.xlu0 %2858
    %2860 = vrot.lane.b32.xlu0 %v2229, 12
    %v2861 = vpop.permute.xlu0 %2860
    %2866 = vrot.lane.b32.xlu0 %v2305, 16
    %v2867 = vpop.permute.xlu0 %2866
    %2868 = vrot.lane.b32.xlu0 %v2381, 16
    %v2869 = vpop.permute.xlu0 %2868
    %2874 = vrot.lane.b32.xlu0 %v2457, 20
    %v2875 = vpop.permute.xlu0 %2874
    %2876 = vrot.lane.b32.xlu0 %v2533, 20
    %v2877 = vpop.permute.xlu0 %2876
    %2882 = vrot.lane.b32.xlu0 %v2609, 24
    %v2883 = vpop.permute.xlu0 %2882
    %2884 = vrot.lane.b32.xlu0 %v2685, 24
    %v2885 = vpop.permute.xlu0 %2884
    %2890 = vrot.lane.b32.xlu0 %v2761, 28
    %v2891 = vpop.permute.xlu0 %2890
    %2892 = vrot.lane.b32.xlu0 %v2837, 28
    %v2893 = vpop.permute.xlu0 %2892
    %v2896 = vsel %vm232, %v1697, %v2843
    %v2897 = vsel %vm232, %v1773, %v2845
    %v2898 = vsel %vm1447, %v2896, %v2851
    %v2899 = vsel %vm1447, %v2897, %v2853
    %vm2900 = vcmask 97280
    %v2901 = vsel %vm2900, %v2898, %v2859
    %v2902 = vsel %vm2900, %v2899, %v2861
    %vm2903 = vcmask 130048
    %v2904 = vsel %vm2903, %v2901, %v2867
    %v2905 = vsel %vm2903, %v2902, %v2869
    %vm2906 = vcmask 162816
    %v2907 = vsel %vm2906, %v2904, %v2875
    %v2908 = vsel %vm2906, %v2905, %v2877
    %vm2909 = vcmask 195584
    %v2910 = vsel %vm2909, %v2907, %v2883
    %v2911 = vsel %vm2909, %v2908, %v2885
    %vm2912 = vcmask 228352
    %v2913 = vsel %vm2912, %v2910, %v2891
    %v2914 = vsel %vm2912, %v2911, %v2893
    %v2915 = vld [vmem:[%s4] sm:$0xff]
    %v2916 = vld [vmem:[%s4 + $0x8] sm:$0xff]
    %v2917 = vld [vmem:[%s4 + $0x10] sm:$0xff]
    %v2918 = vld [vmem:[%s4 + $0x18] sm:$0xff]
    %v2919 = vld [vmem:[%s5] sm:$0x1]
    %v2921 = vlaneseq
    %v2922 = vshrl.u32 %v2921, 7
    %v2923 = vsub.s32 0, %v2922
    %v2924 = vrot.slane %v2919, %v2923
    %v2927 = vsel %vm118, %v2913, 0
    %v2930 = vsel %vm118, %v2914, 0
    %2932 = vmatprep.subr.mxu0 0.0
    %2933 = vmatpush1.msra.mxu0 0.0
    %2934 = vmatprep.subr.mxu0 0.0
    %2935 = vmatpush1.msra.mxu0 0.0
    %2936 = vmatprep.subr.mxu0 0.0
    %2937 = vmatpush1.msra.mxu0 0.0
    %2938 = vmatprep.subr.mxu0 0.0
    %2939 = vmatpush1.msra.mxu0 0.0
    %2940 = vmatprep.subr.mxu0 0.0
    %2941 = vmatpush1.msra.mxu0 0.0
    %2942 = vmatprep.subr.mxu0 0.0
    %2943 = vmatpush1.msra.mxu0 0.0
    %2944 = vmatprep.subr.mxu0 0.0
    %2945 = vmatpush1.msra.mxu0 0.0
    %2946 = vmatprep.subr.mxu0 0.0
    %2947 = vmatpush1.msra.mxu0 0.0
    %2948 = vmatprep.subr.mxu0 0.0
    %2949 = vmatpush1.msra.mxu0 0.0
    %2950 = vmatprep.subr.mxu0 0.0
    %2951 = vmatpush1.msra.mxu0 0.0
    %2952 = vmatprep.subr.mxu0 0.0
    %2953 = vmatpush1.msra.mxu0 0.0
    %2954 = vmatprep.subr.mxu0 0.0
    %2955 = vmatpush1.msra.mxu0 0.0
    %2956 = vmatprep.subr.mxu0 0.0
    %2957 = vmatpush1.msra.mxu0 %v2918
    %2958 = vmatprep.subr.mxu0 0.0
    %2959 = vmatpush1.msra.mxu0 %v2917
    %2960 = vmatprep.subr.mxu0 0.0
    %2961 = vmatpush1.msra.mxu0 %v2916
    %2962 = vmatprep.subr.mxu0 0.0
    %2963 = vmatpush1.msra.mxu0 %v2915
    %2964 = vmatprep.subr.mxu0 0.0
    %2965 = vmatpush2.msra.mxu0 0.0
    %2966 = vmatprep.subr.mxu0 0.0
    %2967 = vmatpush2.msra.mxu0 0.0
    %2968 = vmatprep.subr.mxu0 0.0
    %2969 = vmatpush2.msra.mxu0 0.0
    %2970 = vmatprep.subr.mxu0 0.0
    %2971 = vmatpush2.msra.mxu0 0.0
    %2972 = vmatprep.subr.mxu0 0.0
    %2973 = vmatpush2.msra.mxu0 0.0
    %2974 = vmatprep.subr.mxu0 0.0
    %2975 = vmatpush2.msra.mxu0 0.0
    %2976 = vmatprep.subr.mxu0 0.0
    %2977 = vmatpush2.msra.mxu0 0.0
    %2978 = vmatprep.subr.mxu0 0.0
    %2979 = vmatpush2.msra.mxu0 0.0
    %2980 = vmatprep.subr.mxu0 0.0
    %2981 = vmatpush2.msra.mxu0 0.0
    %2982 = vmatprep.subr.mxu0 0.0
    %2983 = vmatpush2.msra.mxu0 0.0
    %2984 = vmatprep.subr.mxu0 0.0
    %2985 = vmatpush2.msra.mxu0 0.0
    %2986 = vmatprep.subr.mxu0 0.0
    %2987 = vmatpush2.msra.mxu0 0.0
    %2988 = vmatprep.subr.mxu0 0.0
    %2989 = vmatpush2.msra.mxu0 0.0
    %2990 = vmatprep.subr.mxu0 0.0
    %2991 = vmatpush2.msra.mxu0 0.0
    %2992 = vmatprep.subr.mxu0 0.0
    %2993 = vmatpush2.msra.mxu0 0.0
    %2994 = vmatprep.subr.mxu0 0.0
    %2995 = vmatpush2.msra.mxu0 0.0
    %2996 = vmatprep.mubr.f32.mxu0 0.0
    %2997 = vmatmul.mubr.f32.gmra.mxu0 %v2927
    %v2998 = vpop.f32.mrf.mxu0
    %v2999 = vadd.f32 %v2924, %v2998
    %v3000 = vpop.f32.mrf.mxu0
    %3001 = vmatprep.mubr.f32.mxu0 0.0
    %3002 = vmatmul.mubr.f32.gmra.mxu0 %v2930
    %v3003 = vpop.f32.mrf.mxu0
    %v3004 = vadd.f32 %v2924, %v3003
    %v3005 = vpop.f32.mrf.mxu0
    %3006 = vdwg.mxu0
    %v3007 = vadd.f32 %v2999, %v101
    %v3008 = vadd.f32 %v3004, %v102
    %v3009 = vsel %vm118, %v3007, 0.0
    %3010 = vadd.xlane.f32.xlu0 %v3009
    %v3011 = vpop.xlane.xlu0 %3010
    %v3012 = vsel %vm118, %v3008, 0.0
    %3013 = vadd.xlane.f32.xlu0 %v3012
    %v3014 = vpop.xlane.xlu0 %3013
    %v3015 = vrcp.pop 32.0
    %v3016 = vmul.f32 %v3011, %v3015
    %v3017 = vmul.f32 %v3014, %v3015
    %v3018 = vsub.f32 %v3007, %v3016
    %v3019 = vsub.f32 %v3008, %v3017
    %v3020 = vmul.f32 %v3018, %v3018
    %v3021 = vmul.f32 %v3019, %v3019
    %v3022 = vsel %vm118, %v3020, 0.0
    %3023 = vadd.xlane.f32.xlu0 %v3022
    %v3024 = vpop.xlane.xlu0 %3023
    %v3025 = vsel %vm118, %v3021, 0.0
    %3026 = vadd.xlane.f32.xlu0 %v3025
    %v3027 = vpop.xlane.xlu0 %3026
    %v3028 = vmul.f32 %v3024, %v3015
    %v3029 = vmul.f32 %v3027, %v3015
    %v3030 = vadd.f32 %v3028, 1e-05
    %v3031 = vadd.f32 %v3029, 1e-05
    %v3032 = vrsqrt.pop %v3030
    %v3033 = vrsqrt.pop %v3031
    %v3034 = vmul.f32 %v3018, %v3032
    %v3035 = vmul.f32 %v3019, %v3033
    %v3036 = vlaneseq
    %v3037 = vshrl.u32 %v3036, 7
    %v3038 = vsub.s32 0, %v3037
    %v3039 = vrot.slane %v105, %v3038
    %v3040 = vmul.f32 %v3034, %v3039
    %v3041 = vmul.f32 %v3035, %v3039
    %v3042 = vlaneseq
    %v3043 = vshrl.u32 %v3042, 7
    %v3044 = vsub.s32 0, %v3043
    %v3045 = vrot.slane %v106, %v3044
    %v3046 = vadd.f32 %v3040, %v3045
    %v3047 = vadd.f32 %v3041, %v3045
    %v3048 = vld [vmem:[%s6] sm:$0xff]
    %v3049 = vld [vmem:[%s6 + $0x8] sm:$0xff]
    %v3050 = vld [vmem:[%s6 + $0x10] sm:$0xff]
    %v3051 = vld [vmem:[%s6 + $0x18] sm:$0xff]
    %v3052 = vld [vmem:[%s7] sm:$0x1]
    %v3054 = vlaneseq
    %v3055 = vshrl.u32 %v3054, 7
    %v3056 = vsub.s32 0, %v3055
    %v3057 = vrot.slane %v3052, %v3056
    %v3060 = vsel %vm118, %v3046, 0
    %v3063 = vsel %vm118, %v3047, 0
    %3065 = vmatprep.subr.mxu0 0.0
    %3066 = vmatpush1.msra.mxu0 0.0
    %3067 = vmatprep.subr.mxu0 0.0
    %3068 = vmatpush1.msra.mxu0 0.0
    %3069 = vmatprep.subr.mxu0 0.0
    %3070 = vmatpush1.msra.mxu0 0.0
    %3071 = vmatprep.subr.mxu0 0.0
    %3072 = vmatpush1.msra.mxu0 0.0
    %3073 = vmatprep.subr.mxu0 0.0
    %3074 = vmatpush1.msra.mxu0 0.0
    %3075 = vmatprep.subr.mxu0 0.0
    %3076 = vmatpush1.msra.mxu0 0.0
    %3077 = vmatprep.subr.mxu0 0.0
    %3078 = vmatpush1.msra.mxu0 0.0
    %3079 = vmatprep.subr.mxu0 0.0
    %3080 = vmatpush1.msra.mxu0 0.0
    %3081 = vmatprep.subr.mxu0 0.0
    %3082 = vmatpush1.msra.mxu0 0.0
    %3083 = vmatprep.subr.mxu0 0.0
    %3084 = vmatpush1.msra.mxu0 0.0
    %3085 = vmatprep.subr.mxu0 0.0
    %3086 = vmatpush1.msra.mxu0 0.0
    %3087 = vmatprep.subr.mxu0 0.0
    %3088 = vmatpush1.msra.mxu0 0.0
    %3089 = vmatprep.subr.mxu0 0.0
    %3090 = vmatpush1.msra.mxu0 %v3051
    %3091 = vmatprep.subr.mxu0 0.0
    %3092 = vmatpush1.msra.mxu0 %v3050
    %3093 = vmatprep.subr.mxu0 0.0
    %3094 = vmatpush1.msra.mxu0 %v3049
    %3095 = vmatprep.subr.mxu0 0.0
    %3096 = vmatpush1.msra.mxu0 %v3048
    %3097 = vmatprep.subr.mxu0 0.0
    %3098 = vmatpush2.msra.mxu0 0.0
    %3099 = vmatprep.subr.mxu0 0.0
    %3100 = vmatpush2.msra.mxu0 0.0
    %3101 = vmatprep.subr.mxu0 0.0
    %3102 = vmatpush2.msra.mxu0 0.0
    %3103 = vmatprep.subr.mxu0 0.0
    %3104 = vmatpush2.msra.mxu0 0.0
    %3105 = vmatprep.subr.mxu0 0.0
    %3106 = vmatpush2.msra.mxu0 0.0
    %3107 = vmatprep.subr.mxu0 0.0
    %3108 = vmatpush2.msra.mxu0 0.0
    %3109 = vmatprep.subr.mxu0 0.0
    %3110 = vmatpush2.msra.mxu0 0.0
    %3111 = vmatprep.subr.mxu0 0.0
    %3112 = vmatpush2.msra.mxu0 0.0
    %3113 = vmatprep.subr.mxu0 0.0
    %3114 = vmatpush2.msra.mxu0 0.0
    %3115 = vmatprep.subr.mxu0 0.0
    %3116 = vmatpush2.msra.mxu0 0.0
    %3117 = vmatprep.subr.mxu0 0.0
    %3118 = vmatpush2.msra.mxu0 0.0
    %3119 = vmatprep.subr.mxu0 0.0
    %3120 = vmatpush2.msra.mxu0 0.0
    %3121 = vmatprep.subr.mxu0 0.0
    %3122 = vmatpush2.msra.mxu0 0.0
    %3123 = vmatprep.subr.mxu0 0.0
    %3124 = vmatpush2.msra.mxu0 0.0
    %3125 = vmatprep.subr.mxu0 0.0
    %3126 = vmatpush2.msra.mxu0 0.0
    %3127 = vmatprep.subr.mxu0 0.0
    %3128 = vmatpush2.msra.mxu0 0.0
    %3129 = vmatprep.mubr.f32.mxu0 0.0
    %3130 = vmatmul.mubr.f32.gmra.mxu0 %v3060
    %v3131 = vpop.f32.mrf.mxu0
    %v3132 = vadd.f32 %v3057, %v3131
    %v3133 = vpop.f32.mrf.mxu0
    %3134 = vmatprep.mubr.f32.mxu0 0.0
    %3135 = vmatmul.mubr.f32.gmra.mxu0 %v3063
    %v3136 = vpop.f32.mrf.mxu0
    %v3137 = vadd.f32 %v3057, %v3136
    %v3138 = vpop.f32.mrf.mxu0
    %3139 = vdwg.mxu0
    %v3140 = vld [vmem:[%s8] sm:$0xff]
    %v3141 = vld [vmem:[%s8 + $0x8] sm:$0xff]
    %v3142 = vld [vmem:[%s8 + $0x10] sm:$0xff]
    %v3143 = vld [vmem:[%s8 + $0x18] sm:$0xff]
    %v3144 = vld [vmem:[%s9] sm:$0x1]
    %v3146 = vlaneseq
    %v3147 = vshrl.u32 %v3146, 7
    %v3148 = vsub.s32 0, %v3147
    %v3149 = vrot.slane %v3144, %v3148
    %v3152 = vsel %vm118, %v103, 0
    %v3155 = vsel %vm118, %v104, 0
    %3157 = vmatprep.subr.mxu0 0.0
    %3158 = vmatpush1.msra.mxu0 0.0
    %3159 = vmatprep.subr.mxu0 0.0
    %3160 = vmatpush1.msra.mxu0 0.0
    %3161 = vmatprep.subr.mxu0 0.0
    %3162 = vmatpush1.msra.mxu0 0.0
    %3163 = vmatprep.subr.mxu0 0.0
    %3164 = vmatpush1.msra.mxu0 0.0
    %3165 = vmatprep.subr.mxu0 0.0
    %3166 = vmatpush1.msra.mxu0 0.0
    %3167 = vmatprep.subr.mxu0 0.0
    %3168 = vmatpush1.msra.mxu0 0.0
    %3169 = vmatprep.subr.mxu0 0.0
    %3170 = vmatpush1.msra.mxu0 0.0
    %3171 = vmatprep.subr.mxu0 0.0
    %3172 = vmatpush1.msra.mxu0 0.0
    %3173 = vmatprep.subr.mxu0 0.0
    %3174 = vmatpush1.msra.mxu0 0.0
    %3175 = vmatprep.subr.mxu0 0.0
    %3176 = vmatpush1.msra.mxu0 0.0
    %3177 = vmatprep.subr.mxu0 0.0
    %3178 = vmatpush1.msra.mxu0 0.0
    %3179 = vmatprep.subr.mxu0 0.0
    %3180 = vmatpush1.msra.mxu0 0.0
    %3181 = vmatprep.subr.mxu0 0.0
    %3182 = vmatpush1.msra.mxu0 %v3143
    %3183 = vmatprep.subr.mxu0 0.0
    %3184 = vmatpush1.msra.mxu0 %v3142
    %3185 = vmatprep.subr.mxu0 0.0
    %3186 = vmatpush1.msra.mxu0 %v3141
    %3187 = vmatprep.subr.mxu0 0.0
    %3188 = vmatpush1.msra.mxu0 %v3140
    %3189 = vmatprep.subr.mxu0 0.0
    %3190 = vmatpush2.msra.mxu0 0.0
    %3191 = vmatprep.subr.mxu0 0.0
    %3192 = vmatpush2.msra.mxu0 0.0
    %3193 = vmatprep.subr.mxu0 0.0
    %3194 = vmatpush2.msra.mxu0 0.0
    %3195 = vmatprep.subr.mxu0 0.0
    %3196 = vmatpush2.msra.mxu0 0.0
    %3197 = vmatprep.subr.mxu0 0.0
    %3198 = vmatpush2.msra.mxu0 0.0
    %3199 = vmatprep.subr.mxu0 0.0
    %3200 = vmatpush2.msra.mxu0 0.0
    %3201 = vmatprep.subr.mxu0 0.0
    %3202 = vmatpush2.msra.mxu0 0.0
    %3203 = vmatprep.subr.mxu0 0.0
    %3204 = vmatpush2.msra.mxu0 0.0
    %3205 = vmatprep.subr.mxu0 0.0
    %3206 = vmatpush2.msra.mxu0 0.0
    %3207 = vmatprep.subr.mxu0 0.0
    %3208 = vmatpush2.msra.mxu0 0.0
    %3209 = vmatprep.subr.mxu0 0.0
    %3210 = vmatpush2.msra.mxu0 0.0
    %3211 = vmatprep.subr.mxu0 0.0
    %3212 = vmatpush2.msra.mxu0 0.0
    %3213 = vmatprep.subr.mxu0 0.0
    %3214 = vmatpush2.msra.mxu0 0.0
    %3215 = vmatprep.subr.mxu0 0.0
    %3216 = vmatpush2.msra.mxu0 0.0
    %3217 = vmatprep.subr.mxu0 0.0
    %3218 = vmatpush2.msra.mxu0 0.0
    %3219 = vmatprep.subr.mxu0 0.0
    %3220 = vmatpush2.msra.mxu0 0.0
    %3221 = vmatprep.mubr.f32.mxu0 0.0
    %3222 = vmatmul.mubr.f32.gmra.mxu0 %v3152
    %v3223 = vpop.f32.mrf.mxu0
    %v3224 = vadd.f32 %v3149, %v3223
    %v3225 = vpop.f32.mrf.mxu0
    %3226 = vmatprep.mubr.f32.mxu0 0.0
    %3227 = vmatmul.mubr.f32.gmra.mxu0 %v3155
    %v3228 = vpop.f32.mrf.mxu0
    %v3229 = vadd.f32 %v3149, %v3228
    %v3230 = vpop.f32.mrf.mxu0
    %3231 = vdwg.mxu0
    %3234 = vrot.lane.b32.xlu0 %v3132, 124
    %v3235 = vpop.permute.xlu0 %3234
    %3236 = vrot.lane.b32.xlu0 %v3137, 124
    %v3237 = vpop.permute.xlu0 %3236
    %3238 = vrot.lane.b32.xlu0 %v3132, 120
    %v3239 = vpop.permute.xlu0 %3238
    %3240 = vrot.lane.b32.xlu0 %v3137, 120
    %v3241 = vpop.permute.xlu0 %3240
    %3242 = vrot.lane.b32.xlu0 %v3132, 116
    %v3243 = vpop.permute.xlu0 %3242
    %3244 = vrot.lane.b32.xlu0 %v3137, 116
    %v3245 = vpop.permute.xlu0 %3244
    %3246 = vrot.lane.b32.xlu0 %v3132, 112
    %v3247 = vpop.permute.xlu0 %3246
    %3248 = vrot.lane.b32.xlu0 %v3137, 112
    %v3249 = vpop.permute.xlu0 %3248
    %3250 = vrot.lane.b32.xlu0 %v3132, 108
    %v3251 = vpop.permute.xlu0 %3250
    %3252 = vrot.lane.b32.xlu0 %v3137, 108
    %v3253 = vpop.permute.xlu0 %3252
    %3254 = vrot.lane.b32.xlu0 %v3132, 104
    %v3255 = vpop.permute.xlu0 %3254
    %3256 = vrot.lane.b32.xlu0 %v3137, 104
    %v3257 = vpop.permute.xlu0 %3256
    %3258 = vrot.lane.b32.xlu0 %v3132, 100
    %v3259 = vpop.permute.xlu0 %3258
    %3260 = vrot.lane.b32.xlu0 %v3137, 100
    %v3261 = vpop.permute.xlu0 %3260
    %3264 = vrot.lane.b32.xlu0 %v3224, 124
    %v3265 = vpop.permute.xlu0 %3264
    %3266 = vrot.lane.b32.xlu0 %v3229, 124
    %v3267 = vpop.permute.xlu0 %3266
    %3268 = vrot.lane.b32.xlu0 %v3224, 120
    %v3269 = vpop.permute.xlu0 %3268
    %3270 = vrot.lane.b32.xlu0 %v3229, 120
    %v3271 = vpop.permute.xlu0 %3270
    %3272 = vrot.lane.b32.xlu0 %v3224, 116
    %v3273 = vpop.permute.xlu0 %3272
    %3274 = vrot.lane.b32.xlu0 %v3229, 116
    %v3275 = vpop.permute.xlu0 %3274
    %3276 = vrot.lane.b32.xlu0 %v3224, 112
    %v3277 = vpop.permute.xlu0 %3276
    %3278 = vrot.lane.b32.xlu0 %v3229, 112
    %v3279 = vpop.permute.xlu0 %3278
    %3280 = vrot.lane.b32.xlu0 %v3224, 108
    %v3281 = vpop.permute.xlu0 %3280
    %3282 = vrot.lane.b32.xlu0 %v3229, 108
    %v3283 = vpop.permute.xlu0 %3282
    %3284 = vrot.lane.b32.xlu0 %v3224, 104
    %v3285 = vpop.permute.xlu0 %3284
    %3286 = vrot.lane.b32.xlu0 %v3229, 104
    %v3287 = vpop.permute.xlu0 %3286
    %3288 = vrot.lane.b32.xlu0 %v3224, 100
    %v3289 = vpop.permute.xlu0 %3288
    %3290 = vrot.lane.b32.xlu0 %v3229, 100
    %v3291 = vpop.permute.xlu0 %3290
    %v3292 = vsel %vm232, %v3132, 0
    %v3294 = vsel %vm232, %v3224, 0
    %3296 = vmatprep.subr.mxu0 0.0
    %3297 = vmatpush1.xpose.msra.mxu0 0.0
    %3298 = vmatprep.subr.mxu0 0.0
    %3299 = vmatpush1.xpose.msra.mxu0 0.0
    %3300 = vmatprep.subr.mxu0 0.0
    %3301 = vmatpush1.xpose.msra.mxu0 0.0
    %3302 = vmatprep.subr.mxu0 0.0
    %3303 = vmatpush1.xpose.msra.mxu0 0.0
    %3304 = vmatprep.subr.mxu0 0.0
    %3305 = vmatpush1.xpose.msra.mxu0 0.0
    %3306 = vmatprep.subr.mxu0 0.0
    %3307 = vmatpush1.xpose.msra.mxu0 0.0
    %3308 = vmatprep.subr.mxu0 0.0
    %3309 = vmatpush1.xpose.msra.mxu0 0.0
    %3310 = vmatprep.subr.mxu0 0.0
    %3311 = vmatpush1.xpose.msra.mxu0 0.0
    %3312 = vmatprep.subr.mxu0 0.0
    %3313 = vmatpush1.xpose.msra.mxu0 0.0
    %3314 = vmatprep.subr.mxu0 0.0
    %3315 = vmatpush1.xpose.msra.mxu0 0.0
    %3316 = vmatprep.subr.mxu0 0.0
    %3317 = vmatpush1.xpose.msra.mxu0 0.0
    %3318 = vmatprep.subr.mxu0 0.0
    %3319 = vmatpush1.xpose.msra.mxu0 0.0
    %3320 = vmatprep.subr.mxu0 0.0
    %3321 = vmatpush1.xpose.msra.mxu0 0.0
    %3322 = vmatprep.subr.mxu0 0.0
    %3323 = vmatpush1.xpose.msra.mxu0 0.0
    %3324 = vmatprep.subr.mxu0 0.0
    %3325 = vmatpush1.xpose.msra.mxu0 0.0
    %3326 = vmatprep.subr.mxu0 0.0
    %3327 = vmatpush1.xpose.msra.mxu0 %v3294
    %3328 = vmatprep.subr.mxu0 0.0
    %3329 = vmatpush2.xpose.msra.mxu0 0.0
    %3330 = vmatprep.subr.mxu0 0.0
    %3331 = vmatpush2.xpose.msra.mxu0 0.0
    %3332 = vmatprep.subr.mxu0 0.0
    %3333 = vmatpush2.xpose.msra.mxu0 0.0
    %3334 = vmatprep.subr.mxu0 0.0
    %3335 = vmatpush2.xpose.msra.mxu0 0.0
    %3336 = vmatprep.subr.mxu0 0.0
    %3337 = vmatpush2.xpose.msra.mxu0 0.0
    %3338 = vmatprep.subr.mxu0 0.0
    %3339 = vmatpush2.xpose.msra.mxu0 0.0
    %3340 = vmatprep.subr.mxu0 0.0
    %3341 = vmatpush2.xpose.msra.mxu0 0.0
    %3342 = vmatprep.subr.mxu0 0.0
    %3343 = vmatpush2.xpose.msra.mxu0 0.0
    %3344 = vmatprep.subr.mxu0 0.0
    %3345 = vmatpush2.xpose.msra.mxu0 0.0
    %3346 = vmatprep.subr.mxu0 0.0
    %3347 = vmatpush2.xpose.msra.mxu0 0.0
    %3348 = vmatprep.subr.mxu0 0.0
    %3349 = vmatpush2.xpose.msra.mxu0 0.0
    %3350 = vmatprep.subr.mxu0 0.0
    %3351 = vmatpush2.xpose.msra.mxu0 0.0
    %3352 = vmatprep.subr.mxu0 0.0
    %3353 = vmatpush2.xpose.msra.mxu0 0.0
    %3354 = vmatprep.subr.mxu0 0.0
    %3355 = vmatpush2.xpose.msra.mxu0 0.0
    %3356 = vmatprep.subr.mxu0 0.0
    %3357 = vmatpush2.xpose.msra.mxu0 0.0
    %3358 = vmatprep.subr.mxu0 0.0
    %3359 = vmatpush2.xpose.msra.mxu0 0.0
    %3360 = vmatprep.mubr.f32.mxu0 0.0
    %3361 = vmatmul.mubr.f32.gmra.mxu0 %v3292
    %v3362 = vpop.f32.mrf.mxu0
    %v3363 = vadd.f32 0.0, %v3362
    %v3364 = vpop.f32.mrf.mxu0
    %3365 = vdwg.mxu0
    %v3366 = vsel %vm232, %v3137, 0
    %v3368 = vsel %vm232, %v3229, 0
    %3370 = vmatprep.subr.mxu0 0.0
    %3371 = vmatpush1.xpose.msra.mxu0 0.0
    %3372 = vmatprep.subr.mxu0 0.0
    %3373 = vmatpush1.xpose.msra.mxu0 0.0
    %3374 = vmatprep.subr.mxu0 0.0
    %3375 = vmatpush1.xpose.msra.mxu0 0.0
    %3376 = vmatprep.subr.mxu0 0.0
    %3377 = vmatpush1.xpose.msra.mxu0 0.0
    %3378 = vmatprep.subr.mxu0 0.0
    %3379 = vmatpush1.xpose.msra.mxu0 0.0
    %3380 = vmatprep.subr.mxu0 0.0
    %3381 = vmatpush1.xpose.msra.mxu0 0.0
    %3382 = vmatprep.subr.mxu0 0.0
    %3383 = vmatpush1.xpose.msra.mxu0 0.0
    %3384 = vmatprep.subr.mxu0 0.0
    %3385 = vmatpush1.xpose.msra.mxu0 0.0
    %3386 = vmatprep.subr.mxu0 0.0
    %3387 = vmatpush1.xpose.msra.mxu0 0.0
    %3388 = vmatprep.subr.mxu0 0.0
    %3389 = vmatpush1.xpose.msra.mxu0 0.0
    %3390 = vmatprep.subr.mxu0 0.0
    %3391 = vmatpush1.xpose.msra.mxu0 0.0
    %3392 = vmatprep.subr.mxu0 0.0
    %3393 = vmatpush1.xpose.msra.mxu0 0.0
    %3394 = vmatprep.subr.mxu0 0.0
    %3395 = vmatpush1.xpose.msra.mxu0 0.0
    %3396 = vmatprep.subr.mxu0 0.0
    %3397 = vmatpush1.xpose.msra.mxu0 0.0
    %3398 = vmatprep.subr.mxu0 0.0
    %3399 = vmatpush1.xpose.msra.mxu0 0.0
    %3400 = vmatprep.subr.mxu0 0.0
    %3401 = vmatpush1.xpose.msra.mxu0 %v3368
    %3402 = vmatprep.subr.mxu0 0.0
    %3403 = vmatpush2.xpose.msra.mxu0 0.0
    %3404 = vmatprep.subr.mxu0 0.0
    %3405 = vmatpush2.xpose.msra.mxu0 0.0
    %3406 = vmatprep.subr.mxu0 0.0
    %3407 = vmatpush2.xpose.msra.mxu0 0.0
    %3408 = vmatprep.subr.mxu0 0.0
    %3409 = vmatpush2.xpose.msra.mxu0 0.0
    %3410 = vmatprep.subr.mxu0 0.0
    %3411 = vmatpush2.xpose.msra.mxu0 0.0
    %3412 = vmatprep.subr.mxu0 0.0
    %3413 = vmatpush2.xpose.msra.mxu0 0.0
    %3414 = vmatprep.subr.mxu0 0.0
    %3415 = vmatpush2.xpose.msra.mxu0 0.0
    %3416 = vmatprep.subr.mxu0 0.0
    %3417 = vmatpush2.xpose.msra.mxu0 0.0
    %3418 = vmatprep.subr.mxu0 0.0
    %3419 = vmatpush2.xpose.msra.mxu0 0.0
    %3420 = vmatprep.subr.mxu0 0.0
    %3421 = vmatpush2.xpose.msra.mxu0 0.0
    %3422 = vmatprep.subr.mxu0 0.0
    %3423 = vmatpush2.xpose.msra.mxu0 0.0
    %3424 = vmatprep.subr.mxu0 0.0
    %3425 = vmatpush2.xpose.msra.mxu0 0.0
    %3426 = vmatprep.subr.mxu0 0.0
    %3427 = vmatpush2.xpose.msra.mxu0 0.0
    %3428 = vmatprep.subr.mxu0 0.0
    %3429 = vmatpush2.xpose.msra.mxu0 0.0
    %3430 = vmatprep.subr.mxu0 0.0
    %3431 = vmatpush2.xpose.msra.mxu0 0.0
    %3432 = vmatprep.subr.mxu0 0.0
    %3433 = vmatpush2.xpose.msra.mxu0 0.0
    %3434 = vmatprep.mubr.f32.mxu0 0.0
    %3435 = vmatmul.mubr.f32.gmra.mxu0 %v3366
    %v3436 = vpop.f32.mrf.mxu0
    %v3437 = vadd.f32 0.0, %v3436
    %v3438 = vpop.f32.mrf.mxu0
    %3439 = vdwg.mxu0
    %v3440 = vsel %vm232, %v3235, 0
    %v3442 = vsel %vm232, %v3265, 0
    %3444 = vmatprep.subr.mxu0 0.0
    %3445 = vmatpush1.xpose.msra.mxu0 0.0
    %3446 = vmatprep.subr.mxu0 0.0
    %3447 = vmatpush1.xpose.msra.mxu0 0.0
    %3448 = vmatprep.subr.mxu0 0.0
    %3449 = vmatpush1.xpose.msra.mxu0 0.0
    %3450 = vmatprep.subr.mxu0 0.0
    %3451 = vmatpush1.xpose.msra.mxu0 0.0
    %3452 = vmatprep.subr.mxu0 0.0
    %3453 = vmatpush1.xpose.msra.mxu0 0.0
    %3454 = vmatprep.subr.mxu0 0.0
    %3455 = vmatpush1.xpose.msra.mxu0 0.0
    %3456 = vmatprep.subr.mxu0 0.0
    %3457 = vmatpush1.xpose.msra.mxu0 0.0
    %3458 = vmatprep.subr.mxu0 0.0
    %3459 = vmatpush1.xpose.msra.mxu0 0.0
    %3460 = vmatprep.subr.mxu0 0.0
    %3461 = vmatpush1.xpose.msra.mxu0 0.0
    %3462 = vmatprep.subr.mxu0 0.0
    %3463 = vmatpush1.xpose.msra.mxu0 0.0
    %3464 = vmatprep.subr.mxu0 0.0
    %3465 = vmatpush1.xpose.msra.mxu0 0.0
    %3466 = vmatprep.subr.mxu0 0.0
    %3467 = vmatpush1.xpose.msra.mxu0 0.0
    %3468 = vmatprep.subr.mxu0 0.0
    %3469 = vmatpush1.xpose.msra.mxu0 0.0
    %3470 = vmatprep.subr.mxu0 0.0
    %3471 = vmatpush1.xpose.msra.mxu0 0.0
    %3472 = vmatprep.subr.mxu0 0.0
    %3473 = vmatpush1.xpose.msra.mxu0 0.0
    %3474 = vmatprep.subr.mxu0 0.0
    %3475 = vmatpush1.xpose.msra.mxu0 %v3442
    %3476 = vmatprep.subr.mxu0 0.0
    %3477 = vmatpush2.xpose.msra.mxu0 0.0
    %3478 = vmatprep.subr.mxu0 0.0
    %3479 = vmatpush2.xpose.msra.mxu0 0.0
    %3480 = vmatprep.subr.mxu0 0.0
    %3481 = vmatpush2.xpose.msra.mxu0 0.0
    %3482 = vmatprep.subr.mxu0 0.0
    %3483 = vmatpush2.xpose.msra.mxu0 0.0
    %3484 = vmatprep.subr.mxu0 0.0
    %3485 = vmatpush2.xpose.msra.mxu0 0.0
    %3486 = vmatprep.subr.mxu0 0.0
    %3487 = vmatpush2.xpose.msra.mxu0 0.0
    %3488 = vmatprep.subr.mxu0 0.0
    %3489 = vmatpush2.xpose.msra.mxu0 0.0
    %3490 = vmatprep.subr.mxu0 0.0
    %3491 = vmatpush2.xpose.msra.mxu0 0.0
    %3492 = vmatprep.subr.mxu0 0.0
    %3493 = vmatpush2.xpose.msra.mxu0 0.0
    %3494 = vmatprep.subr.mxu0 0.0
    %3495 = vmatpush2.xpose.msra.mxu0 0.0
    %3496 = vmatprep.subr.mxu0 0.0
    %3497 = vmatpush2.xpose.msra.mxu0 0.0
    %3498 = vmatprep.subr.mxu0 0.0
    %3499 = vmatpush2.xpose.msra.mxu0 0.0
    %3500 = vmatprep.subr.mxu0 0.0
    %3501 = vmatpush2.xpose.msra.mxu0 0.0
    %3502 = vmatprep.subr.mxu0 0.0
    %3503 = vmatpush2.xpose.msra.mxu0 0.0
    %3504 = vmatprep.subr.mxu0 0.0
    %3505 = vmatpush2.xpose.msra.mxu0 0.0
    %3506 = vmatprep.subr.mxu0 0.0
    %3507 = vmatpush2.xpose.msra.mxu0 0.0
    %3508 = vmatprep.mubr.f32.mxu0 0.0
    %3509 = vmatmul.mubr.f32.gmra.mxu0 %v3440
    %v3510 = vpop.f32.mrf.mxu0
    %v3511 = vadd.f32 0.0, %v3510
    %v3512 = vpop.f32.mrf.mxu0
    %3513 = vdwg.mxu0
    %v3514 = vsel %vm232, %v3237, 0
    %v3516 = vsel %vm232, %v3267, 0
    %3518 = vmatprep.subr.mxu0 0.0
    %3519 = vmatpush1.xpose.msra.mxu0 0.0
    %3520 = vmatprep.subr.mxu0 0.0
    %3521 = vmatpush1.xpose.msra.mxu0 0.0
    %3522 = vmatprep.subr.mxu0 0.0
    %3523 = vmatpush1.xpose.msra.mxu0 0.0
    %3524 = vmatprep.subr.mxu0 0.0
    %3525 = vmatpush1.xpose.msra.mxu0 0.0
    %3526 = vmatprep.subr.mxu0 0.0
    %3527 = vmatpush1.xpose.msra.mxu0 0.0
    %3528 = vmatprep.subr.mxu0 0.0
    %3529 = vmatpush1.xpose.msra.mxu0 0.0
    %3530 = vmatprep.subr.mxu0 0.0
    %3531 = vmatpush1.xpose.msra.mxu0 0.0
    %3532 = vmatprep.subr.mxu0 0.0
    %3533 = vmatpush1.xpose.msra.mxu0 0.0
    %3534 = vmatprep.subr.mxu0 0.0
    %3535 = vmatpush1.xpose.msra.mxu0 0.0
    %3536 = vmatprep.subr.mxu0 0.0
    %3537 = vmatpush1.xpose.msra.mxu0 0.0
    %3538 = vmatprep.subr.mxu0 0.0
    %3539 = vmatpush1.xpose.msra.mxu0 0.0
    %3540 = vmatprep.subr.mxu0 0.0
    %3541 = vmatpush1.xpose.msra.mxu0 0.0
    %3542 = vmatprep.subr.mxu0 0.0
    %3543 = vmatpush1.xpose.msra.mxu0 0.0
    %3544 = vmatprep.subr.mxu0 0.0
    %3545 = vmatpush1.xpose.msra.mxu0 0.0
    %3546 = vmatprep.subr.mxu0 0.0
    %3547 = vmatpush1.xpose.msra.mxu0 0.0
    %3548 = vmatprep.subr.mxu0 0.0
    %3549 = vmatpush1.xpose.msra.mxu0 %v3516
    %3550 = vmatprep.subr.mxu0 0.0
    %3551 = vmatpush2.xpose.msra.mxu0 0.0
    %3552 = vmatprep.subr.mxu0 0.0
    %3553 = vmatpush2.xpose.msra.mxu0 0.0
    %3554 = vmatprep.subr.mxu0 0.0
    %3555 = vmatpush2.xpose.msra.mxu0 0.0
    %3556 = vmatprep.subr.mxu0 0.0
    %3557 = vmatpush2.xpose.msra.mxu0 0.0
    %3558 = vmatprep.subr.mxu0 0.0
    %3559 = vmatpush2.xpose.msra.mxu0 0.0
    %3560 = vmatprep.subr.mxu0 0.0
    %3561 = vmatpush2.xpose.msra.mxu0 0.0
    %3562 = vmatprep.subr.mxu0 0.0
    %3563 = vmatpush2.xpose.msra.mxu0 0.0
    %3564 = vmatprep.subr.mxu0 0.0
    %3565 = vmatpush2.xpose.msra.mxu0 0.0
    %3566 = vmatprep.subr.mxu0 0.0
    %3567 = vmatpush2.xpose.msra.mxu0 0.0
    %3568 = vmatprep.subr.mxu0 0.0
    %3569 = vmatpush2.xpose.msra.mxu0 0.0
    %3570 = vmatprep.subr.mxu0 0.0
    %3571 = vmatpush2.xpose.msra.mxu0 0.0
    %3572 = vmatprep.subr.mxu0 0.0
    %3573 = vmatpush2.xpose.msra.mxu0 0.0
    %3574 = vmatprep.subr.mxu0 0.0
    %3575 = vmatpush2.xpose.msra.mxu0 0.0
    %3576 = vmatprep.subr.mxu0 0.0
    %3577 = vmatpush2.xpose.msra.mxu0 0.0
    %3578 = vmatprep.subr.mxu0 0.0
    %3579 = vmatpush2.xpose.msra.mxu0 0.0
    %3580 = vmatprep.subr.mxu0 0.0
    %3581 = vmatpush2.xpose.msra.mxu0 0.0
    %3582 = vmatprep.mubr.f32.mxu0 0.0
    %3583 = vmatmul.mubr.f32.gmra.mxu0 %v3514
    %v3584 = vpop.f32.mrf.mxu0
    %v3585 = vadd.f32 0.0, %v3584
    %v3586 = vpop.f32.mrf.mxu0
    %3587 = vdwg.mxu0
    %v3588 = vsel %vm232, %v3239, 0
    %v3590 = vsel %vm232, %v3269, 0
    %3592 = vmatprep.subr.mxu0 0.0
    %3593 = vmatpush1.xpose.msra.mxu0 0.0
    %3594 = vmatprep.subr.mxu0 0.0
    %3595 = vmatpush1.xpose.msra.mxu0 0.0
    %3596 = vmatprep.subr.mxu0 0.0
    %3597 = vmatpush1.xpose.msra.mxu0 0.0
    %3598 = vmatprep.subr.mxu0 0.0
    %3599 = vmatpush1.xpose.msra.mxu0 0.0
    %3600 = vmatprep.subr.mxu0 0.0
    %3601 = vmatpush1.xpose.msra.mxu0 0.0
    %3602 = vmatprep.subr.mxu0 0.0
    %3603 = vmatpush1.xpose.msra.mxu0 0.0
    %3604 = vmatprep.subr.mxu0 0.0
    %3605 = vmatpush1.xpose.msra.mxu0 0.0
    %3606 = vmatprep.subr.mxu0 0.0
    %3607 = vmatpush1.xpose.msra.mxu0 0.0
    %3608 = vmatprep.subr.mxu0 0.0
    %3609 = vmatpush1.xpose.msra.mxu0 0.0
    %3610 = vmatprep.subr.mxu0 0.0
    %3611 = vmatpush1.xpose.msra.mxu0 0.0
    %3612 = vmatprep.subr.mxu0 0.0
    %3613 = vmatpush1.xpose.msra.mxu0 0.0
    %3614 = vmatprep.subr.mxu0 0.0
    %3615 = vmatpush1.xpose.msra.mxu0 0.0
    %3616 = vmatprep.subr.mxu0 0.0
    %3617 = vmatpush1.xpose.msra.mxu0 0.0
    %3618 = vmatprep.subr.mxu0 0.0
    %3619 = vmatpush1.xpose.msra.mxu0 0.0
    %3620 = vmatprep.subr.mxu0 0.0
    %3621 = vmatpush1.xpose.msra.mxu0 0.0
    %3622 = vmatprep.subr.mxu0 0.0
    %3623 = vmatpush1.xpose.msra.mxu0 %v3590
    %3624 = vmatprep.subr.mxu0 0.0
    %3625 = vmatpush2.xpose.msra.mxu0 0.0
    %3626 = vmatprep.subr.mxu0 0.0
    %3627 = vmatpush2.xpose.msra.mxu0 0.0
    %3628 = vmatprep.subr.mxu0 0.0
    %3629 = vmatpush2.xpose.msra.mxu0 0.0
    %3630 = vmatprep.subr.mxu0 0.0
    %3631 = vmatpush2.xpose.msra.mxu0 0.0
    %3632 = vmatprep.subr.mxu0 0.0
    %3633 = vmatpush2.xpose.msra.mxu0 0.0
    %3634 = vmatprep.subr.mxu0 0.0
    %3635 = vmatpush2.xpose.msra.mxu0 0.0
    %3636 = vmatprep.subr.mxu0 0.0
    %3637 = vmatpush2.xpose.msra.mxu0 0.0
    %3638 = vmatprep.subr.mxu0 0.0
    %3639 = vmatpush2.xpose.msra.mxu0 0.0
    %3640 = vmatprep.subr.mxu0 0.0
    %3641 = vmatpush2.xpose.msra.mxu0 0.0
    %3642 = vmatprep.subr.mxu0 0.0
    %3643 = vmatpush2.xpose.msra.mxu0 0.0
    %3644 = vmatprep.subr.mxu0 0.0
    %3645 = vmatpush2.xpose.msra.mxu0 0.0
    %3646 = vmatprep.subr.mxu0 0.0
    %3647 = vmatpush2.xpose.msra.mxu0 0.0
    %3648 = vmatprep.subr.mxu0 0.0
    %3649 = vmatpush2.xpose.msra.mxu0 0.0
    %3650 = vmatprep.subr.mxu0 0.0
    %3651 = vmatpush2.xpose.msra.mxu0 0.0
    %3652 = vmatprep.subr.mxu0 0.0
    %3653 = vmatpush2.xpose.msra.mxu0 0.0
    %3654 = vmatprep.subr.mxu0 0.0
    %3655 = vmatpush2.xpose.msra.mxu0 0.0
    %3656 = vmatprep.mubr.f32.mxu0 0.0
    %3657 = vmatmul.mubr.f32.gmra.mxu0 %v3588
    %v3658 = vpop.f32.mrf.mxu0
    %v3659 = vadd.f32 0.0, %v3658
    %v3660 = vpop.f32.mrf.mxu0
    %3661 = vdwg.mxu0
    %v3662 = vsel %vm232, %v3241, 0
    %v3664 = vsel %vm232, %v3271, 0
    %3666 = vmatprep.subr.mxu0 0.0
    %3667 = vmatpush1.xpose.msra.mxu0 0.0
    %3668 = vmatprep.subr.mxu0 0.0
    %3669 = vmatpush1.xpose.msra.mxu0 0.0
    %3670 = vmatprep.subr.mxu0 0.0
    %3671 = vmatpush1.xpose.msra.mxu0 0.0
    %3672 = vmatprep.subr.mxu0 0.0
    %3673 = vmatpush1.xpose.msra.mxu0 0.0
    %3674 = vmatprep.subr.mxu0 0.0
    %3675 = vmatpush1.xpose.msra.mxu0 0.0
    %3676 = vmatprep.subr.mxu0 0.0
    %3677 = vmatpush1.xpose.msra.mxu0 0.0
    %3678 = vmatprep.subr.mxu0 0.0
    %3679 = vmatpush1.xpose.msra.mxu0 0.0
    %3680 = vmatprep.subr.mxu0 0.0
    %3681 = vmatpush1.xpose.msra.mxu0 0.0
    %3682 = vmatprep.subr.mxu0 0.0
    %3683 = vmatpush1.xpose.msra.mxu0 0.0
    %3684 = vmatprep.subr.mxu0 0.0
    %3685 = vmatpush1.xpose.msra.mxu0 0.0
    %3686 = vmatprep.subr.mxu0 0.0
    %3687 = vmatpush1.xpose.msra.mxu0 0.0
    %3688 = vmatprep.subr.mxu0 0.0
    %3689 = vmatpush1.xpose.msra.mxu0 0.0
    %3690 = vmatprep.subr.mxu0 0.0
    %3691 = vmatpush1.xpose.msra.mxu0 0.0
    %3692 = vmatprep.subr.mxu0 0.0
    %3693 = vmatpush1.xpose.msra.mxu0 0.0
    %3694 = vmatprep.subr.mxu0 0.0
    %3695 = vmatpush1.xpose.msra.mxu0 0.0
    %3696 = vmatprep.subr.mxu0 0.0
    %3697 = vmatpush1.xpose.msra.mxu0 %v3664
    %3698 = vmatprep.subr.mxu0 0.0
    %3699 = vmatpush2.xpose.msra.mxu0 0.0
    %3700 = vmatprep.subr.mxu0 0.0
    %3701 = vmatpush2.xpose.msra.mxu0 0.0
    %3702 = vmatprep.subr.mxu0 0.0
    %3703 = vmatpush2.xpose.msra.mxu0 0.0
    %3704 = vmatprep.subr.mxu0 0.0
    %3705 = vmatpush2.xpose.msra.mxu0 0.0
    %3706 = vmatprep.subr.mxu0 0.0
    %3707 = vmatpush2.xpose.msra.mxu0 0.0
    %3708 = vmatprep.subr.mxu0 0.0
    %3709 = vmatpush2.xpose.msra.mxu0 0.0
    %3710 = vmatprep.subr.mxu0 0.0
    %3711 = vmatpush2.xpose.msra.mxu0 0.0
    %3712 = vmatprep.subr.mxu0 0.0
    %3713 = vmatpush2.xpose.msra.mxu0 0.0
    %3714 = vmatprep.subr.mxu0 0.0
    %3715 = vmatpush2.xpose.msra.mxu0 0.0
    %3716 = vmatprep.subr.mxu0 0.0
    %3717 = vmatpush2.xpose.msra.mxu0 0.0
    %3718 = vmatprep.subr.mxu0 0.0
    %3719 = vmatpush2.xpose.msra.mxu0 0.0
    %3720 = vmatprep.subr.mxu0 0.0
    %3721 = vmatpush2.xpose.msra.mxu0 0.0
    %3722 = vmatprep.subr.mxu0 0.0
    %3723 = vmatpush2.xpose.msra.mxu0 0.0
    %3724 = vmatprep.subr.mxu0 0.0
    %3725 = vmatpush2.xpose.msra.mxu0 0.0
    %3726 = vmatprep.subr.mxu0 0.0
    %3727 = vmatpush2.xpose.msra.mxu0 0.0
    %3728 = vmatprep.subr.mxu0 0.0
    %3729 = vmatpush2.xpose.msra.mxu0 0.0
    %3730 = vmatprep.mubr.f32.mxu0 0.0
    %3731 = vmatmul.mubr.f32.gmra.mxu0 %v3662
    %v3732 = vpop.f32.mrf.mxu0
    %v3733 = vadd.f32 0.0, %v3732
    %v3734 = vpop.f32.mrf.mxu0
    %3735 = vdwg.mxu0
    %v3736 = vsel %vm232, %v3243, 0
    %v3738 = vsel %vm232, %v3273, 0
    %3740 = vmatprep.subr.mxu0 0.0
    %3741 = vmatpush1.xpose.msra.mxu0 0.0
    %3742 = vmatprep.subr.mxu0 0.0
    %3743 = vmatpush1.xpose.msra.mxu0 0.0
    %3744 = vmatprep.subr.mxu0 0.0
    %3745 = vmatpush1.xpose.msra.mxu0 0.0
    %3746 = vmatprep.subr.mxu0 0.0
    %3747 = vmatpush1.xpose.msra.mxu0 0.0
    %3748 = vmatprep.subr.mxu0 0.0
    %3749 = vmatpush1.xpose.msra.mxu0 0.0
    %3750 = vmatprep.subr.mxu0 0.0
    %3751 = vmatpush1.xpose.msra.mxu0 0.0
    %3752 = vmatprep.subr.mxu0 0.0
    %3753 = vmatpush1.xpose.msra.mxu0 0.0
    %3754 = vmatprep.subr.mxu0 0.0
    %3755 = vmatpush1.xpose.msra.mxu0 0.0
    %3756 = vmatprep.subr.mxu0 0.0
    %3757 = vmatpush1.xpose.msra.mxu0 0.0
    %3758 = vmatprep.subr.mxu0 0.0
    %3759 = vmatpush1.xpose.msra.mxu0 0.0
    %3760 = vmatprep.subr.mxu0 0.0
    %3761 = vmatpush1.xpose.msra.mxu0 0.0
    %3762 = vmatprep.subr.mxu0 0.0
    %3763 = vmatpush1.xpose.msra.mxu0 0.0
    %3764 = vmatprep.subr.mxu0 0.0
    %3765 = vmatpush1.xpose.msra.mxu0 0.0
    %3766 = vmatprep.subr.mxu0 0.0
    %3767 = vmatpush1.xpose.msra.mxu0 0.0
    %3768 = vmatprep.subr.mxu0 0.0
    %3769 = vmatpush1.xpose.msra.mxu0 0.0
    %3770 = vmatprep.subr.mxu0 0.0
    %3771 = vmatpush1.xpose.msra.mxu0 %v3738
    %3772 = vmatprep.subr.mxu0 0.0
    %3773 = vmatpush2.xpose.msra.mxu0 0.0
    %3774 = vmatprep.subr.mxu0 0.0
    %3775 = vmatpush2.xpose.msra.mxu0 0.0
    %3776 = vmatprep.subr.mxu0 0.0
    %3777 = vmatpush2.xpose.msra.mxu0 0.0
    %3778 = vmatprep.subr.mxu0 0.0
    %3779 = vmatpush2.xpose.msra.mxu0 0.0
    %3780 = vmatprep.subr.mxu0 0.0
    %3781 = vmatpush2.xpose.msra.mxu0 0.0
    %3782 = vmatprep.subr.mxu0 0.0
    %3783 = vmatpush2.xpose.msra.mxu0 0.0
    %3784 = vmatprep.subr.mxu0 0.0
    %3785 = vmatpush2.xpose.msra.mxu0 0.0
    %3786 = vmatprep.subr.mxu0 0.0
    %3787 = vmatpush2.xpose.msra.mxu0 0.0
    %3788 = vmatprep.subr.mxu0 0.0
    %3789 = vmatpush2.xpose.msra.mxu0 0.0
    %3790 = vmatprep.subr.mxu0 0.0
    %3791 = vmatpush2.xpose.msra.mxu0 0.0
    %3792 = vmatprep.subr.mxu0 0.0
    %3793 = vmatpush2.xpose.msra.mxu0 0.0
    %3794 = vmatprep.subr.mxu0 0.0
    %3795 = vmatpush2.xpose.msra.mxu0 0.0
    %3796 = vmatprep.subr.mxu0 0.0
    %3797 = vmatpush2.xpose.msra.mxu0 0.0
    %3798 = vmatprep.subr.mxu0 0.0
    %3799 = vmatpush2.xpose.msra.mxu0 0.0
    %3800 = vmatprep.subr.mxu0 0.0
    %3801 = vmatpush2.xpose.msra.mxu0 0.0
    %3802 = vmatprep.subr.mxu0 0.0
    %3803 = vmatpush2.xpose.msra.mxu0 0.0
    %3804 = vmatprep.mubr.f32.mxu0 0.0
    %3805 = vmatmul.mubr.f32.gmra.mxu0 %v3736
    %v3806 = vpop.f32.mrf.mxu0
    %v3807 = vadd.f32 0.0, %v3806
    %v3808 = vpop.f32.mrf.mxu0
    %3809 = vdwg.mxu0
    %v3810 = vsel %vm232, %v3245, 0
    %v3812 = vsel %vm232, %v3275, 0
    %3814 = vmatprep.subr.mxu0 0.0
    %3815 = vmatpush1.xpose.msra.mxu0 0.0
    %3816 = vmatprep.subr.mxu0 0.0
    %3817 = vmatpush1.xpose.msra.mxu0 0.0
    %3818 = vmatprep.subr.mxu0 0.0
    %3819 = vmatpush1.xpose.msra.mxu0 0.0
    %3820 = vmatprep.subr.mxu0 0.0
    %3821 = vmatpush1.xpose.msra.mxu0 0.0
    %3822 = vmatprep.subr.mxu0 0.0
    %3823 = vmatpush1.xpose.msra.mxu0 0.0
    %3824 = vmatprep.subr.mxu0 0.0
    %3825 = vmatpush1.xpose.msra.mxu0 0.0
    %3826 = vmatprep.subr.mxu0 0.0
    %3827 = vmatpush1.xpose.msra.mxu0 0.0
    %3828 = vmatprep.subr.mxu0 0.0
    %3829 = vmatpush1.xpose.msra.mxu0 0.0
    %3830 = vmatprep.subr.mxu0 0.0
    %3831 = vmatpush1.xpose.msra.mxu0 0.0
    %3832 = vmatprep.subr.mxu0 0.0
    %3833 = vmatpush1.xpose.msra.mxu0 0.0
    %3834 = vmatprep.subr.mxu0 0.0
    %3835 = vmatpush1.xpose.msra.mxu0 0.0
    %3836 = vmatprep.subr.mxu0 0.0
    %3837 = vmatpush1.xpose.msra.mxu0 0.0
    %3838 = vmatprep.subr.mxu0 0.0
    %3839 = vmatpush1.xpose.msra.mxu0 0.0
    %3840 = vmatprep.subr.mxu0 0.0
    %3841 = vmatpush1.xpose.msra.mxu0 0.0
    %3842 = vmatprep.subr.mxu0 0.0
    %3843 = vmatpush1.xpose.msra.mxu0 0.0
    %3844 = vmatprep.subr.mxu0 0.0
    %3845 = vmatpush1.xpose.msra.mxu0 %v3812
    %3846 = vmatprep.subr.mxu0 0.0
    %3847 = vmatpush2.xpose.msra.mxu0 0.0
    %3848 = vmatprep.subr.mxu0 0.0
    %3849 = vmatpush2.xpose.msra.mxu0 0.0
    %3850 = vmatprep.subr.mxu0 0.0
    %3851 = vmatpush2.xpose.msra.mxu0 0.0
    %3852 = vmatprep.subr.mxu0 0.0
    %3853 = vmatpush2.xpose.msra.mxu0 0.0
    %3854 = vmatprep.subr.mxu0 0.0
    %3855 = vmatpush2.xpose.msra.mxu0 0.0
    %3856 = vmatprep.subr.mxu0 0.0
    %3857 = vmatpush2.xpose.msra.mxu0 0.0
    %3858 = vmatprep.subr.mxu0 0.0
    %3859 = vmatpush2.xpose.msra.mxu0 0.0
    %3860 = vmatprep.subr.mxu0 0.0
    %3861 = vmatpush2.xpose.msra.mxu0 0.0
    %3862 = vmatprep.subr.mxu0 0.0
    %3863 = vmatpush2.xpose.msra.mxu0 0.0
    %3864 = vmatprep.subr.mxu0 0.0
    %3865 = vmatpush2.xpose.msra.mxu0 0.0
    %3866 = vmatprep.subr.mxu0 0.0
    %3867 = vmatpush2.xpose.msra.mxu0 0.0
    %3868 = vmatprep.subr.mxu0 0.0
    %3869 = vmatpush2.xpose.msra.mxu0 0.0
    %3870 = vmatprep.subr.mxu0 0.0
    %3871 = vmatpush2.xpose.msra.mxu0 0.0
    %3872 = vmatprep.subr.mxu0 0.0
    %3873 = vmatpush2.xpose.msra.mxu0 0.0
    %3874 = vmatprep.subr.mxu0 0.0
    %3875 = vmatpush2.xpose.msra.mxu0 0.0
    %3876 = vmatprep.subr.mxu0 0.0
    %3877 = vmatpush2.xpose.msra.mxu0 0.0
    %3878 = vmatprep.mubr.f32.mxu0 0.0
    %3879 = vmatmul.mubr.f32.gmra.mxu0 %v3810
    %v3880 = vpop.f32.mrf.mxu0
    %v3881 = vadd.f32 0.0, %v3880
    %v3882 = vpop.f32.mrf.mxu0
    %3883 = vdwg.mxu0
    %v3884 = vsel %vm232, %v3247, 0
    %v3886 = vsel %vm232, %v3277, 0
    %3888 = vmatprep.subr.mxu0 0.0
    %3889 = vmatpush1.xpose.msra.mxu0 0.0
    %3890 = vmatprep.subr.mxu0 0.0
    %3891 = vmatpush1.xpose.msra.mxu0 0.0
    %3892 = vmatprep.subr.mxu0 0.0
    %3893 = vmatpush1.xpose.msra.mxu0 0.0
    %3894 = vmatprep.subr.mxu0 0.0
    %3895 = vmatpush1.xpose.msra.mxu0 0.0
    %3896 = vmatprep.subr.mxu0 0.0
    %3897 = vmatpush1.xpose.msra.mxu0 0.0
    %3898 = vmatprep.subr.mxu0 0.0
    %3899 = vmatpush1.xpose.msra.mxu0 0.0
    %3900 = vmatprep.subr.mxu0 0.0
    %3901 = vmatpush1.xpose.msra.mxu0 0.0
    %3902 = vmatprep.subr.mxu0 0.0
    %3903 = vmatpush1.xpose.msra.mxu0 0.0
    %3904 = vmatprep.subr.mxu0 0.0
    %3905 = vmatpush1.xpose.msra.mxu0 0.0
    %3906 = vmatprep.subr.mxu0 0.0
    %3907 = vmatpush1.xpose.msra.mxu0 0.0
    %3908 = vmatprep.subr.mxu0 0.0
    %3909 = vmatpush1.xpose.msra.mxu0 0.0
    %3910 = vmatprep.subr.mxu0 0.0
    %3911 = vmatpush1.xpose.msra.mxu0 0.0
    %3912 = vmatprep.subr.mxu0 0.0
    %3913 = vmatpush1.xpose.msra.mxu0 0.0
    %3914 = vmatprep.subr.mxu0 0.0
    %3915 = vmatpush1.xpose.msra.mxu0 0.0
    %3916 = vmatprep.subr.mxu0 0.0
    %3917 = vmatpush1.xpose.msra.mxu0 0.0
    %3918 = vmatprep.subr.mxu0 0.0
    %3919 = vmatpush1.xpose.msra.mxu0 %v3886
    %3920 = vmatprep.subr.mxu0 0.0
    %3921 = vmatpush2.xpose.msra.mxu0 0.0
    %3922 = vmatprep.subr.mxu0 0.0
    %3923 = vmatpush2.xpose.msra.mxu0 0.0
    %3924 = vmatprep.subr.mxu0 0.0
    %3925 = vmatpush2.xpose.msra.mxu0 0.0
    %3926 = vmatprep.subr.mxu0 0.0
    %3927 = vmatpush2.xpose.msra.mxu0 0.0
    %3928 = vmatprep.subr.mxu0 0.0
    %3929 = vmatpush2.xpose.msra.mxu0 0.0
    %3930 = vmatprep.subr.mxu0 0.0
    %3931 = vmatpush2.xpose.msra.mxu0 0.0
    %3932 = vmatprep.subr.mxu0 0.0
    %3933 = vmatpush2.xpose.msra.mxu0 0.0
    %3934 = vmatprep.subr.mxu0 0.0
    %3935 = vmatpush2.xpose.msra.mxu0 0.0
    %3936 = vmatprep.subr.mxu0 0.0
    %3937 = vmatpush2.xpose.msra.mxu0 0.0
    %3938 = vmatprep.subr.mxu0 0.0
    %3939 = vmatpush2.xpose.msra.mxu0 0.0
    %3940 = vmatprep.subr.mxu0 0.0
    %3941 = vmatpush2.xpose.msra.mxu0 0.0
    %3942 = vmatprep.subr.mxu0 0.0
    %3943 = vmatpush2.xpose.msra.mxu0 0.0
    %3944 = vmatprep.subr.mxu0 0.0
    %3945 = vmatpush2.xpose.msra.mxu0 0.0
    %3946 = vmatprep.subr.mxu0 0.0
    %3947 = vmatpush2.xpose.msra.mxu0 0.0
    %3948 = vmatprep.subr.mxu0 0.0
    %3949 = vmatpush2.xpose.msra.mxu0 0.0
    %3950 = vmatprep.subr.mxu0 0.0
    %3951 = vmatpush2.xpose.msra.mxu0 0.0
    %3952 = vmatprep.mubr.f32.mxu0 0.0
    %3953 = vmatmul.mubr.f32.gmra.mxu0 %v3884
    %v3954 = vpop.f32.mrf.mxu0
    %v3955 = vadd.f32 0.0, %v3954
    %v3956 = vpop.f32.mrf.mxu0
    %3957 = vdwg.mxu0
    %v3958 = vsel %vm232, %v3249, 0
    %v3960 = vsel %vm232, %v3279, 0
    %3962 = vmatprep.subr.mxu0 0.0
    %3963 = vmatpush1.xpose.msra.mxu0 0.0
    %3964 = vmatprep.subr.mxu0 0.0
    %3965 = vmatpush1.xpose.msra.mxu0 0.0
    %3966 = vmatprep.subr.mxu0 0.0
    %3967 = vmatpush1.xpose.msra.mxu0 0.0
    %3968 = vmatprep.subr.mxu0 0.0
    %3969 = vmatpush1.xpose.msra.mxu0 0.0
    %3970 = vmatprep.subr.mxu0 0.0
    %3971 = vmatpush1.xpose.msra.mxu0 0.0
    %3972 = vmatprep.subr.mxu0 0.0
    %3973 = vmatpush1.xpose.msra.mxu0 0.0
    %3974 = vmatprep.subr.mxu0 0.0
    %3975 = vmatpush1.xpose.msra.mxu0 0.0
    %3976 = vmatprep.subr.mxu0 0.0
    %3977 = vmatpush1.xpose.msra.mxu0 0.0
    %3978 = vmatprep.subr.mxu0 0.0
    %3979 = vmatpush1.xpose.msra.mxu0 0.0
    %3980 = vmatprep.subr.mxu0 0.0
    %3981 = vmatpush1.xpose.msra.mxu0 0.0
    %3982 = vmatprep.subr.mxu0 0.0
    %3983 = vmatpush1.xpose.msra.mxu0 0.0
    %3984 = vmatprep.subr.mxu0 0.0
    %3985 = vmatpush1.xpose.msra.mxu0 0.0
    %3986 = vmatprep.subr.mxu0 0.0
    %3987 = vmatpush1.xpose.msra.mxu0 0.0
    %3988 = vmatprep.subr.mxu0 0.0
    %3989 = vmatpush1.xpose.msra.mxu0 0.0
    %3990 = vmatprep.subr.mxu0 0.0
    %3991 = vmatpush1.xpose.msra.mxu0 0.0
    %3992 = vmatprep.subr.mxu0 0.0
    %3993 = vmatpush1.xpose.msra.mxu0 %v3960
    %3994 = vmatprep.subr.mxu0 0.0
    %3995 = vmatpush2.xpose.msra.mxu0 0.0
    %3996 = vmatprep.subr.mxu0 0.0
    %3997 = vmatpush2.xpose.msra.mxu0 0.0
    %3998 = vmatprep.subr.mxu0 0.0
    %3999 = vmatpush2.xpose.msra.mxu0 0.0
    %4000 = vmatprep.subr.mxu0 0.0
    %4001 = vmatpush2.xpose.msra.mxu0 0.0
    %4002 = vmatprep.subr.mxu0 0.0
    %4003 = vmatpush2.xpose.msra.mxu0 0.0
    %4004 = vmatprep.subr.mxu0 0.0
    %4005 = vmatpush2.xpose.msra.mxu0 0.0
    %4006 = vmatprep.subr.mxu0 0.0
    %4007 = vmatpush2.xpose.msra.mxu0 0.0
    %4008 = vmatprep.subr.mxu0 0.0
    %4009 = vmatpush2.xpose.msra.mxu0 0.0
    %4010 = vmatprep.subr.mxu0 0.0
    %4011 = vmatpush2.xpose.msra.mxu0 0.0
    %4012 = vmatprep.subr.mxu0 0.0
    %4013 = vmatpush2.xpose.msra.mxu0 0.0
    %4014 = vmatprep.subr.mxu0 0.0
    %4015 = vmatpush2.xpose.msra.mxu0 0.0
    %4016 = vmatprep.subr.mxu0 0.0
    %4017 = vmatpush2.xpose.msra.mxu0 0.0
    %4018 = vmatprep.subr.mxu0 0.0
    %4019 = vmatpush2.xpose.msra.mxu0 0.0
    %4020 = vmatprep.subr.mxu0 0.0
    %4021 = vmatpush2.xpose.msra.mxu0 0.0
    %4022 = vmatprep.subr.mxu0 0.0
    %4023 = vmatpush2.xpose.msra.mxu0 0.0
    %4024 = vmatprep.subr.mxu0 0.0
    %4025 = vmatpush2.xpose.msra.mxu0 0.0
    %4026 = vmatprep.mubr.f32.mxu0 0.0
    %4027 = vmatmul.mubr.f32.gmra.mxu0 %v3958
    %v4028 = vpop.f32.mrf.mxu0
    %v4029 = vadd.f32 0.0, %v4028
    %v4030 = vpop.f32.mrf.mxu0
    %4031 = vdwg.mxu0
    %v4032 = vsel %vm232, %v3251, 0
    %v4034 = vsel %vm232, %v3281, 0
    %4036 = vmatprep.subr.mxu0 0.0
    %4037 = vmatpush1.xpose.msra.mxu0 0.0
    %4038 = vmatprep.subr.mxu0 0.0
    %4039 = vmatpush1.xpose.msra.mxu0 0.0
    %4040 = vmatprep.subr.mxu0 0.0
    %4041 = vmatpush1.xpose.msra.mxu0 0.0
    %4042 = vmatprep.subr.mxu0 0.0
    %4043 = vmatpush1.xpose.msra.mxu0 0.0
    %4044 = vmatprep.subr.mxu0 0.0
    %4045 = vmatpush1.xpose.msra.mxu0 0.0
    %4046 = vmatprep.subr.mxu0 0.0
    %4047 = vmatpush1.xpose.msra.mxu0 0.0
    %4048 = vmatprep.subr.mxu0 0.0
    %4049 = vmatpush1.xpose.msra.mxu0 0.0
    %4050 = vmatprep.subr.mxu0 0.0
    %4051 = vmatpush1.xpose.msra.mxu0 0.0
    %4052 = vmatprep.subr.mxu0 0.0
    %4053 = vmatpush1.xpose.msra.mxu0 0.0
    %4054 = vmatprep.subr.mxu0 0.0
    %4055 = vmatpush1.xpose.msra.mxu0 0.0
    %4056 = vmatprep.subr.mxu0 0.0
    %4057 = vmatpush1.xpose.msra.mxu0 0.0
    %4058 = vmatprep.subr.mxu0 0.0
    %4059 = vmatpush1.xpose.msra.mxu0 0.0
    %4060 = vmatprep.subr.mxu0 0.0
    %4061 = vmatpush1.xpose.msra.mxu0 0.0
    %4062 = vmatprep.subr.mxu0 0.0
    %4063 = vmatpush1.xpose.msra.mxu0 0.0
    %4064 = vmatprep.subr.mxu0 0.0
    %4065 = vmatpush1.xpose.msra.mxu0 0.0
    %4066 = vmatprep.subr.mxu0 0.0
    %4067 = vmatpush1.xpose.msra.mxu0 %v4034
    %4068 = vmatprep.subr.mxu0 0.0
    %4069 = vmatpush2.xpose.msra.mxu0 0.0
    %4070 = vmatprep.subr.mxu0 0.0
    %4071 = vmatpush2.xpose.msra.mxu0 0.0
    %4072 = vmatprep.subr.mxu0 0.0
    %4073 = vmatpush2.xpose.msra.mxu0 0.0
    %4074 = vmatprep.subr.mxu0 0.0
    %4075 = vmatpush2.xpose.msra.mxu0 0.0
    %4076 = vmatprep.subr.mxu0 0.0
    %4077 = vmatpush2.xpose.msra.mxu0 0.0
    %4078 = vmatprep.subr.mxu0 0.0
    %4079 = vmatpush2.xpose.msra.mxu0 0.0
    %4080 = vmatprep.subr.mxu0 0.0
    %4081 = vmatpush2.xpose.msra.mxu0 0.0
    %4082 = vmatprep.subr.mxu0 0.0
    %4083 = vmatpush2.xpose.msra.mxu0 0.0
    %4084 = vmatprep.subr.mxu0 0.0
    %4085 = vmatpush2.xpose.msra.mxu0 0.0
    %4086 = vmatprep.subr.mxu0 0.0
    %4087 = vmatpush2.xpose.msra.mxu0 0.0
    %4088 = vmatprep.subr.mxu0 0.0
    %4089 = vmatpush2.xpose.msra.mxu0 0.0
    %4090 = vmatprep.subr.mxu0 0.0
    %4091 = vmatpush2.xpose.msra.mxu0 0.0
    %4092 = vmatprep.subr.mxu0 0.0
    %4093 = vmatpush2.xpose.msra.mxu0 0.0
    %4094 = vmatprep.subr.mxu0 0.0
    %4095 = vmatpush2.xpose.msra.mxu0 0.0
    %4096 = vmatprep.subr.mxu0 0.0
    %4097 = vmatpush2.xpose.msra.mxu0 0.0
    %4098 = vmatprep.subr.mxu0 0.0
    %4099 = vmatpush2.xpose.msra.mxu0 0.0
    %4100 = vmatprep.mubr.f32.mxu0 0.0
    %4101 = vmatmul.mubr.f32.gmra.mxu0 %v4032
    %v4102 = vpop.f32.mrf.mxu0
    %v4103 = vadd.f32 0.0, %v4102
    %v4104 = vpop.f32.mrf.mxu0
    %4105 = vdwg.mxu0
    %v4106 = vsel %vm232, %v3253, 0
    %v4108 = vsel %vm232, %v3283, 0
    %4110 = vmatprep.subr.mxu0 0.0
    %4111 = vmatpush1.xpose.msra.mxu0 0.0
    %4112 = vmatprep.subr.mxu0 0.0
    %4113 = vmatpush1.xpose.msra.mxu0 0.0
    %4114 = vmatprep.subr.mxu0 0.0
    %4115 = vmatpush1.xpose.msra.mxu0 0.0
    %4116 = vmatprep.subr.mxu0 0.0
    %4117 = vmatpush1.xpose.msra.mxu0 0.0
    %4118 = vmatprep.subr.mxu0 0.0
    %4119 = vmatpush1.xpose.msra.mxu0 0.0
    %4120 = vmatprep.subr.mxu0 0.0
    %4121 = vmatpush1.xpose.msra.mxu0 0.0
    %4122 = vmatprep.subr.mxu0 0.0
    %4123 = vmatpush1.xpose.msra.mxu0 0.0
    %4124 = vmatprep.subr.mxu0 0.0
    %4125 = vmatpush1.xpose.msra.mxu0 0.0
    %4126 = vmatprep.subr.mxu0 0.0
    %4127 = vmatpush1.xpose.msra.mxu0 0.0
    %4128 = vmatprep.subr.mxu0 0.0
    %4129 = vmatpush1.xpose.msra.mxu0 0.0
    %4130 = vmatprep.subr.mxu0 0.0
    %4131 = vmatpush1.xpose.msra.mxu0 0.0
    %4132 = vmatprep.subr.mxu0 0.0
    %4133 = vmatpush1.xpose.msra.mxu0 0.0
    %4134 = vmatprep.subr.mxu0 0.0
    %4135 = vmatpush1.xpose.msra.mxu0 0.0
    %4136 = vmatprep.subr.mxu0 0.0
    %4137 = vmatpush1.xpose.msra.mxu0 0.0
    %4138 = vmatprep.subr.mxu0 0.0
    %4139 = vmatpush1.xpose.msra.mxu0 0.0
    %4140 = vmatprep.subr.mxu0 0.0
    %4141 = vmatpush1.xpose.msra.mxu0 %v4108
    %4142 = vmatprep.subr.mxu0 0.0
    %4143 = vmatpush2.xpose.msra.mxu0 0.0
    %4144 = vmatprep.subr.mxu0 0.0
    %4145 = vmatpush2.xpose.msra.mxu0 0.0
    %4146 = vmatprep.subr.mxu0 0.0
    %4147 = vmatpush2.xpose.msra.mxu0 0.0
    %4148 = vmatprep.subr.mxu0 0.0
    %4149 = vmatpush2.xpose.msra.mxu0 0.0
    %4150 = vmatprep.subr.mxu0 0.0
    %4151 = vmatpush2.xpose.msra.mxu0 0.0
    %4152 = vmatprep.subr.mxu0 0.0
    %4153 = vmatpush2.xpose.msra.mxu0 0.0
    %4154 = vmatprep.subr.mxu0 0.0
    %4155 = vmatpush2.xpose.msra.mxu0 0.0
    %4156 = vmatprep.subr.mxu0 0.0
    %4157 = vmatpush2.xpose.msra.mxu0 0.0
    %4158 = vmatprep.subr.mxu0 0.0
    %4159 = vmatpush2.xpose.msra.mxu0 0.0
    %4160 = vmatprep.subr.mxu0 0.0
    %4161 = vmatpush2.xpose.msra.mxu0 0.0
    %4162 = vmatprep.subr.mxu0 0.0
    %4163 = vmatpush2.xpose.msra.mxu0 0.0
    %4164 = vmatprep.subr.mxu0 0.0
    %4165 = vmatpush2.xpose.msra.mxu0 0.0
    %4166 = vmatprep.subr.mxu0 0.0
    %4167 = vmatpush2.xpose.msra.mxu0 0.0
    %4168 = vmatprep.subr.mxu0 0.0
    %4169 = vmatpush2.xpose.msra.mxu0 0.0
    %4170 = vmatprep.subr.mxu0 0.0
    %4171 = vmatpush2.xpose.msra.mxu0 0.0
    %4172 = vmatprep.subr.mxu0 0.0
    %4173 = vmatpush2.xpose.msra.mxu0 0.0
    %4174 = vmatprep.mubr.f32.mxu0 0.0
    %4175 = vmatmul.mubr.f32.gmra.mxu0 %v4106
    %v4176 = vpop.f32.mrf.mxu0
    %v4177 = vadd.f32 0.0, %v4176
    %v4178 = vpop.f32.mrf.mxu0
    %4179 = vdwg.mxu0
    %v4180 = vsel %vm232, %v3255, 0
    %v4182 = vsel %vm232, %v3285, 0
    %4184 = vmatprep.subr.mxu0 0.0
    %4185 = vmatpush1.xpose.msra.mxu0 0.0
    %4186 = vmatprep.subr.mxu0 0.0
    %4187 = vmatpush1.xpose.msra.mxu0 0.0
    %4188 = vmatprep.subr.mxu0 0.0
    %4189 = vmatpush1.xpose.msra.mxu0 0.0
    %4190 = vmatprep.subr.mxu0 0.0
    %4191 = vmatpush1.xpose.msra.mxu0 0.0
    %4192 = vmatprep.subr.mxu0 0.0
    %4193 = vmatpush1.xpose.msra.mxu0 0.0
    %4194 = vmatprep.subr.mxu0 0.0
    %4195 = vmatpush1.xpose.msra.mxu0 0.0
    %4196 = vmatprep.subr.mxu0 0.0
    %4197 = vmatpush1.xpose.msra.mxu0 0.0
    %4198 = vmatprep.subr.mxu0 0.0
    %4199 = vmatpush1.xpose.msra.mxu0 0.0
    %4200 = vmatprep.subr.mxu0 0.0
    %4201 = vmatpush1.xpose.msra.mxu0 0.0
    %4202 = vmatprep.subr.mxu0 0.0
    %4203 = vmatpush1.xpose.msra.mxu0 0.0
    %4204 = vmatprep.subr.mxu0 0.0
    %4205 = vmatpush1.xpose.msra.mxu0 0.0
    %4206 = vmatprep.subr.mxu0 0.0
    %4207 = vmatpush1.xpose.msra.mxu0 0.0
    %4208 = vmatprep.subr.mxu0 0.0
    %4209 = vmatpush1.xpose.msra.mxu0 0.0
    %4210 = vmatprep.subr.mxu0 0.0
    %4211 = vmatpush1.xpose.msra.mxu0 0.0
    %4212 = vmatprep.subr.mxu0 0.0
    %4213 = vmatpush1.xpose.msra.mxu0 0.0
    %4214 = vmatprep.subr.mxu0 0.0
    %4215 = vmatpush1.xpose.msra.mxu0 %v4182
    %4216 = vmatprep.subr.mxu0 0.0
    %4217 = vmatpush2.xpose.msra.mxu0 0.0
    %4218 = vmatprep.subr.mxu0 0.0
    %4219 = vmatpush2.xpose.msra.mxu0 0.0
    %4220 = vmatprep.subr.mxu0 0.0
    %4221 = vmatpush2.xpose.msra.mxu0 0.0
    %4222 = vmatprep.subr.mxu0 0.0
    %4223 = vmatpush2.xpose.msra.mxu0 0.0
    %4224 = vmatprep.subr.mxu0 0.0
    %4225 = vmatpush2.xpose.msra.mxu0 0.0
    %4226 = vmatprep.subr.mxu0 0.0
    %4227 = vmatpush2.xpose.msra.mxu0 0.0
    %4228 = vmatprep.subr.mxu0 0.0
    %4229 = vmatpush2.xpose.msra.mxu0 0.0
    %4230 = vmatprep.subr.mxu0 0.0
    %4231 = vmatpush2.xpose.msra.mxu0 0.0
    %4232 = vmatprep.subr.mxu0 0.0
    %4233 = vmatpush2.xpose.msra.mxu0 0.0
    %4234 = vmatprep.subr.mxu0 0.0
    %4235 = vmatpush2.xpose.msra.mxu0 0.0
    %4236 = vmatprep.subr.mxu0 0.0
    %4237 = vmatpush2.xpose.msra.mxu0 0.0
    %4238 = vmatprep.subr.mxu0 0.0
    %4239 = vmatpush2.xpose.msra.mxu0 0.0
    %4240 = vmatprep.subr.mxu0 0.0
    %4241 = vmatpush2.xpose.msra.mxu0 0.0
    %4242 = vmatprep.subr.mxu0 0.0
    %4243 = vmatpush2.xpose.msra.mxu0 0.0
    %4244 = vmatprep.subr.mxu0 0.0
    %4245 = vmatpush2.xpose.msra.mxu0 0.0
    %4246 = vmatprep.subr.mxu0 0.0
    %4247 = vmatpush2.xpose.msra.mxu0 0.0
    %4248 = vmatprep.mubr.f32.mxu0 0.0
    %4249 = vmatmul.mubr.f32.gmra.mxu0 %v4180
    %v4250 = vpop.f32.mrf.mxu0
    %v4251 = vadd.f32 0.0, %v4250
    %v4252 = vpop.f32.mrf.mxu0
    %4253 = vdwg.mxu0
    %v4254 = vsel %vm232, %v3257, 0
    %v4256 = vsel %vm232, %v3287, 0
    %4258 = vmatprep.subr.mxu0 0.0
    %4259 = vmatpush1.xpose.msra.mxu0 0.0
    %4260 = vmatprep.subr.mxu0 0.0
    %4261 = vmatpush1.xpose.msra.mxu0 0.0
    %4262 = vmatprep.subr.mxu0 0.0
    %4263 = vmatpush1.xpose.msra.mxu0 0.0
    %4264 = vmatprep.subr.mxu0 0.0
    %4265 = vmatpush1.xpose.msra.mxu0 0.0
    %4266 = vmatprep.subr.mxu0 0.0
    %4267 = vmatpush1.xpose.msra.mxu0 0.0
    %4268 = vmatprep.subr.mxu0 0.0
    %4269 = vmatpush1.xpose.msra.mxu0 0.0
    %4270 = vmatprep.subr.mxu0 0.0
    %4271 = vmatpush1.xpose.msra.mxu0 0.0
    %4272 = vmatprep.subr.mxu0 0.0
    %4273 = vmatpush1.xpose.msra.mxu0 0.0
    %4274 = vmatprep.subr.mxu0 0.0
    %4275 = vmatpush1.xpose.msra.mxu0 0.0
    %4276 = vmatprep.subr.mxu0 0.0
    %4277 = vmatpush1.xpose.msra.mxu0 0.0
    %4278 = vmatprep.subr.mxu0 0.0
    %4279 = vmatpush1.xpose.msra.mxu0 0.0
    %4280 = vmatprep.subr.mxu0 0.0
    %4281 = vmatpush1.xpose.msra.mxu0 0.0
    %4282 = vmatprep.subr.mxu0 0.0
    %4283 = vmatpush1.xpose.msra.mxu0 0.0
    %4284 = vmatprep.subr.mxu0 0.0
    %4285 = vmatpush1.xpose.msra.mxu0 0.0
    %4286 = vmatprep.subr.mxu0 0.0
    %4287 = vmatpush1.xpose.msra.mxu0 0.0
    %4288 = vmatprep.subr.mxu0 0.0
    %4289 = vmatpush1.xpose.msra.mxu0 %v4256
    %4290 = vmatprep.subr.mxu0 0.0
    %4291 = vmatpush2.xpose.msra.mxu0 0.0
    %4292 = vmatprep.subr.mxu0 0.0
    %4293 = vmatpush2.xpose.msra.mxu0 0.0
    %4294 = vmatprep.subr.mxu0 0.0
    %4295 = vmatpush2.xpose.msra.mxu0 0.0
    %4296 = vmatprep.subr.mxu0 0.0
    %4297 = vmatpush2.xpose.msra.mxu0 0.0
    %4298 = vmatprep.subr.mxu0 0.0
    %4299 = vmatpush2.xpose.msra.mxu0 0.0
    %4300 = vmatprep.subr.mxu0 0.0
    %4301 = vmatpush2.xpose.msra.mxu0 0.0
    %4302 = vmatprep.subr.mxu0 0.0
    %4303 = vmatpush2.xpose.msra.mxu0 0.0
    %4304 = vmatprep.subr.mxu0 0.0
    %4305 = vmatpush2.xpose.msra.mxu0 0.0
    %4306 = vmatprep.subr.mxu0 0.0
    %4307 = vmatpush2.xpose.msra.mxu0 0.0
    %4308 = vmatprep.subr.mxu0 0.0
    %4309 = vmatpush2.xpose.msra.mxu0 0.0
    %4310 = vmatprep.subr.mxu0 0.0
    %4311 = vmatpush2.xpose.msra.mxu0 0.0
    %4312 = vmatprep.subr.mxu0 0.0
    %4313 = vmatpush2.xpose.msra.mxu0 0.0
    %4314 = vmatprep.subr.mxu0 0.0
    %4315 = vmatpush2.xpose.msra.mxu0 0.0
    %4316 = vmatprep.subr.mxu0 0.0
    %4317 = vmatpush2.xpose.msra.mxu0 0.0
    %4318 = vmatprep.subr.mxu0 0.0
    %4319 = vmatpush2.xpose.msra.mxu0 0.0
    %4320 = vmatprep.subr.mxu0 0.0
    %4321 = vmatpush2.xpose.msra.mxu0 0.0
    %4322 = vmatprep.mubr.f32.mxu0 0.0
    %4323 = vmatmul.mubr.f32.gmra.mxu0 %v4254
    %v4324 = vpop.f32.mrf.mxu0
    %v4325 = vadd.f32 0.0, %v4324
    %v4326 = vpop.f32.mrf.mxu0
    %4327 = vdwg.mxu0
    %v4328 = vsel %vm232, %v3259, 0
    %v4330 = vsel %vm232, %v3289, 0
    %4332 = vmatprep.subr.mxu0 0.0
    %4333 = vmatpush1.xpose.msra.mxu0 0.0
    %4334 = vmatprep.subr.mxu0 0.0
    %4335 = vmatpush1.xpose.msra.mxu0 0.0
    %4336 = vmatprep.subr.mxu0 0.0
    %4337 = vmatpush1.xpose.msra.mxu0 0.0
    %4338 = vmatprep.subr.mxu0 0.0
    %4339 = vmatpush1.xpose.msra.mxu0 0.0
    %4340 = vmatprep.subr.mxu0 0.0
    %4341 = vmatpush1.xpose.msra.mxu0 0.0
    %4342 = vmatprep.subr.mxu0 0.0
    %4343 = vmatpush1.xpose.msra.mxu0 0.0
    %4344 = vmatprep.subr.mxu0 0.0
    %4345 = vmatpush1.xpose.msra.mxu0 0.0
    %4346 = vmatprep.subr.mxu0 0.0
    %4347 = vmatpush1.xpose.msra.mxu0 0.0
    %4348 = vmatprep.subr.mxu0 0.0
    %4349 = vmatpush1.xpose.msra.mxu0 0.0
    %4350 = vmatprep.subr.mxu0 0.0
    %4351 = vmatpush1.xpose.msra.mxu0 0.0
    %4352 = vmatprep.subr.mxu0 0.0
    %4353 = vmatpush1.xpose.msra.mxu0 0.0
    %4354 = vmatprep.subr.mxu0 0.0
    %4355 = vmatpush1.xpose.msra.mxu0 0.0
    %4356 = vmatprep.subr.mxu0 0.0
    %4357 = vmatpush1.xpose.msra.mxu0 0.0
    %4358 = vmatprep.subr.mxu0 0.0
    %4359 = vmatpush1.xpose.msra.mxu0 0.0
    %4360 = vmatprep.subr.mxu0 0.0
    %4361 = vmatpush1.xpose.msra.mxu0 0.0
    %4362 = vmatprep.subr.mxu0 0.0
    %4363 = vmatpush1.xpose.msra.mxu0 %v4330
    %4364 = vmatprep.subr.mxu0 0.0
    %4365 = vmatpush2.xpose.msra.mxu0 0.0
    %4366 = vmatprep.subr.mxu0 0.0
    %4367 = vmatpush2.xpose.msra.mxu0 0.0
    %4368 = vmatprep.subr.mxu0 0.0
    %4369 = vmatpush2.xpose.msra.mxu0 0.0
    %4370 = vmatprep.subr.mxu0 0.0
    %4371 = vmatpush2.xpose.msra.mxu0 0.0
    %4372 = vmatprep.subr.mxu0 0.0
    %4373 = vmatpush2.xpose.msra.mxu0 0.0
    %4374 = vmatprep.subr.mxu0 0.0
    %4375 = vmatpush2.xpose.msra.mxu0 0.0
    %4376 = vmatprep.subr.mxu0 0.0
    %4377 = vmatpush2.xpose.msra.mxu0 0.0
    %4378 = vmatprep.subr.mxu0 0.0
    %4379 = vmatpush2.xpose.msra.mxu0 0.0
    %4380 = vmatprep.subr.mxu0 0.0
    %4381 = vmatpush2.xpose.msra.mxu0 0.0
    %4382 = vmatprep.subr.mxu0 0.0
    %4383 = vmatpush2.xpose.msra.mxu0 0.0
    %4384 = vmatprep.subr.mxu0 0.0
    %4385 = vmatpush2.xpose.msra.mxu0 0.0
    %4386 = vmatprep.subr.mxu0 0.0
    %4387 = vmatpush2.xpose.msra.mxu0 0.0
    %4388 = vmatprep.subr.mxu0 0.0
    %4389 = vmatpush2.xpose.msra.mxu0 0.0
    %4390 = vmatprep.subr.mxu0 0.0
    %4391 = vmatpush2.xpose.msra.mxu0 0.0
    %4392 = vmatprep.subr.mxu0 0.0
    %4393 = vmatpush2.xpose.msra.mxu0 0.0
    %4394 = vmatprep.subr.mxu0 0.0
    %4395 = vmatpush2.xpose.msra.mxu0 0.0
    %4396 = vmatprep.mubr.f32.mxu0 0.0
    %4397 = vmatmul.mubr.f32.gmra.mxu0 %v4328
    %v4398 = vpop.f32.mrf.mxu0
    %v4399 = vadd.f32 0.0, %v4398
    %v4400 = vpop.f32.mrf.mxu0
    %4401 = vdwg.mxu0
    %v4402 = vsel %vm232, %v3261, 0
    %v4404 = vsel %vm232, %v3291, 0
    %4406 = vmatprep.subr.mxu0 0.0
    %4407 = vmatpush1.xpose.msra.mxu0 0.0
    %4408 = vmatprep.subr.mxu0 0.0
    %4409 = vmatpush1.xpose.msra.mxu0 0.0
    %4410 = vmatprep.subr.mxu0 0.0
    %4411 = vmatpush1.xpose.msra.mxu0 0.0
    %4412 = vmatprep.subr.mxu0 0.0
    %4413 = vmatpush1.xpose.msra.mxu0 0.0
    %4414 = vmatprep.subr.mxu0 0.0
    %4415 = vmatpush1.xpose.msra.mxu0 0.0
    %4416 = vmatprep.subr.mxu0 0.0
    %4417 = vmatpush1.xpose.msra.mxu0 0.0
    %4418 = vmatprep.subr.mxu0 0.0
    %4419 = vmatpush1.xpose.msra.mxu0 0.0
    %4420 = vmatprep.subr.mxu0 0.0
    %4421 = vmatpush1.xpose.msra.mxu0 0.0
    %4422 = vmatprep.subr.mxu0 0.0
    %4423 = vmatpush1.xpose.msra.mxu0 0.0
    %4424 = vmatprep.subr.mxu0 0.0
    %4425 = vmatpush1.xpose.msra.mxu0 0.0
    %4426 = vmatprep.subr.mxu0 0.0
    %4427 = vmatpush1.xpose.msra.mxu0 0.0
    %4428 = vmatprep.subr.mxu0 0.0
    %4429 = vmatpush1.xpose.msra.mxu0 0.0
    %4430 = vmatprep.subr.mxu0 0.0
    %4431 = vmatpush1.xpose.msra.mxu0 0.0
    %4432 = vmatprep.subr.mxu0 0.0
    %4433 = vmatpush1.xpose.msra.mxu0 0.0
    %4434 = vmatprep.subr.mxu0 0.0
    %4435 = vmatpush1.xpose.msra.mxu0 0.0
    %4436 = vmatprep.subr.mxu0 0.0
    %4437 = vmatpush1.xpose.msra.mxu0 %v4404
    %4438 = vmatprep.subr.mxu0 0.0
    %4439 = vmatpush2.xpose.msra.mxu0 0.0
    %4440 = vmatprep.subr.mxu0 0.0
    %4441 = vmatpush2.xpose.msra.mxu0 0.0
    %4442 = vmatprep.subr.mxu0 0.0
    %4443 = vmatpush2.xpose.msra.mxu0 0.0
    %4444 = vmatprep.subr.mxu0 0.0
    %4445 = vmatpush2.xpose.msra.mxu0 0.0
    %4446 = vmatprep.subr.mxu0 0.0
    %4447 = vmatpush2.xpose.msra.mxu0 0.0
    %4448 = vmatprep.subr.mxu0 0.0
    %4449 = vmatpush2.xpose.msra.mxu0 0.0
    %4450 = vmatprep.subr.mxu0 0.0
    %4451 = vmatpush2.xpose.msra.mxu0 0.0
    %4452 = vmatprep.subr.mxu0 0.0
    %4453 = vmatpush2.xpose.msra.mxu0 0.0
    %4454 = vmatprep.subr.mxu0 0.0
    %4455 = vmatpush2.xpose.msra.mxu0 0.0
    %4456 = vmatprep.subr.mxu0 0.0
    %4457 = vmatpush2.xpose.msra.mxu0 0.0
    %4458 = vmatprep.subr.mxu0 0.0
    %4459 = vmatpush2.xpose.msra.mxu0 0.0
    %4460 = vmatprep.subr.mxu0 0.0
    %4461 = vmatpush2.xpose.msra.mxu0 0.0
    %4462 = vmatprep.subr.mxu0 0.0
    %4463 = vmatpush2.xpose.msra.mxu0 0.0
    %4464 = vmatprep.subr.mxu0 0.0
    %4465 = vmatpush2.xpose.msra.mxu0 0.0
    %4466 = vmatprep.subr.mxu0 0.0
    %4467 = vmatpush2.xpose.msra.mxu0 0.0
    %4468 = vmatprep.subr.mxu0 0.0
    %4469 = vmatpush2.xpose.msra.mxu0 0.0
    %4470 = vmatprep.mubr.f32.mxu0 0.0
    %4471 = vmatmul.mubr.f32.gmra.mxu0 %v4402
    %v4472 = vpop.f32.mrf.mxu0
    %v4473 = vadd.f32 0.0, %v4472
    %v4474 = vpop.f32.mrf.mxu0
    %4475 = vdwg.mxu0
    %v4476 = vsel %vm1447, %v3363, -inf
    %4477 = vmax.xlane.f32.xlu0 %v4476
    %v4478 = vpop.xlane.xlu0 %4477
    %v4479 = vsel %vm1447, %v3437, -inf
    %4480 = vmax.xlane.f32.xlu0 %v4479
    %v4481 = vpop.xlane.xlu0 %4480
    %v4482 = vsel %vm1447, %v3511, -inf
    %4483 = vmax.xlane.f32.xlu0 %v4482
    %v4484 = vpop.xlane.xlu0 %4483
    %v4485 = vsel %vm1447, %v3585, -inf
    %4486 = vmax.xlane.f32.xlu0 %v4485
    %v4487 = vpop.xlane.xlu0 %4486
    %v4488 = vsel %vm1447, %v3659, -inf
    %4489 = vmax.xlane.f32.xlu0 %v4488
    %v4490 = vpop.xlane.xlu0 %4489
    %v4491 = vsel %vm1447, %v3733, -inf
    %4492 = vmax.xlane.f32.xlu0 %v4491
    %v4493 = vpop.xlane.xlu0 %4492
    %v4494 = vsel %vm1447, %v3807, -inf
    %4495 = vmax.xlane.f32.xlu0 %v4494
    %v4496 = vpop.xlane.xlu0 %4495
    %v4497 = vsel %vm1447, %v3881, -inf
    %4498 = vmax.xlane.f32.xlu0 %v4497
    %v4499 = vpop.xlane.xlu0 %4498
    %v4500 = vsel %vm1447, %v3955, -inf
    %4501 = vmax.xlane.f32.xlu0 %v4500
    %v4502 = vpop.xlane.xlu0 %4501
    %v4503 = vsel %vm1447, %v4029, -inf
    %4504 = vmax.xlane.f32.xlu0 %v4503
    %v4505 = vpop.xlane.xlu0 %4504
    %v4506 = vsel %vm1447, %v4103, -inf
    %4507 = vmax.xlane.f32.xlu0 %v4506
    %v4508 = vpop.xlane.xlu0 %4507
    %v4509 = vsel %vm1447, %v4177, -inf
    %4510 = vmax.xlane.f32.xlu0 %v4509
    %v4511 = vpop.xlane.xlu0 %4510
    %v4512 = vsel %vm1447, %v4251, -inf
    %4513 = vmax.xlane.f32.xlu0 %v4512
    %v4514 = vpop.xlane.xlu0 %4513
    %v4515 = vsel %vm1447, %v4325, -inf
    %4516 = vmax.xlane.f32.xlu0 %v4515
    %v4517 = vpop.xlane.xlu0 %4516
    %v4518 = vsel %vm1447, %v4399, -inf
    %4519 = vmax.xlane.f32.xlu0 %v4518
    %v4520 = vpop.xlane.xlu0 %4519
    %v4521 = vsel %vm1447, %v4473, -inf
    %4522 = vmax.xlane.f32.xlu0 %v4521
    %v4523 = vpop.xlane.xlu0 %4522
    %v4524 = vsub.f32 %v3363, %v4478
    %v4525 = vsub.f32 %v3437, %v4481
    %v4526 = vsub.f32 %v3511, %v4484
    %v4527 = vsub.f32 %v3585, %v4487
    %v4528 = vsub.f32 %v3659, %v4490
    %v4529 = vsub.f32 %v3733, %v4493
    %v4530 = vsub.f32 %v3807, %v4496
    %v4531 = vsub.f32 %v3881, %v4499
    %v4532 = vsub.f32 %v3955, %v4502
    %v4533 = vsub.f32 %v4029, %v4505
    %v4534 = vsub.f32 %v4103, %v4508
    %v4535 = vsub.f32 %v4177, %v4511
    %v4536 = vsub.f32 %v4251, %v4514
    %v4537 = vsub.f32 %v4325, %v4517
    %v4538 = vsub.f32 %v4399, %v4520
    %v4539 = vsub.f32 %v4473, %v4523
    %v4540 = vmul.f32 %v4524, 1.442695
    %v4541 = vpow.pop %v4540
    %v4542 = vmul.f32 %v4525, 1.442695
    %v4543 = vpow.pop %v4542
    %v4544 = vmul.f32 %v4526, 1.442695
    %v4545 = vpow.pop %v4544
    %v4546 = vmul.f32 %v4527, 1.442695
    %v4547 = vpow.pop %v4546
    %v4548 = vmul.f32 %v4528, 1.442695
    %v4549 = vpow.pop %v4548
    %v4550 = vmul.f32 %v4529, 1.442695
    %v4551 = vpow.pop %v4550
    %v4552 = vmul.f32 %v4530, 1.442695
    %v4553 = vpow.pop %v4552
    %v4554 = vmul.f32 %v4531, 1.442695
    %v4555 = vpow.pop %v4554
    %v4556 = vmul.f32 %v4532, 1.442695
    %v4557 = vpow.pop %v4556
    %v4558 = vmul.f32 %v4533, 1.442695
    %v4559 = vpow.pop %v4558
    %v4560 = vmul.f32 %v4534, 1.442695
    %v4561 = vpow.pop %v4560
    %v4562 = vmul.f32 %v4535, 1.442695
    %v4563 = vpow.pop %v4562
    %v4564 = vmul.f32 %v4536, 1.442695
    %v4565 = vpow.pop %v4564
    %v4566 = vmul.f32 %v4537, 1.442695
    %v4567 = vpow.pop %v4566
    %v4568 = vmul.f32 %v4538, 1.442695
    %v4569 = vpow.pop %v4568
    %v4570 = vmul.f32 %v4539, 1.442695
    %v4571 = vpow.pop %v4570
    %v4572 = vsel %vm1447, %v4541, 0.0
    %4573 = vadd.xlane.f32.xlu0 %v4572
    %v4574 = vpop.xlane.xlu0 %4573
    %v4575 = vsel %vm1447, %v4543, 0.0
    %4576 = vadd.xlane.f32.xlu0 %v4575
    %v4577 = vpop.xlane.xlu0 %4576
    %v4578 = vsel %vm1447, %v4545, 0.0
    %4579 = vadd.xlane.f32.xlu0 %v4578
    %v4580 = vpop.xlane.xlu0 %4579
    %v4581 = vsel %vm1447, %v4547, 0.0
    %4582 = vadd.xlane.f32.xlu0 %v4581
    %v4583 = vpop.xlane.xlu0 %4582
    %v4584 = vsel %vm1447, %v4549, 0.0
    %4585 = vadd.xlane.f32.xlu0 %v4584
    %v4586 = vpop.xlane.xlu0 %4585
    %v4587 = vsel %vm1447, %v4551, 0.0
    %4588 = vadd.xlane.f32.xlu0 %v4587
    %v4589 = vpop.xlane.xlu0 %4588
    %v4590 = vsel %vm1447, %v4553, 0.0
    %4591 = vadd.xlane.f32.xlu0 %v4590
    %v4592 = vpop.xlane.xlu0 %4591
    %v4593 = vsel %vm1447, %v4555, 0.0
    %4594 = vadd.xlane.f32.xlu0 %v4593
    %v4595 = vpop.xlane.xlu0 %4594
    %v4596 = vsel %vm1447, %v4557, 0.0
    %4597 = vadd.xlane.f32.xlu0 %v4596
    %v4598 = vpop.xlane.xlu0 %4597
    %v4599 = vsel %vm1447, %v4559, 0.0
    %4600 = vadd.xlane.f32.xlu0 %v4599
    %v4601 = vpop.xlane.xlu0 %4600
    %v4602 = vsel %vm1447, %v4561, 0.0
    %4603 = vadd.xlane.f32.xlu0 %v4602
    %v4604 = vpop.xlane.xlu0 %4603
    %v4605 = vsel %vm1447, %v4563, 0.0
    %4606 = vadd.xlane.f32.xlu0 %v4605
    %v4607 = vpop.xlane.xlu0 %4606
    %v4608 = vsel %vm1447, %v4565, 0.0
    %4609 = vadd.xlane.f32.xlu0 %v4608
    %v4610 = vpop.xlane.xlu0 %4609
    %v4611 = vsel %vm1447, %v4567, 0.0
    %4612 = vadd.xlane.f32.xlu0 %v4611
    %v4613 = vpop.xlane.xlu0 %4612
    %v4614 = vsel %vm1447, %v4569, 0.0
    %4615 = vadd.xlane.f32.xlu0 %v4614
    %v4616 = vpop.xlane.xlu0 %4615
    %v4617 = vsel %vm1447, %v4571, 0.0
    %4618 = vadd.xlane.f32.xlu0 %v4617
    %v4619 = vpop.xlane.xlu0 %4618
    %v4620 = vrcp.pop %v4574
    %v4621 = vrcp.pop %v4577
    %v4622 = vrcp.pop %v4580
    %v4623 = vrcp.pop %v4583
    %v4624 = vrcp.pop %v4586
    %v4625 = vrcp.pop %v4589
    %v4626 = vrcp.pop %v4592
    %v4627 = vrcp.pop %v4595
    %v4628 = vrcp.pop %v4598
    %v4629 = vrcp.pop %v4601
    %v4630 = vrcp.pop %v4604
    %v4631 = vrcp.pop %v4607
    %v4632 = vrcp.pop %v4610
    %v4633 = vrcp.pop %v4613
    %v4634 = vrcp.pop %v4616
    %v4635 = vrcp.pop %v4619
    %v4636 = vmul.f32 %v4541, %v4620
    %v4637 = vmul.f32 %v4543, %v4621
    %v4638 = vmul.f32 %v4545, %v4622
    %v4639 = vmul.f32 %v4547, %v4623
    %v4640 = vmul.f32 %v4549, %v4624
    %v4641 = vmul.f32 %v4551, %v4625
    %v4642 = vmul.f32 %v4553, %v4626
    %v4643 = vmul.f32 %v4555, %v4627
    %v4644 = vmul.f32 %v4557, %v4628
    %v4645 = vmul.f32 %v4559, %v4629
    %v4646 = vmul.f32 %v4561, %v4630
    %v4647 = vmul.f32 %v4563, %v4631
    %v4648 = vmul.f32 %v4565, %v4632
    %v4649 = vmul.f32 %v4567, %v4633
    %v4650 = vmul.f32 %v4569, %v4634
    %v4651 = vmul.f32 %v4571, %v4635
    %4652 = vrot.lane.b32.xlu0 %v3224, 96
    %v4653 = vpop.permute.xlu0 %4652
    %v4656 = vsel %vm1447, %v4636, 0
    %4658 = vmatprep.subr.mxu0 0.0
    %4659 = vmatpush1.msra.mxu0 0.0
    %4660 = vmatprep.subr.mxu0 0.0
    %4661 = vmatpush1.msra.mxu0 0.0
    %4662 = vmatprep.subr.mxu0 0.0
    %4663 = vmatpush1.msra.mxu0 0.0
    %4664 = vmatprep.subr.mxu0 0.0
    %4665 = vmatpush1.msra.mxu0 0.0
    %4666 = vmatprep.subr.mxu0 0.0
    %4667 = vmatpush1.msra.mxu0 0.0
    %4668 = vmatprep.subr.mxu0 0.0
    %4669 = vmatpush1.msra.mxu0 0.0
    %4670 = vmatprep.subr.mxu0 0.0
    %4671 = vmatpush1.msra.mxu0 0.0
    %4672 = vmatprep.subr.mxu0 0.0
    %4673 = vmatpush1.msra.mxu0 0.0
    %4674 = vmatprep.subr.mxu0 0.0
    %4675 = vmatpush1.msra.mxu0 0.0
    %4676 = vmatprep.subr.mxu0 0.0
    %4677 = vmatpush1.msra.mxu0 0.0
    %4678 = vmatprep.subr.mxu0 0.0
    %4679 = vmatpush1.msra.mxu0 0.0
    %4680 = vmatprep.subr.mxu0 0.0
    %4681 = vmatpush1.msra.mxu0 0.0
    %4682 = vmatprep.subr.mxu0 0.0
    %4683 = vmatpush1.msra.mxu0 0.0
    %4684 = vmatprep.subr.mxu0 0.0
    %4685 = vmatpush1.msra.mxu0 0.0
    %4686 = vmatprep.subr.mxu0 0.0
    %4687 = vmatpush1.msra.mxu0 0.0
    %4688 = vmatprep.subr.mxu0 0.0
    %4689 = vmatpush1.msra.mxu0 %v4653
    %4690 = vmatprep.subr.mxu0 0.0
    %4691 = vmatpush2.msra.mxu0 0.0
    %4692 = vmatprep.subr.mxu0 0.0
    %4693 = vmatpush2.msra.mxu0 0.0
    %4694 = vmatprep.subr.mxu0 0.0
    %4695 = vmatpush2.msra.mxu0 0.0
    %4696 = vmatprep.subr.mxu0 0.0
    %4697 = vmatpush2.msra.mxu0 0.0
    %4698 = vmatprep.subr.mxu0 0.0
    %4699 = vmatpush2.msra.mxu0 0.0
    %4700 = vmatprep.subr.mxu0 0.0
    %4701 = vmatpush2.msra.mxu0 0.0
    %4702 = vmatprep.subr.mxu0 0.0
    %4703 = vmatpush2.msra.mxu0 0.0
    %4704 = vmatprep.subr.mxu0 0.0
    %4705 = vmatpush2.msra.mxu0 0.0
    %4706 = vmatprep.subr.mxu0 0.0
    %4707 = vmatpush2.msra.mxu0 0.0
    %4708 = vmatprep.subr.mxu0 0.0
    %4709 = vmatpush2.msra.mxu0 0.0
    %4710 = vmatprep.subr.mxu0 0.0
    %4711 = vmatpush2.msra.mxu0 0.0
    %4712 = vmatprep.subr.mxu0 0.0
    %4713 = vmatpush2.msra.mxu0 0.0
    %4714 = vmatprep.subr.mxu0 0.0
    %4715 = vmatpush2.msra.mxu0 0.0
    %4716 = vmatprep.subr.mxu0 0.0
    %4717 = vmatpush2.msra.mxu0 0.0
    %4718 = vmatprep.subr.mxu0 0.0
    %4719 = vmatpush2.msra.mxu0 0.0
    %4720 = vmatprep.subr.mxu0 0.0
    %4721 = vmatpush2.msra.mxu0 0.0
    %4722 = vmatprep.mubr.f32.mxu0 0.0
    %4723 = vmatmul.mubr.f32.gmra.mxu0 %v4656
    %v4724 = vpop.f32.mrf.mxu0
    %v4725 = vadd.f32 0.0, %v4724
    %v4726 = vpop.f32.mrf.mxu0
    %4727 = vdwg.mxu0
    %4728 = vrot.lane.b32.xlu0 %v3229, 96
    %v4729 = vpop.permute.xlu0 %4728
    %v4732 = vsel %vm1447, %v4637, 0
    %4734 = vmatprep.subr.mxu0 0.0
    %4735 = vmatpush1.msra.mxu0 0.0
    %4736 = vmatprep.subr.mxu0 0.0
    %4737 = vmatpush1.msra.mxu0 0.0
    %4738 = vmatprep.subr.mxu0 0.0
    %4739 = vmatpush1.msra.mxu0 0.0
    %4740 = vmatprep.subr.mxu0 0.0
    %4741 = vmatpush1.msra.mxu0 0.0
    %4742 = vmatprep.subr.mxu0 0.0
    %4743 = vmatpush1.msra.mxu0 0.0
    %4744 = vmatprep.subr.mxu0 0.0
    %4745 = vmatpush1.msra.mxu0 0.0
    %4746 = vmatprep.subr.mxu0 0.0
    %4747 = vmatpush1.msra.mxu0 0.0
    %4748 = vmatprep.subr.mxu0 0.0
    %4749 = vmatpush1.msra.mxu0 0.0
    %4750 = vmatprep.subr.mxu0 0.0
    %4751 = vmatpush1.msra.mxu0 0.0
    %4752 = vmatprep.subr.mxu0 0.0
    %4753 = vmatpush1.msra.mxu0 0.0
    %4754 = vmatprep.subr.mxu0 0.0
    %4755 = vmatpush1.msra.mxu0 0.0
    %4756 = vmatprep.subr.mxu0 0.0
    %4757 = vmatpush1.msra.mxu0 0.0
    %4758 = vmatprep.subr.mxu0 0.0
    %4759 = vmatpush1.msra.mxu0 0.0
    %4760 = vmatprep.subr.mxu0 0.0
    %4761 = vmatpush1.msra.mxu0 0.0
    %4762 = vmatprep.subr.mxu0 0.0
    %4763 = vmatpush1.msra.mxu0 0.0
    %4764 = vmatprep.subr.mxu0 0.0
    %4765 = vmatpush1.msra.mxu0 %v4729
    %4766 = vmatprep.subr.mxu0 0.0
    %4767 = vmatpush2.msra.mxu0 0.0
    %4768 = vmatprep.subr.mxu0 0.0
    %4769 = vmatpush2.msra.mxu0 0.0
    %4770 = vmatprep.subr.mxu0 0.0
    %4771 = vmatpush2.msra.mxu0 0.0
    %4772 = vmatprep.subr.mxu0 0.0
    %4773 = vmatpush2.msra.mxu0 0.0
    %4774 = vmatprep.subr.mxu0 0.0
    %4775 = vmatpush2.msra.mxu0 0.0
    %4776 = vmatprep.subr.mxu0 0.0
    %4777 = vmatpush2.msra.mxu0 0.0
    %4778 = vmatprep.subr.mxu0 0.0
    %4779 = vmatpush2.msra.mxu0 0.0
    %4780 = vmatprep.subr.mxu0 0.0
    %4781 = vmatpush2.msra.mxu0 0.0
    %4782 = vmatprep.subr.mxu0 0.0
    %4783 = vmatpush2.msra.mxu0 0.0
    %4784 = vmatprep.subr.mxu0 0.0
    %4785 = vmatpush2.msra.mxu0 0.0
    %4786 = vmatprep.subr.mxu0 0.0
    %4787 = vmatpush2.msra.mxu0 0.0
    %4788 = vmatprep.subr.mxu0 0.0
    %4789 = vmatpush2.msra.mxu0 0.0
    %4790 = vmatprep.subr.mxu0 0.0
    %4791 = vmatpush2.msra.mxu0 0.0
    %4792 = vmatprep.subr.mxu0 0.0
    %4793 = vmatpush2.msra.mxu0 0.0
    %4794 = vmatprep.subr.mxu0 0.0
    %4795 = vmatpush2.msra.mxu0 0.0
    %4796 = vmatprep.subr.mxu0 0.0
    %4797 = vmatpush2.msra.mxu0 0.0
    %4798 = vmatprep.mubr.f32.mxu0 0.0
    %4799 = vmatmul.mubr.f32.gmra.mxu0 %v4732
    %v4800 = vpop.f32.mrf.mxu0
    %v4801 = vadd.f32 0.0, %v4800
    %v4802 = vpop.f32.mrf.mxu0
    %4803 = vdwg.mxu0
    %4804 = vrot.lane.b32.xlu0 %v3265, 96
    %v4805 = vpop.permute.xlu0 %4804
    %v4808 = vsel %vm1447, %v4638, 0
    %4810 = vmatprep.subr.mxu0 0.0
    %4811 = vmatpush1.msra.mxu0 0.0
    %4812 = vmatprep.subr.mxu0 0.0
    %4813 = vmatpush1.msra.mxu0 0.0
    %4814 = vmatprep.subr.mxu0 0.0
    %4815 = vmatpush1.msra.mxu0 0.0
    %4816 = vmatprep.subr.mxu0 0.0
    %4817 = vmatpush1.msra.mxu0 0.0
    %4818 = vmatprep.subr.mxu0 0.0
    %4819 = vmatpush1.msra.mxu0 0.0
    %4820 = vmatprep.subr.mxu0 0.0
    %4821 = vmatpush1.msra.mxu0 0.0
    %4822 = vmatprep.subr.mxu0 0.0
    %4823 = vmatpush1.msra.mxu0 0.0
    %4824 = vmatprep.subr.mxu0 0.0
    %4825 = vmatpush1.msra.mxu0 0.0
    %4826 = vmatprep.subr.mxu0 0.0
    %4827 = vmatpush1.msra.mxu0 0.0
    %4828 = vmatprep.subr.mxu0 0.0
    %4829 = vmatpush1.msra.mxu0 0.0
    %4830 = vmatprep.subr.mxu0 0.0
    %4831 = vmatpush1.msra.mxu0 0.0
    %4832 = vmatprep.subr.mxu0 0.0
    %4833 = vmatpush1.msra.mxu0 0.0
    %4834 = vmatprep.subr.mxu0 0.0
    %4835 = vmatpush1.msra.mxu0 0.0
    %4836 = vmatprep.subr.mxu0 0.0
    %4837 = vmatpush1.msra.mxu0 0.0
    %4838 = vmatprep.subr.mxu0 0.0
    %4839 = vmatpush1.msra.mxu0 0.0
    %4840 = vmatprep.subr.mxu0 0.0
    %4841 = vmatpush1.msra.mxu0 %v4805
    %4842 = vmatprep.subr.mxu0 0.0
    %4843 = vmatpush2.msra.mxu0 0.0
    %4844 = vmatprep.subr.mxu0 0.0
    %4845 = vmatpush2.msra.mxu0 0.0
    %4846 = vmatprep.subr.mxu0 0.0
    %4847 = vmatpush2.msra.mxu0 0.0
    %4848 = vmatprep.subr.mxu0 0.0
    %4849 = vmatpush2.msra.mxu0 0.0
    %4850 = vmatprep.subr.mxu0 0.0
    %4851 = vmatpush2.msra.mxu0 0.0
    %4852 = vmatprep.subr.mxu0 0.0
    %4853 = vmatpush2.msra.mxu0 0.0
    %4854 = vmatprep.subr.mxu0 0.0
    %4855 = vmatpush2.msra.mxu0 0.0
    %4856 = vmatprep.subr.mxu0 0.0
    %4857 = vmatpush2.msra.mxu0 0.0
    %4858 = vmatprep.subr.mxu0 0.0
    %4859 = vmatpush2.msra.mxu0 0.0
    %4860 = vmatprep.subr.mxu0 0.0
    %4861 = vmatpush2.msra.mxu0 0.0
    %4862 = vmatprep.subr.mxu0 0.0
    %4863 = vmatpush2.msra.mxu0 0.0
    %4864 = vmatprep.subr.mxu0 0.0
    %4865 = vmatpush2.msra.mxu0 0.0
    %4866 = vmatprep.subr.mxu0 0.0
    %4867 = vmatpush2.msra.mxu0 0.0
    %4868 = vmatprep.subr.mxu0 0.0
    %4869 = vmatpush2.msra.mxu0 0.0
    %4870 = vmatprep.subr.mxu0 0.0
    %4871 = vmatpush2.msra.mxu0 0.0
    %4872 = vmatprep.subr.mxu0 0.0
    %4873 = vmatpush2.msra.mxu0 0.0
    %4874 = vmatprep.mubr.f32.mxu0 0.0
    %4875 = vmatmul.mubr.f32.gmra.mxu0 %v4808
    %v4876 = vpop.f32.mrf.mxu0
    %v4877 = vadd.f32 0.0, %v4876
    %v4878 = vpop.f32.mrf.mxu0
    %4879 = vdwg.mxu0
    %4880 = vrot.lane.b32.xlu0 %v3267, 96
    %v4881 = vpop.permute.xlu0 %4880
    %v4884 = vsel %vm1447, %v4639, 0
    %4886 = vmatprep.subr.mxu0 0.0
    %4887 = vmatpush1.msra.mxu0 0.0
    %4888 = vmatprep.subr.mxu0 0.0
    %4889 = vmatpush1.msra.mxu0 0.0
    %4890 = vmatprep.subr.mxu0 0.0
    %4891 = vmatpush1.msra.mxu0 0.0
    %4892 = vmatprep.subr.mxu0 0.0
    %4893 = vmatpush1.msra.mxu0 0.0
    %4894 = vmatprep.subr.mxu0 0.0
    %4895 = vmatpush1.msra.mxu0 0.0
    %4896 = vmatprep.subr.mxu0 0.0
    %4897 = vmatpush1.msra.mxu0 0.0
    %4898 = vmatprep.subr.mxu0 0.0
    %4899 = vmatpush1.msra.mxu0 0.0
    %4900 = vmatprep.subr.mxu0 0.0
    %4901 = vmatpush1.msra.mxu0 0.0
    %4902 = vmatprep.subr.mxu0 0.0
    %4903 = vmatpush1.msra.mxu0 0.0
    %4904 = vmatprep.subr.mxu0 0.0
    %4905 = vmatpush1.msra.mxu0 0.0
    %4906 = vmatprep.subr.mxu0 0.0
    %4907 = vmatpush1.msra.mxu0 0.0
    %4908 = vmatprep.subr.mxu0 0.0
    %4909 = vmatpush1.msra.mxu0 0.0
    %4910 = vmatprep.subr.mxu0 0.0
    %4911 = vmatpush1.msra.mxu0 0.0
    %4912 = vmatprep.subr.mxu0 0.0
    %4913 = vmatpush1.msra.mxu0 0.0
    %4914 = vmatprep.subr.mxu0 0.0
    %4915 = vmatpush1.msra.mxu0 0.0
    %4916 = vmatprep.subr.mxu0 0.0
    %4917 = vmatpush1.msra.mxu0 %v4881
    %4918 = vmatprep.subr.mxu0 0.0
    %4919 = vmatpush2.msra.mxu0 0.0
    %4920 = vmatprep.subr.mxu0 0.0
    %4921 = vmatpush2.msra.mxu0 0.0
    %4922 = vmatprep.subr.mxu0 0.0
    %4923 = vmatpush2.msra.mxu0 0.0
    %4924 = vmatprep.subr.mxu0 0.0
    %4925 = vmatpush2.msra.mxu0 0.0
    %4926 = vmatprep.subr.mxu0 0.0
    %4927 = vmatpush2.msra.mxu0 0.0
    %4928 = vmatprep.subr.mxu0 0.0
    %4929 = vmatpush2.msra.mxu0 0.0
    %4930 = vmatprep.subr.mxu0 0.0
    %4931 = vmatpush2.msra.mxu0 0.0
    %4932 = vmatprep.subr.mxu0 0.0
    %4933 = vmatpush2.msra.mxu0 0.0
    %4934 = vmatprep.subr.mxu0 0.0
    %4935 = vmatpush2.msra.mxu0 0.0
    %4936 = vmatprep.subr.mxu0 0.0
    %4937 = vmatpush2.msra.mxu0 0.0
    %4938 = vmatprep.subr.mxu0 0.0
    %4939 = vmatpush2.msra.mxu0 0.0
    %4940 = vmatprep.subr.mxu0 0.0
    %4941 = vmatpush2.msra.mxu0 0.0
    %4942 = vmatprep.subr.mxu0 0.0
    %4943 = vmatpush2.msra.mxu0 0.0
    %4944 = vmatprep.subr.mxu0 0.0
    %4945 = vmatpush2.msra.mxu0 0.0
    %4946 = vmatprep.subr.mxu0 0.0
    %4947 = vmatpush2.msra.mxu0 0.0
    %4948 = vmatprep.subr.mxu0 0.0
    %4949 = vmatpush2.msra.mxu0 0.0
    %4950 = vmatprep.mubr.f32.mxu0 0.0
    %4951 = vmatmul.mubr.f32.gmra.mxu0 %v4884
    %v4952 = vpop.f32.mrf.mxu0
    %v4953 = vadd.f32 0.0, %v4952
    %v4954 = vpop.f32.mrf.mxu0
    %4955 = vdwg.mxu0
    %4956 = vrot.lane.b32.xlu0 %v3269, 96
    %v4957 = vpop.permute.xlu0 %4956
    %v4960 = vsel %vm1447, %v4640, 0
    %4962 = vmatprep.subr.mxu0 0.0
    %4963 = vmatpush1.msra.mxu0 0.0
    %4964 = vmatprep.subr.mxu0 0.0
    %4965 = vmatpush1.msra.mxu0 0.0
    %4966 = vmatprep.subr.mxu0 0.0
    %4967 = vmatpush1.msra.mxu0 0.0
    %4968 = vmatprep.subr.mxu0 0.0
    %4969 = vmatpush1.msra.mxu0 0.0
    %4970 = vmatprep.subr.mxu0 0.0
    %4971 = vmatpush1.msra.mxu0 0.0
    %4972 = vmatprep.subr.mxu0 0.0
    %4973 = vmatpush1.msra.mxu0 0.0
    %4974 = vmatprep.subr.mxu0 0.0
    %4975 = vmatpush1.msra.mxu0 0.0
    %4976 = vmatprep.subr.mxu0 0.0
    %4977 = vmatpush1.msra.mxu0 0.0
    %4978 = vmatprep.subr.mxu0 0.0
    %4979 = vmatpush1.msra.mxu0 0.0
    %4980 = vmatprep.subr.mxu0 0.0
    %4981 = vmatpush1.msra.mxu0 0.0
    %4982 = vmatprep.subr.mxu0 0.0
    %4983 = vmatpush1.msra.mxu0 0.0
    %4984 = vmatprep.subr.mxu0 0.0
    %4985 = vmatpush1.msra.mxu0 0.0
    %4986 = vmatprep.subr.mxu0 0.0
    %4987 = vmatpush1.msra.mxu0 0.0
    %4988 = vmatprep.subr.mxu0 0.0
    %4989 = vmatpush1.msra.mxu0 0.0
    %4990 = vmatprep.subr.mxu0 0.0
    %4991 = vmatpush1.msra.mxu0 0.0
    %4992 = vmatprep.subr.mxu0 0.0
    %4993 = vmatpush1.msra.mxu0 %v4957
    %4994 = vmatprep.subr.mxu0 0.0
    %4995 = vmatpush2.msra.mxu0 0.0
    %4996 = vmatprep.subr.mxu0 0.0
    %4997 = vmatpush2.msra.mxu0 0.0
    %4998 = vmatprep.subr.mxu0 0.0
    %4999 = vmatpush2.msra.mxu0 0.0
    %5000 = vmatprep.subr.mxu0 0.0
    %5001 = vmatpush2.msra.mxu0 0.0
    %5002 = vmatprep.subr.mxu0 0.0
    %5003 = vmatpush2.msra.mxu0 0.0
    %5004 = vmatprep.subr.mxu0 0.0
    %5005 = vmatpush2.msra.mxu0 0.0
    %5006 = vmatprep.subr.mxu0 0.0
    %5007 = vmatpush2.msra.mxu0 0.0
    %5008 = vmatprep.subr.mxu0 0.0
    %5009 = vmatpush2.msra.mxu0 0.0
    %5010 = vmatprep.subr.mxu0 0.0
    %5011 = vmatpush2.msra.mxu0 0.0
    %5012 = vmatprep.subr.mxu0 0.0
    %5013 = vmatpush2.msra.mxu0 0.0
    %5014 = vmatprep.subr.mxu0 0.0
    %5015 = vmatpush2.msra.mxu0 0.0
    %5016 = vmatprep.subr.mxu0 0.0
    %5017 = vmatpush2.msra.mxu0 0.0
    %5018 = vmatprep.subr.mxu0 0.0
    %5019 = vmatpush2.msra.mxu0 0.0
    %5020 = vmatprep.subr.mxu0 0.0
    %5021 = vmatpush2.msra.mxu0 0.0
    %5022 = vmatprep.subr.mxu0 0.0
    %5023 = vmatpush2.msra.mxu0 0.0
    %5024 = vmatprep.subr.mxu0 0.0
    %5025 = vmatpush2.msra.mxu0 0.0
    %5026 = vmatprep.mubr.f32.mxu0 0.0
    %5027 = vmatmul.mubr.f32.gmra.mxu0 %v4960
    %v5028 = vpop.f32.mrf.mxu0
    %v5029 = vadd.f32 0.0, %v5028
    %v5030 = vpop.f32.mrf.mxu0
    %5031 = vdwg.mxu0
    %5032 = vrot.lane.b32.xlu0 %v3271, 96
    %v5033 = vpop.permute.xlu0 %5032
    %v5036 = vsel %vm1447, %v4641, 0
    %5038 = vmatprep.subr.mxu0 0.0
    %5039 = vmatpush1.msra.mxu0 0.0
    %5040 = vmatprep.subr.mxu0 0.0
    %5041 = vmatpush1.msra.mxu0 0.0
    %5042 = vmatprep.subr.mxu0 0.0
    %5043 = vmatpush1.msra.mxu0 0.0
    %5044 = vmatprep.subr.mxu0 0.0
    %5045 = vmatpush1.msra.mxu0 0.0
    %5046 = vmatprep.subr.mxu0 0.0
    %5047 = vmatpush1.msra.mxu0 0.0
    %5048 = vmatprep.subr.mxu0 0.0
    %5049 = vmatpush1.msra.mxu0 0.0
    %5050 = vmatprep.subr.mxu0 0.0
    %5051 = vmatpush1.msra.mxu0 0.0
    %5052 = vmatprep.subr.mxu0 0.0
    %5053 = vmatpush1.msra.mxu0 0.0
    %5054 = vmatprep.subr.mxu0 0.0
    %5055 = vmatpush1.msra.mxu0 0.0
    %5056 = vmatprep.subr.mxu0 0.0
    %5057 = vmatpush1.msra.mxu0 0.0
    %5058 = vmatprep.subr.mxu0 0.0
    %5059 = vmatpush1.msra.mxu0 0.0
    %5060 = vmatprep.subr.mxu0 0.0
    %5061 = vmatpush1.msra.mxu0 0.0
    %5062 = vmatprep.subr.mxu0 0.0
    %5063 = vmatpush1.msra.mxu0 0.0
    %5064 = vmatprep.subr.mxu0 0.0
    %5065 = vmatpush1.msra.mxu0 0.0
    %5066 = vmatprep.subr.mxu0 0.0
    %5067 = vmatpush1.msra.mxu0 0.0
    %5068 = vmatprep.subr.mxu0 0.0
    %5069 = vmatpush1.msra.mxu0 %v5033
    %5070 = vmatprep.subr.mxu0 0.0
    %5071 = vmatpush2.msra.mxu0 0.0
    %5072 = vmatprep.subr.mxu0 0.0
    %5073 = vmatpush2.msra.mxu0 0.0
    %5074 = vmatprep.subr.mxu0 0.0
    %5075 = vmatpush2.msra.mxu0 0.0
    %5076 = vmatprep.subr.mxu0 0.0
    %5077 = vmatpush2.msra.mxu0 0.0
    %5078 = vmatprep.subr.mxu0 0.0
    %5079 = vmatpush2.msra.mxu0 0.0
    %5080 = vmatprep.subr.mxu0 0.0
    %5081 = vmatpush2.msra.mxu0 0.0
    %5082 = vmatprep.subr.mxu0 0.0
    %5083 = vmatpush2.msra.mxu0 0.0
    %5084 = vmatprep.subr.mxu0 0.0
    %5085 = vmatpush2.msra.mxu0 0.0
    %5086 = vmatprep.subr.mxu0 0.0
    %5087 = vmatpush2.msra.mxu0 0.0
    %5088 = vmatprep.subr.mxu0 0.0
    %5089 = vmatpush2.msra.mxu0 0.0
    %5090 = vmatprep.subr.mxu0 0.0
    %5091 = vmatpush2.msra.mxu0 0.0
    %5092 = vmatprep.subr.mxu0 0.0
    %5093 = vmatpush2.msra.mxu0 0.0
    %5094 = vmatprep.subr.mxu0 0.0
    %5095 = vmatpush2.msra.mxu0 0.0
    %5096 = vmatprep.subr.mxu0 0.0
    %5097 = vmatpush2.msra.mxu0 0.0
    %5098 = vmatprep.subr.mxu0 0.0
    %5099 = vmatpush2.msra.mxu0 0.0
    %5100 = vmatprep.subr.mxu0 0.0
    %5101 = vmatpush2.msra.mxu0 0.0
    %5102 = vmatprep.mubr.f32.mxu0 0.0
    %5103 = vmatmul.mubr.f32.gmra.mxu0 %v5036
    %v5104 = vpop.f32.mrf.mxu0
    %v5105 = vadd.f32 0.0, %v5104
    %v5106 = vpop.f32.mrf.mxu0
    %5107 = vdwg.mxu0
    %5108 = vrot.lane.b32.xlu0 %v3273, 96
    %v5109 = vpop.permute.xlu0 %5108
    %v5112 = vsel %vm1447, %v4642, 0
    %5114 = vmatprep.subr.mxu0 0.0
    %5115 = vmatpush1.msra.mxu0 0.0
    %5116 = vmatprep.subr.mxu0 0.0
    %5117 = vmatpush1.msra.mxu0 0.0
    %5118 = vmatprep.subr.mxu0 0.0
    %5119 = vmatpush1.msra.mxu0 0.0
    %5120 = vmatprep.subr.mxu0 0.0
    %5121 = vmatpush1.msra.mxu0 0.0
    %5122 = vmatprep.subr.mxu0 0.0
    %5123 = vmatpush1.msra.mxu0 0.0
    %5124 = vmatprep.subr.mxu0 0.0
    %5125 = vmatpush1.msra.mxu0 0.0
    %5126 = vmatprep.subr.mxu0 0.0
    %5127 = vmatpush1.msra.mxu0 0.0
    %5128 = vmatprep.subr.mxu0 0.0
    %5129 = vmatpush1.msra.mxu0 0.0
    %5130 = vmatprep.subr.mxu0 0.0
    %5131 = vmatpush1.msra.mxu0 0.0
    %5132 = vmatprep.subr.mxu0 0.0
    %5133 = vmatpush1.msra.mxu0 0.0
    %5134 = vmatprep.subr.mxu0 0.0
    %5135 = vmatpush1.msra.mxu0 0.0
    %5136 = vmatprep.subr.mxu0 0.0
    %5137 = vmatpush1.msra.mxu0 0.0
    %5138 = vmatprep.subr.mxu0 0.0
    %5139 = vmatpush1.msra.mxu0 0.0
    %5140 = vmatprep.subr.mxu0 0.0
    %5141 = vmatpush1.msra.mxu0 0.0
    %5142 = vmatprep.subr.mxu0 0.0
    %5143 = vmatpush1.msra.mxu0 0.0
    %5144 = vmatprep.subr.mxu0 0.0
    %5145 = vmatpush1.msra.mxu0 %v5109
    %5146 = vmatprep.subr.mxu0 0.0
    %5147 = vmatpush2.msra.mxu0 0.0
    %5148 = vmatprep.subr.mxu0 0.0
    %5149 = vmatpush2.msra.mxu0 0.0
    %5150 = vmatprep.subr.mxu0 0.0
    %5151 = vmatpush2.msra.mxu0 0.0
    %5152 = vmatprep.subr.mxu0 0.0
    %5153 = vmatpush2.msra.mxu0 0.0
    %5154 = vmatprep.subr.mxu0 0.0
    %5155 = vmatpush2.msra.mxu0 0.0
    %5156 = vmatprep.subr.mxu0 0.0
    %5157 = vmatpush2.msra.mxu0 0.0
    %5158 = vmatprep.subr.mxu0 0.0
    %5159 = vmatpush2.msra.mxu0 0.0
    %5160 = vmatprep.subr.mxu0 0.0
    %5161 = vmatpush2.msra.mxu0 0.0
    %5162 = vmatprep.subr.mxu0 0.0
    %5163 = vmatpush2.msra.mxu0 0.0
    %5164 = vmatprep.subr.mxu0 0.0
    %5165 = vmatpush2.msra.mxu0 0.0
    %5166 = vmatprep.subr.mxu0 0.0
    %5167 = vmatpush2.msra.mxu0 0.0
    %5168 = vmatprep.subr.mxu0 0.0
    %5169 = vmatpush2.msra.mxu0 0.0
    %5170 = vmatprep.subr.mxu0 0.0
    %5171 = vmatpush2.msra.mxu0 0.0
    %5172 = vmatprep.subr.mxu0 0.0
    %5173 = vmatpush2.msra.mxu0 0.0
    %5174 = vmatprep.subr.mxu0 0.0
    %5175 = vmatpush2.msra.mxu0 0.0
    %5176 = vmatprep.subr.mxu0 0.0
    %5177 = vmatpush2.msra.mxu0 0.0
    %5178 = vmatprep.mubr.f32.mxu0 0.0
    %5179 = vmatmul.mubr.f32.gmra.mxu0 %v5112
    %v5180 = vpop.f32.mrf.mxu0
    %v5181 = vadd.f32 0.0, %v5180
    %v5182 = vpop.f32.mrf.mxu0
    %5183 = vdwg.mxu0
    %5184 = vrot.lane.b32.xlu0 %v3275, 96
    %v5185 = vpop.permute.xlu0 %5184
    %v5188 = vsel %vm1447, %v4643, 0
    %5190 = vmatprep.subr.mxu0 0.0
    %5191 = vmatpush1.msra.mxu0 0.0
    %5192 = vmatprep.subr.mxu0 0.0
    %5193 = vmatpush1.msra.mxu0 0.0
    %5194 = vmatprep.subr.mxu0 0.0
    %5195 = vmatpush1.msra.mxu0 0.0
    %5196 = vmatprep.subr.mxu0 0.0
    %5197 = vmatpush1.msra.mxu0 0.0
    %5198 = vmatprep.subr.mxu0 0.0
    %5199 = vmatpush1.msra.mxu0 0.0
    %5200 = vmatprep.subr.mxu0 0.0
    %5201 = vmatpush1.msra.mxu0 0.0
    %5202 = vmatprep.subr.mxu0 0.0
    %5203 = vmatpush1.msra.mxu0 0.0
    %5204 = vmatprep.subr.mxu0 0.0
    %5205 = vmatpush1.msra.mxu0 0.0
    %5206 = vmatprep.subr.mxu0 0.0
    %5207 = vmatpush1.msra.mxu0 0.0
    %5208 = vmatprep.subr.mxu0 0.0
    %5209 = vmatpush1.msra.mxu0 0.0
    %5210 = vmatprep.subr.mxu0 0.0
    %5211 = vmatpush1.msra.mxu0 0.0
    %5212 = vmatprep.subr.mxu0 0.0
    %5213 = vmatpush1.msra.mxu0 0.0
    %5214 = vmatprep.subr.mxu0 0.0
    %5215 = vmatpush1.msra.mxu0 0.0
    %5216 = vmatprep.subr.mxu0 0.0
    %5217 = vmatpush1.msra.mxu0 0.0
    %5218 = vmatprep.subr.mxu0 0.0
    %5219 = vmatpush1.msra.mxu0 0.0
    %5220 = vmatprep.subr.mxu0 0.0
    %5221 = vmatpush1.msra.mxu0 %v5185
    %5222 = vmatprep.subr.mxu0 0.0
    %5223 = vmatpush2.msra.mxu0 0.0
    %5224 = vmatprep.subr.mxu0 0.0
    %5225 = vmatpush2.msra.mxu0 0.0
    %5226 = vmatprep.subr.mxu0 0.0
    %5227 = vmatpush2.msra.mxu0 0.0
    %5228 = vmatprep.subr.mxu0 0.0
    %5229 = vmatpush2.msra.mxu0 0.0
    %5230 = vmatprep.subr.mxu0 0.0
    %5231 = vmatpush2.msra.mxu0 0.0
    %5232 = vmatprep.subr.mxu0 0.0
    %5233 = vmatpush2.msra.mxu0 0.0
    %5234 = vmatprep.subr.mxu0 0.0
    %5235 = vmatpush2.msra.mxu0 0.0
    %5236 = vmatprep.subr.mxu0 0.0
    %5237 = vmatpush2.msra.mxu0 0.0
    %5238 = vmatprep.subr.mxu0 0.0
    %5239 = vmatpush2.msra.mxu0 0.0
    %5240 = vmatprep.subr.mxu0 0.0
    %5241 = vmatpush2.msra.mxu0 0.0
    %5242 = vmatprep.subr.mxu0 0.0
    %5243 = vmatpush2.msra.mxu0 0.0
    %5244 = vmatprep.subr.mxu0 0.0
    %5245 = vmatpush2.msra.mxu0 0.0
    %5246 = vmatprep.subr.mxu0 0.0
    %5247 = vmatpush2.msra.mxu0 0.0
    %5248 = vmatprep.subr.mxu0 0.0
    %5249 = vmatpush2.msra.mxu0 0.0
    %5250 = vmatprep.subr.mxu0 0.0
    %5251 = vmatpush2.msra.mxu0 0.0
    %5252 = vmatprep.subr.mxu0 0.0
    %5253 = vmatpush2.msra.mxu0 0.0
    %5254 = vmatprep.mubr.f32.mxu0 0.0
    %5255 = vmatmul.mubr.f32.gmra.mxu0 %v5188
    %v5256 = vpop.f32.mrf.mxu0
    %v5257 = vadd.f32 0.0, %v5256
    %v5258 = vpop.f32.mrf.mxu0
    %5259 = vdwg.mxu0
    %5260 = vrot.lane.b32.xlu0 %v3277, 96
    %v5261 = vpop.permute.xlu0 %5260
    %v5264 = vsel %vm1447, %v4644, 0
    %5266 = vmatprep.subr.mxu0 0.0
    %5267 = vmatpush1.msra.mxu0 0.0
    %5268 = vmatprep.subr.mxu0 0.0
    %5269 = vmatpush1.msra.mxu0 0.0
    %5270 = vmatprep.subr.mxu0 0.0
    %5271 = vmatpush1.msra.mxu0 0.0
    %5272 = vmatprep.subr.mxu0 0.0
    %5273 = vmatpush1.msra.mxu0 0.0
    %5274 = vmatprep.subr.mxu0 0.0
    %5275 = vmatpush1.msra.mxu0 0.0
    %5276 = vmatprep.subr.mxu0 0.0
    %5277 = vmatpush1.msra.mxu0 0.0
    %5278 = vmatprep.subr.mxu0 0.0
    %5279 = vmatpush1.msra.mxu0 0.0
    %5280 = vmatprep.subr.mxu0 0.0
    %5281 = vmatpush1.msra.mxu0 0.0
    %5282 = vmatprep.subr.mxu0 0.0
    %5283 = vmatpush1.msra.mxu0 0.0
    %5284 = vmatprep.subr.mxu0 0.0
    %5285 = vmatpush1.msra.mxu0 0.0
    %5286 = vmatprep.subr.mxu0 0.0
    %5287 = vmatpush1.msra.mxu0 0.0
    %5288 = vmatprep.subr.mxu0 0.0
    %5289 = vmatpush1.msra.mxu0 0.0
    %5290 = vmatprep.subr.mxu0 0.0
    %5291 = vmatpush1.msra.mxu0 0.0
    %5292 = vmatprep.subr.mxu0 0.0
    %5293 = vmatpush1.msra.mxu0 0.0
    %5294 = vmatprep.subr.mxu0 0.0
    %5295 = vmatpush1.msra.mxu0 0.0
    %5296 = vmatprep.subr.mxu0 0.0
    %5297 = vmatpush1.msra.mxu0 %v5261
    %5298 = vmatprep.subr.mxu0 0.0
    %5299 = vmatpush2.msra.mxu0 0.0
    %5300 = vmatprep.subr.mxu0 0.0
    %5301 = vmatpush2.msra.mxu0 0.0
    %5302 = vmatprep.subr.mxu0 0.0
    %5303 = vmatpush2.msra.mxu0 0.0
    %5304 = vmatprep.subr.mxu0 0.0
    %5305 = vmatpush2.msra.mxu0 0.0
    %5306 = vmatprep.subr.mxu0 0.0
    %5307 = vmatpush2.msra.mxu0 0.0
    %5308 = vmatprep.subr.mxu0 0.0
    %5309 = vmatpush2.msra.mxu0 0.0
    %5310 = vmatprep.subr.mxu0 0.0
    %5311 = vmatpush2.msra.mxu0 0.0
    %5312 = vmatprep.subr.mxu0 0.0
    %5313 = vmatpush2.msra.mxu0 0.0
    %5314 = vmatprep.subr.mxu0 0.0
    %5315 = vmatpush2.msra.mxu0 0.0
    %5316 = vmatprep.subr.mxu0 0.0
    %5317 = vmatpush2.msra.mxu0 0.0
    %5318 = vmatprep.subr.mxu0 0.0
    %5319 = vmatpush2.msra.mxu0 0.0
    %5320 = vmatprep.subr.mxu0 0.0
    %5321 = vmatpush2.msra.mxu0 0.0
    %5322 = vmatprep.subr.mxu0 0.0
    %5323 = vmatpush2.msra.mxu0 0.0
    %5324 = vmatprep.subr.mxu0 0.0
    %5325 = vmatpush2.msra.mxu0 0.0
    %5326 = vmatprep.subr.mxu0 0.0
    %5327 = vmatpush2.msra.mxu0 0.0
    %5328 = vmatprep.subr.mxu0 0.0
    %5329 = vmatpush2.msra.mxu0 0.0
    %5330 = vmatprep.mubr.f32.mxu0 0.0
    %5331 = vmatmul.mubr.f32.gmra.mxu0 %v5264
    %v5332 = vpop.f32.mrf.mxu0
    %v5333 = vadd.f32 0.0, %v5332
    %v5334 = vpop.f32.mrf.mxu0
    %5335 = vdwg.mxu0
    %5336 = vrot.lane.b32.xlu0 %v3279, 96
    %v5337 = vpop.permute.xlu0 %5336
    %v5340 = vsel %vm1447, %v4645, 0
    %5342 = vmatprep.subr.mxu0 0.0
    %5343 = vmatpush1.msra.mxu0 0.0
    %5344 = vmatprep.subr.mxu0 0.0
    %5345 = vmatpush1.msra.mxu0 0.0
    %5346 = vmatprep.subr.mxu0 0.0
    %5347 = vmatpush1.msra.mxu0 0.0
    %5348 = vmatprep.subr.mxu0 0.0
    %5349 = vmatpush1.msra.mxu0 0.0
    %5350 = vmatprep.subr.mxu0 0.0
    %5351 = vmatpush1.msra.mxu0 0.0
    %5352 = vmatprep.subr.mxu0 0.0
    %5353 = vmatpush1.msra.mxu0 0.0
    %5354 = vmatprep.subr.mxu0 0.0
    %5355 = vmatpush1.msra.mxu0 0.0
    %5356 = vmatprep.subr.mxu0 0.0
    %5357 = vmatpush1.msra.mxu0 0.0
    %5358 = vmatprep.subr.mxu0 0.0
    %5359 = vmatpush1.msra.mxu0 0.0
    %5360 = vmatprep.subr.mxu0 0.0
    %5361 = vmatpush1.msra.mxu0 0.0
    %5362 = vmatprep.subr.mxu0 0.0
    %5363 = vmatpush1.msra.mxu0 0.0
    %5364 = vmatprep.subr.mxu0 0.0
    %5365 = vmatpush1.msra.mxu0 0.0
    %5366 = vmatprep.subr.mxu0 0.0
    %5367 = vmatpush1.msra.mxu0 0.0
    %5368 = vmatprep.subr.mxu0 0.0
    %5369 = vmatpush1.msra.mxu0 0.0
    %5370 = vmatprep.subr.mxu0 0.0
    %5371 = vmatpush1.msra.mxu0 0.0
    %5372 = vmatprep.subr.mxu0 0.0
    %5373 = vmatpush1.msra.mxu0 %v5337
    %5374 = vmatprep.subr.mxu0 0.0
    %5375 = vmatpush2.msra.mxu0 0.0
    %5376 = vmatprep.subr.mxu0 0.0
    %5377 = vmatpush2.msra.mxu0 0.0
    %5378 = vmatprep.subr.mxu0 0.0
    %5379 = vmatpush2.msra.mxu0 0.0
    %5380 = vmatprep.subr.mxu0 0.0
    %5381 = vmatpush2.msra.mxu0 0.0
    %5382 = vmatprep.subr.mxu0 0.0
    %5383 = vmatpush2.msra.mxu0 0.0
    %5384 = vmatprep.subr.mxu0 0.0
    %5385 = vmatpush2.msra.mxu0 0.0
    %5386 = vmatprep.subr.mxu0 0.0
    %5387 = vmatpush2.msra.mxu0 0.0
    %5388 = vmatprep.subr.mxu0 0.0
    %5389 = vmatpush2.msra.mxu0 0.0
    %5390 = vmatprep.subr.mxu0 0.0
    %5391 = vmatpush2.msra.mxu0 0.0
    %5392 = vmatprep.subr.mxu0 0.0
    %5393 = vmatpush2.msra.mxu0 0.0
    %5394 = vmatprep.subr.mxu0 0.0
    %5395 = vmatpush2.msra.mxu0 0.0
    %5396 = vmatprep.subr.mxu0 0.0
    %5397 = vmatpush2.msra.mxu0 0.0
    %5398 = vmatprep.subr.mxu0 0.0
    %5399 = vmatpush2.msra.mxu0 0.0
    %5400 = vmatprep.subr.mxu0 0.0
    %5401 = vmatpush2.msra.mxu0 0.0
    %5402 = vmatprep.subr.mxu0 0.0
    %5403 = vmatpush2.msra.mxu0 0.0
    %5404 = vmatprep.subr.mxu0 0.0
    %5405 = vmatpush2.msra.mxu0 0.0
    %5406 = vmatprep.mubr.f32.mxu0 0.0
    %5407 = vmatmul.mubr.f32.gmra.mxu0 %v5340
    %v5408 = vpop.f32.mrf.mxu0
    %v5409 = vadd.f32 0.0, %v5408
    %v5410 = vpop.f32.mrf.mxu0
    %5411 = vdwg.mxu0
    %5412 = vrot.lane.b32.xlu0 %v3281, 96
    %v5413 = vpop.permute.xlu0 %5412
    %v5416 = vsel %vm1447, %v4646, 0
    %5418 = vmatprep.subr.mxu0 0.0
    %5419 = vmatpush1.msra.mxu0 0.0
    %5420 = vmatprep.subr.mxu0 0.0
    %5421 = vmatpush1.msra.mxu0 0.0
    %5422 = vmatprep.subr.mxu0 0.0
    %5423 = vmatpush1.msra.mxu0 0.0
    %5424 = vmatprep.subr.mxu0 0.0
    %5425 = vmatpush1.msra.mxu0 0.0
    %5426 = vmatprep.subr.mxu0 0.0
    %5427 = vmatpush1.msra.mxu0 0.0
    %5428 = vmatprep.subr.mxu0 0.0
    %5429 = vmatpush1.msra.mxu0 0.0
    %5430 = vmatprep.subr.mxu0 0.0
    %5431 = vmatpush1.msra.mxu0 0.0
    %5432 = vmatprep.subr.mxu0 0.0
    %5433 = vmatpush1.msra.mxu0 0.0
    %5434 = vmatprep.subr.mxu0 0.0
    %5435 = vmatpush1.msra.mxu0 0.0
    %5436 = vmatprep.subr.mxu0 0.0
    %5437 = vmatpush1.msra.mxu0 0.0
    %5438 = vmatprep.subr.mxu0 0.0
    %5439 = vmatpush1.msra.mxu0 0.0
    %5440 = vmatprep.subr.mxu0 0.0
    %5441 = vmatpush1.msra.mxu0 0.0
    %5442 = vmatprep.subr.mxu0 0.0
    %5443 = vmatpush1.msra.mxu0 0.0
    %5444 = vmatprep.subr.mxu0 0.0
    %5445 = vmatpush1.msra.mxu0 0.0
    %5446 = vmatprep.subr.mxu0 0.0
    %5447 = vmatpush1.msra.mxu0 0.0
    %5448 = vmatprep.subr.mxu0 0.0
    %5449 = vmatpush1.msra.mxu0 %v5413
    %5450 = vmatprep.subr.mxu0 0.0
    %5451 = vmatpush2.msra.mxu0 0.0
    %5452 = vmatprep.subr.mxu0 0.0
    %5453 = vmatpush2.msra.mxu0 0.0
    %5454 = vmatprep.subr.mxu0 0.0
    %5455 = vmatpush2.msra.mxu0 0.0
    %5456 = vmatprep.subr.mxu0 0.0
    %5457 = vmatpush2.msra.mxu0 0.0
    %5458 = vmatprep.subr.mxu0 0.0
    %5459 = vmatpush2.msra.mxu0 0.0
    %5460 = vmatprep.subr.mxu0 0.0
    %5461 = vmatpush2.msra.mxu0 0.0
    %5462 = vmatprep.subr.mxu0 0.0
    %5463 = vmatpush2.msra.mxu0 0.0
    %5464 = vmatprep.subr.mxu0 0.0
    %5465 = vmatpush2.msra.mxu0 0.0
    %5466 = vmatprep.subr.mxu0 0.0
    %5467 = vmatpush2.msra.mxu0 0.0
    %5468 = vmatprep.subr.mxu0 0.0
    %5469 = vmatpush2.msra.mxu0 0.0
    %5470 = vmatprep.subr.mxu0 0.0
    %5471 = vmatpush2.msra.mxu0 0.0
    %5472 = vmatprep.subr.mxu0 0.0
    %5473 = vmatpush2.msra.mxu0 0.0
    %5474 = vmatprep.subr.mxu0 0.0
    %5475 = vmatpush2.msra.mxu0 0.0
    %5476 = vmatprep.subr.mxu0 0.0
    %5477 = vmatpush2.msra.mxu0 0.0
    %5478 = vmatprep.subr.mxu0 0.0
    %5479 = vmatpush2.msra.mxu0 0.0
    %5480 = vmatprep.subr.mxu0 0.0
    %5481 = vmatpush2.msra.mxu0 0.0
    %5482 = vmatprep.mubr.f32.mxu0 0.0
    %5483 = vmatmul.mubr.f32.gmra.mxu0 %v5416
    %v5484 = vpop.f32.mrf.mxu0
    %v5485 = vadd.f32 0.0, %v5484
    %v5486 = vpop.f32.mrf.mxu0
    %5487 = vdwg.mxu0
    %5488 = vrot.lane.b32.xlu0 %v3283, 96
    %v5489 = vpop.permute.xlu0 %5488
    %v5492 = vsel %vm1447, %v4647, 0
    %5494 = vmatprep.subr.mxu0 0.0
    %5495 = vmatpush1.msra.mxu0 0.0
    %5496 = vmatprep.subr.mxu0 0.0
    %5497 = vmatpush1.msra.mxu0 0.0
    %5498 = vmatprep.subr.mxu0 0.0
    %5499 = vmatpush1.msra.mxu0 0.0
    %5500 = vmatprep.subr.mxu0 0.0
    %5501 = vmatpush1.msra.mxu0 0.0
    %5502 = vmatprep.subr.mxu0 0.0
    %5503 = vmatpush1.msra.mxu0 0.0
    %5504 = vmatprep.subr.mxu0 0.0
    %5505 = vmatpush1.msra.mxu0 0.0
    %5506 = vmatprep.subr.mxu0 0.0
    %5507 = vmatpush1.msra.mxu0 0.0
    %5508 = vmatprep.subr.mxu0 0.0
    %5509 = vmatpush1.msra.mxu0 0.0
    %5510 = vmatprep.subr.mxu0 0.0
    %5511 = vmatpush1.msra.mxu0 0.0
    %5512 = vmatprep.subr.mxu0 0.0
    %5513 = vmatpush1.msra.mxu0 0.0
    %5514 = vmatprep.subr.mxu0 0.0
    %5515 = vmatpush1.msra.mxu0 0.0
    %5516 = vmatprep.subr.mxu0 0.0
    %5517 = vmatpush1.msra.mxu0 0.0
    %5518 = vmatprep.subr.mxu0 0.0
    %5519 = vmatpush1.msra.mxu0 0.0
    %5520 = vmatprep.subr.mxu0 0.0
    %5521 = vmatpush1.msra.mxu0 0.0
    %5522 = vmatprep.subr.mxu0 0.0
    %5523 = vmatpush1.msra.mxu0 0.0
    %5524 = vmatprep.subr.mxu0 0.0
    %5525 = vmatpush1.msra.mxu0 %v5489
    %5526 = vmatprep.subr.mxu0 0.0
    %5527 = vmatpush2.msra.mxu0 0.0
    %5528 = vmatprep.subr.mxu0 0.0
    %5529 = vmatpush2.msra.mxu0 0.0
    %5530 = vmatprep.subr.mxu0 0.0
    %5531 = vmatpush2.msra.mxu0 0.0
    %5532 = vmatprep.subr.mxu0 0.0
    %5533 = vmatpush2.msra.mxu0 0.0
    %5534 = vmatprep.subr.mxu0 0.0
    %5535 = vmatpush2.msra.mxu0 0.0
    %5536 = vmatprep.subr.mxu0 0.0
    %5537 = vmatpush2.msra.mxu0 0.0
    %5538 = vmatprep.subr.mxu0 0.0
    %5539 = vmatpush2.msra.mxu0 0.0
    %5540 = vmatprep.subr.mxu0 0.0
    %5541 = vmatpush2.msra.mxu0 0.0
    %5542 = vmatprep.subr.mxu0 0.0
    %5543 = vmatpush2.msra.mxu0 0.0
    %5544 = vmatprep.subr.mxu0 0.0
    %5545 = vmatpush2.msra.mxu0 0.0
    %5546 = vmatprep.subr.mxu0 0.0
    %5547 = vmatpush2.msra.mxu0 0.0
    %5548 = vmatprep.subr.mxu0 0.0
    %5549 = vmatpush2.msra.mxu0 0.0
    %5550 = vmatprep.subr.mxu0 0.0
    %5551 = vmatpush2.msra.mxu0 0.0
    %5552 = vmatprep.subr.mxu0 0.0
    %5553 = vmatpush2.msra.mxu0 0.0
    %5554 = vmatprep.subr.mxu0 0.0
    %5555 = vmatpush2.msra.mxu0 0.0
    %5556 = vmatprep.subr.mxu0 0.0
    %5557 = vmatpush2.msra.mxu0 0.0
    %5558 = vmatprep.mubr.f32.mxu0 0.0
    %5559 = vmatmul.mubr.f32.gmra.mxu0 %v5492
    %v5560 = vpop.f32.mrf.mxu0
    %v5561 = vadd.f32 0.0, %v5560
    %v5562 = vpop.f32.mrf.mxu0
    %5563 = vdwg.mxu0
    %5564 = vrot.lane.b32.xlu0 %v3285, 96
    %v5565 = vpop.permute.xlu0 %5564
    %v5568 = vsel %vm1447, %v4648, 0
    %5570 = vmatprep.subr.mxu0 0.0
    %5571 = vmatpush1.msra.mxu0 0.0
    %5572 = vmatprep.subr.mxu0 0.0
    %5573 = vmatpush1.msra.mxu0 0.0
    %5574 = vmatprep.subr.mxu0 0.0
    %5575 = vmatpush1.msra.mxu0 0.0
    %5576 = vmatprep.subr.mxu0 0.0
    %5577 = vmatpush1.msra.mxu0 0.0
    %5578 = vmatprep.subr.mxu0 0.0
    %5579 = vmatpush1.msra.mxu0 0.0
    %5580 = vmatprep.subr.mxu0 0.0
    %5581 = vmatpush1.msra.mxu0 0.0
    %5582 = vmatprep.subr.mxu0 0.0
    %5583 = vmatpush1.msra.mxu0 0.0
    %5584 = vmatprep.subr.mxu0 0.0
    %5585 = vmatpush1.msra.mxu0 0.0
    %5586 = vmatprep.subr.mxu0 0.0
    %5587 = vmatpush1.msra.mxu0 0.0
    %5588 = vmatprep.subr.mxu0 0.0
    %5589 = vmatpush1.msra.mxu0 0.0
    %5590 = vmatprep.subr.mxu0 0.0
    %5591 = vmatpush1.msra.mxu0 0.0
    %5592 = vmatprep.subr.mxu0 0.0
    %5593 = vmatpush1.msra.mxu0 0.0
    %5594 = vmatprep.subr.mxu0 0.0
    %5595 = vmatpush1.msra.mxu0 0.0
    %5596 = vmatprep.subr.mxu0 0.0
    %5597 = vmatpush1.msra.mxu0 0.0
    %5598 = vmatprep.subr.mxu0 0.0
    %5599 = vmatpush1.msra.mxu0 0.0
    %5600 = vmatprep.subr.mxu0 0.0
    %5601 = vmatpush1.msra.mxu0 %v5565
    %5602 = vmatprep.subr.mxu0 0.0
    %5603 = vmatpush2.msra.mxu0 0.0
    %5604 = vmatprep.subr.mxu0 0.0
    %5605 = vmatpush2.msra.mxu0 0.0
    %5606 = vmatprep.subr.mxu0 0.0
    %5607 = vmatpush2.msra.mxu0 0.0
    %5608 = vmatprep.subr.mxu0 0.0
    %5609 = vmatpush2.msra.mxu0 0.0
    %5610 = vmatprep.subr.mxu0 0.0
    %5611 = vmatpush2.msra.mxu0 0.0
    %5612 = vmatprep.subr.mxu0 0.0
    %5613 = vmatpush2.msra.mxu0 0.0
    %5614 = vmatprep.subr.mxu0 0.0
    %5615 = vmatpush2.msra.mxu0 0.0
    %5616 = vmatprep.subr.mxu0 0.0
    %5617 = vmatpush2.msra.mxu0 0.0
    %5618 = vmatprep.subr.mxu0 0.0
    %5619 = vmatpush2.msra.mxu0 0.0
    %5620 = vmatprep.subr.mxu0 0.0
    %5621 = vmatpush2.msra.mxu0 0.0
    %5622 = vmatprep.subr.mxu0 0.0
    %5623 = vmatpush2.msra.mxu0 0.0
    %5624 = vmatprep.subr.mxu0 0.0
    %5625 = vmatpush2.msra.mxu0 0.0
    %5626 = vmatprep.subr.mxu0 0.0
    %5627 = vmatpush2.msra.mxu0 0.0
    %5628 = vmatprep.subr.mxu0 0.0
    %5629 = vmatpush2.msra.mxu0 0.0
    %5630 = vmatprep.subr.mxu0 0.0
    %5631 = vmatpush2.msra.mxu0 0.0
    %5632 = vmatprep.subr.mxu0 0.0
    %5633 = vmatpush2.msra.mxu0 0.0
    %5634 = vmatprep.mubr.f32.mxu0 0.0
    %5635 = vmatmul.mubr.f32.gmra.mxu0 %v5568
    %v5636 = vpop.f32.mrf.mxu0
    %v5637 = vadd.f32 0.0, %v5636
    %v5638 = vpop.f32.mrf.mxu0
    %5639 = vdwg.mxu0
    %5640 = vrot.lane.b32.xlu0 %v3287, 96
    %v5641 = vpop.permute.xlu0 %5640
    %v5644 = vsel %vm1447, %v4649, 0
    %5646 = vmatprep.subr.mxu0 0.0
    %5647 = vmatpush1.msra.mxu0 0.0
    %5648 = vmatprep.subr.mxu0 0.0
    %5649 = vmatpush1.msra.mxu0 0.0
    %5650 = vmatprep.subr.mxu0 0.0
    %5651 = vmatpush1.msra.mxu0 0.0
    %5652 = vmatprep.subr.mxu0 0.0
    %5653 = vmatpush1.msra.mxu0 0.0
    %5654 = vmatprep.subr.mxu0 0.0
    %5655 = vmatpush1.msra.mxu0 0.0
    %5656 = vmatprep.subr.mxu0 0.0
    %5657 = vmatpush1.msra.mxu0 0.0
    %5658 = vmatprep.subr.mxu0 0.0
    %5659 = vmatpush1.msra.mxu0 0.0
    %5660 = vmatprep.subr.mxu0 0.0
    %5661 = vmatpush1.msra.mxu0 0.0
    %5662 = vmatprep.subr.mxu0 0.0
    %5663 = vmatpush1.msra.mxu0 0.0
    %5664 = vmatprep.subr.mxu0 0.0
    %5665 = vmatpush1.msra.mxu0 0.0
    %5666 = vmatprep.subr.mxu0 0.0
    %5667 = vmatpush1.msra.mxu0 0.0
    %5668 = vmatprep.subr.mxu0 0.0
    %5669 = vmatpush1.msra.mxu0 0.0
    %5670 = vmatprep.subr.mxu0 0.0
    %5671 = vmatpush1.msra.mxu0 0.0
    %5672 = vmatprep.subr.mxu0 0.0
    %5673 = vmatpush1.msra.mxu0 0.0
    %5674 = vmatprep.subr.mxu0 0.0
    %5675 = vmatpush1.msra.mxu0 0.0
    %5676 = vmatprep.subr.mxu0 0.0
    %5677 = vmatpush1.msra.mxu0 %v5641
    %5678 = vmatprep.subr.mxu0 0.0
    %5679 = vmatpush2.msra.mxu0 0.0
    %5680 = vmatprep.subr.mxu0 0.0
    %5681 = vmatpush2.msra.mxu0 0.0
    %5682 = vmatprep.subr.mxu0 0.0
    %5683 = vmatpush2.msra.mxu0 0.0
    %5684 = vmatprep.subr.mxu0 0.0
    %5685 = vmatpush2.msra.mxu0 0.0
    %5686 = vmatprep.subr.mxu0 0.0
    %5687 = vmatpush2.msra.mxu0 0.0
    %5688 = vmatprep.subr.mxu0 0.0
    %5689 = vmatpush2.msra.mxu0 0.0
    %5690 = vmatprep.subr.mxu0 0.0
    %5691 = vmatpush2.msra.mxu0 0.0
    %5692 = vmatprep.subr.mxu0 0.0
    %5693 = vmatpush2.msra.mxu0 0.0
    %5694 = vmatprep.subr.mxu0 0.0
    %5695 = vmatpush2.msra.mxu0 0.0
    %5696 = vmatprep.subr.mxu0 0.0
    %5697 = vmatpush2.msra.mxu0 0.0
    %5698 = vmatprep.subr.mxu0 0.0
    %5699 = vmatpush2.msra.mxu0 0.0
    %5700 = vmatprep.subr.mxu0 0.0
    %5701 = vmatpush2.msra.mxu0 0.0
    %5702 = vmatprep.subr.mxu0 0.0
    %5703 = vmatpush2.msra.mxu0 0.0
    %5704 = vmatprep.subr.mxu0 0.0
    %5705 = vmatpush2.msra.mxu0 0.0
    %5706 = vmatprep.subr.mxu0 0.0
    %5707 = vmatpush2.msra.mxu0 0.0
    %5708 = vmatprep.subr.mxu0 0.0
    %5709 = vmatpush2.msra.mxu0 0.0
    %5710 = vmatprep.mubr.f32.mxu0 0.0
    %5711 = vmatmul.mubr.f32.gmra.mxu0 %v5644
    %v5712 = vpop.f32.mrf.mxu0
    %v5713 = vadd.f32 0.0, %v5712
    %v5714 = vpop.f32.mrf.mxu0
    %5715 = vdwg.mxu0
    %5716 = vrot.lane.b32.xlu0 %v3289, 96
    %v5717 = vpop.permute.xlu0 %5716
    %v5720 = vsel %vm1447, %v4650, 0
    %5722 = vmatprep.subr.mxu0 0.0
    %5723 = vmatpush1.msra.mxu0 0.0
    %5724 = vmatprep.subr.mxu0 0.0
    %5725 = vmatpush1.msra.mxu0 0.0
    %5726 = vmatprep.subr.mxu0 0.0
    %5727 = vmatpush1.msra.mxu0 0.0
    %5728 = vmatprep.subr.mxu0 0.0
    %5729 = vmatpush1.msra.mxu0 0.0
    %5730 = vmatprep.subr.mxu0 0.0
    %5731 = vmatpush1.msra.mxu0 0.0
    %5732 = vmatprep.subr.mxu0 0.0
    %5733 = vmatpush1.msra.mxu0 0.0
    %5734 = vmatprep.subr.mxu0 0.0
    %5735 = vmatpush1.msra.mxu0 0.0
    %5736 = vmatprep.subr.mxu0 0.0
    %5737 = vmatpush1.msra.mxu0 0.0
    %5738 = vmatprep.subr.mxu0 0.0
    %5739 = vmatpush1.msra.mxu0 0.0
    %5740 = vmatprep.subr.mxu0 0.0
    %5741 = vmatpush1.msra.mxu0 0.0
    %5742 = vmatprep.subr.mxu0 0.0
    %5743 = vmatpush1.msra.mxu0 0.0
    %5744 = vmatprep.subr.mxu0 0.0
    %5745 = vmatpush1.msra.mxu0 0.0
    %5746 = vmatprep.subr.mxu0 0.0
    %5747 = vmatpush1.msra.mxu0 0.0
    %5748 = vmatprep.subr.mxu0 0.0
    %5749 = vmatpush1.msra.mxu0 0.0
    %5750 = vmatprep.subr.mxu0 0.0
    %5751 = vmatpush1.msra.mxu0 0.0
    %5752 = vmatprep.subr.mxu0 0.0
    %5753 = vmatpush1.msra.mxu0 %v5717
    %5754 = vmatprep.subr.mxu0 0.0
    %5755 = vmatpush2.msra.mxu0 0.0
    %5756 = vmatprep.subr.mxu0 0.0
    %5757 = vmatpush2.msra.mxu0 0.0
    %5758 = vmatprep.subr.mxu0 0.0
    %5759 = vmatpush2.msra.mxu0 0.0
    %5760 = vmatprep.subr.mxu0 0.0
    %5761 = vmatpush2.msra.mxu0 0.0
    %5762 = vmatprep.subr.mxu0 0.0
    %5763 = vmatpush2.msra.mxu0 0.0
    %5764 = vmatprep.subr.mxu0 0.0
    %5765 = vmatpush2.msra.mxu0 0.0
    %5766 = vmatprep.subr.mxu0 0.0
    %5767 = vmatpush2.msra.mxu0 0.0
    %5768 = vmatprep.subr.mxu0 0.0
    %5769 = vmatpush2.msra.mxu0 0.0
    %5770 = vmatprep.subr.mxu0 0.0
    %5771 = vmatpush2.msra.mxu0 0.0
    %5772 = vmatprep.subr.mxu0 0.0
    %5773 = vmatpush2.msra.mxu0 0.0
    %5774 = vmatprep.subr.mxu0 0.0
    %5775 = vmatpush2.msra.mxu0 0.0
    %5776 = vmatprep.subr.mxu0 0.0
    %5777 = vmatpush2.msra.mxu0 0.0
    %5778 = vmatprep.subr.mxu0 0.0
    %5779 = vmatpush2.msra.mxu0 0.0
    %5780 = vmatprep.subr.mxu0 0.0
    %5781 = vmatpush2.msra.mxu0 0.0
    %5782 = vmatprep.subr.mxu0 0.0
    %5783 = vmatpush2.msra.mxu0 0.0
    %5784 = vmatprep.subr.mxu0 0.0
    %5785 = vmatpush2.msra.mxu0 0.0
    %5786 = vmatprep.mubr.f32.mxu0 0.0
    %5787 = vmatmul.mubr.f32.gmra.mxu0 %v5720
    %v5788 = vpop.f32.mrf.mxu0
    %v5789 = vadd.f32 0.0, %v5788
    %v5790 = vpop.f32.mrf.mxu0
    %5791 = vdwg.mxu0
    %5792 = vrot.lane.b32.xlu0 %v3291, 96
    %v5793 = vpop.permute.xlu0 %5792
    %v5796 = vsel %vm1447, %v4651, 0
    %5798 = vmatprep.subr.mxu0 0.0
    %5799 = vmatpush1.msra.mxu0 0.0
    %5800 = vmatprep.subr.mxu0 0.0
    %5801 = vmatpush1.msra.mxu0 0.0
    %5802 = vmatprep.subr.mxu0 0.0
    %5803 = vmatpush1.msra.mxu0 0.0
    %5804 = vmatprep.subr.mxu0 0.0
    %5805 = vmatpush1.msra.mxu0 0.0
    %5806 = vmatprep.subr.mxu0 0.0
    %5807 = vmatpush1.msra.mxu0 0.0
    %5808 = vmatprep.subr.mxu0 0.0
    %5809 = vmatpush1.msra.mxu0 0.0
    %5810 = vmatprep.subr.mxu0 0.0
    %5811 = vmatpush1.msra.mxu0 0.0
    %5812 = vmatprep.subr.mxu0 0.0
    %5813 = vmatpush1.msra.mxu0 0.0
    %5814 = vmatprep.subr.mxu0 0.0
    %5815 = vmatpush1.msra.mxu0 0.0
    %5816 = vmatprep.subr.mxu0 0.0
    %5817 = vmatpush1.msra.mxu0 0.0
    %5818 = vmatprep.subr.mxu0 0.0
    %5819 = vmatpush1.msra.mxu0 0.0
    %5820 = vmatprep.subr.mxu0 0.0
    %5821 = vmatpush1.msra.mxu0 0.0
    %5822 = vmatprep.subr.mxu0 0.0
    %5823 = vmatpush1.msra.mxu0 0.0
    %5824 = vmatprep.subr.mxu0 0.0
    %5825 = vmatpush1.msra.mxu0 0.0
    %5826 = vmatprep.subr.mxu0 0.0
    %5827 = vmatpush1.msra.mxu0 0.0
    %5828 = vmatprep.subr.mxu0 0.0
    %5829 = vmatpush1.msra.mxu0 %v5793
    %5830 = vmatprep.subr.mxu0 0.0
    %5831 = vmatpush2.msra.mxu0 0.0
    %5832 = vmatprep.subr.mxu0 0.0
    %5833 = vmatpush2.msra.mxu0 0.0
    %5834 = vmatprep.subr.mxu0 0.0
    %5835 = vmatpush2.msra.mxu0 0.0
    %5836 = vmatprep.subr.mxu0 0.0
    %5837 = vmatpush2.msra.mxu0 0.0
    %5838 = vmatprep.subr.mxu0 0.0
    %5839 = vmatpush2.msra.mxu0 0.0
    %5840 = vmatprep.subr.mxu0 0.0
    %5841 = vmatpush2.msra.mxu0 0.0
    %5842 = vmatprep.subr.mxu0 0.0
    %5843 = vmatpush2.msra.mxu0 0.0
    %5844 = vmatprep.subr.mxu0 0.0
    %5845 = vmatpush2.msra.mxu0 0.0
    %5846 = vmatprep.subr.mxu0 0.0
    %5847 = vmatpush2.msra.mxu0 0.0
    %5848 = vmatprep.subr.mxu0 0.0
    %5849 = vmatpush2.msra.mxu0 0.0
    %5850 = vmatprep.subr.mxu0 0.0
    %5851 = vmatpush2.msra.mxu0 0.0
    %5852 = vmatprep.subr.mxu0 0.0
    %5853 = vmatpush2.msra.mxu0 0.0
    %5854 = vmatprep.subr.mxu0 0.0
    %5855 = vmatpush2.msra.mxu0 0.0
    %5856 = vmatprep.subr.mxu0 0.0
    %5857 = vmatpush2.msra.mxu0 0.0
    %5858 = vmatprep.subr.mxu0 0.0
    %5859 = vmatpush2.msra.mxu0 0.0
    %5860 = vmatprep.subr.mxu0 0.0
    %5861 = vmatpush2.msra.mxu0 0.0
    %5862 = vmatprep.mubr.f32.mxu0 0.0
    %5863 = vmatmul.mubr.f32.gmra.mxu0 %v5796
    %v5864 = vpop.f32.mrf.mxu0
    %v5865 = vadd.f32 0.0, %v5864
    %v5866 = vpop.f32.mrf.mxu0
    %5867 = vdwg.mxu0
    %5870 = vrot.lane.b32.xlu0 %v4877, 4
    %v5871 = vpop.permute.xlu0 %5870
    %5872 = vrot.lane.b32.xlu0 %v4953, 4
    %v5873 = vpop.permute.xlu0 %5872
    %5878 = vrot.lane.b32.xlu0 %v5029, 8
    %v5879 = vpop.permute.xlu0 %5878
    %5880 = vrot.lane.b32.xlu0 %v5105, 8
    %v5881 = vpop.permute.xlu0 %5880
    %5886 = vrot.lane.b32.xlu0 %v5181, 12
    %v5887 = vpop.permute.xlu0 %5886
    %5888 = vrot.lane.b32.xlu0 %v5257, 12
    %v5889 = vpop.permute.xlu0 %5888
    %5894 = vrot.lane.b32.xlu0 %v5333, 16
    %v5895 = vpop.permute.xlu0 %5894
    %5896 = vrot.lane.b32.xlu0 %v5409, 16
    %v5897 = vpop.permute.xlu0 %5896
    %5902 = vrot.lane.b32.xlu0 %v5485, 20
    %v5903 = vpop.permute.xlu0 %5902
    %5904 = vrot.lane.b32.xlu0 %v5561, 20
    %v5905 = vpop.permute.xlu0 %5904
    %5910 = vrot.lane.b32.xlu0 %v5637, 24
    %v5911 = vpop.permute.xlu0 %5910
    %5912 = vrot.lane.b32.xlu0 %v5713, 24
    %v5913 = vpop.permute.xlu0 %5912
    %5918 = vrot.lane.b32.xlu0 %v5789, 28
    %v5919 = vpop.permute.xlu0 %5918
    %5920 = vrot.lane.b32.xlu0 %v5865, 28
    %v5921 = vpop.permute.xlu0 %5920
    %v5924 = vsel %vm232, %v4725, %v5871
    %v5925 = vsel %vm232, %v4801, %v5873
    %v5926 = vsel %vm1447, %v5924, %v5879
    %v5927 = vsel %vm1447, %v5925, %v5881
    %v5928 = vsel %vm2900, %v5926, %v5887
    %v5929 = vsel %vm2900, %v5927, %v5889
    %v5930 = vsel %vm2903, %v5928, %v5895
    %v5931 = vsel %vm2903, %v5929, %v5897
    %v5932 = vsel %vm2906, %v5930, %v5903
    %v5933 = vsel %vm2906, %v5931, %v5905
    %v5934 = vsel %vm2909, %v5932, %v5911
    %v5935 = vsel %vm2909, %v5933, %v5913
    %v5936 = vsel %vm2912, %v5934, %v5919
    %v5937 = vsel %vm2912, %v5935, %v5921
    %v5938 = vld [vmem:[%s10] sm:$0xff]
    %v5939 = vld [vmem:[%s10 + $0x8] sm:$0xff]
    %v5940 = vld [vmem:[%s10 + $0x10] sm:$0xff]
    %v5941 = vld [vmem:[%s10 + $0x18] sm:$0xff]
    %v5942 = vld [vmem:[%s11] sm:$0x1]
    %v5944 = vlaneseq
    %v5945 = vshrl.u32 %v5944, 7
    %v5946 = vsub.s32 0, %v5945
    %v5947 = vrot.slane %v5942, %v5946
    %v5950 = vsel %vm118, %v5936, 0
    %v5953 = vsel %vm118, %v5937, 0
    %5955 = vmatprep.subr.mxu0 0.0
    %5956 = vmatpush1.msra.mxu0 0.0
    %5957 = vmatprep.subr.mxu0 0.0
    %5958 = vmatpush1.msra.mxu0 0.0
    %5959 = vmatprep.subr.mxu0 0.0
    %5960 = vmatpush1.msra.mxu0 0.0
    %5961 = vmatprep.subr.mxu0 0.0
    %5962 = vmatpush1.msra.mxu0 0.0
    %5963 = vmatprep.subr.mxu0 0.0
    %5964 = vmatpush1.msra.mxu0 0.0
    %5965 = vmatprep.subr.mxu0 0.0
    %5966 = vmatpush1.msra.mxu0 0.0
    %5967 = vmatprep.subr.mxu0 0.0
    %5968 = vmatpush1.msra.mxu0 0.0
    %5969 = vmatprep.subr.mxu0 0.0
    %5970 = vmatpush1.msra.mxu0 0.0
    %5971 = vmatprep.subr.mxu0 0.0
    %5972 = vmatpush1.msra.mxu0 0.0
    %5973 = vmatprep.subr.mxu0 0.0
    %5974 = vmatpush1.msra.mxu0 0.0
    %5975 = vmatprep.subr.mxu0 0.0
    %5976 = vmatpush1.msra.mxu0 0.0
    %5977 = vmatprep.subr.mxu0 0.0
    %5978 = vmatpush1.msra.mxu0 0.0
    %5979 = vmatprep.subr.mxu0 0.0
    %5980 = vmatpush1.msra.mxu0 %v5941
    %5981 = vmatprep.subr.mxu0 0.0
    %5982 = vmatpush1.msra.mxu0 %v5940
    %5983 = vmatprep.subr.mxu0 0.0
    %5984 = vmatpush1.msra.mxu0 %v5939
    %5985 = vmatprep.subr.mxu0 0.0
    %5986 = vmatpush1.msra.mxu0 %v5938
    %5987 = vmatprep.subr.mxu0 0.0
    %5988 = vmatpush2.msra.mxu0 0.0
    %5989 = vmatprep.subr.mxu0 0.0
    %5990 = vmatpush2.msra.mxu0 0.0
    %5991 = vmatprep.subr.mxu0 0.0
    %5992 = vmatpush2.msra.mxu0 0.0
    %5993 = vmatprep.subr.mxu0 0.0
    %5994 = vmatpush2.msra.mxu0 0.0
    %5995 = vmatprep.subr.mxu0 0.0
    %5996 = vmatpush2.msra.mxu0 0.0
    %5997 = vmatprep.subr.mxu0 0.0
    %5998 = vmatpush2.msra.mxu0 0.0
    %5999 = vmatprep.subr.mxu0 0.0
    %6000 = vmatpush2.msra.mxu0 0.0
    %6001 = vmatprep.subr.mxu0 0.0
    %6002 = vmatpush2.msra.mxu0 0.0
    %6003 = vmatprep.subr.mxu0 0.0
    %6004 = vmatpush2.msra.mxu0 0.0
    %6005 = vmatprep.subr.mxu0 0.0
    %6006 = vmatpush2.msra.mxu0 0.0
    %6007 = vmatprep.subr.mxu0 0.0
    %6008 = vmatpush2.msra.mxu0 0.0
    %6009 = vmatprep.subr.mxu0 0.0
    %6010 = vmatpush2.msra.mxu0 0.0
    %6011 = vmatprep.subr.mxu0 0.0
    %6012 = vmatpush2.msra.mxu0 0.0
    %6013 = vmatprep.subr.mxu0 0.0
    %6014 = vmatpush2.msra.mxu0 0.0
    %6015 = vmatprep.subr.mxu0 0.0
    %6016 = vmatpush2.msra.mxu0 0.0
    %6017 = vmatprep.subr.mxu0 0.0
    %6018 = vmatpush2.msra.mxu0 0.0
    %6019 = vmatprep.mubr.f32.mxu0 0.0
    %6020 = vmatmul.mubr.f32.gmra.mxu0 %v5950
    %v6021 = vpop.f32.mrf.mxu0
    %v6022 = vadd.f32 %v5947, %v6021
    %v6023 = vpop.f32.mrf.mxu0
    %6024 = vmatprep.mubr.f32.mxu0 0.0
    %6025 = vmatmul.mubr.f32.gmra.mxu0 %v5953
    %v6026 = vpop.f32.mrf.mxu0
    %v6027 = vadd.f32 %v5947, %v6026
    %v6028 = vpop.f32.mrf.mxu0
    %6029 = vdwg.mxu0
    %v6030 = vadd.f32 %v6022, %v3046
    %v6031 = vadd.f32 %v6027, %v3047
    %v6032 = vsel %vm118, %v6030, 0.0
    %6033 = vadd.xlane.f32.xlu0 %v6032
    %v6034 = vpop.xlane.xlu0 %6033
    %v6035 = vsel %vm118, %v6031, 0.0
    %6036 = vadd.xlane.f32.xlu0 %v6035
    %v6037 = vpop.xlane.xlu0 %6036
    %v6038 = vmul.f32 %v6034, %v3015
    %v6039 = vmul.f32 %v6037, %v3015
    %v6040 = vsub.f32 %v6030, %v6038
    %v6041 = vsub.f32 %v6031, %v6039
    %v6042 = vmul.f32 %v6040, %v6040
    %v6043 = vmul.f32 %v6041, %v6041
    %v6044 = vsel %vm118, %v6042, 0.0
    %6045 = vadd.xlane.f32.xlu0 %v6044
    %v6046 = vpop.xlane.xlu0 %6045
    %v6047 = vsel %vm118, %v6043, 0.0
    %6048 = vadd.xlane.f32.xlu0 %v6047
    %v6049 = vpop.xlane.xlu0 %6048
    %v6050 = vmul.f32 %v6046, %v3015
    %v6051 = vmul.f32 %v6049, %v3015
    %v6052 = vadd.f32 %v6050, 1e-05
    %v6053 = vadd.f32 %v6051, 1e-05
    %v6054 = vrsqrt.pop %v6052
    %v6055 = vrsqrt.pop %v6053
    %v6056 = vmul.f32 %v6040, %v6054
    %v6057 = vmul.f32 %v6041, %v6055
    %v6058 = vlaneseq
    %v6059 = vshrl.u32 %v6058, 7
    %v6060 = vsub.s32 1, %v6059
    %v6061 = vrot.slane %v105, %v6060
    %v6062 = vmul.f32 %v6056, %v6061
    %v6063 = vmul.f32 %v6057, %v6061
    %v6064 = vlaneseq
    %v6065 = vshrl.u32 %v6064, 7
    %v6066 = vsub.s32 1, %v6065
    %v6067 = vrot.slane %v106, %v6066
    %v6068 = vadd.f32 %v6062, %v6067
    %v6069 = vadd.f32 %v6063, %v6067
    %v6070 = vld [vmem:[#allocation7] sm:$0xff]
    %v6071 = vld [vmem:[#allocation7 + $0x8] sm:$0xff]
    %v6072 = vld [vmem:[#allocation7 + $0x10] sm:$0xff]
    %v6073 = vld [vmem:[#allocation7 + $0x18] sm:$0xff]
    %v6074 = vld [vmem:[%s13] sm:$0x1]
    %v6076 = vlaneseq
    %v6077 = vshrl.u32 %v6076, 7
    %v6078 = vsub.s32 0, %v6077
    %v6079 = vrot.slane %v6074, %v6078
    %v6082 = vsel %vm118, %v6068, 0
    %v6085 = vsel %vm118, %v6069, 0
    %6087 = vmatprep.subr.mxu0 0.0
    %6088 = vmatpush1.msra.mxu0 0.0
    %6089 = vmatprep.subr.mxu0 0.0
    %6090 = vmatpush1.msra.mxu0 0.0
    %6091 = vmatprep.subr.mxu0 0.0
    %6092 = vmatpush1.msra.mxu0 0.0
    %6093 = vmatprep.subr.mxu0 0.0
    %6094 = vmatpush1.msra.mxu0 0.0
    %6095 = vmatprep.subr.mxu0 0.0
    %6096 = vmatpush1.msra.mxu0 0.0
    %6097 = vmatprep.subr.mxu0 0.0
    %6098 = vmatpush1.msra.mxu0 0.0
    %6099 = vmatprep.subr.mxu0 0.0
    %6100 = vmatpush1.msra.mxu0 0.0
    %6101 = vmatprep.subr.mxu0 0.0
    %6102 = vmatpush1.msra.mxu0 0.0
    %6103 = vmatprep.subr.mxu0 0.0
    %6104 = vmatpush1.msra.mxu0 0.0
    %6105 = vmatprep.subr.mxu0 0.0
    %6106 = vmatpush1.msra.mxu0 0.0
    %6107 = vmatprep.subr.mxu0 0.0
    %6108 = vmatpush1.msra.mxu0 0.0
    %6109 = vmatprep.subr.mxu0 0.0
    %6110 = vmatpush1.msra.mxu0 0.0
    %6111 = vmatprep.subr.mxu0 0.0
    %6112 = vmatpush1.msra.mxu0 %v6073
    %6113 = vmatprep.subr.mxu0 0.0
    %6114 = vmatpush1.msra.mxu0 %v6072
    %6115 = vmatprep.subr.mxu0 0.0
    %6116 = vmatpush1.msra.mxu0 %v6071
    %6117 = vmatprep.subr.mxu0 0.0
    %6118 = vmatpush1.msra.mxu0 %v6070
    %6119 = vmatprep.subr.mxu0 0.0
    %6120 = vmatpush2.msra.mxu0 0.0
    %6121 = vmatprep.subr.mxu0 0.0
    %6122 = vmatpush2.msra.mxu0 0.0
    %6123 = vmatprep.subr.mxu0 0.0
    %6124 = vmatpush2.msra.mxu0 0.0
    %6125 = vmatprep.subr.mxu0 0.0
    %6126 = vmatpush2.msra.mxu0 0.0
    %6127 = vmatprep.subr.mxu0 0.0
    %6128 = vmatpush2.msra.mxu0 0.0
    %6129 = vmatprep.subr.mxu0 0.0
    %6130 = vmatpush2.msra.mxu0 0.0
    %6131 = vmatprep.subr.mxu0 0.0
    %6132 = vmatpush2.msra.mxu0 0.0
    %6133 = vmatprep.subr.mxu0 0.0
    %6134 = vmatpush2.msra.mxu0 0.0
    %6135 = vmatprep.subr.mxu0 0.0
    %6136 = vmatpush2.msra.mxu0 0.0
    %6137 = vmatprep.subr.mxu0 0.0
    %6138 = vmatpush2.msra.mxu0 0.0
    %6139 = vmatprep.subr.mxu0 0.0
    %6140 = vmatpush2.msra.mxu0 0.0
    %6141 = vmatprep.subr.mxu0 0.0
    %6142 = vmatpush2.msra.mxu0 0.0
    %6143 = vmatprep.subr.mxu0 0.0
    %6144 = vmatpush2.msra.mxu0 0.0
    %6145 = vmatprep.subr.mxu0 0.0
    %6146 = vmatpush2.msra.mxu0 0.0
    %6147 = vmatprep.subr.mxu0 0.0
    %6148 = vmatpush2.msra.mxu0 0.0
    %6149 = vmatprep.subr.mxu0 0.0
    %6150 = vmatpush2.msra.mxu0 0.0
    %6151 = vmatprep.mubr.f32.mxu0 0.0
    %6152 = vmatmul.mubr.f32.gmra.mxu0 %v6082
    %v6153 = vpop.f32.mrf.mxu0
    %v6154 = vadd.f32 %v6079, %v6153
    %v6155 = vpop.f32.mrf.mxu0
    %6156 = vmatprep.mubr.f32.mxu0 0.0
    %6157 = vmatmul.mubr.f32.gmra.mxu0 %v6085
    %v6158 = vpop.f32.mrf.mxu0
    %v6159 = vadd.f32 %v6079, %v6158
    %v6160 = vpop.f32.mrf.mxu0
    %6161 = vdwg.mxu0
    %v6162 = vmax.f32 %v6154, 0.0
    %v6163 = vmax.f32 %v6159, 0.0
    %v6164 = vld [vmem:[%s14] sm:$0xff]
    %v6165 = vld [vmem:[%s14 + $0x8] sm:$0xff]
    %v6166 = vld [vmem:[%s14 + $0x10] sm:$0xff]
    %v6167 = vld [vmem:[%s14 + $0x18] sm:$0xff]
    %v6168 = vld [vmem:[%s14 + $0x20] sm:$0xff]
    %v6169 = vld [vmem:[%s14 + $0x28] sm:$0xff]
    %v6170 = vld [vmem:[%s14 + $0x30] sm:$0xff]
    %v6171 = vld [vmem:[%s14 + $0x38] sm:$0xff]
    %v6172 = vld [vmem:[%s14 + $0x40] sm:$0xff]
    %v6173 = vld [vmem:[%s14 + $0x48] sm:$0xff]
    %v6174 = vld [vmem:[%s14 + $0x50] sm:$0xff]
    %v6175 = vld [vmem:[%s14 + $0x58] sm:$0xff]
    %v6176 = vld [vmem:[%s14 + $0x60] sm:$0xff]
    %v6177 = vld [vmem:[%s14 + $0x68] sm:$0xff]
    %v6178 = vld [vmem:[%s14 + $0x70] sm:$0xff]
    %v6179 = vld [vmem:[%s14 + $0x78] sm:$0xff]
    %v6180 = vld [vmem:[%s15] sm:$0x1]
    %v6182 = vlaneseq
    %v6183 = vshrl.u32 %v6182, 7
    %v6184 = vsub.s32 0, %v6183
    %v6185 = vrot.slane %v6180, %v6184
    %6187 = vmatprep.subr.mxu0 0.0
    %6188 = vmatpush1.msra.mxu0 %v6179
    %6189 = vmatprep.subr.mxu0 0.0
    %6190 = vmatpush1.msra.mxu0 %v6178
    %6191 = vmatprep.subr.mxu0 0.0
    %6192 = vmatpush1.msra.mxu0 %v6177
    %6193 = vmatprep.subr.mxu0 0.0
    %6194 = vmatpush1.msra.mxu0 %v6176
    %6195 = vmatprep.subr.mxu0 0.0
    %6196 = vmatpush1.msra.mxu0 %v6175
    %6197 = vmatprep.subr.mxu0 0.0
    %6198 = vmatpush1.msra.mxu0 %v6174
    %6199 = vmatprep.subr.mxu0 0.0
    %6200 = vmatpush1.msra.mxu0 %v6173
    %6201 = vmatprep.subr.mxu0 0.0
    %6202 = vmatpush1.msra.mxu0 %v6172
    %6203 = vmatprep.subr.mxu0 0.0
    %6204 = vmatpush1.msra.mxu0 %v6171
    %6205 = vmatprep.subr.mxu0 0.0
    %6206 = vmatpush1.msra.mxu0 %v6170
    %6207 = vmatprep.subr.mxu0 0.0
    %6208 = vmatpush1.msra.mxu0 %v6169
    %6209 = vmatprep.subr.mxu0 0.0
    %6210 = vmatpush1.msra.mxu0 %v6168
    %6211 = vmatprep.subr.mxu0 0.0
    %6212 = vmatpush1.msra.mxu0 %v6167
    %6213 = vmatprep.subr.mxu0 0.0
    %6214 = vmatpush1.msra.mxu0 %v6166
    %6215 = vmatprep.subr.mxu0 0.0
    %6216 = vmatpush1.msra.mxu0 %v6165
    %6217 = vmatprep.subr.mxu0 0.0
    %6218 = vmatpush1.msra.mxu0 %v6164
    %6219 = vmatprep.subr.mxu0 0.0
    %6220 = vmatpush2.msra.mxu0 0.0
    %6221 = vmatprep.subr.mxu0 0.0
    %6222 = vmatpush2.msra.mxu0 0.0
    %6223 = vmatprep.subr.mxu0 0.0
    %6224 = vmatpush2.msra.mxu0 0.0
    %6225 = vmatprep.subr.mxu0 0.0
    %6226 = vmatpush2.msra.mxu0 0.0
    %6227 = vmatprep.subr.mxu0 0.0
    %6228 = vmatpush2.msra.mxu0 0.0
    %6229 = vmatprep.subr.mxu0 0.0
    %6230 = vmatpush2.msra.mxu0 0.0
    %6231 = vmatprep.subr.mxu0 0.0
    %6232 = vmatpush2.msra.mxu0 0.0
    %6233 = vmatprep.subr.mxu0 0.0
    %6234 = vmatpush2.msra.mxu0 0.0
    %6235 = vmatprep.subr.mxu0 0.0
    %6236 = vmatpush2.msra.mxu0 0.0
    %6237 = vmatprep.subr.mxu0 0.0
    %6238 = vmatpush2.msra.mxu0 0.0
    %6239 = vmatprep.subr.mxu0 0.0
    %6240 = vmatpush2.msra.mxu0 0.0
    %6241 = vmatprep.subr.mxu0 0.0
    %6242 = vmatpush2.msra.mxu0 0.0
    %6243 = vmatprep.subr.mxu0 0.0
    %6244 = vmatpush2.msra.mxu0 0.0
    %6245 = vmatprep.subr.mxu0 0.0
    %6246 = vmatpush2.msra.mxu0 0.0
    %6247 = vmatprep.subr.mxu0 0.0
    %6248 = vmatpush2.msra.mxu0 0.0
    %6249 = vmatprep.subr.mxu0 0.0
    %6250 = vmatpush2.msra.mxu0 0.0
    %6251 = vmatprep.mubr.f32.mxu0 0.0
    %6252 = vmatmul.mubr.f32.gmra.mxu0 %v6162
    %v6253 = vpop.f32.mrf.mxu0
    %v6254 = vadd.f32 %v6185, %v6253
    %v6255 = vpop.f32.mrf.mxu0
    %6256 = vmatprep.mubr.f32.mxu0 0.0
    %6257 = vmatmul.mubr.f32.gmra.mxu0 %v6163
    %v6258 = vpop.f32.mrf.mxu0
    %v6259 = vadd.f32 %v6185, %v6258
    %v6260 = vpop.f32.mrf.mxu0
    %6261 = vdwg.mxu0
    %v6262 = vadd.f32 %v6254, %v6068
    %v6263 = vadd.f32 %v6259, %v6069
    %v6264 = vsel %vm118, %v6262, 0.0
    %6265 = vadd.xlane.f32.xlu0 %v6264
    %v6266 = vpop.xlane.xlu0 %6265
    %v6267 = vsel %vm118, %v6263, 0.0
    %6268 = vadd.xlane.f32.xlu0 %v6267
    %v6269 = vpop.xlane.xlu0 %6268
    %v6270 = vmul.f32 %v6266, %v3015
    %v6271 = vmul.f32 %v6269, %v3015
    %v6272 = vsub.f32 %v6262, %v6270
    %v6273 = vsub.f32 %v6263, %v6271
    %v6274 = vmul.f32 %v6272, %v6272
    %v6275 = vmul.f32 %v6273, %v6273
    %v6276 = vsel %vm118, %v6274, 0.0
    %6277 = vadd.xlane.f32.xlu0 %v6276
    %v6278 = vpop.xlane.xlu0 %6277
    %v6279 = vsel %vm118, %v6275, 0.0
    %6280 = vadd.xlane.f32.xlu0 %v6279
    %v6281 = vpop.xlane.xlu0 %6280
    %v6282 = vmul.f32 %v6278, %v3015
    %v6283 = vmul.f32 %v6281, %v3015
    %v6284 = vadd.f32 %v6282, 1e-05
    %v6285 = vadd.f32 %v6283, 1e-05
    %v6286 = vrsqrt.pop %v6284
    %v6287 = vrsqrt.pop %v6285
    %v6288 = vmul.f32 %v6272, %v6286
    %v6289 = vmul.f32 %v6273, %v6287
    %v6290 = vlaneseq
    %v6291 = vshrl.u32 %v6290, 7
    %v6292 = vsub.s32 2, %v6291
    %v6293 = vrot.slane %v105, %v6292
    %v6294 = vmul.f32 %v6288, %v6293
    %v6295 = vmul.f32 %v6289, %v6293
    %v6296 = vlaneseq
    %v6297 = vshrl.u32 %v6296, 7
    %v6298 = vsub.s32 2, %v6297
    %v6299 = vrot.slane %v106, %v6298
    %v6300 = vadd.f32 %v6294, %v6299
    %v6301 = vadd.f32 %v6295, %v6299
    %6302 = vst.msk [vmem:[#allocation8] sm:$0xff] %vm118, %v6300
    %6303 = vst.msk [vmem:[#allocation8 + $0x8] sm:$0xff] %vm118, %v6301
    // Predicated region
    $region86: #{tpu_custom_call.1} parent=1 // pred_check
      _
    $region87: #{tpu_custom_call.1} parent=1 // pred_check_branch
      %6305 = sbr.rel (0) target = $region89
    $region88: #{tpu_custom_call.1} parent=1 // pred_region
      %s6307 = ssub.s32 256, 256
      %6308 = vsyncadd [#allocation4], %s6307
      %s6309 = sshll.u32 [#allocation8], 4
      %s6310 = int_to_ptr.vmem [resolvable:$true] %s6309
      %6315 = dma.vmem_to_hbm [thread:$0]  %s6310, 256, %s18, [#allocation4], 128, 128, 8
    $region89: #{tpu_custom_call.1} parent=1 // pred_fallthru
      _
    // Predicated region
    $region90: #{tpu_custom_call.1} parent=1 // pred_check
      _
    $region91: #{tpu_custom_call.1} parent=1 // pred_check_branch
      %6317 = sbr.rel (0) target = $region93
    $region92: #{tpu_custom_call.1} parent=1 // pred_region
      %6318 = dma.done [#allocation4], 256
    $region93: #{tpu_custom_call.1} parent=1 // pred_fallthru
      _
    %6319 = vsyncpa [#allocation3], 1
    %6320 = vsyncpa [#allocation6], 1
    %6321 = vsyncpa [#allocation4], 1

</llo_original>
